<compile_context>
chip_gen: v6e
topology: v6e:2x2x1
jax: 0.10.0
libtpu: 0.0.40
codegen_flags: <defaults>
</compile_context>

<pallas_src>
import functools

import jax
import jax.numpy as jnp
from jax import lax
from jax.experimental import pallas as pl
from jax.experimental.pallas import tpu as pltpu

_EPS = 1e-5


def _round_up(x, m):
    return ((x + m - 1) // m) * m


# ----------------------------------------------------------------------------
# In-kernel helpers (all work on 2-D (channels, P_pad) tiles, spatial on lanes)
# ----------------------------------------------------------------------------
def _dwconv7x7_flat(xf, dw_ref, w_img, p_pad):
    """Depthwise 7x7 conv on a zero-halo-padded, row-major-flattened image.

    xf     : (C, P_pad) value; element p = r*(w_img+6)+c is padded pixel (r,c);
             the 3-wide halo ring and the lane-padding tail are exactly zero.
    dw_ref : (49, C, 1) ref of per-channel tap weights, tap t = dy*7 + dx.
    Returns (C, P_pad): exact at interior positions, garbage in the halo/tail
    (callers mask it before it is reduced or re-convolved).
    """
    stride = w_img + 6
    acc = None
    for dy in range(7):
        for dx in range(7):
            off = (dy - 3) * stride + (dx - 3)
            if off == 0:
                shifted = xf
            else:
                # position p reads xf[p + off]; interior positions never wrap
                # because the halo is exactly 3 pixels wide.
                shifted = pltpu.roll(xf, (-off) % p_pad, 1)
            wk = dw_ref[dy * 7 + dx]                      # (C, 1) column
            term = shifted * wk
            acc = term if acc is None else acc + term
    return acc


def _masked_row_sums(y, mask_row):
    """(C, P) x (1, P) -> (C, 1) interior sums, on the MXU (q@k^T pattern)."""
    return lax.dot_general(y, mask_row, (((1,), (1,)), ((), ())),
                           preferred_element_type=jnp.float32)


def _fold_bn_into_pointwise(w, b, gamma, beta, mean, var):
    """Fold training-mode BN into the following 1x1 conv.

      W @ (y*s + t) + b == (W diag(s)) @ y + (W @ t + b),
      s = gamma * rsqrt(var+eps), t = beta - mean*s.

    w: (D, C); b: (D, 1); gamma/beta/mean/var: (C, 1). Only O(D*C) work.
    """
    c = w.shape[1]
    inv_std = lax.rsqrt(var + _EPS)                       # (C, 1)
    s = gamma * inv_std                                   # (C, 1)
    t = beta - mean * s                                   # (C, 1)
    eye = jnp.equal(lax.broadcasted_iota(jnp.int32, (c, c), 0),
                    lax.broadcasted_iota(jnp.int32, (c, c), 1)
                    ).astype(jnp.float32)
    w_fold = jnp.dot(w, eye * s, preferred_element_type=jnp.float32)
    b_fold = jnp.dot(w, t, preferred_element_type=jnp.float32) + b
    return w_fold, b_fold


# ----------------------------------------------------------------------------
# Fused kernel
# ----------------------------------------------------------------------------
def _decoder_block_kernel(mask_ref, x_ref,
                          dw1_ref, g1_ref, b1_ref, w1_ref, c1_ref, w2_ref, c2_ref,
                          dw2_ref, g2_ref, b2_ref, w3_ref, c3_ref, w4_ref, c4_ref,
                          o_ref, *, n, h_img, w_img, p_pad):
    mask = mask_ref[...]                   # (1, P_pad): 1.0 at interior pixels
    inv_m = 1.0 / float(n * h_img * w_img)

    # ------------------ stage 1: dwconv -> BN stats -------------------------
    y1 = [_dwconv7x7_flat(x_ref[i], dw1_ref, w_img, p_pad) for i in range(n)]
    s_acc = q_acc = None
    for y in y1:
        s = _masked_row_sums(y, mask)
        q = _masked_row_sums(y * y, mask)
        s_acc = s if s_acc is None else s_acc + s
        q_acc = q if q_acc is None else q_acc + q
    mean1 = s_acc * inv_m
    var1 = jnp.maximum(q_acc * inv_m - mean1 * mean1, 0.0)
    w1f, c1f = _fold_bn_into_pointwise(w1_ref[...], c1_ref[...],
                                       g1_ref[...], b1_ref[...], mean1, var1)
    w2 = w2_ref[...]
    c2 = c2_ref[...]

    # ------------------ stage 1 pointwise + stage 2 dwconv ------------------
    y2 = []
    for y in y1:
        hdn = jnp.maximum(
            jnp.dot(w1f, y, preferred_element_type=jnp.float32) + c1f, 0.0)
        z = jnp.dot(w2, hdn, preferred_element_type=jnp.float32) + c2
        z = z * mask                      # re-zero the halo ring for stage 2
        y2.append(_dwconv7x7_flat(z, dw2_ref, w_img, p_pad))

    s_acc = q_acc = None
    for y in y2:
        s = _masked_row_sums(y, mask)
        q = _masked_row_sums(y * y, mask)
        s_acc = s if s_acc is None else s_acc + s
        q_acc = q if q_acc is None else q_acc + q
    mean2 = s_acc * inv_m
    var2 = jnp.maximum(q_acc * inv_m - mean2 * mean2, 0.0)
    w3f, c3f = _fold_bn_into_pointwise(w3_ref[...], c3_ref[...],
                                       g2_ref[...], b2_ref[...], mean2, var2)
    w4 = w4_ref[...]
    c4 = c4_ref[...]

    # ------------------ stage 2 pointwise + lane-dense store ----------------
    for i, y in enumerate(y2):
        hdn = jnp.maximum(
            jnp.dot(w3f, y, preferred_element_type=jnp.float32) + c3f, 0.0)
        o_ref[i] = (jnp.dot(w4, hdn, preferred_element_type=jnp.float32) + c4
                    ).astype(o_ref.dtype)


# ----------------------------------------------------------------------------
# Wrapper
# ----------------------------------------------------------------------------
def _full_spec(shape):
    nd = len(shape)
    return pl.BlockSpec(shape, lambda i, _nd=nd: (0,) * _nd)


def _prepare_params(p):
    """PyTorch-layout parameters -> kernel layout (tiny host-side reshapes)."""
    def dw(k):      # (C,1,7,7) -> (49, C, 1), tap t = dy*7 + dx
        w = jnp.transpose(p[k][:, 0], (1, 2, 0))          # (7, 7, C)
        return jnp.reshape(w, (49, -1))[..., None]

    def pw(k):      # (Cout, Cin, 1, 1) -> (Cout, Cin)  (left-multiply layout)
        return p[k][:, :, 0, 0]

    def col(k):
        return jnp.reshape(p[k], (-1, 1))

    # dw1_b / dw2_b are intentionally omitted: the depthwise bias is exactly
    # cancelled by the batch-mean subtraction of the training-mode BN.
    return (
        dw("dw1_w"), col("bn1_g"), col("bn1_b"),
        pw("pw1_w"), col("pw1_b"), pw("pw2_w"), col("pw2_b"),
        dw("dw2_w"), col("bn2_g"), col("bn2_b"),
        pw("pw3_w"), col("pw3_b"), pw("pw4_w"), col("pw4_b"),
    )


def _vmem_limit_bytes():
    # ~3/4 of physical VMEM: ~96 MiB on v5e/v6e (128 MiB), ~48 MiB on v7x.
    cap = 128 * 1024 * 1024
    try:
        cap = int(getattr(pltpu.get_tpu_info(), "vmem_capacity_bytes", cap))
    except Exception:
        pass
    return int(cap * 3 // 4)


def decoder_block_forward(x_nchw, params):
    n, c_in, h, w = x_nchw.shape
    c_out = params["pw2_w"].shape[0]
    hp, wp = h + 6, w + 6
    p_valid = hp * wp
    p_pad = _round_up(p_valid, 128)

    # Zero halo + row-major flatten + lane padding, all outside the kernel.
    x = x_nchw.astype(jnp.float32)
    xp = jnp.pad(x, ((0, 0), (0, 0), (3, 3), (3, 3)))
    xf = jnp.pad(jnp.reshape(xp, (n, c_in, p_valid)),
                 ((0, 0), (0, 0), (0, p_pad - p_valid)))

    interior = jnp.pad(jnp.ones((h, w), jnp.float32), ((3, 3), (3, 3)))
    mask_row = jnp.pad(jnp.reshape(interior, (1, p_valid)),
                       ((0, 0), (0, p_pad - p_valid)))

    kparams = _prepare_params(params)
    inputs = (mask_row, xf) + kparams

    m = n * h * w
    e_in, e_out = 4 * c_in, 4 * c_out
    flops = 2 * m * (49 * c_in + c_in * e_in + e_in * c_out
                     + 49 * c_out + c_out * e_out + e_out * c_out)
    bytes_accessed = 4 * (xf.size + n * c_out * p_pad
                          + sum(int(a.size) for a in kparams))
    cost = pl.CostEstimate(flops=int(flops),
                           transcendentals=2 * (c_in + c_out),
                           bytes_accessed=int(bytes_accessed))

    kernel = functools.partial(_decoder_block_kernel,
                               n=n, h_img=h, w_img=w, p_pad=p_pad)

    out_flat = pl.pallas_call(
        kernel,
        out_shape=jax.ShapeDtypeStruct((n, c_out, p_pad), jnp.float32),
        grid=(1,),
        in_specs=[_full_spec(a.shape) for a in inputs],
        out_specs=_full_spec((n, c_out, p_pad)),
        compiler_params=pltpu.CompilerParams(
            dimension_semantics=("arbitrary",),
            vmem_limit_bytes=_vmem_limit_bytes()),
        cost_estimate=cost,
    )(*inputs)

    # Lane-dense slab -> NCHW (strip halo + lane padding) in the wrapper.
    out = jnp.reshape(out_flat[:, :, :p_valid], (n, c_out, hp, wp))
    return out[:, :, 3:3 + h, 3:3 + w]


# ----------------------------------------------------------------------------
# Parameter init (PyTorch nn.Conv2d / nn.BatchNorm2d layouts & default init)
# ----------------------------------------------------------------------------
def init_decoder_block_params(key, in_channels, out_channels):
    exp = 4
    ks = jax.random.split(key, 12)

    def u(k, shape, fan_in):
        bound = 1.0 / (fan_in ** 0.5)
        return jax.random.uniform(k, shape, jnp.float32, -bound, bound)

    p = {}
    p["dw1_w"] = u(ks[0], (in_channels, 1, 7, 7), 49)
    p["dw1_b"] = u(ks[1], (in_channels,), 49)
    p["bn1_g"] = jnp.ones((in_channels,), jnp.float32)
    p["bn1_b"] = jnp.zeros((in_channels,), jnp.float32)
    p["pw1_w"] = u(ks[2], (exp * in_channels, in_channels, 1, 1), in_channels)
    p["pw1_b"] = u(ks[3], (exp * in_channels,), in_channels)
    p["pw2_w"] = u(ks[4], (out_channels, exp * in_channels, 1, 1), exp * in_channels)
    p["pw2_b"] = u(ks[5], (out_channels,), exp * in_channels)
    p["dw2_w"] = u(ks[6], (out_channels, 1, 7, 7), 49)
    p["dw2_b"] = u(ks[7], (out_channels,), 49)
    p["bn2_g"] = jnp.ones((out_channels,), jnp.float32)
    p["bn2_b"] = jnp.zeros((out_channels,), jnp.float32)
    p["pw3_w"] = u(ks[8], (exp * out_channels, out_channels, 1, 1), out_channels)
    p["pw3_b"] = u(ks[9], (exp * out_channels,), out_channels)
    p["pw4_w"] = u(ks[10], (out_channels, exp * out_channels, 1, 1), exp * out_channels)
    p["pw4_b"] = u(ks[11], (out_channels,), exp * out_channels)
    return p


# ----------------------------------------------------------------------------
# Pure-JAX reference (PyTorch-faithful math) for a correctness cross-check
# ----------------------------------------------------------------------------
def decoder_block_reference(x_nchw, p):
    x = jnp.transpose(x_nchw, (0, 2, 3, 1)).astype(jnp.float32)

    def dw(xx, w_pt, b):
        n, h, ww, c = xx.shape
        xp = jnp.pad(xx, ((0, 0), (3, 3), (3, 3), (0, 0)))
        wk = jnp.transpose(w_pt[:, 0], (1, 2, 0))
        acc = jnp.zeros_like(xx)
        for dy in range(7):
            for dx in range(7):
                acc = acc + xp[:, dy:dy + h, dx:dx + ww, :] * wk[dy, dx, :]
        return acc + b

    def bn(xx, g, b):
        mean = jnp.mean(xx, axis=(0, 1, 2), keepdims=True)
        var = jnp.mean((xx - mean) ** 2, axis=(0, 1, 2), keepdims=True)
        return (xx - mean) * lax.rsqrt(var + _EPS) * g + b

    def pw(xx, w_pt, b, relu=False):
        wk = jnp.transpose(w_pt[:, :, 0, 0], (1, 0))
        y = jnp.einsum("nhwc,cd->nhwd", xx, wk,
                       precision=lax.Precision.HIGHEST) + b
        return jnp.maximum(y, 0.0) if relu else y

    y = dw(x, p["dw1_w"], p["dw1_b"])
    y = bn(y, p["bn1_g"], p["bn1_b"])
    y = pw(y, p["pw1_w"], p["pw1_b"], relu=True)
    y = pw(y, p["pw2_w"], p["pw2_b"])
    y = dw(y, p["dw2_w"], p["dw2_b"])
    y = bn(y, p["bn2_g"], p["bn2_b"])
    y = pw(y, p["pw3_w"], p["pw3_b"], relu=True)
    y = pw(y, p["pw4_w"], p["pw4_b"])
    return jnp.transpose(y, (0, 3, 1, 2))


if __name__ == "__main__":
    N, IN_CH, OUT_CH, H, W = 2, 8, 4, 16, 16

    key = jax.random.PRNGKey(0)
    k_x, k_p = jax.random.split(key)
    x = jax.random.normal(k_x, (N, IN_CH, H, W), jnp.float32)
    params = init_decoder_block_params(k_p, IN_CH, OUT_CH)

    fwd = jax.jit(decoder_block_forward)
    out = fwd(x, params)
    jax.block_until_ready(out)

    assert out.shape == (N, OUT_CH, H, W), out.shape
    assert bool(jnp.all(jnp.isfinite(out)))

    ref = decoder_block_reference(x, params)
    err = float(jnp.max(jnp.abs(out - ref)))
    # Tight-ish tolerance: kernel differs from the reference only by rounding
    # (MXU reductions, E[x^2]-mean^2, cancelled dw bias) -> expected ~1e-6..1e-5.
    assert err < 2e-4, f"max abs err vs reference: {err}"

    print("KERNEL_OK")
</pallas_src>

<mosaic_0001>
module attributes {stable_mosaic.version = 11 : i64} {
  func.func @_decoder_block_kernel(%arg0: i32, %arg1: memref<1x512xf32, #tpu.memory_space<vmem>>, %arg2: memref<2x8x512xf32, #tpu.memory_space<vmem>>, %arg3: memref<49x8x1xf32, #tpu.memory_space<vmem>>, %arg4: memref<8x1xf32, #tpu.memory_space<vmem>>, %arg5: memref<8x1xf32, #tpu.memory_space<vmem>>, %arg6: memref<32x8xf32, #tpu.memory_space<vmem>>, %arg7: memref<32x1xf32, #tpu.memory_space<vmem>>, %arg8: memref<4x32xf32, #tpu.memory_space<vmem>>, %arg9: memref<4x1xf32, #tpu.memory_space<vmem>>, %arg10: memref<49x4x1xf32, #tpu.memory_space<vmem>>, %arg11: memref<4x1xf32, #tpu.memory_space<vmem>>, %arg12: memref<4x1xf32, #tpu.memory_space<vmem>>, %arg13: memref<16x4xf32, #tpu.memory_space<vmem>>, %arg14: memref<16x1xf32, #tpu.memory_space<vmem>>, %arg15: memref<4x16xf32, #tpu.memory_space<vmem>>, %arg16: memref<4x1xf32, #tpu.memory_space<vmem>>, %arg17: memref<2x4x512xf32, #tpu.memory_space<vmem>>) attributes {dimension_semantics = [#tpu.dimension_semantics<arbitrary>], iteration_bounds = array<i64: 1>, scalar_prefetch = 0 : i64, scratch_operands = 0 : i64, tpu.core_type = #tpu.core_type<tc>, window_params = [{pipeline_mode = #tpu.pipeline_mode<synchronous>, transform_indices = @transform_0, window_bounds = array<i64: 1, 512>}, {pipeline_mode = #tpu.pipeline_mode<synchronous>, transform_indices = @transform_1, window_bounds = array<i64: 2, 8, 512>}, {pipeline_mode = #tpu.pipeline_mode<synchronous>, transform_indices = @transform_2, window_bounds = array<i64: 49, 8, 1>}, {pipeline_mode = #tpu.pipeline_mode<synchronous>, transform_indices = @transform_3, window_bounds = array<i64: 8, 1>}, {pipeline_mode = #tpu.pipeline_mode<synchronous>, transform_indices = @transform_4, window_bounds = array<i64: 8, 1>}, {pipeline_mode = #tpu.pipeline_mode<synchronous>, transform_indices = @transform_5, window_bounds = array<i64: 32, 8>}, {pipeline_mode = #tpu.pipeline_mode<synchronous>, transform_indices = @transform_6, window_bounds = array<i64: 32, 1>}, {pipeline_mode = #tpu.pipeline_mode<synchronous>, transform_indices = @transform_7, window_bounds = array<i64: 4, 32>}, {pipeline_mode = #tpu.pipeline_mode<synchronous>, transform_indices = @transform_8, window_bounds = array<i64: 4, 1>}, {pipeline_mode = #tpu.pipeline_mode<synchronous>, transform_indices = @transform_9, window_bounds = array<i64: 49, 4, 1>}, {pipeline_mode = #tpu.pipeline_mode<synchronous>, transform_indices = @transform_10, window_bounds = array<i64: 4, 1>}, {pipeline_mode = #tpu.pipeline_mode<synchronous>, transform_indices = @transform_11, window_bounds = array<i64: 4, 1>}, {pipeline_mode = #tpu.pipeline_mode<synchronous>, transform_indices = @transform_12, window_bounds = array<i64: 16, 4>}, {pipeline_mode = #tpu.pipeline_mode<synchronous>, transform_indices = @transform_13, window_bounds = array<i64: 16, 1>}, {pipeline_mode = #tpu.pipeline_mode<synchronous>, transform_indices = @transform_14, window_bounds = array<i64: 4, 16>}, {pipeline_mode = #tpu.pipeline_mode<synchronous>, transform_indices = @transform_15, window_bounds = array<i64: 4, 1>}, {pipeline_mode = #tpu.pipeline_mode<synchronous>, transform_indices = @transform_16, window_bounds = array<i64: 2, 4, 512>}]} {
    %c0 = arith.constant 0 : index
    %c0_0 = arith.constant 0 : index
    %0 = vector.load %arg1[%c0, %c0_0] : memref<1x512xf32, #tpu.memory_space<vmem>>, vector<1x512xf32>
    %c0_1 = arith.constant 0 : index
    %c0_2 = arith.constant 0 : index
    %c0_3 = arith.constant 0 : index
    %1 = vector.load %arg2[%c0_1, %c0_2, %c0_3] : memref<2x8x512xf32, #tpu.memory_space<vmem>>, vector<1x8x512xf32>
    %2 = vector.shape_cast %1 : vector<1x8x512xf32> to vector<8x512xf32>
    %c69_i32 = arith.constant 69 : i32
    %3 = tpu.dynamic_rotate %2 by %c69_i32 dim 1 : vector<8x512xf32>, i32 -> vector<8x512xf32>
    %c0_4 = arith.constant 0 : index
    %c0_5 = arith.constant 0 : index
    %c0_6 = arith.constant 0 : index
    %4 = vector.load %arg3[%c0_4, %c0_5, %c0_6] : memref<49x8x1xf32, #tpu.memory_space<vmem>>, vector<1x8x1xf32>
    %5 = vector.shape_cast %4 : vector<1x8x1xf32> to vector<8x1xf32>
    %6 = vector.broadcast %5 : vector<8x1xf32> to vector<8x512xf32>
    %7 = arith.mulf %3, %6 : vector<8x512xf32>
    %c68_i32 = arith.constant 68 : i32
    %8 = tpu.dynamic_rotate %2 by %c68_i32 dim 1 : vector<8x512xf32>, i32 -> vector<8x512xf32>
    %c1 = arith.constant 1 : index
    %c0_7 = arith.constant 0 : index
    %c0_8 = arith.constant 0 : index
    %9 = vector.load %arg3[%c1, %c0_7, %c0_8] : memref<49x8x1xf32, #tpu.memory_space<vmem>>, vector<1x8x1xf32>
    %10 = vector.shape_cast %9 : vector<1x8x1xf32> to vector<8x1xf32>
    %11 = vector.broadcast %10 : vector<8x1xf32> to vector<8x512xf32>
    %12 = arith.mulf %8, %11 : vector<8x512xf32>
    %13 = arith.addf %7, %12 : vector<8x512xf32>
    %c67_i32 = arith.constant 67 : i32
    %14 = tpu.dynamic_rotate %2 by %c67_i32 dim 1 : vector<8x512xf32>, i32 -> vector<8x512xf32>
    %c2 = arith.constant 2 : index
    %c0_9 = arith.constant 0 : index
    %c0_10 = arith.constant 0 : index
    %15 = vector.load %arg3[%c2, %c0_9, %c0_10] : memref<49x8x1xf32, #tpu.memory_space<vmem>>, vector<1x8x1xf32>
    %16 = vector.shape_cast %15 : vector<1x8x1xf32> to vector<8x1xf32>
    %17 = vector.broadcast %16 : vector<8x1xf32> to vector<8x512xf32>
    %18 = arith.mulf %14, %17 : vector<8x512xf32>
    %19 = arith.addf %13, %18 : vector<8x512xf32>
    %c66_i32 = arith.constant 66 : i32
    %20 = tpu.dynamic_rotate %2 by %c66_i32 dim 1 : vector<8x512xf32>, i32 -> vector<8x512xf32>
    %c3 = arith.constant 3 : index
    %c0_11 = arith.constant 0 : index
    %c0_12 = arith.constant 0 : index
    %21 = vector.load %arg3[%c3, %c0_11, %c0_12] : memref<49x8x1xf32, #tpu.memory_space<vmem>>, vector<1x8x1xf32>
    %22 = vector.shape_cast %21 : vector<1x8x1xf32> to vector<8x1xf32>
    %23 = vector.broadcast %22 : vector<8x1xf32> to vector<8x512xf32>
    %24 = arith.mulf %20, %23 : vector<8x512xf32>
    %25 = arith.addf %19, %24 : vector<8x512xf32>
    %c65_i32 = arith.constant 65 : i32
    %26 = tpu.dynamic_rotate %2 by %c65_i32 dim 1 : vector<8x512xf32>, i32 -> vector<8x512xf32>
    %c4 = arith.constant 4 : index
    %c0_13 = arith.constant 0 : index
    %c0_14 = arith.constant 0 : index
    %27 = vector.load %arg3[%c4, %c0_13, %c0_14] : memref<49x8x1xf32, #tpu.memory_space<vmem>>, vector<1x8x1xf32>
    %28 = vector.shape_cast %27 : vector<1x8x1xf32> to vector<8x1xf32>
    %29 = vector.broadcast %28 : vector<8x1xf32> to vector<8x512xf32>
    %30 = arith.mulf %26, %29 : vector<8x512xf32>
    %31 = arith.addf %25, %30 : vector<8x512xf32>
    %c64_i32 = arith.constant 64 : i32
    %32 = tpu.dynamic_rotate %2 by %c64_i32 dim 1 : vector<8x512xf32>, i32 -> vector<8x512xf32>
    %c5 = arith.constant 5 : index
    %c0_15 = arith.constant 0 : index
    %c0_16 = arith.constant 0 : index
    %33 = vector.load %arg3[%c5, %c0_15, %c0_16] : memref<49x8x1xf32, #tpu.memory_space<vmem>>, vector<1x8x1xf32>
    %34 = vector.shape_cast %33 : vector<1x8x1xf32> to vector<8x1xf32>
    %35 = vector.broadcast %34 : vector<8x1xf32> to vector<8x512xf32>
    %36 = arith.mulf %32, %35 : vector<8x512xf32>
    %37 = arith.addf %31, %36 : vector<8x512xf32>
    %c63_i32 = arith.constant 63 : i32
    %38 = tpu.dynamic_rotate %2 by %c63_i32 dim 1 : vector<8x512xf32>, i32 -> vector<8x512xf32>
    %c6 = arith.constant 6 : index
    %c0_17 = arith.constant 0 : index
    %c0_18 = arith.constant 0 : index
    %39 = vector.load %arg3[%c6, %c0_17, %c0_18] : memref<49x8x1xf32, #tpu.memory_space<vmem>>, vector<1x8x1xf32>
    %40 = vector.shape_cast %39 : vector<1x8x1xf32> to vector<8x1xf32>
    %41 = vector.broadcast %40 : vector<8x1xf32> to vector<8x512xf32>
    %42 = arith.mulf %38, %41 : vector<8x512xf32>
    %43 = arith.addf %37, %42 : vector<8x512xf32>
    %c47_i32 = arith.constant 47 : i32
    %44 = tpu.dynamic_rotate %2 by %c47_i32 dim 1 : vector<8x512xf32>, i32 -> vector<8x512xf32>
    %c7 = arith.constant 7 : index
    %c0_19 = arith.constant 0 : index
    %c0_20 = arith.constant 0 : index
    %45 = vector.load %arg3[%c7, %c0_19, %c0_20] : memref<49x8x1xf32, #tpu.memory_space<vmem>>, vector<1x8x1xf32>
    %46 = vector.shape_cast %45 : vector<1x8x1xf32> to vector<8x1xf32>
    %47 = vector.broadcast %46 : vector<8x1xf32> to vector<8x512xf32>
    %48 = arith.mulf %44, %47 : vector<8x512xf32>
    %49 = arith.addf %43, %48 : vector<8x512xf32>
    %c46_i32 = arith.constant 46 : i32
    %50 = tpu.dynamic_rotate %2 by %c46_i32 dim 1 : vector<8x512xf32>, i32 -> vector<8x512xf32>
    %c8 = arith.constant 8 : index
    %c0_21 = arith.constant 0 : index
    %c0_22 = arith.constant 0 : index
    %51 = vector.load %arg3[%c8, %c0_21, %c0_22] : memref<49x8x1xf32, #tpu.memory_space<vmem>>, vector<1x8x1xf32>
    %52 = vector.shape_cast %51 : vector<1x8x1xf32> to vector<8x1xf32>
    %53 = vector.broadcast %52 : vector<8x1xf32> to vector<8x512xf32>
    %54 = arith.mulf %50, %53 : vector<8x512xf32>
    %55 = arith.addf %49, %54 : vector<8x512xf32>
    %c45_i32 = arith.constant 45 : i32
    %56 = tpu.dynamic_rotate %2 by %c45_i32 dim 1 : vector<8x512xf32>, i32 -> vector<8x512xf32>
    %c9 = arith.constant 9 : index
    %c0_23 = arith.constant 0 : index
    %c0_24 = arith.constant 0 : index
    %57 = vector.load %arg3[%c9, %c0_23, %c0_24] : memref<49x8x1xf32, #tpu.memory_space<vmem>>, vector<1x8x1xf32>
    %58 = vector.shape_cast %57 : vector<1x8x1xf32> to vector<8x1xf32>
    %59 = vector.broadcast %58 : vector<8x1xf32> to vector<8x512xf32>
    %60 = arith.mulf %56, %59 : vector<8x512xf32>
    %61 = arith.addf %55, %60 : vector<8x512xf32>
    %c44_i32 = arith.constant 44 : i32
    %62 = tpu.dynamic_rotate %2 by %c44_i32 dim 1 : vector<8x512xf32>, i32 -> vector<8x512xf32>
    %c10 = arith.constant 10 : index
    %c0_25 = arith.constant 0 : index
    %c0_26 = arith.constant 0 : index
    %63 = vector.load %arg3[%c10, %c0_25, %c0_26] : memref<49x8x1xf32, #tpu.memory_space<vmem>>, vector<1x8x1xf32>
    %64 = vector.shape_cast %63 : vector<1x8x1xf32> to vector<8x1xf32>
    %65 = vector.broadcast %64 : vector<8x1xf32> to vector<8x512xf32>
    %66 = arith.mulf %62, %65 : vector<8x512xf32>
    %67 = arith.addf %61, %66 : vector<8x512xf32>
    %c43_i32 = arith.constant 43 : i32
    %68 = tpu.dynamic_rotate %2 by %c43_i32 dim 1 : vector<8x512xf32>, i32 -> vector<8x512xf32>
    %c11 = arith.constant 11 : index
    %c0_27 = arith.constant 0 : index
    %c0_28 = arith.constant 0 : index
    %69 = vector.load %arg3[%c11, %c0_27, %c0_28] : memref<49x8x1xf32, #tpu.memory_space<vmem>>, vector<1x8x1xf32>
    %70 = vector.shape_cast %69 : vector<1x8x1xf32> to vector<8x1xf32>
    %71 = vector.broadcast %70 : vector<8x1xf32> to vector<8x512xf32>
    %72 = arith.mulf %68, %71 : vector<8x512xf32>
    %73 = arith.addf %67, %72 : vector<8x512xf32>
    %c42_i32 = arith.constant 42 : i32
    %74 = tpu.dynamic_rotate %2 by %c42_i32 dim 1 : vector<8x512xf32>, i32 -> vector<8x512xf32>
    %c12 = arith.constant 12 : index
    %c0_29 = arith.constant 0 : index
    %c0_30 = arith.constant 0 : index
    %75 = vector.load %arg3[%c12, %c0_29, %c0_30] : memref<49x8x1xf32, #tpu.memory_space<vmem>>, vector<1x8x1xf32>
    %76 = vector.shape_cast %75 : vector<1x8x1xf32> to vector<8x1xf32>
    %77 = vector.broadcast %76 : vector<8x1xf32> to vector<8x512xf32>
    %78 = arith.mulf %74, %77 : vector<8x512xf32>
    %79 = arith.addf %73, %78 : vector<8x512xf32>
    %c41_i32 = arith.constant 41 : i32
    %80 = tpu.dynamic_rotate %2 by %c41_i32 dim 1 : vector<8x512xf32>, i32 -> vector<8x512xf32>
    %c13 = arith.constant 13 : index
    %c0_31 = arith.constant 0 : index
    %c0_32 = arith.constant 0 : index
    %81 = vector.load %arg3[%c13, %c0_31, %c0_32] : memref<49x8x1xf32, #tpu.memory_space<vmem>>, vector<1x8x1xf32>
    %82 = vector.shape_cast %81 : vector<1x8x1xf32> to vector<8x1xf32>
    %83 = vector.broadcast %82 : vector<8x1xf32> to vector<8x512xf32>
    %84 = arith.mulf %80, %83 : vector<8x512xf32>
    %85 = arith.addf %79, %84 : vector<8x512xf32>
    %c25_i32 = arith.constant 25 : i32
    %86 = tpu.dynamic_rotate %2 by %c25_i32 dim 1 : vector<8x512xf32>, i32 -> vector<8x512xf32>
    %c14 = arith.constant 14 : index
    %c0_33 = arith.constant 0 : index
    %c0_34 = arith.constant 0 : index
    %87 = vector.load %arg3[%c14, %c0_33, %c0_34] : memref<49x8x1xf32, #tpu.memory_space<vmem>>, vector<1x8x1xf32>
    %88 = vector.shape_cast %87 : vector<1x8x1xf32> to vector<8x1xf32>
    %89 = vector.broadcast %88 : vector<8x1xf32> to vector<8x512xf32>
    %90 = arith.mulf %86, %89 : vector<8x512xf32>
    %91 = arith.addf %85, %90 : vector<8x512xf32>
    %c24_i32 = arith.constant 24 : i32
    %92 = tpu.dynamic_rotate %2 by %c24_i32 dim 1 : vector<8x512xf32>, i32 -> vector<8x512xf32>
    %c15 = arith.constant 15 : index
    %c0_35 = arith.constant 0 : index
    %c0_36 = arith.constant 0 : index
    %93 = vector.load %arg3[%c15, %c0_35, %c0_36] : memref<49x8x1xf32, #tpu.memory_space<vmem>>, vector<1x8x1xf32>
    %94 = vector.shape_cast %93 : vector<1x8x1xf32> to vector<8x1xf32>
    %95 = vector.broadcast %94 : vector<8x1xf32> to vector<8x512xf32>
    %96 = arith.mulf %92, %95 : vector<8x512xf32>
    %97 = arith.addf %91, %96 : vector<8x512xf32>
    %c23_i32 = arith.constant 23 : i32
    %98 = tpu.dynamic_rotate %2 by %c23_i32 dim 1 : vector<8x512xf32>, i32 -> vector<8x512xf32>
    %c16 = arith.constant 16 : index
    %c0_37 = arith.constant 0 : index
    %c0_38 = arith.constant 0 : index
    %99 = vector.load %arg3[%c16, %c0_37, %c0_38] : memref<49x8x1xf32, #tpu.memory_space<vmem>>, vector<1x8x1xf32>
    %100 = vector.shape_cast %99 : vector<1x8x1xf32> to vector<8x1xf32>
    %101 = vector.broadcast %100 : vector<8x1xf32> to vector<8x512xf32>
    %102 = arith.mulf %98, %101 : vector<8x512xf32>
    %103 = arith.addf %97, %102 : vector<8x512xf32>
    %c22_i32 = arith.constant 22 : i32
    %104 = tpu.dynamic_rotate %2 by %c22_i32 dim 1 : vector<8x512xf32>, i32 -> vector<8x512xf32>
    %c17 = arith.constant 17 : index
    %c0_39 = arith.constant 0 : index
    %c0_40 = arith.constant 0 : index
    %105 = vector.load %arg3[%c17, %c0_39, %c0_40] : memref<49x8x1xf32, #tpu.memory_space<vmem>>, vector<1x8x1xf32>
    %106 = vector.shape_cast %105 : vector<1x8x1xf32> to vector<8x1xf32>
    %107 = vector.broadcast %106 : vector<8x1xf32> to vector<8x512xf32>
    %108 = arith.mulf %104, %107 : vector<8x512xf32>
    %109 = arith.addf %103, %108 : vector<8x512xf32>
    %c21_i32 = arith.constant 21 : i32
    %110 = tpu.dynamic_rotate %2 by %c21_i32 dim 1 : vector<8x512xf32>, i32 -> vector<8x512xf32>
    %c18 = arith.constant 18 : index
    %c0_41 = arith.constant 0 : index
    %c0_42 = arith.constant 0 : index
    %111 = vector.load %arg3[%c18, %c0_41, %c0_42] : memref<49x8x1xf32, #tpu.memory_space<vmem>>, vector<1x8x1xf32>
    %112 = vector.shape_cast %111 : vector<1x8x1xf32> to vector<8x1xf32>
    %113 = vector.broadcast %112 : vector<8x1xf32> to vector<8x512xf32>
    %114 = arith.mulf %110, %113 : vector<8x512xf32>
    %115 = arith.addf %109, %114 : vector<8x512xf32>
    %c20_i32 = arith.constant 20 : i32
    %116 = tpu.dynamic_rotate %2 by %c20_i32 dim 1 : vector<8x512xf32>, i32 -> vector<8x512xf32>
    %c19 = arith.constant 19 : index
    %c0_43 = arith.constant 0 : index
    %c0_44 = arith.constant 0 : index
    %117 = vector.load %arg3[%c19, %c0_43, %c0_44] : memref<49x8x1xf32, #tpu.memory_space<vmem>>, vector<1x8x1xf32>
    %118 = vector.shape_cast %117 : vector<1x8x1xf32> to vector<8x1xf32>
    %119 = vector.broadcast %118 : vector<8x1xf32> to vector<8x512xf32>
    %120 = arith.mulf %116, %119 : vector<8x512xf32>
    %121 = arith.addf %115, %120 : vector<8x512xf32>
    %c19_i32 = arith.constant 19 : i32
    %122 = tpu.dynamic_rotate %2 by %c19_i32 dim 1 : vector<8x512xf32>, i32 -> vector<8x512xf32>
    %c20 = arith.constant 20 : index
    %c0_45 = arith.constant 0 : index
    %c0_46 = arith.constant 0 : index
    %123 = vector.load %arg3[%c20, %c0_45, %c0_46] : memref<49x8x1xf32, #tpu.memory_space<vmem>>, vector<1x8x1xf32>
    %124 = vector.shape_cast %123 : vector<1x8x1xf32> to vector<8x1xf32>
    %125 = vector.broadcast %124 : vector<8x1xf32> to vector<8x512xf32>
    %126 = arith.mulf %122, %125 : vector<8x512xf32>
    %127 = arith.addf %121, %126 : vector<8x512xf32>
    %c3_i32 = arith.constant 3 : i32
    %128 = tpu.dynamic_rotate %2 by %c3_i32 dim 1 : vector<8x512xf32>, i32 -> vector<8x512xf32>
    %c21 = arith.constant 21 : index
    %c0_47 = arith.constant 0 : index
    %c0_48 = arith.constant 0 : index
    %129 = vector.load %arg3[%c21, %c0_47, %c0_48] : memref<49x8x1xf32, #tpu.memory_space<vmem>>, vector<1x8x1xf32>
    %130 = vector.shape_cast %129 : vector<1x8x1xf32> to vector<8x1xf32>
    %131 = vector.broadcast %130 : vector<8x1xf32> to vector<8x512xf32>
    %132 = arith.mulf %128, %131 : vector<8x512xf32>
    %133 = arith.addf %127, %132 : vector<8x512xf32>
    %c2_i32 = arith.constant 2 : i32
    %134 = tpu.dynamic_rotate %2 by %c2_i32 dim 1 : vector<8x512xf32>, i32 -> vector<8x512xf32>
    %c22 = arith.constant 22 : index
    %c0_49 = arith.constant 0 : index
    %c0_50 = arith.constant 0 : index
    %135 = vector.load %arg3[%c22, %c0_49, %c0_50] : memref<49x8x1xf32, #tpu.memory_space<vmem>>, vector<1x8x1xf32>
    %136 = vector.shape_cast %135 : vector<1x8x1xf32> to vector<8x1xf32>
    %137 = vector.broadcast %136 : vector<8x1xf32> to vector<8x512xf32>
    %138 = arith.mulf %134, %137 : vector<8x512xf32>
    %139 = arith.addf %133, %138 : vector<8x512xf32>
    %c1_i32 = arith.constant 1 : i32
    %140 = tpu.dynamic_rotate %2 by %c1_i32 dim 1 : vector<8x512xf32>, i32 -> vector<8x512xf32>
    %c23 = arith.constant 23 : index
    %c0_51 = arith.constant 0 : index
    %c0_52 = arith.constant 0 : index
    %141 = vector.load %arg3[%c23, %c0_51, %c0_52] : memref<49x8x1xf32, #tpu.memory_space<vmem>>, vector<1x8x1xf32>
    %142 = vector.shape_cast %141 : vector<1x8x1xf32> to vector<8x1xf32>
    %143 = vector.broadcast %142 : vector<8x1xf32> to vector<8x512xf32>
    %144 = arith.mulf %140, %143 : vector<8x512xf32>
    %145 = arith.addf %139, %144 : vector<8x512xf32>
    %c24 = arith.constant 24 : index
    %c0_53 = arith.constant 0 : index
    %c0_54 = arith.constant 0 : index
    %146 = vector.load %arg3[%c24, %c0_53, %c0_54] : memref<49x8x1xf32, #tpu.memory_space<vmem>>, vector<1x8x1xf32>
    %147 = vector.shape_cast %146 : vector<1x8x1xf32> to vector<8x1xf32>
    %148 = vector.broadcast %147 : vector<8x1xf32> to vector<8x512xf32>
    %149 = arith.mulf %2, %148 : vector<8x512xf32>
    %150 = arith.addf %145, %149 : vector<8x512xf32>
    %c511_i32 = arith.constant 511 : i32
    %151 = tpu.dynamic_rotate %2 by %c511_i32 dim 1 : vector<8x512xf32>, i32 -> vector<8x512xf32>
    %c25 = arith.constant 25 : index
    %c0_55 = arith.constant 0 : index
    %c0_56 = arith.constant 0 : index
    %152 = vector.load %arg3[%c25, %c0_55, %c0_56] : memref<49x8x1xf32, #tpu.memory_space<vmem>>, vector<1x8x1xf32>
    %153 = vector.shape_cast %152 : vector<1x8x1xf32> to vector<8x1xf32>
    %154 = vector.broadcast %153 : vector<8x1xf32> to vector<8x512xf32>
    %155 = arith.mulf %151, %154 : vector<8x512xf32>
    %156 = arith.addf %150, %155 : vector<8x512xf32>
    %c510_i32 = arith.constant 510 : i32
    %157 = tpu.dynamic_rotate %2 by %c510_i32 dim 1 : vector<8x512xf32>, i32 -> vector<8x512xf32>
    %c26 = arith.constant 26 : index
    %c0_57 = arith.constant 0 : index
    %c0_58 = arith.constant 0 : index
    %158 = vector.load %arg3[%c26, %c0_57, %c0_58] : memref<49x8x1xf32, #tpu.memory_space<vmem>>, vector<1x8x1xf32>
    %159 = vector.shape_cast %158 : vector<1x8x1xf32> to vector<8x1xf32>
    %160 = vector.broadcast %159 : vector<8x1xf32> to vector<8x512xf32>
    %161 = arith.mulf %157, %160 : vector<8x512xf32>
    %162 = arith.addf %156, %161 : vector<8x512xf32>
    %c509_i32 = arith.constant 509 : i32
    %163 = tpu.dynamic_rotate %2 by %c509_i32 dim 1 : vector<8x512xf32>, i32 -> vector<8x512xf32>
    %c27 = arith.constant 27 : index
    %c0_59 = arith.constant 0 : index
    %c0_60 = arith.constant 0 : index
    %164 = vector.load %arg3[%c27, %c0_59, %c0_60] : memref<49x8x1xf32, #tpu.memory_space<vmem>>, vector<1x8x1xf32>
    %165 = vector.shape_cast %164 : vector<1x8x1xf32> to vector<8x1xf32>
    %166 = vector.broadcast %165 : vector<8x1xf32> to vector<8x512xf32>
    %167 = arith.mulf %163, %166 : vector<8x512xf32>
    %168 = arith.addf %162, %167 : vector<8x512xf32>
    %c493_i32 = arith.constant 493 : i32
    %169 = tpu.dynamic_rotate %2 by %c493_i32 dim 1 : vector<8x512xf32>, i32 -> vector<8x512xf32>
    %c28 = arith.constant 28 : index
    %c0_61 = arith.constant 0 : index
    %c0_62 = arith.constant 0 : index
    %170 = vector.load %arg3[%c28, %c0_61, %c0_62] : memref<49x8x1xf32, #tpu.memory_space<vmem>>, vector<1x8x1xf32>
    %171 = vector.shape_cast %170 : vector<1x8x1xf32> to vector<8x1xf32>
    %172 = vector.broadcast %171 : vector<8x1xf32> to vector<8x512xf32>
    %173 = arith.mulf %169, %172 : vector<8x512xf32>
    %174 = arith.addf %168, %173 : vector<8x512xf32>
    %c492_i32 = arith.constant 492 : i32
    %175 = tpu.dynamic_rotate %2 by %c492_i32 dim 1 : vector<8x512xf32>, i32 -> vector<8x512xf32>
    %c29 = arith.constant 29 : index
    %c0_63 = arith.constant 0 : index
    %c0_64 = arith.constant 0 : index
    %176 = vector.load %arg3[%c29, %c0_63, %c0_64] : memref<49x8x1xf32, #tpu.memory_space<vmem>>, vector<1x8x1xf32>
    %177 = vector.shape_cast %176 : vector<1x8x1xf32> to vector<8x1xf32>
    %178 = vector.broadcast %177 : vector<8x1xf32> to vector<8x512xf32>
    %179 = arith.mulf %175, %178 : vector<8x512xf32>
    %180 = arith.addf %174, %179 : vector<8x512xf32>
    %c491_i32 = arith.constant 491 : i32
    %181 = tpu.dynamic_rotate %2 by %c491_i32 dim 1 : vector<8x512xf32>, i32 -> vector<8x512xf32>
    %c30 = arith.constant 30 : index
    %c0_65 = arith.constant 0 : index
    %c0_66 = arith.constant 0 : index
    %182 = vector.load %arg3[%c30, %c0_65, %c0_66] : memref<49x8x1xf32, #tpu.memory_space<vmem>>, vector<1x8x1xf32>
    %183 = vector.shape_cast %182 : vector<1x8x1xf32> to vector<8x1xf32>
    %184 = vector.broadcast %183 : vector<8x1xf32> to vector<8x512xf32>
    %185 = arith.mulf %181, %184 : vector<8x512xf32>
    %186 = arith.addf %180, %185 : vector<8x512xf32>
    %c490_i32 = arith.constant 490 : i32
    %187 = tpu.dynamic_rotate %2 by %c490_i32 dim 1 : vector<8x512xf32>, i32 -> vector<8x512xf32>
    %c31 = arith.constant 31 : index
    %c0_67 = arith.constant 0 : index
    %c0_68 = arith.constant 0 : index
    %188 = vector.load %arg3[%c31, %c0_67, %c0_68] : memref<49x8x1xf32, #tpu.memory_space<vmem>>, vector<1x8x1xf32>
    %189 = vector.shape_cast %188 : vector<1x8x1xf32> to vector<8x1xf32>
    %190 = vector.broadcast %189 : vector<8x1xf32> to vector<8x512xf32>
    %191 = arith.mulf %187, %190 : vector<8x512xf32>
    %192 = arith.addf %186, %191 : vector<8x512xf32>
    %c489_i32 = arith.constant 489 : i32
    %193 = tpu.dynamic_rotate %2 by %c489_i32 dim 1 : vector<8x512xf32>, i32 -> vector<8x512xf32>
    %c32 = arith.constant 32 : index
    %c0_69 = arith.constant 0 : index
    %c0_70 = arith.constant 0 : index
    %194 = vector.load %arg3[%c32, %c0_69, %c0_70] : memref<49x8x1xf32, #tpu.memory_space<vmem>>, vector<1x8x1xf32>
    %195 = vector.shape_cast %194 : vector<1x8x1xf32> to vector<8x1xf32>
    %196 = vector.broadcast %195 : vector<8x1xf32> to vector<8x512xf32>
    %197 = arith.mulf %193, %196 : vector<8x512xf32>
    %198 = arith.addf %192, %197 : vector<8x512xf32>
    %c488_i32 = arith.constant 488 : i32
    %199 = tpu.dynamic_rotate %2 by %c488_i32 dim 1 : vector<8x512xf32>, i32 -> vector<8x512xf32>
    %c33 = arith.constant 33 : index
    %c0_71 = arith.constant 0 : index
    %c0_72 = arith.constant 0 : index
    %200 = vector.load %arg3[%c33, %c0_71, %c0_72] : memref<49x8x1xf32, #tpu.memory_space<vmem>>, vector<1x8x1xf32>
    %201 = vector.shape_cast %200 : vector<1x8x1xf32> to vector<8x1xf32>
    %202 = vector.broadcast %201 : vector<8x1xf32> to vector<8x512xf32>
    %203 = arith.mulf %199, %202 : vector<8x512xf32>
    %204 = arith.addf %198, %203 : vector<8x512xf32>
    %c487_i32 = arith.constant 487 : i32
    %205 = tpu.dynamic_rotate %2 by %c487_i32 dim 1 : vector<8x512xf32>, i32 -> vector<8x512xf32>
    %c34 = arith.constant 34 : index
    %c0_73 = arith.constant 0 : index
    %c0_74 = arith.constant 0 : index
    %206 = vector.load %arg3[%c34, %c0_73, %c0_74] : memref<49x8x1xf32, #tpu.memory_space<vmem>>, vector<1x8x1xf32>
    %207 = vector.shape_cast %206 : vector<1x8x1xf32> to vector<8x1xf32>
    %208 = vector.broadcast %207 : vector<8x1xf32> to vector<8x512xf32>
    %209 = arith.mulf %205, %208 : vector<8x512xf32>
    %210 = arith.addf %204, %209 : vector<8x512xf32>
    %c471_i32 = arith.constant 471 : i32
    %211 = tpu.dynamic_rotate %2 by %c471_i32 dim 1 : vector<8x512xf32>, i32 -> vector<8x512xf32>
    %c35 = arith.constant 35 : index
    %c0_75 = arith.constant 0 : index
    %c0_76 = arith.constant 0 : index
    %212 = vector.load %arg3[%c35, %c0_75, %c0_76] : memref<49x8x1xf32, #tpu.memory_space<vmem>>, vector<1x8x1xf32>
    %213 = vector.shape_cast %212 : vector<1x8x1xf32> to vector<8x1xf32>
    %214 = vector.broadcast %213 : vector<8x1xf32> to vector<8x512xf32>
    %215 = arith.mulf %211, %214 : vector<8x512xf32>
    %216 = arith.addf %210, %215 : vector<8x512xf32>
    %c470_i32 = arith.constant 470 : i32
    %217 = tpu.dynamic_rotate %2 by %c470_i32 dim 1 : vector<8x512xf32>, i32 -> vector<8x512xf32>
    %c36 = arith.constant 36 : index
    %c0_77 = arith.constant 0 : index
    %c0_78 = arith.constant 0 : index
    %218 = vector.load %arg3[%c36, %c0_77, %c0_78] : memref<49x8x1xf32, #tpu.memory_space<vmem>>, vector<1x8x1xf32>
    %219 = vector.shape_cast %218 : vector<1x8x1xf32> to vector<8x1xf32>
    %220 = vector.broadcast %219 : vector<8x1xf32> to vector<8x512xf32>
    %221 = arith.mulf %217, %220 : vector<8x512xf32>
    %222 = arith.addf %216, %221 : vector<8x512xf32>
    %c469_i32 = arith.constant 469 : i32
    %223 = tpu.dynamic_rotate %2 by %c469_i32 dim 1 : vector<8x512xf32>, i32 -> vector<8x512xf32>
    %c37 = arith.constant 37 : index
    %c0_79 = arith.constant 0 : index
    %c0_80 = arith.constant 0 : index
    %224 = vector.load %arg3[%c37, %c0_79, %c0_80] : memref<49x8x1xf32, #tpu.memory_space<vmem>>, vector<1x8x1xf32>
    %225 = vector.shape_cast %224 : vector<1x8x1xf32> to vector<8x1xf32>
    %226 = vector.broadcast %225 : vector<8x1xf32> to vector<8x512xf32>
    %227 = arith.mulf %223, %226 : vector<8x512xf32>
    %228 = arith.addf %222, %227 : vector<8x512xf32>
    %c468_i32 = arith.constant 468 : i32
    %229 = tpu.dynamic_rotate %2 by %c468_i32 dim 1 : vector<8x512xf32>, i32 -> vector<8x512xf32>
    %c38 = arith.constant 38 : index
    %c0_81 = arith.constant 0 : index
    %c0_82 = arith.constant 0 : index
    %230 = vector.load %arg3[%c38, %c0_81, %c0_82] : memref<49x8x1xf32, #tpu.memory_space<vmem>>, vector<1x8x1xf32>
    %231 = vector.shape_cast %230 : vector<1x8x1xf32> to vector<8x1xf32>
    %232 = vector.broadcast %231 : vector<8x1xf32> to vector<8x512xf32>
    %233 = arith.mulf %229, %232 : vector<8x512xf32>
    %234 = arith.addf %228, %233 : vector<8x512xf32>
    %c467_i32 = arith.constant 467 : i32
    %235 = tpu.dynamic_rotate %2 by %c467_i32 dim 1 : vector<8x512xf32>, i32 -> vector<8x512xf32>
    %c39 = arith.constant 39 : index
    %c0_83 = arith.constant 0 : index
    %c0_84 = arith.constant 0 : index
    %236 = vector.load %arg3[%c39, %c0_83, %c0_84] : memref<49x8x1xf32, #tpu.memory_space<vmem>>, vector<1x8x1xf32>
    %237 = vector.shape_cast %236 : vector<1x8x1xf32> to vector<8x1xf32>
    %238 = vector.broadcast %237 : vector<8x1xf32> to vector<8x512xf32>
    %239 = arith.mulf %235, %238 : vector<8x512xf32>
    %240 = arith.addf %234, %239 : vector<8x512xf32>
    %c466_i32 = arith.constant 466 : i32
    %241 = tpu.dynamic_rotate %2 by %c466_i32 dim 1 : vector<8x512xf32>, i32 -> vector<8x512xf32>
    %c40 = arith.constant 40 : index
    %c0_85 = arith.constant 0 : index
    %c0_86 = arith.constant 0 : index
    %242 = vector.load %arg3[%c40, %c0_85, %c0_86] : memref<49x8x1xf32, #tpu.memory_space<vmem>>, vector<1x8x1xf32>
    %243 = vector.shape_cast %242 : vector<1x8x1xf32> to vector<8x1xf32>
    %244 = vector.broadcast %243 : vector<8x1xf32> to vector<8x512xf32>
    %245 = arith.mulf %241, %244 : vector<8x512xf32>
    %246 = arith.addf %240, %245 : vector<8x512xf32>
    %c465_i32 = arith.constant 465 : i32
    %247 = tpu.dynamic_rotate %2 by %c465_i32 dim 1 : vector<8x512xf32>, i32 -> vector<8x512xf32>
    %c41 = arith.constant 41 : index
    %c0_87 = arith.constant 0 : index
    %c0_88 = arith.constant 0 : index
    %248 = vector.load %arg3[%c41, %c0_87, %c0_88] : memref<49x8x1xf32, #tpu.memory_space<vmem>>, vector<1x8x1xf32>
    %249 = vector.shape_cast %248 : vector<1x8x1xf32> to vector<8x1xf32>
    %250 = vector.broadcast %249 : vector<8x1xf32> to vector<8x512xf32>
    %251 = arith.mulf %247, %250 : vector<8x512xf32>
    %252 = arith.addf %246, %251 : vector<8x512xf32>
    %c449_i32 = arith.constant 449 : i32
    %253 = tpu.dynamic_rotate %2 by %c449_i32 dim 1 : vector<8x512xf32>, i32 -> vector<8x512xf32>
    %c42 = arith.constant 42 : index
    %c0_89 = arith.constant 0 : index
    %c0_90 = arith.constant 0 : index
    %254 = vector.load %arg3[%c42, %c0_89, %c0_90] : memref<49x8x1xf32, #tpu.memory_space<vmem>>, vector<1x8x1xf32>
    %255 = vector.shape_cast %254 : vector<1x8x1xf32> to vector<8x1xf32>
    %256 = vector.broadcast %255 : vector<8x1xf32> to vector<8x512xf32>
    %257 = arith.mulf %253, %256 : vector<8x512xf32>
    %258 = arith.addf %252, %257 : vector<8x512xf32>
    %c448_i32 = arith.constant 448 : i32
    %259 = tpu.dynamic_rotate %2 by %c448_i32 dim 1 : vector<8x512xf32>, i32 -> vector<8x512xf32>
    %c43 = arith.constant 43 : index
    %c0_91 = arith.constant 0 : index
    %c0_92 = arith.constant 0 : index
    %260 = vector.load %arg3[%c43, %c0_91, %c0_92] : memref<49x8x1xf32, #tpu.memory_space<vmem>>, vector<1x8x1xf32>
    %261 = vector.shape_cast %260 : vector<1x8x1xf32> to vector<8x1xf32>
    %262 = vector.broadcast %261 : vector<8x1xf32> to vector<8x512xf32>
    %263 = arith.mulf %259, %262 : vector<8x512xf32>
    %264 = arith.addf %258, %263 : vector<8x512xf32>
    %c447_i32 = arith.constant 447 : i32
    %265 = tpu.dynamic_rotate %2 by %c447_i32 dim 1 : vector<8x512xf32>, i32 -> vector<8x512xf32>
    %c44 = arith.constant 44 : index
    %c0_93 = arith.constant 0 : index
    %c0_94 = arith.constant 0 : index
    %266 = vector.load %arg3[%c44, %c0_93, %c0_94] : memref<49x8x1xf32, #tpu.memory_space<vmem>>, vector<1x8x1xf32>
    %267 = vector.shape_cast %266 : vector<1x8x1xf32> to vector<8x1xf32>
    %268 = vector.broadcast %267 : vector<8x1xf32> to vector<8x512xf32>
    %269 = arith.mulf %265, %268 : vector<8x512xf32>
    %270 = arith.addf %264, %269 : vector<8x512xf32>
    %c446_i32 = arith.constant 446 : i32
    %271 = tpu.dynamic_rotate %2 by %c446_i32 dim 1 : vector<8x512xf32>, i32 -> vector<8x512xf32>
    %c45 = arith.constant 45 : index
    %c0_95 = arith.constant 0 : index
    %c0_96 = arith.constant 0 : index
    %272 = vector.load %arg3[%c45, %c0_95, %c0_96] : memref<49x8x1xf32, #tpu.memory_space<vmem>>, vector<1x8x1xf32>
    %273 = vector.shape_cast %272 : vector<1x8x1xf32> to vector<8x1xf32>
    %274 = vector.broadcast %273 : vector<8x1xf32> to vector<8x512xf32>
    %275 = arith.mulf %271, %274 : vector<8x512xf32>
    %276 = arith.addf %270, %275 : vector<8x512xf32>
    %c445_i32 = arith.constant 445 : i32
    %277 = tpu.dynamic_rotate %2 by %c445_i32 dim 1 : vector<8x512xf32>, i32 -> vector<8x512xf32>
    %c46 = arith.constant 46 : index
    %c0_97 = arith.constant 0 : index
    %c0_98 = arith.constant 0 : index
    %278 = vector.load %arg3[%c46, %c0_97, %c0_98] : memref<49x8x1xf32, #tpu.memory_space<vmem>>, vector<1x8x1xf32>
    %279 = vector.shape_cast %278 : vector<1x8x1xf32> to vector<8x1xf32>
    %280 = vector.broadcast %279 : vector<8x1xf32> to vector<8x512xf32>
    %281 = arith.mulf %277, %280 : vector<8x512xf32>
    %282 = arith.addf %276, %281 : vector<8x512xf32>
    %c444_i32 = arith.constant 444 : i32
    %283 = tpu.dynamic_rotate %2 by %c444_i32 dim 1 : vector<8x512xf32>, i32 -> vector<8x512xf32>
    %c47 = arith.constant 47 : index
    %c0_99 = arith.constant 0 : index
    %c0_100 = arith.constant 0 : index
    %284 = vector.load %arg3[%c47, %c0_99, %c0_100] : memref<49x8x1xf32, #tpu.memory_space<vmem>>, vector<1x8x1xf32>
    %285 = vector.shape_cast %284 : vector<1x8x1xf32> to vector<8x1xf32>
    %286 = vector.broadcast %285 : vector<8x1xf32> to vector<8x512xf32>
    %287 = arith.mulf %283, %286 : vector<8x512xf32>
    %288 = arith.addf %282, %287 : vector<8x512xf32>
    %c443_i32 = arith.constant 443 : i32
    %289 = tpu.dynamic_rotate %2 by %c443_i32 dim 1 : vector<8x512xf32>, i32 -> vector<8x512xf32>
    %c48 = arith.constant 48 : index
    %c0_101 = arith.constant 0 : index
    %c0_102 = arith.constant 0 : index
    %290 = vector.load %arg3[%c48, %c0_101, %c0_102] : memref<49x8x1xf32, #tpu.memory_space<vmem>>, vector<1x8x1xf32>
    %291 = vector.shape_cast %290 : vector<1x8x1xf32> to vector<8x1xf32>
    %292 = vector.broadcast %291 : vector<8x1xf32> to vector<8x512xf32>
    %293 = arith.mulf %289, %292 : vector<8x512xf32>
    %294 = arith.addf %288, %293 : vector<8x512xf32>
    %c1_103 = arith.constant 1 : index
    %c0_104 = arith.constant 0 : index
    %c0_105 = arith.constant 0 : index
    %295 = vector.load %arg2[%c1_103, %c0_104, %c0_105] : memref<2x8x512xf32, #tpu.memory_space<vmem>>, vector<1x8x512xf32>
    %296 = vector.shape_cast %295 : vector<1x8x512xf32> to vector<8x512xf32>
    %c69_i32_106 = arith.constant 69 : i32
    %297 = tpu.dynamic_rotate %296 by %c69_i32_106 dim 1 : vector<8x512xf32>, i32 -> vector<8x512xf32>
    %c0_107 = arith.constant 0 : index
    %c0_108 = arith.constant 0 : index
    %c0_109 = arith.constant 0 : index
    %298 = vector.load %arg3[%c0_107, %c0_108, %c0_109] : memref<49x8x1xf32, #tpu.memory_space<vmem>>, vector<1x8x1xf32>
    %299 = vector.shape_cast %298 : vector<1x8x1xf32> to vector<8x1xf32>
    %300 = vector.broadcast %299 : vector<8x1xf32> to vector<8x512xf32>
    %301 = arith.mulf %297, %300 : vector<8x512xf32>
    %c68_i32_110 = arith.constant 68 : i32
    %302 = tpu.dynamic_rotate %296 by %c68_i32_110 dim 1 : vector<8x512xf32>, i32 -> vector<8x512xf32>
    %c1_111 = arith.constant 1 : index
    %c0_112 = arith.constant 0 : index
    %c0_113 = arith.constant 0 : index
    %303 = vector.load %arg3[%c1_111, %c0_112, %c0_113] : memref<49x8x1xf32, #tpu.memory_space<vmem>>, vector<1x8x1xf32>
    %304 = vector.shape_cast %303 : vector<1x8x1xf32> to vector<8x1xf32>
    %305 = vector.broadcast %304 : vector<8x1xf32> to vector<8x512xf32>
    %306 = arith.mulf %302, %305 : vector<8x512xf32>
    %307 = arith.addf %301, %306 : vector<8x512xf32>
    %c67_i32_114 = arith.constant 67 : i32
    %308 = tpu.dynamic_rotate %296 by %c67_i32_114 dim 1 : vector<8x512xf32>, i32 -> vector<8x512xf32>
    %c2_115 = arith.constant 2 : index
    %c0_116 = arith.constant 0 : index
    %c0_117 = arith.constant 0 : index
    %309 = vector.load %arg3[%c2_115, %c0_116, %c0_117] : memref<49x8x1xf32, #tpu.memory_space<vmem>>, vector<1x8x1xf32>
    %310 = vector.shape_cast %309 : vector<1x8x1xf32> to vector<8x1xf32>
    %311 = vector.broadcast %310 : vector<8x1xf32> to vector<8x512xf32>
    %312 = arith.mulf %308, %311 : vector<8x512xf32>
    %313 = arith.addf %307, %312 : vector<8x512xf32>
    %c66_i32_118 = arith.constant 66 : i32
    %314 = tpu.dynamic_rotate %296 by %c66_i32_118 dim 1 : vector<8x512xf32>, i32 -> vector<8x512xf32>
    %c3_119 = arith.constant 3 : index
    %c0_120 = arith.constant 0 : index
    %c0_121 = arith.constant 0 : index
    %315 = vector.load %arg3[%c3_119, %c0_120, %c0_121] : memref<49x8x1xf32, #tpu.memory_space<vmem>>, vector<1x8x1xf32>
    %316 = vector.shape_cast %315 : vector<1x8x1xf32> to vector<8x1xf32>
    %317 = vector.broadcast %316 : vector<8x1xf32> to vector<8x512xf32>
    %318 = arith.mulf %314, %317 : vector<8x512xf32>
    %319 = arith.addf %313, %318 : vector<8x512xf32>
    %c65_i32_122 = arith.constant 65 : i32
    %320 = tpu.dynamic_rotate %296 by %c65_i32_122 dim 1 : vector<8x512xf32>, i32 -> vector<8x512xf32>
    %c4_123 = arith.constant 4 : index
    %c0_124 = arith.constant 0 : index
    %c0_125 = arith.constant 0 : index
    %321 = vector.load %arg3[%c4_123, %c0_124, %c0_125] : memref<49x8x1xf32, #tpu.memory_space<vmem>>, vector<1x8x1xf32>
    %322 = vector.shape_cast %321 : vector<1x8x1xf32> to vector<8x1xf32>
    %323 = vector.broadcast %322 : vector<8x1xf32> to vector<8x512xf32>
    %324 = arith.mulf %320, %323 : vector<8x512xf32>
    %325 = arith.addf %319, %324 : vector<8x512xf32>
    %c64_i32_126 = arith.constant 64 : i32
    %326 = tpu.dynamic_rotate %296 by %c64_i32_126 dim 1 : vector<8x512xf32>, i32 -> vector<8x512xf32>
    %c5_127 = arith.constant 5 : index
    %c0_128 = arith.constant 0 : index
    %c0_129 = arith.constant 0 : index
    %327 = vector.load %arg3[%c5_127, %c0_128, %c0_129] : memref<49x8x1xf32, #tpu.memory_space<vmem>>, vector<1x8x1xf32>
    %328 = vector.shape_cast %327 : vector<1x8x1xf32> to vector<8x1xf32>
    %329 = vector.broadcast %328 : vector<8x1xf32> to vector<8x512xf32>
    %330 = arith.mulf %326, %329 : vector<8x512xf32>
    %331 = arith.addf %325, %330 : vector<8x512xf32>
    %c63_i32_130 = arith.constant 63 : i32
    %332 = tpu.dynamic_rotate %296 by %c63_i32_130 dim 1 : vector<8x512xf32>, i32 -> vector<8x512xf32>
    %c6_131 = arith.constant 6 : index
    %c0_132 = arith.constant 0 : index
    %c0_133 = arith.constant 0 : index
    %333 = vector.load %arg3[%c6_131, %c0_132, %c0_133] : memref<49x8x1xf32, #tpu.memory_space<vmem>>, vector<1x8x1xf32>
    %334 = vector.shape_cast %333 : vector<1x8x1xf32> to vector<8x1xf32>
    %335 = vector.broadcast %334 : vector<8x1xf32> to vector<8x512xf32>
    %336 = arith.mulf %332, %335 : vector<8x512xf32>
    %337 = arith.addf %331, %336 : vector<8x512xf32>
    %c47_i32_134 = arith.constant 47 : i32
    %338 = tpu.dynamic_rotate %296 by %c47_i32_134 dim 1 : vector<8x512xf32>, i32 -> vector<8x512xf32>
    %c7_135 = arith.constant 7 : index
    %c0_136 = arith.constant 0 : index
    %c0_137 = arith.constant 0 : index
    %339 = vector.load %arg3[%c7_135, %c0_136, %c0_137] : memref<49x8x1xf32, #tpu.memory_space<vmem>>, vector<1x8x1xf32>
    %340 = vector.shape_cast %339 : vector<1x8x1xf32> to vector<8x1xf32>
    %341 = vector.broadcast %340 : vector<8x1xf32> to vector<8x512xf32>
    %342 = arith.mulf %338, %341 : vector<8x512xf32>
    %343 = arith.addf %337, %342 : vector<8x512xf32>
    %c46_i32_138 = arith.constant 46 : i32
    %344 = tpu.dynamic_rotate %296 by %c46_i32_138 dim 1 : vector<8x512xf32>, i32 -> vector<8x512xf32>
    %c8_139 = arith.constant 8 : index
    %c0_140 = arith.constant 0 : index
    %c0_141 = arith.constant 0 : index
    %345 = vector.load %arg3[%c8_139, %c0_140, %c0_141] : memref<49x8x1xf32, #tpu.memory_space<vmem>>, vector<1x8x1xf32>
    %346 = vector.shape_cast %345 : vector<1x8x1xf32> to vector<8x1xf32>
    %347 = vector.broadcast %346 : vector<8x1xf32> to vector<8x512xf32>
    %348 = arith.mulf %344, %347 : vector<8x512xf32>
    %349 = arith.addf %343, %348 : vector<8x512xf32>
    %c45_i32_142 = arith.constant 45 : i32
    %350 = tpu.dynamic_rotate %296 by %c45_i32_142 dim 1 : vector<8x512xf32>, i32 -> vector<8x512xf32>
    %c9_143 = arith.constant 9 : index
    %c0_144 = arith.constant 0 : index
    %c0_145 = arith.constant 0 : index
    %351 = vector.load %arg3[%c9_143, %c0_144, %c0_145] : memref<49x8x1xf32, #tpu.memory_space<vmem>>, vector<1x8x1xf32>
    %352 = vector.shape_cast %351 : vector<1x8x1xf32> to vector<8x1xf32>
    %353 = vector.broadcast %352 : vector<8x1xf32> to vector<8x512xf32>
    %354 = arith.mulf %350, %353 : vector<8x512xf32>
    %355 = arith.addf %349, %354 : vector<8x512xf32>
    %c44_i32_146 = arith.constant 44 : i32
    %356 = tpu.dynamic_rotate %296 by %c44_i32_146 dim 1 : vector<8x512xf32>, i32 -> vector<8x512xf32>
    %c10_147 = arith.constant 10 : index
    %c0_148 = arith.constant 0 : index
    %c0_149 = arith.constant 0 : index
    %357 = vector.load %arg3[%c10_147, %c0_148, %c0_149] : memref<49x8x1xf32, #tpu.memory_space<vmem>>, vector<1x8x1xf32>
    %358 = vector.shape_cast %357 : vector<1x8x1xf32> to vector<8x1xf32>
    %359 = vector.broadcast %358 : vector<8x1xf32> to vector<8x512xf32>
    %360 = arith.mulf %356, %359 : vector<8x512xf32>
    %361 = arith.addf %355, %360 : vector<8x512xf32>
    %c43_i32_150 = arith.constant 43 : i32
    %362 = tpu.dynamic_rotate %296 by %c43_i32_150 dim 1 : vector<8x512xf32>, i32 -> vector<8x512xf32>
    %c11_151 = arith.constant 11 : index
    %c0_152 = arith.constant 0 : index
    %c0_153 = arith.constant 0 : index
    %363 = vector.load %arg3[%c11_151, %c0_152, %c0_153] : memref<49x8x1xf32, #tpu.memory_space<vmem>>, vector<1x8x1xf32>
    %364 = vector.shape_cast %363 : vector<1x8x1xf32> to vector<8x1xf32>
    %365 = vector.broadcast %364 : vector<8x1xf32> to vector<8x512xf32>
    %366 = arith.mulf %362, %365 : vector<8x512xf32>
    %367 = arith.addf %361, %366 : vector<8x512xf32>
    %c42_i32_154 = arith.constant 42 : i32
    %368 = tpu.dynamic_rotate %296 by %c42_i32_154 dim 1 : vector<8x512xf32>, i32 -> vector<8x512xf32>
    %c12_155 = arith.constant 12 : index
    %c0_156 = arith.constant 0 : index
    %c0_157 = arith.constant 0 : index
    %369 = vector.load %arg3[%c12_155, %c0_156, %c0_157] : memref<49x8x1xf32, #tpu.memory_space<vmem>>, vector<1x8x1xf32>
    %370 = vector.shape_cast %369 : vector<1x8x1xf32> to vector<8x1xf32>
    %371 = vector.broadcast %370 : vector<8x1xf32> to vector<8x512xf32>
    %372 = arith.mulf %368, %371 : vector<8x512xf32>
    %373 = arith.addf %367, %372 : vector<8x512xf32>
    %c41_i32_158 = arith.constant 41 : i32
    %374 = tpu.dynamic_rotate %296 by %c41_i32_158 dim 1 : vector<8x512xf32>, i32 -> vector<8x512xf32>
    %c13_159 = arith.constant 13 : index
    %c0_160 = arith.constant 0 : index
    %c0_161 = arith.constant 0 : index
    %375 = vector.load %arg3[%c13_159, %c0_160, %c0_161] : memref<49x8x1xf32, #tpu.memory_space<vmem>>, vector<1x8x1xf32>
    %376 = vector.shape_cast %375 : vector<1x8x1xf32> to vector<8x1xf32>
    %377 = vector.broadcast %376 : vector<8x1xf32> to vector<8x512xf32>
    %378 = arith.mulf %374, %377 : vector<8x512xf32>
    %379 = arith.addf %373, %378 : vector<8x512xf32>
    %c25_i32_162 = arith.constant 25 : i32
    %380 = tpu.dynamic_rotate %296 by %c25_i32_162 dim 1 : vector<8x512xf32>, i32 -> vector<8x512xf32>
    %c14_163 = arith.constant 14 : index
    %c0_164 = arith.constant 0 : index
    %c0_165 = arith.constant 0 : index
    %381 = vector.load %arg3[%c14_163, %c0_164, %c0_165] : memref<49x8x1xf32, #tpu.memory_space<vmem>>, vector<1x8x1xf32>
    %382 = vector.shape_cast %381 : vector<1x8x1xf32> to vector<8x1xf32>
    %383 = vector.broadcast %382 : vector<8x1xf32> to vector<8x512xf32>
    %384 = arith.mulf %380, %383 : vector<8x512xf32>
    %385 = arith.addf %379, %384 : vector<8x512xf32>
    %c24_i32_166 = arith.constant 24 : i32
    %386 = tpu.dynamic_rotate %296 by %c24_i32_166 dim 1 : vector<8x512xf32>, i32 -> vector<8x512xf32>
    %c15_167 = arith.constant 15 : index
    %c0_168 = arith.constant 0 : index
    %c0_169 = arith.constant 0 : index
    %387 = vector.load %arg3[%c15_167, %c0_168, %c0_169] : memref<49x8x1xf32, #tpu.memory_space<vmem>>, vector<1x8x1xf32>
    %388 = vector.shape_cast %387 : vector<1x8x1xf32> to vector<8x1xf32>
    %389 = vector.broadcast %388 : vector<8x1xf32> to vector<8x512xf32>
    %390 = arith.mulf %386, %389 : vector<8x512xf32>
    %391 = arith.addf %385, %390 : vector<8x512xf32>
    %c23_i32_170 = arith.constant 23 : i32
    %392 = tpu.dynamic_rotate %296 by %c23_i32_170 dim 1 : vector<8x512xf32>, i32 -> vector<8x512xf32>
    %c16_171 = arith.constant 16 : index
    %c0_172 = arith.constant 0 : index
    %c0_173 = arith.constant 0 : index
    %393 = vector.load %arg3[%c16_171, %c0_172, %c0_173] : memref<49x8x1xf32, #tpu.memory_space<vmem>>, vector<1x8x1xf32>
    %394 = vector.shape_cast %393 : vector<1x8x1xf32> to vector<8x1xf32>
    %395 = vector.broadcast %394 : vector<8x1xf32> to vector<8x512xf32>
    %396 = arith.mulf %392, %395 : vector<8x512xf32>
    %397 = arith.addf %391, %396 : vector<8x512xf32>
    %c22_i32_174 = arith.constant 22 : i32
    %398 = tpu.dynamic_rotate %296 by %c22_i32_174 dim 1 : vector<8x512xf32>, i32 -> vector<8x512xf32>
    %c17_175 = arith.constant 17 : index
    %c0_176 = arith.constant 0 : index
    %c0_177 = arith.constant 0 : index
    %399 = vector.load %arg3[%c17_175, %c0_176, %c0_177] : memref<49x8x1xf32, #tpu.memory_space<vmem>>, vector<1x8x1xf32>
    %400 = vector.shape_cast %399 : vector<1x8x1xf32> to vector<8x1xf32>
    %401 = vector.broadcast %400 : vector<8x1xf32> to vector<8x512xf32>
    %402 = arith.mulf %398, %401 : vector<8x512xf32>
    %403 = arith.addf %397, %402 : vector<8x512xf32>
    %c21_i32_178 = arith.constant 21 : i32
    %404 = tpu.dynamic_rotate %296 by %c21_i32_178 dim 1 : vector<8x512xf32>, i32 -> vector<8x512xf32>
    %c18_179 = arith.constant 18 : index
    %c0_180 = arith.constant 0 : index
    %c0_181 = arith.constant 0 : index
    %405 = vector.load %arg3[%c18_179, %c0_180, %c0_181] : memref<49x8x1xf32, #tpu.memory_space<vmem>>, vector<1x8x1xf32>
    %406 = vector.shape_cast %405 : vector<1x8x1xf32> to vector<8x1xf32>
    %407 = vector.broadcast %406 : vector<8x1xf32> to vector<8x512xf32>
    %408 = arith.mulf %404, %407 : vector<8x512xf32>
    %409 = arith.addf %403, %408 : vector<8x512xf32>
    %c20_i32_182 = arith.constant 20 : i32
    %410 = tpu.dynamic_rotate %296 by %c20_i32_182 dim 1 : vector<8x512xf32>, i32 -> vector<8x512xf32>
    %c19_183 = arith.constant 19 : index
    %c0_184 = arith.constant 0 : index
    %c0_185 = arith.constant 0 : index
    %411 = vector.load %arg3[%c19_183, %c0_184, %c0_185] : memref<49x8x1xf32, #tpu.memory_space<vmem>>, vector<1x8x1xf32>
    %412 = vector.shape_cast %411 : vector<1x8x1xf32> to vector<8x1xf32>
    %413 = vector.broadcast %412 : vector<8x1xf32> to vector<8x512xf32>
    %414 = arith.mulf %410, %413 : vector<8x512xf32>
    %415 = arith.addf %409, %414 : vector<8x512xf32>
    %c19_i32_186 = arith.constant 19 : i32
    %416 = tpu.dynamic_rotate %296 by %c19_i32_186 dim 1 : vector<8x512xf32>, i32 -> vector<8x512xf32>
    %c20_187 = arith.constant 20 : index
    %c0_188 = arith.constant 0 : index
    %c0_189 = arith.constant 0 : index
    %417 = vector.load %arg3[%c20_187, %c0_188, %c0_189] : memref<49x8x1xf32, #tpu.memory_space<vmem>>, vector<1x8x1xf32>
    %418 = vector.shape_cast %417 : vector<1x8x1xf32> to vector<8x1xf32>
    %419 = vector.broadcast %418 : vector<8x1xf32> to vector<8x512xf32>
    %420 = arith.mulf %416, %419 : vector<8x512xf32>
    %421 = arith.addf %415, %420 : vector<8x512xf32>
    %c3_i32_190 = arith.constant 3 : i32
    %422 = tpu.dynamic_rotate %296 by %c3_i32_190 dim 1 : vector<8x512xf32>, i32 -> vector<8x512xf32>
    %c21_191 = arith.constant 21 : index
    %c0_192 = arith.constant 0 : index
    %c0_193 = arith.constant 0 : index
    %423 = vector.load %arg3[%c21_191, %c0_192, %c0_193] : memref<49x8x1xf32, #tpu.memory_space<vmem>>, vector<1x8x1xf32>
    %424 = vector.shape_cast %423 : vector<1x8x1xf32> to vector<8x1xf32>
    %425 = vector.broadcast %424 : vector<8x1xf32> to vector<8x512xf32>
    %426 = arith.mulf %422, %425 : vector<8x512xf32>
    %427 = arith.addf %421, %426 : vector<8x512xf32>
    %c2_i32_194 = arith.constant 2 : i32
    %428 = tpu.dynamic_rotate %296 by %c2_i32_194 dim 1 : vector<8x512xf32>, i32 -> vector<8x512xf32>
    %c22_195 = arith.constant 22 : index
    %c0_196 = arith.constant 0 : index
    %c0_197 = arith.constant 0 : index
    %429 = vector.load %arg3[%c22_195, %c0_196, %c0_197] : memref<49x8x1xf32, #tpu.memory_space<vmem>>, vector<1x8x1xf32>
    %430 = vector.shape_cast %429 : vector<1x8x1xf32> to vector<8x1xf32>
    %431 = vector.broadcast %430 : vector<8x1xf32> to vector<8x512xf32>
    %432 = arith.mulf %428, %431 : vector<8x512xf32>
    %433 = arith.addf %427, %432 : vector<8x512xf32>
    %c1_i32_198 = arith.constant 1 : i32
    %434 = tpu.dynamic_rotate %296 by %c1_i32_198 dim 1 : vector<8x512xf32>, i32 -> vector<8x512xf32>
    %c23_199 = arith.constant 23 : index
    %c0_200 = arith.constant 0 : index
    %c0_201 = arith.constant 0 : index
    %435 = vector.load %arg3[%c23_199, %c0_200, %c0_201] : memref<49x8x1xf32, #tpu.memory_space<vmem>>, vector<1x8x1xf32>
    %436 = vector.shape_cast %435 : vector<1x8x1xf32> to vector<8x1xf32>
    %437 = vector.broadcast %436 : vector<8x1xf32> to vector<8x512xf32>
    %438 = arith.mulf %434, %437 : vector<8x512xf32>
    %439 = arith.addf %433, %438 : vector<8x512xf32>
    %c24_202 = arith.constant 24 : index
    %c0_203 = arith.constant 0 : index
    %c0_204 = arith.constant 0 : index
    %440 = vector.load %arg3[%c24_202, %c0_203, %c0_204] : memref<49x8x1xf32, #tpu.memory_space<vmem>>, vector<1x8x1xf32>
    %441 = vector.shape_cast %440 : vector<1x8x1xf32> to vector<8x1xf32>
    %442 = vector.broadcast %441 : vector<8x1xf32> to vector<8x512xf32>
    %443 = arith.mulf %296, %442 : vector<8x512xf32>
    %444 = arith.addf %439, %443 : vector<8x512xf32>
    %c511_i32_205 = arith.constant 511 : i32
    %445 = tpu.dynamic_rotate %296 by %c511_i32_205 dim 1 : vector<8x512xf32>, i32 -> vector<8x512xf32>
    %c25_206 = arith.constant 25 : index
    %c0_207 = arith.constant 0 : index
    %c0_208 = arith.constant 0 : index
    %446 = vector.load %arg3[%c25_206, %c0_207, %c0_208] : memref<49x8x1xf32, #tpu.memory_space<vmem>>, vector<1x8x1xf32>
    %447 = vector.shape_cast %446 : vector<1x8x1xf32> to vector<8x1xf32>
    %448 = vector.broadcast %447 : vector<8x1xf32> to vector<8x512xf32>
    %449 = arith.mulf %445, %448 : vector<8x512xf32>
    %450 = arith.addf %444, %449 : vector<8x512xf32>
    %c510_i32_209 = arith.constant 510 : i32
    %451 = tpu.dynamic_rotate %296 by %c510_i32_209 dim 1 : vector<8x512xf32>, i32 -> vector<8x512xf32>
    %c26_210 = arith.constant 26 : index
    %c0_211 = arith.constant 0 : index
    %c0_212 = arith.constant 0 : index
    %452 = vector.load %arg3[%c26_210, %c0_211, %c0_212] : memref<49x8x1xf32, #tpu.memory_space<vmem>>, vector<1x8x1xf32>
    %453 = vector.shape_cast %452 : vector<1x8x1xf32> to vector<8x1xf32>
    %454 = vector.broadcast %453 : vector<8x1xf32> to vector<8x512xf32>
    %455 = arith.mulf %451, %454 : vector<8x512xf32>
    %456 = arith.addf %450, %455 : vector<8x512xf32>
    %c509_i32_213 = arith.constant 509 : i32
    %457 = tpu.dynamic_rotate %296 by %c509_i32_213 dim 1 : vector<8x512xf32>, i32 -> vector<8x512xf32>
    %c27_214 = arith.constant 27 : index
    %c0_215 = arith.constant 0 : index
    %c0_216 = arith.constant 0 : index
    %458 = vector.load %arg3[%c27_214, %c0_215, %c0_216] : memref<49x8x1xf32, #tpu.memory_space<vmem>>, vector<1x8x1xf32>
    %459 = vector.shape_cast %458 : vector<1x8x1xf32> to vector<8x1xf32>
    %460 = vector.broadcast %459 : vector<8x1xf32> to vector<8x512xf32>
    %461 = arith.mulf %457, %460 : vector<8x512xf32>
    %462 = arith.addf %456, %461 : vector<8x512xf32>
    %c493_i32_217 = arith.constant 493 : i32
    %463 = tpu.dynamic_rotate %296 by %c493_i32_217 dim 1 : vector<8x512xf32>, i32 -> vector<8x512xf32>
    %c28_218 = arith.constant 28 : index
    %c0_219 = arith.constant 0 : index
    %c0_220 = arith.constant 0 : index
    %464 = vector.load %arg3[%c28_218, %c0_219, %c0_220] : memref<49x8x1xf32, #tpu.memory_space<vmem>>, vector<1x8x1xf32>
    %465 = vector.shape_cast %464 : vector<1x8x1xf32> to vector<8x1xf32>
    %466 = vector.broadcast %465 : vector<8x1xf32> to vector<8x512xf32>
    %467 = arith.mulf %463, %466 : vector<8x512xf32>
    %468 = arith.addf %462, %467 : vector<8x512xf32>
    %c492_i32_221 = arith.constant 492 : i32
    %469 = tpu.dynamic_rotate %296 by %c492_i32_221 dim 1 : vector<8x512xf32>, i32 -> vector<8x512xf32>
    %c29_222 = arith.constant 29 : index
    %c0_223 = arith.constant 0 : index
    %c0_224 = arith.constant 0 : index
    %470 = vector.load %arg3[%c29_222, %c0_223, %c0_224] : memref<49x8x1xf32, #tpu.memory_space<vmem>>, vector<1x8x1xf32>
    %471 = vector.shape_cast %470 : vector<1x8x1xf32> to vector<8x1xf32>
    %472 = vector.broadcast %471 : vector<8x1xf32> to vector<8x512xf32>
    %473 = arith.mulf %469, %472 : vector<8x512xf32>
    %474 = arith.addf %468, %473 : vector<8x512xf32>
    %c491_i32_225 = arith.constant 491 : i32
    %475 = tpu.dynamic_rotate %296 by %c491_i32_225 dim 1 : vector<8x512xf32>, i32 -> vector<8x512xf32>
    %c30_226 = arith.constant 30 : index
    %c0_227 = arith.constant 0 : index
    %c0_228 = arith.constant 0 : index
    %476 = vector.load %arg3[%c30_226, %c0_227, %c0_228] : memref<49x8x1xf32, #tpu.memory_space<vmem>>, vector<1x8x1xf32>
    %477 = vector.shape_cast %476 : vector<1x8x1xf32> to vector<8x1xf32>
    %478 = vector.broadcast %477 : vector<8x1xf32> to vector<8x512xf32>
    %479 = arith.mulf %475, %478 : vector<8x512xf32>
    %480 = arith.addf %474, %479 : vector<8x512xf32>
    %c490_i32_229 = arith.constant 490 : i32
    %481 = tpu.dynamic_rotate %296 by %c490_i32_229 dim 1 : vector<8x512xf32>, i32 -> vector<8x512xf32>
    %c31_230 = arith.constant 31 : index
    %c0_231 = arith.constant 0 : index
    %c0_232 = arith.constant 0 : index
    %482 = vector.load %arg3[%c31_230, %c0_231, %c0_232] : memref<49x8x1xf32, #tpu.memory_space<vmem>>, vector<1x8x1xf32>
    %483 = vector.shape_cast %482 : vector<1x8x1xf32> to vector<8x1xf32>
    %484 = vector.broadcast %483 : vector<8x1xf32> to vector<8x512xf32>
    %485 = arith.mulf %481, %484 : vector<8x512xf32>
    %486 = arith.addf %480, %485 : vector<8x512xf32>
    %c489_i32_233 = arith.constant 489 : i32
    %487 = tpu.dynamic_rotate %296 by %c489_i32_233 dim 1 : vector<8x512xf32>, i32 -> vector<8x512xf32>
    %c32_234 = arith.constant 32 : index
    %c0_235 = arith.constant 0 : index
    %c0_236 = arith.constant 0 : index
    %488 = vector.load %arg3[%c32_234, %c0_235, %c0_236] : memref<49x8x1xf32, #tpu.memory_space<vmem>>, vector<1x8x1xf32>
    %489 = vector.shape_cast %488 : vector<1x8x1xf32> to vector<8x1xf32>
    %490 = vector.broadcast %489 : vector<8x1xf32> to vector<8x512xf32>
    %491 = arith.mulf %487, %490 : vector<8x512xf32>
    %492 = arith.addf %486, %491 : vector<8x512xf32>
    %c488_i32_237 = arith.constant 488 : i32
    %493 = tpu.dynamic_rotate %296 by %c488_i32_237 dim 1 : vector<8x512xf32>, i32 -> vector<8x512xf32>
    %c33_238 = arith.constant 33 : index
    %c0_239 = arith.constant 0 : index
    %c0_240 = arith.constant 0 : index
    %494 = vector.load %arg3[%c33_238, %c0_239, %c0_240] : memref<49x8x1xf32, #tpu.memory_space<vmem>>, vector<1x8x1xf32>
    %495 = vector.shape_cast %494 : vector<1x8x1xf32> to vector<8x1xf32>
    %496 = vector.broadcast %495 : vector<8x1xf32> to vector<8x512xf32>
    %497 = arith.mulf %493, %496 : vector<8x512xf32>
    %498 = arith.addf %492, %497 : vector<8x512xf32>
    %c487_i32_241 = arith.constant 487 : i32
    %499 = tpu.dynamic_rotate %296 by %c487_i32_241 dim 1 : vector<8x512xf32>, i32 -> vector<8x512xf32>
    %c34_242 = arith.constant 34 : index
    %c0_243 = arith.constant 0 : index
    %c0_244 = arith.constant 0 : index
    %500 = vector.load %arg3[%c34_242, %c0_243, %c0_244] : memref<49x8x1xf32, #tpu.memory_space<vmem>>, vector<1x8x1xf32>
    %501 = vector.shape_cast %500 : vector<1x8x1xf32> to vector<8x1xf32>
    %502 = vector.broadcast %501 : vector<8x1xf32> to vector<8x512xf32>
    %503 = arith.mulf %499, %502 : vector<8x512xf32>
    %504 = arith.addf %498, %503 : vector<8x512xf32>
    %c471_i32_245 = arith.constant 471 : i32
    %505 = tpu.dynamic_rotate %296 by %c471_i32_245 dim 1 : vector<8x512xf32>, i32 -> vector<8x512xf32>
    %c35_246 = arith.constant 35 : index
    %c0_247 = arith.constant 0 : index
    %c0_248 = arith.constant 0 : index
    %506 = vector.load %arg3[%c35_246, %c0_247, %c0_248] : memref<49x8x1xf32, #tpu.memory_space<vmem>>, vector<1x8x1xf32>
    %507 = vector.shape_cast %506 : vector<1x8x1xf32> to vector<8x1xf32>
    %508 = vector.broadcast %507 : vector<8x1xf32> to vector<8x512xf32>
    %509 = arith.mulf %505, %508 : vector<8x512xf32>
    %510 = arith.addf %504, %509 : vector<8x512xf32>
    %c470_i32_249 = arith.constant 470 : i32
    %511 = tpu.dynamic_rotate %296 by %c470_i32_249 dim 1 : vector<8x512xf32>, i32 -> vector<8x512xf32>
    %c36_250 = arith.constant 36 : index
    %c0_251 = arith.constant 0 : index
    %c0_252 = arith.constant 0 : index
    %512 = vector.load %arg3[%c36_250, %c0_251, %c0_252] : memref<49x8x1xf32, #tpu.memory_space<vmem>>, vector<1x8x1xf32>
    %513 = vector.shape_cast %512 : vector<1x8x1xf32> to vector<8x1xf32>
    %514 = vector.broadcast %513 : vector<8x1xf32> to vector<8x512xf32>
    %515 = arith.mulf %511, %514 : vector<8x512xf32>
    %516 = arith.addf %510, %515 : vector<8x512xf32>
    %c469_i32_253 = arith.constant 469 : i32
    %517 = tpu.dynamic_rotate %296 by %c469_i32_253 dim 1 : vector<8x512xf32>, i32 -> vector<8x512xf32>
    %c37_254 = arith.constant 37 : index
    %c0_255 = arith.constant 0 : index
    %c0_256 = arith.constant 0 : index
    %518 = vector.load %arg3[%c37_254, %c0_255, %c0_256] : memref<49x8x1xf32, #tpu.memory_space<vmem>>, vector<1x8x1xf32>
    %519 = vector.shape_cast %518 : vector<1x8x1xf32> to vector<8x1xf32>
    %520 = vector.broadcast %519 : vector<8x1xf32> to vector<8x512xf32>
    %521 = arith.mulf %517, %520 : vector<8x512xf32>
    %522 = arith.addf %516, %521 : vector<8x512xf32>
    %c468_i32_257 = arith.constant 468 : i32
    %523 = tpu.dynamic_rotate %296 by %c468_i32_257 dim 1 : vector<8x512xf32>, i32 -> vector<8x512xf32>
    %c38_258 = arith.constant 38 : index
    %c0_259 = arith.constant 0 : index
    %c0_260 = arith.constant 0 : index
    %524 = vector.load %arg3[%c38_258, %c0_259, %c0_260] : memref<49x8x1xf32, #tpu.memory_space<vmem>>, vector<1x8x1xf32>
    %525 = vector.shape_cast %524 : vector<1x8x1xf32> to vector<8x1xf32>
    %526 = vector.broadcast %525 : vector<8x1xf32> to vector<8x512xf32>
    %527 = arith.mulf %523, %526 : vector<8x512xf32>
    %528 = arith.addf %522, %527 : vector<8x512xf32>
    %c467_i32_261 = arith.constant 467 : i32
    %529 = tpu.dynamic_rotate %296 by %c467_i32_261 dim 1 : vector<8x512xf32>, i32 -> vector<8x512xf32>
    %c39_262 = arith.constant 39 : index
    %c0_263 = arith.constant 0 : index
    %c0_264 = arith.constant 0 : index
    %530 = vector.load %arg3[%c39_262, %c0_263, %c0_264] : memref<49x8x1xf32, #tpu.memory_space<vmem>>, vector<1x8x1xf32>
    %531 = vector.shape_cast %530 : vector<1x8x1xf32> to vector<8x1xf32>
    %532 = vector.broadcast %531 : vector<8x1xf32> to vector<8x512xf32>
    %533 = arith.mulf %529, %532 : vector<8x512xf32>
    %534 = arith.addf %528, %533 : vector<8x512xf32>
    %c466_i32_265 = arith.constant 466 : i32
    %535 = tpu.dynamic_rotate %296 by %c466_i32_265 dim 1 : vector<8x512xf32>, i32 -> vector<8x512xf32>
    %c40_266 = arith.constant 40 : index
    %c0_267 = arith.constant 0 : index
    %c0_268 = arith.constant 0 : index
    %536 = vector.load %arg3[%c40_266, %c0_267, %c0_268] : memref<49x8x1xf32, #tpu.memory_space<vmem>>, vector<1x8x1xf32>
    %537 = vector.shape_cast %536 : vector<1x8x1xf32> to vector<8x1xf32>
    %538 = vector.broadcast %537 : vector<8x1xf32> to vector<8x512xf32>
    %539 = arith.mulf %535, %538 : vector<8x512xf32>
    %540 = arith.addf %534, %539 : vector<8x512xf32>
    %c465_i32_269 = arith.constant 465 : i32
    %541 = tpu.dynamic_rotate %296 by %c465_i32_269 dim 1 : vector<8x512xf32>, i32 -> vector<8x512xf32>
    %c41_270 = arith.constant 41 : index
    %c0_271 = arith.constant 0 : index
    %c0_272 = arith.constant 0 : index
    %542 = vector.load %arg3[%c41_270, %c0_271, %c0_272] : memref<49x8x1xf32, #tpu.memory_space<vmem>>, vector<1x8x1xf32>
    %543 = vector.shape_cast %542 : vector<1x8x1xf32> to vector<8x1xf32>
    %544 = vector.broadcast %543 : vector<8x1xf32> to vector<8x512xf32>
    %545 = arith.mulf %541, %544 : vector<8x512xf32>
    %546 = arith.addf %540, %545 : vector<8x512xf32>
    %c449_i32_273 = arith.constant 449 : i32
    %547 = tpu.dynamic_rotate %296 by %c449_i32_273 dim 1 : vector<8x512xf32>, i32 -> vector<8x512xf32>
    %c42_274 = arith.constant 42 : index
    %c0_275 = arith.constant 0 : index
    %c0_276 = arith.constant 0 : index
    %548 = vector.load %arg3[%c42_274, %c0_275, %c0_276] : memref<49x8x1xf32, #tpu.memory_space<vmem>>, vector<1x8x1xf32>
    %549 = vector.shape_cast %548 : vector<1x8x1xf32> to vector<8x1xf32>
    %550 = vector.broadcast %549 : vector<8x1xf32> to vector<8x512xf32>
    %551 = arith.mulf %547, %550 : vector<8x512xf32>
    %552 = arith.addf %546, %551 : vector<8x512xf32>
    %c448_i32_277 = arith.constant 448 : i32
    %553 = tpu.dynamic_rotate %296 by %c448_i32_277 dim 1 : vector<8x512xf32>, i32 -> vector<8x512xf32>
    %c43_278 = arith.constant 43 : index
    %c0_279 = arith.constant 0 : index
    %c0_280 = arith.constant 0 : index
    %554 = vector.load %arg3[%c43_278, %c0_279, %c0_280] : memref<49x8x1xf32, #tpu.memory_space<vmem>>, vector<1x8x1xf32>
    %555 = vector.shape_cast %554 : vector<1x8x1xf32> to vector<8x1xf32>
    %556 = vector.broadcast %555 : vector<8x1xf32> to vector<8x512xf32>
    %557 = arith.mulf %553, %556 : vector<8x512xf32>
    %558 = arith.addf %552, %557 : vector<8x512xf32>
    %c447_i32_281 = arith.constant 447 : i32
    %559 = tpu.dynamic_rotate %296 by %c447_i32_281 dim 1 : vector<8x512xf32>, i32 -> vector<8x512xf32>
    %c44_282 = arith.constant 44 : index
    %c0_283 = arith.constant 0 : index
    %c0_284 = arith.constant 0 : index
    %560 = vector.load %arg3[%c44_282, %c0_283, %c0_284] : memref<49x8x1xf32, #tpu.memory_space<vmem>>, vector<1x8x1xf32>
    %561 = vector.shape_cast %560 : vector<1x8x1xf32> to vector<8x1xf32>
    %562 = vector.broadcast %561 : vector<8x1xf32> to vector<8x512xf32>
    %563 = arith.mulf %559, %562 : vector<8x512xf32>
    %564 = arith.addf %558, %563 : vector<8x512xf32>
    %c446_i32_285 = arith.constant 446 : i32
    %565 = tpu.dynamic_rotate %296 by %c446_i32_285 dim 1 : vector<8x512xf32>, i32 -> vector<8x512xf32>
    %c45_286 = arith.constant 45 : index
    %c0_287 = arith.constant 0 : index
    %c0_288 = arith.constant 0 : index
    %566 = vector.load %arg3[%c45_286, %c0_287, %c0_288] : memref<49x8x1xf32, #tpu.memory_space<vmem>>, vector<1x8x1xf32>
    %567 = vector.shape_cast %566 : vector<1x8x1xf32> to vector<8x1xf32>
    %568 = vector.broadcast %567 : vector<8x1xf32> to vector<8x512xf32>
    %569 = arith.mulf %565, %568 : vector<8x512xf32>
    %570 = arith.addf %564, %569 : vector<8x512xf32>
    %c445_i32_289 = arith.constant 445 : i32
    %571 = tpu.dynamic_rotate %296 by %c445_i32_289 dim 1 : vector<8x512xf32>, i32 -> vector<8x512xf32>
    %c46_290 = arith.constant 46 : index
    %c0_291 = arith.constant 0 : index
    %c0_292 = arith.constant 0 : index
    %572 = vector.load %arg3[%c46_290, %c0_291, %c0_292] : memref<49x8x1xf32, #tpu.memory_space<vmem>>, vector<1x8x1xf32>
    %573 = vector.shape_cast %572 : vector<1x8x1xf32> to vector<8x1xf32>
    %574 = vector.broadcast %573 : vector<8x1xf32> to vector<8x512xf32>
    %575 = arith.mulf %571, %574 : vector<8x512xf32>
    %576 = arith.addf %570, %575 : vector<8x512xf32>
    %c444_i32_293 = arith.constant 444 : i32
    %577 = tpu.dynamic_rotate %296 by %c444_i32_293 dim 1 : vector<8x512xf32>, i32 -> vector<8x512xf32>
    %c47_294 = arith.constant 47 : index
    %c0_295 = arith.constant 0 : index
    %c0_296 = arith.constant 0 : index
    %578 = vector.load %arg3[%c47_294, %c0_295, %c0_296] : memref<49x8x1xf32, #tpu.memory_space<vmem>>, vector<1x8x1xf32>
    %579 = vector.shape_cast %578 : vector<1x8x1xf32> to vector<8x1xf32>
    %580 = vector.broadcast %579 : vector<8x1xf32> to vector<8x512xf32>
    %581 = arith.mulf %577, %580 : vector<8x512xf32>
    %582 = arith.addf %576, %581 : vector<8x512xf32>
    %c443_i32_297 = arith.constant 443 : i32
    %583 = tpu.dynamic_rotate %296 by %c443_i32_297 dim 1 : vector<8x512xf32>, i32 -> vector<8x512xf32>
    %c48_298 = arith.constant 48 : index
    %c0_299 = arith.constant 0 : index
    %c0_300 = arith.constant 0 : index
    %584 = vector.load %arg3[%c48_298, %c0_299, %c0_300] : memref<49x8x1xf32, #tpu.memory_space<vmem>>, vector<1x8x1xf32>
    %585 = vector.shape_cast %584 : vector<1x8x1xf32> to vector<8x1xf32>
    %586 = vector.broadcast %585 : vector<8x1xf32> to vector<8x512xf32>
    %587 = arith.mulf %583, %586 : vector<8x512xf32>
    %588 = arith.addf %582, %587 : vector<8x512xf32>
    %cst = arith.constant dense<0.000000e+00> : vector<8x1xf32>
    %589 = tpu.matmul %294, %0, %cst {dimension_numbers = #tpu.dot_dimension_numbers<[1], [1], [0], [0], [0, 0, 1, 0], [], []>} : vector<8x512xf32>, vector<1x512xf32>, vector<8x1xf32> -> vector<8x1xf32>
    %590 = arith.mulf %294, %294 : vector<8x512xf32>
    %cst_301 = arith.constant dense<0.000000e+00> : vector<8x1xf32>
    %591 = tpu.matmul %590, %0, %cst_301 {dimension_numbers = #tpu.dot_dimension_numbers<[1], [1], [0], [0], [0, 0, 1, 0], [], []>} : vector<8x512xf32>, vector<1x512xf32>, vector<8x1xf32> -> vector<8x1xf32>
    %cst_302 = arith.constant dense<0.000000e+00> : vector<8x1xf32>
    %592 = tpu.matmul %588, %0, %cst_302 {dimension_numbers = #tpu.dot_dimension_numbers<[1], [1], [0], [0], [0, 0, 1, 0], [], []>} : vector<8x512xf32>, vector<1x512xf32>, vector<8x1xf32> -> vector<8x1xf32>
    %593 = arith.mulf %588, %588 : vector<8x512xf32>
    %cst_303 = arith.constant dense<0.000000e+00> : vector<8x1xf32>
    %594 = tpu.matmul %593, %0, %cst_303 {dimension_numbers = #tpu.dot_dimension_numbers<[1], [1], [0], [0], [0, 0, 1, 0], [], []>} : vector<8x512xf32>, vector<1x512xf32>, vector<8x1xf32> -> vector<8x1xf32>
    %595 = arith.addf %589, %592 : vector<8x1xf32>
    %596 = arith.addf %591, %594 : vector<8x1xf32>
    %cst_304 = arith.constant 0.001953125 : f32
    %597 = vector.broadcast %cst_304 : f32 to vector<8x1xf32>
    %598 = arith.mulf %595, %597 : vector<8x1xf32>
    %cst_305 = arith.constant 0.001953125 : f32
    %599 = vector.broadcast %cst_305 : f32 to vector<8x1xf32>
    %600 = arith.mulf %596, %599 : vector<8x1xf32>
    %601 = arith.mulf %598, %598 : vector<8x1xf32>
    %602 = arith.subf %600, %601 : vector<8x1xf32>
    %cst_306 = arith.constant 0.000000e+00 : f32
    %603 = vector.broadcast %cst_306 : f32 to vector<8x1xf32>
    %604 = arith.maximumf %602, %603 : vector<8x1xf32>
    %c0_307 = arith.constant 0 : index
    %c0_308 = arith.constant 0 : index
    %605 = vector.load %arg6[%c0_307, %c0_308] : memref<32x8xf32, #tpu.memory_space<vmem>>, vector<32x8xf32>
    %c0_309 = arith.constant 0 : index
    %c0_310 = arith.constant 0 : index
    %606 = vector.load %arg7[%c0_309, %c0_310] : memref<32x1xf32, #tpu.memory_space<vmem>>, vector<32x1xf32>
    %c0_311 = arith.constant 0 : index
    %c0_312 = arith.constant 0 : index
    %607 = vector.load %arg4[%c0_311, %c0_312] : memref<8x1xf32, #tpu.memory_space<vmem>>, vector<8x1xf32>
    %c0_313 = arith.constant 0 : index
    %c0_314 = arith.constant 0 : index
    %608 = vector.load %arg5[%c0_313, %c0_314] : memref<8x1xf32, #tpu.memory_space<vmem>>, vector<8x1xf32>
    %cst_315 = arith.constant 9.99999974E-6 : f32
    %609 = vector.broadcast %cst_315 : f32 to vector<8x1xf32>
    %610 = arith.addf %604, %609 : vector<8x1xf32>
    %611 = math.rsqrt %610 : vector<8x1xf32>
    %612 = arith.mulf %607, %611 : vector<8x1xf32>
    %613 = arith.mulf %598, %612 : vector<8x1xf32>
    %614 = arith.subf %608, %613 : vector<8x1xf32>
    %615 = tpu.iota {dimensions = array<i32: 0>} : vector<8x8xi32>
    %616 = tpu.iota {dimensions = array<i32: 1>} : vector<8x8xi32>
    %617 = arith.cmpi eq, %615, %616 : vector<8x8xi32>
    %618 = arith.extui %617 : vector<8x8xi1> to vector<8x8xi32>
    %619 = arith.sitofp %618 : vector<8x8xi32> to vector<8x8xf32>
    %620 = vector.broadcast %612 : vector<8x1xf32> to vector<8x8xf32>
    %621 = arith.mulf %619, %620 : vector<8x8xf32>
    %cst_316 = arith.constant dense<0.000000e+00> : vector<32x8xf32>
    %622 = tpu.matmul %605, %621, %cst_316 {dimension_numbers = #tpu.dot_dimension_numbers<[1], [0], [0], [1], [0, 0, 1, 1], [], []>} : vector<32x8xf32>, vector<8x8xf32>, vector<32x8xf32> -> vector<32x8xf32>
    %cst_317 = arith.constant dense<0.000000e+00> : vector<32x1xf32>
    %623 = tpu.matmul %605, %614, %cst_317 {dimension_numbers = #tpu.dot_dimension_numbers<[1], [0], [0], [1], [0, 0, 1, 1], [], []>} : vector<32x8xf32>, vector<8x1xf32>, vector<32x1xf32> -> vector<32x1xf32>
    %624 = arith.addf %623, %606 : vector<32x1xf32>
    %c0_318 = arith.constant 0 : index
    %c0_319 = arith.constant 0 : index
    %625 = vector.load %arg8[%c0_318, %c0_319] : memref<4x32xf32, #tpu.memory_space<vmem>>, vector<4x32xf32>
    %c0_320 = arith.constant 0 : index
    %c0_321 = arith.constant 0 : index
    %626 = vector.load %arg9[%c0_320, %c0_321] : memref<4x1xf32, #tpu.memory_space<vmem>>, vector<4x1xf32>
    %cst_322 = arith.constant dense<0.000000e+00> : vector<32x512xf32>
    %627 = tpu.matmul %622, %294, %cst_322 {dimension_numbers = #tpu.dot_dimension_numbers<[1], [0], [0], [1], [0, 0, 1, 1], [], []>} : vector<32x8xf32>, vector<8x512xf32>, vector<32x512xf32> -> vector<32x512xf32>
    %628 = vector.broadcast %624 : vector<32x1xf32> to vector<32x512xf32>
    %629 = arith.addf %627, %628 : vector<32x512xf32>
    %cst_323 = arith.constant 0.000000e+00 : f32
    %630 = vector.broadcast %cst_323 : f32 to vector<32x512xf32>
    %631 = arith.maximumf %629, %630 : vector<32x512xf32>
    %cst_324 = arith.constant dense<0.000000e+00> : vector<4x512xf32>
    %632 = tpu.matmul %625, %631, %cst_324 {dimension_numbers = #tpu.dot_dimension_numbers<[1], [0], [0], [1], [0, 0, 1, 1], [], []>} : vector<4x32xf32>, vector<32x512xf32>, vector<4x512xf32> -> vector<4x512xf32>
    %633 = vector.broadcast %626 : vector<4x1xf32> to vector<4x512xf32>
    %634 = arith.addf %632, %633 : vector<4x512xf32>
    %635 = vector.broadcast %0 : vector<1x512xf32> to vector<4x512xf32>
    %636 = arith.mulf %634, %635 : vector<4x512xf32>
    %c69_i32_325 = arith.constant 69 : i32
    %637 = tpu.dynamic_rotate %636 by %c69_i32_325 dim 1 : vector<4x512xf32>, i32 -> vector<4x512xf32>
    %c0_326 = arith.constant 0 : index
    %c0_327 = arith.constant 0 : index
    %c0_328 = arith.constant 0 : index
    %638 = vector.load %arg10[%c0_326, %c0_327, %c0_328] : memref<49x4x1xf32, #tpu.memory_space<vmem>>, vector<1x4x1xf32>
    %639 = vector.shape_cast %638 : vector<1x4x1xf32> to vector<4x1xf32>
    %640 = vector.broadcast %639 : vector<4x1xf32> to vector<4x512xf32>
    %641 = arith.mulf %637, %640 : vector<4x512xf32>
    %c68_i32_329 = arith.constant 68 : i32
    %642 = tpu.dynamic_rotate %636 by %c68_i32_329 dim 1 : vector<4x512xf32>, i32 -> vector<4x512xf32>
    %c1_330 = arith.constant 1 : index
    %c0_331 = arith.constant 0 : index
    %c0_332 = arith.constant 0 : index
    %643 = vector.load %arg10[%c1_330, %c0_331, %c0_332] : memref<49x4x1xf32, #tpu.memory_space<vmem>>, vector<1x4x1xf32>
    %644 = vector.shape_cast %643 : vector<1x4x1xf32> to vector<4x1xf32>
    %645 = vector.broadcast %644 : vector<4x1xf32> to vector<4x512xf32>
    %646 = arith.mulf %642, %645 : vector<4x512xf32>
    %647 = arith.addf %641, %646 : vector<4x512xf32>
    %c67_i32_333 = arith.constant 67 : i32
    %648 = tpu.dynamic_rotate %636 by %c67_i32_333 dim 1 : vector<4x512xf32>, i32 -> vector<4x512xf32>
    %c2_334 = arith.constant 2 : index
    %c0_335 = arith.constant 0 : index
    %c0_336 = arith.constant 0 : index
    %649 = vector.load %arg10[%c2_334, %c0_335, %c0_336] : memref<49x4x1xf32, #tpu.memory_space<vmem>>, vector<1x4x1xf32>
    %650 = vector.shape_cast %649 : vector<1x4x1xf32> to vector<4x1xf32>
    %651 = vector.broadcast %650 : vector<4x1xf32> to vector<4x512xf32>
    %652 = arith.mulf %648, %651 : vector<4x512xf32>
    %653 = arith.addf %647, %652 : vector<4x512xf32>
    %c66_i32_337 = arith.constant 66 : i32
    %654 = tpu.dynamic_rotate %636 by %c66_i32_337 dim 1 : vector<4x512xf32>, i32 -> vector<4x512xf32>
    %c3_338 = arith.constant 3 : index
    %c0_339 = arith.constant 0 : index
    %c0_340 = arith.constant 0 : index
    %655 = vector.load %arg10[%c3_338, %c0_339, %c0_340] : memref<49x4x1xf32, #tpu.memory_space<vmem>>, vector<1x4x1xf32>
    %656 = vector.shape_cast %655 : vector<1x4x1xf32> to vector<4x1xf32>
    %657 = vector.broadcast %656 : vector<4x1xf32> to vector<4x512xf32>
    %658 = arith.mulf %654, %657 : vector<4x512xf32>
    %659 = arith.addf %653, %658 : vector<4x512xf32>
    %c65_i32_341 = arith.constant 65 : i32
    %660 = tpu.dynamic_rotate %636 by %c65_i32_341 dim 1 : vector<4x512xf32>, i32 -> vector<4x512xf32>
    %c4_342 = arith.constant 4 : index
    %c0_343 = arith.constant 0 : index
    %c0_344 = arith.constant 0 : index
    %661 = vector.load %arg10[%c4_342, %c0_343, %c0_344] : memref<49x4x1xf32, #tpu.memory_space<vmem>>, vector<1x4x1xf32>
    %662 = vector.shape_cast %661 : vector<1x4x1xf32> to vector<4x1xf32>
    %663 = vector.broadcast %662 : vector<4x1xf32> to vector<4x512xf32>
    %664 = arith.mulf %660, %663 : vector<4x512xf32>
    %665 = arith.addf %659, %664 : vector<4x512xf32>
    %c64_i32_345 = arith.constant 64 : i32
    %666 = tpu.dynamic_rotate %636 by %c64_i32_345 dim 1 : vector<4x512xf32>, i32 -> vector<4x512xf32>
    %c5_346 = arith.constant 5 : index
    %c0_347 = arith.constant 0 : index
    %c0_348 = arith.constant 0 : index
    %667 = vector.load %arg10[%c5_346, %c0_347, %c0_348] : memref<49x4x1xf32, #tpu.memory_space<vmem>>, vector<1x4x1xf32>
    %668 = vector.shape_cast %667 : vector<1x4x1xf32> to vector<4x1xf32>
    %669 = vector.broadcast %668 : vector<4x1xf32> to vector<4x512xf32>
    %670 = arith.mulf %666, %669 : vector<4x512xf32>
    %671 = arith.addf %665, %670 : vector<4x512xf32>
    %c63_i32_349 = arith.constant 63 : i32
    %672 = tpu.dynamic_rotate %636 by %c63_i32_349 dim 1 : vector<4x512xf32>, i32 -> vector<4x512xf32>
    %c6_350 = arith.constant 6 : index
    %c0_351 = arith.constant 0 : index
    %c0_352 = arith.constant 0 : index
    %673 = vector.load %arg10[%c6_350, %c0_351, %c0_352] : memref<49x4x1xf32, #tpu.memory_space<vmem>>, vector<1x4x1xf32>
    %674 = vector.shape_cast %673 : vector<1x4x1xf32> to vector<4x1xf32>
    %675 = vector.broadcast %674 : vector<4x1xf32> to vector<4x512xf32>
    %676 = arith.mulf %672, %675 : vector<4x512xf32>
    %677 = arith.addf %671, %676 : vector<4x512xf32>
    %c47_i32_353 = arith.constant 47 : i32
    %678 = tpu.dynamic_rotate %636 by %c47_i32_353 dim 1 : vector<4x512xf32>, i32 -> vector<4x512xf32>
    %c7_354 = arith.constant 7 : index
    %c0_355 = arith.constant 0 : index
    %c0_356 = arith.constant 0 : index
    %679 = vector.load %arg10[%c7_354, %c0_355, %c0_356] : memref<49x4x1xf32, #tpu.memory_space<vmem>>, vector<1x4x1xf32>
    %680 = vector.shape_cast %679 : vector<1x4x1xf32> to vector<4x1xf32>
    %681 = vector.broadcast %680 : vector<4x1xf32> to vector<4x512xf32>
    %682 = arith.mulf %678, %681 : vector<4x512xf32>
    %683 = arith.addf %677, %682 : vector<4x512xf32>
    %c46_i32_357 = arith.constant 46 : i32
    %684 = tpu.dynamic_rotate %636 by %c46_i32_357 dim 1 : vector<4x512xf32>, i32 -> vector<4x512xf32>
    %c8_358 = arith.constant 8 : index
    %c0_359 = arith.constant 0 : index
    %c0_360 = arith.constant 0 : index
    %685 = vector.load %arg10[%c8_358, %c0_359, %c0_360] : memref<49x4x1xf32, #tpu.memory_space<vmem>>, vector<1x4x1xf32>
    %686 = vector.shape_cast %685 : vector<1x4x1xf32> to vector<4x1xf32>
    %687 = vector.broadcast %686 : vector<4x1xf32> to vector<4x512xf32>
    %688 = arith.mulf %684, %687 : vector<4x512xf32>
    %689 = arith.addf %683, %688 : vector<4x512xf32>
    %c45_i32_361 = arith.constant 45 : i32
    %690 = tpu.dynamic_rotate %636 by %c45_i32_361 dim 1 : vector<4x512xf32>, i32 -> vector<4x512xf32>
    %c9_362 = arith.constant 9 : index
    %c0_363 = arith.constant 0 : index
    %c0_364 = arith.constant 0 : index
    %691 = vector.load %arg10[%c9_362, %c0_363, %c0_364] : memref<49x4x1xf32, #tpu.memory_space<vmem>>, vector<1x4x1xf32>
    %692 = vector.shape_cast %691 : vector<1x4x1xf32> to vector<4x1xf32>
    %693 = vector.broadcast %692 : vector<4x1xf32> to vector<4x512xf32>
    %694 = arith.mulf %690, %693 : vector<4x512xf32>
    %695 = arith.addf %689, %694 : vector<4x512xf32>
    %c44_i32_365 = arith.constant 44 : i32
    %696 = tpu.dynamic_rotate %636 by %c44_i32_365 dim 1 : vector<4x512xf32>, i32 -> vector<4x512xf32>
    %c10_366 = arith.constant 10 : index
    %c0_367 = arith.constant 0 : index
    %c0_368 = arith.constant 0 : index
    %697 = vector.load %arg10[%c10_366, %c0_367, %c0_368] : memref<49x4x1xf32, #tpu.memory_space<vmem>>, vector<1x4x1xf32>
    %698 = vector.shape_cast %697 : vector<1x4x1xf32> to vector<4x1xf32>
    %699 = vector.broadcast %698 : vector<4x1xf32> to vector<4x512xf32>
    %700 = arith.mulf %696, %699 : vector<4x512xf32>
    %701 = arith.addf %695, %700 : vector<4x512xf32>
    %c43_i32_369 = arith.constant 43 : i32
    %702 = tpu.dynamic_rotate %636 by %c43_i32_369 dim 1 : vector<4x512xf32>, i32 -> vector<4x512xf32>
    %c11_370 = arith.constant 11 : index
    %c0_371 = arith.constant 0 : index
    %c0_372 = arith.constant 0 : index
    %703 = vector.load %arg10[%c11_370, %c0_371, %c0_372] : memref<49x4x1xf32, #tpu.memory_space<vmem>>, vector<1x4x1xf32>
    %704 = vector.shape_cast %703 : vector<1x4x1xf32> to vector<4x1xf32>
    %705 = vector.broadcast %704 : vector<4x1xf32> to vector<4x512xf32>
    %706 = arith.mulf %702, %705 : vector<4x512xf32>
    %707 = arith.addf %701, %706 : vector<4x512xf32>
    %c42_i32_373 = arith.constant 42 : i32
    %708 = tpu.dynamic_rotate %636 by %c42_i32_373 dim 1 : vector<4x512xf32>, i32 -> vector<4x512xf32>
    %c12_374 = arith.constant 12 : index
    %c0_375 = arith.constant 0 : index
    %c0_376 = arith.constant 0 : index
    %709 = vector.load %arg10[%c12_374, %c0_375, %c0_376] : memref<49x4x1xf32, #tpu.memory_space<vmem>>, vector<1x4x1xf32>
    %710 = vector.shape_cast %709 : vector<1x4x1xf32> to vector<4x1xf32>
    %711 = vector.broadcast %710 : vector<4x1xf32> to vector<4x512xf32>
    %712 = arith.mulf %708, %711 : vector<4x512xf32>
    %713 = arith.addf %707, %712 : vector<4x512xf32>
    %c41_i32_377 = arith.constant 41 : i32
    %714 = tpu.dynamic_rotate %636 by %c41_i32_377 dim 1 : vector<4x512xf32>, i32 -> vector<4x512xf32>
    %c13_378 = arith.constant 13 : index
    %c0_379 = arith.constant 0 : index
    %c0_380 = arith.constant 0 : index
    %715 = vector.load %arg10[%c13_378, %c0_379, %c0_380] : memref<49x4x1xf32, #tpu.memory_space<vmem>>, vector<1x4x1xf32>
    %716 = vector.shape_cast %715 : vector<1x4x1xf32> to vector<4x1xf32>
    %717 = vector.broadcast %716 : vector<4x1xf32> to vector<4x512xf32>
    %718 = arith.mulf %714, %717 : vector<4x512xf32>
    %719 = arith.addf %713, %718 : vector<4x512xf32>
    %c25_i32_381 = arith.constant 25 : i32
    %720 = tpu.dynamic_rotate %636 by %c25_i32_381 dim 1 : vector<4x512xf32>, i32 -> vector<4x512xf32>
    %c14_382 = arith.constant 14 : index
    %c0_383 = arith.constant 0 : index
    %c0_384 = arith.constant 0 : index
    %721 = vector.load %arg10[%c14_382, %c0_383, %c0_384] : memref<49x4x1xf32, #tpu.memory_space<vmem>>, vector<1x4x1xf32>
    %722 = vector.shape_cast %721 : vector<1x4x1xf32> to vector<4x1xf32>
    %723 = vector.broadcast %722 : vector<4x1xf32> to vector<4x512xf32>
    %724 = arith.mulf %720, %723 : vector<4x512xf32>
    %725 = arith.addf %719, %724 : vector<4x512xf32>
    %c24_i32_385 = arith.constant 24 : i32
    %726 = tpu.dynamic_rotate %636 by %c24_i32_385 dim 1 : vector<4x512xf32>, i32 -> vector<4x512xf32>
    %c15_386 = arith.constant 15 : index
    %c0_387 = arith.constant 0 : index
    %c0_388 = arith.constant 0 : index
    %727 = vector.load %arg10[%c15_386, %c0_387, %c0_388] : memref<49x4x1xf32, #tpu.memory_space<vmem>>, vector<1x4x1xf32>
    %728 = vector.shape_cast %727 : vector<1x4x1xf32> to vector<4x1xf32>
    %729 = vector.broadcast %728 : vector<4x1xf32> to vector<4x512xf32>
    %730 = arith.mulf %726, %729 : vector<4x512xf32>
    %731 = arith.addf %725, %730 : vector<4x512xf32>
    %c23_i32_389 = arith.constant 23 : i32
    %732 = tpu.dynamic_rotate %636 by %c23_i32_389 dim 1 : vector<4x512xf32>, i32 -> vector<4x512xf32>
    %c16_390 = arith.constant 16 : index
    %c0_391 = arith.constant 0 : index
    %c0_392 = arith.constant 0 : index
    %733 = vector.load %arg10[%c16_390, %c0_391, %c0_392] : memref<49x4x1xf32, #tpu.memory_space<vmem>>, vector<1x4x1xf32>
    %734 = vector.shape_cast %733 : vector<1x4x1xf32> to vector<4x1xf32>
    %735 = vector.broadcast %734 : vector<4x1xf32> to vector<4x512xf32>
    %736 = arith.mulf %732, %735 : vector<4x512xf32>
    %737 = arith.addf %731, %736 : vector<4x512xf32>
    %c22_i32_393 = arith.constant 22 : i32
    %738 = tpu.dynamic_rotate %636 by %c22_i32_393 dim 1 : vector<4x512xf32>, i32 -> vector<4x512xf32>
    %c17_394 = arith.constant 17 : index
    %c0_395 = arith.constant 0 : index
    %c0_396 = arith.constant 0 : index
    %739 = vector.load %arg10[%c17_394, %c0_395, %c0_396] : memref<49x4x1xf32, #tpu.memory_space<vmem>>, vector<1x4x1xf32>
    %740 = vector.shape_cast %739 : vector<1x4x1xf32> to vector<4x1xf32>
    %741 = vector.broadcast %740 : vector<4x1xf32> to vector<4x512xf32>
    %742 = arith.mulf %738, %741 : vector<4x512xf32>
    %743 = arith.addf %737, %742 : vector<4x512xf32>
    %c21_i32_397 = arith.constant 21 : i32
    %744 = tpu.dynamic_rotate %636 by %c21_i32_397 dim 1 : vector<4x512xf32>, i32 -> vector<4x512xf32>
    %c18_398 = arith.constant 18 : index
    %c0_399 = arith.constant 0 : index
    %c0_400 = arith.constant 0 : index
    %745 = vector.load %arg10[%c18_398, %c0_399, %c0_400] : memref<49x4x1xf32, #tpu.memory_space<vmem>>, vector<1x4x1xf32>
    %746 = vector.shape_cast %745 : vector<1x4x1xf32> to vector<4x1xf32>
    %747 = vector.broadcast %746 : vector<4x1xf32> to vector<4x512xf32>
    %748 = arith.mulf %744, %747 : vector<4x512xf32>
    %749 = arith.addf %743, %748 : vector<4x512xf32>
    %c20_i32_401 = arith.constant 20 : i32
    %750 = tpu.dynamic_rotate %636 by %c20_i32_401 dim 1 : vector<4x512xf32>, i32 -> vector<4x512xf32>
    %c19_402 = arith.constant 19 : index
    %c0_403 = arith.constant 0 : index
    %c0_404 = arith.constant 0 : index
    %751 = vector.load %arg10[%c19_402, %c0_403, %c0_404] : memref<49x4x1xf32, #tpu.memory_space<vmem>>, vector<1x4x1xf32>
    %752 = vector.shape_cast %751 : vector<1x4x1xf32> to vector<4x1xf32>
    %753 = vector.broadcast %752 : vector<4x1xf32> to vector<4x512xf32>
    %754 = arith.mulf %750, %753 : vector<4x512xf32>
    %755 = arith.addf %749, %754 : vector<4x512xf32>
    %c19_i32_405 = arith.constant 19 : i32
    %756 = tpu.dynamic_rotate %636 by %c19_i32_405 dim 1 : vector<4x512xf32>, i32 -> vector<4x512xf32>
    %c20_406 = arith.constant 20 : index
    %c0_407 = arith.constant 0 : index
    %c0_408 = arith.constant 0 : index
    %757 = vector.load %arg10[%c20_406, %c0_407, %c0_408] : memref<49x4x1xf32, #tpu.memory_space<vmem>>, vector<1x4x1xf32>
    %758 = vector.shape_cast %757 : vector<1x4x1xf32> to vector<4x1xf32>
    %759 = vector.broadcast %758 : vector<4x1xf32> to vector<4x512xf32>
    %760 = arith.mulf %756, %759 : vector<4x512xf32>
    %761 = arith.addf %755, %760 : vector<4x512xf32>
    %c3_i32_409 = arith.constant 3 : i32
    %762 = tpu.dynamic_rotate %636 by %c3_i32_409 dim 1 : vector<4x512xf32>, i32 -> vector<4x512xf32>
    %c21_410 = arith.constant 21 : index
    %c0_411 = arith.constant 0 : index
    %c0_412 = arith.constant 0 : index
    %763 = vector.load %arg10[%c21_410, %c0_411, %c0_412] : memref<49x4x1xf32, #tpu.memory_space<vmem>>, vector<1x4x1xf32>
    %764 = vector.shape_cast %763 : vector<1x4x1xf32> to vector<4x1xf32>
    %765 = vector.broadcast %764 : vector<4x1xf32> to vector<4x512xf32>
    %766 = arith.mulf %762, %765 : vector<4x512xf32>
    %767 = arith.addf %761, %766 : vector<4x512xf32>
    %c2_i32_413 = arith.constant 2 : i32
    %768 = tpu.dynamic_rotate %636 by %c2_i32_413 dim 1 : vector<4x512xf32>, i32 -> vector<4x512xf32>
    %c22_414 = arith.constant 22 : index
    %c0_415 = arith.constant 0 : index
    %c0_416 = arith.constant 0 : index
    %769 = vector.load %arg10[%c22_414, %c0_415, %c0_416] : memref<49x4x1xf32, #tpu.memory_space<vmem>>, vector<1x4x1xf32>
    %770 = vector.shape_cast %769 : vector<1x4x1xf32> to vector<4x1xf32>
    %771 = vector.broadcast %770 : vector<4x1xf32> to vector<4x512xf32>
    %772 = arith.mulf %768, %771 : vector<4x512xf32>
    %773 = arith.addf %767, %772 : vector<4x512xf32>
    %c1_i32_417 = arith.constant 1 : i32
    %774 = tpu.dynamic_rotate %636 by %c1_i32_417 dim 1 : vector<4x512xf32>, i32 -> vector<4x512xf32>
    %c23_418 = arith.constant 23 : index
    %c0_419 = arith.constant 0 : index
    %c0_420 = arith.constant 0 : index
    %775 = vector.load %arg10[%c23_418, %c0_419, %c0_420] : memref<49x4x1xf32, #tpu.memory_space<vmem>>, vector<1x4x1xf32>
    %776 = vector.shape_cast %775 : vector<1x4x1xf32> to vector<4x1xf32>
    %777 = vector.broadcast %776 : vector<4x1xf32> to vector<4x512xf32>
    %778 = arith.mulf %774, %777 : vector<4x512xf32>
    %779 = arith.addf %773, %778 : vector<4x512xf32>
    %c24_421 = arith.constant 24 : index
    %c0_422 = arith.constant 0 : index
    %c0_423 = arith.constant 0 : index
    %780 = vector.load %arg10[%c24_421, %c0_422, %c0_423] : memref<49x4x1xf32, #tpu.memory_space<vmem>>, vector<1x4x1xf32>
    %781 = vector.shape_cast %780 : vector<1x4x1xf32> to vector<4x1xf32>
    %782 = vector.broadcast %781 : vector<4x1xf32> to vector<4x512xf32>
    %783 = arith.mulf %636, %782 : vector<4x512xf32>
    %784 = arith.addf %779, %783 : vector<4x512xf32>
    %c511_i32_424 = arith.constant 511 : i32
    %785 = tpu.dynamic_rotate %636 by %c511_i32_424 dim 1 : vector<4x512xf32>, i32 -> vector<4x512xf32>
    %c25_425 = arith.constant 25 : index
    %c0_426 = arith.constant 0 : index
    %c0_427 = arith.constant 0 : index
    %786 = vector.load %arg10[%c25_425, %c0_426, %c0_427] : memref<49x4x1xf32, #tpu.memory_space<vmem>>, vector<1x4x1xf32>
    %787 = vector.shape_cast %786 : vector<1x4x1xf32> to vector<4x1xf32>
    %788 = vector.broadcast %787 : vector<4x1xf32> to vector<4x512xf32>
    %789 = arith.mulf %785, %788 : vector<4x512xf32>
    %790 = arith.addf %784, %789 : vector<4x512xf32>
    %c510_i32_428 = arith.constant 510 : i32
    %791 = tpu.dynamic_rotate %636 by %c510_i32_428 dim 1 : vector<4x512xf32>, i32 -> vector<4x512xf32>
    %c26_429 = arith.constant 26 : index
    %c0_430 = arith.constant 0 : index
    %c0_431 = arith.constant 0 : index
    %792 = vector.load %arg10[%c26_429, %c0_430, %c0_431] : memref<49x4x1xf32, #tpu.memory_space<vmem>>, vector<1x4x1xf32>
    %793 = vector.shape_cast %792 : vector<1x4x1xf32> to vector<4x1xf32>
    %794 = vector.broadcast %793 : vector<4x1xf32> to vector<4x512xf32>
    %795 = arith.mulf %791, %794 : vector<4x512xf32>
    %796 = arith.addf %790, %795 : vector<4x512xf32>
    %c509_i32_432 = arith.constant 509 : i32
    %797 = tpu.dynamic_rotate %636 by %c509_i32_432 dim 1 : vector<4x512xf32>, i32 -> vector<4x512xf32>
    %c27_433 = arith.constant 27 : index
    %c0_434 = arith.constant 0 : index
    %c0_435 = arith.constant 0 : index
    %798 = vector.load %arg10[%c27_433, %c0_434, %c0_435] : memref<49x4x1xf32, #tpu.memory_space<vmem>>, vector<1x4x1xf32>
    %799 = vector.shape_cast %798 : vector<1x4x1xf32> to vector<4x1xf32>
    %800 = vector.broadcast %799 : vector<4x1xf32> to vector<4x512xf32>
    %801 = arith.mulf %797, %800 : vector<4x512xf32>
    %802 = arith.addf %796, %801 : vector<4x512xf32>
    %c493_i32_436 = arith.constant 493 : i32
    %803 = tpu.dynamic_rotate %636 by %c493_i32_436 dim 1 : vector<4x512xf32>, i32 -> vector<4x512xf32>
    %c28_437 = arith.constant 28 : index
    %c0_438 = arith.constant 0 : index
    %c0_439 = arith.constant 0 : index
    %804 = vector.load %arg10[%c28_437, %c0_438, %c0_439] : memref<49x4x1xf32, #tpu.memory_space<vmem>>, vector<1x4x1xf32>
    %805 = vector.shape_cast %804 : vector<1x4x1xf32> to vector<4x1xf32>
    %806 = vector.broadcast %805 : vector<4x1xf32> to vector<4x512xf32>
    %807 = arith.mulf %803, %806 : vector<4x512xf32>
    %808 = arith.addf %802, %807 : vector<4x512xf32>
    %c492_i32_440 = arith.constant 492 : i32
    %809 = tpu.dynamic_rotate %636 by %c492_i32_440 dim 1 : vector<4x512xf32>, i32 -> vector<4x512xf32>
    %c29_441 = arith.constant 29 : index
    %c0_442 = arith.constant 0 : index
    %c0_443 = arith.constant 0 : index
    %810 = vector.load %arg10[%c29_441, %c0_442, %c0_443] : memref<49x4x1xf32, #tpu.memory_space<vmem>>, vector<1x4x1xf32>
    %811 = vector.shape_cast %810 : vector<1x4x1xf32> to vector<4x1xf32>
    %812 = vector.broadcast %811 : vector<4x1xf32> to vector<4x512xf32>
    %813 = arith.mulf %809, %812 : vector<4x512xf32>
    %814 = arith.addf %808, %813 : vector<4x512xf32>
    %c491_i32_444 = arith.constant 491 : i32
    %815 = tpu.dynamic_rotate %636 by %c491_i32_444 dim 1 : vector<4x512xf32>, i32 -> vector<4x512xf32>
    %c30_445 = arith.constant 30 : index
    %c0_446 = arith.constant 0 : index
    %c0_447 = arith.constant 0 : index
    %816 = vector.load %arg10[%c30_445, %c0_446, %c0_447] : memref<49x4x1xf32, #tpu.memory_space<vmem>>, vector<1x4x1xf32>
    %817 = vector.shape_cast %816 : vector<1x4x1xf32> to vector<4x1xf32>
    %818 = vector.broadcast %817 : vector<4x1xf32> to vector<4x512xf32>
    %819 = arith.mulf %815, %818 : vector<4x512xf32>
    %820 = arith.addf %814, %819 : vector<4x512xf32>
    %c490_i32_448 = arith.constant 490 : i32
    %821 = tpu.dynamic_rotate %636 by %c490_i32_448 dim 1 : vector<4x512xf32>, i32 -> vector<4x512xf32>
    %c31_449 = arith.constant 31 : index
    %c0_450 = arith.constant 0 : index
    %c0_451 = arith.constant 0 : index
    %822 = vector.load %arg10[%c31_449, %c0_450, %c0_451] : memref<49x4x1xf32, #tpu.memory_space<vmem>>, vector<1x4x1xf32>
    %823 = vector.shape_cast %822 : vector<1x4x1xf32> to vector<4x1xf32>
    %824 = vector.broadcast %823 : vector<4x1xf32> to vector<4x512xf32>
    %825 = arith.mulf %821, %824 : vector<4x512xf32>
    %826 = arith.addf %820, %825 : vector<4x512xf32>
    %c489_i32_452 = arith.constant 489 : i32
    %827 = tpu.dynamic_rotate %636 by %c489_i32_452 dim 1 : vector<4x512xf32>, i32 -> vector<4x512xf32>
    %c32_453 = arith.constant 32 : index
    %c0_454 = arith.constant 0 : index
    %c0_455 = arith.constant 0 : index
    %828 = vector.load %arg10[%c32_453, %c0_454, %c0_455] : memref<49x4x1xf32, #tpu.memory_space<vmem>>, vector<1x4x1xf32>
    %829 = vector.shape_cast %828 : vector<1x4x1xf32> to vector<4x1xf32>
    %830 = vector.broadcast %829 : vector<4x1xf32> to vector<4x512xf32>
    %831 = arith.mulf %827, %830 : vector<4x512xf32>
    %832 = arith.addf %826, %831 : vector<4x512xf32>
    %c488_i32_456 = arith.constant 488 : i32
    %833 = tpu.dynamic_rotate %636 by %c488_i32_456 dim 1 : vector<4x512xf32>, i32 -> vector<4x512xf32>
    %c33_457 = arith.constant 33 : index
    %c0_458 = arith.constant 0 : index
    %c0_459 = arith.constant 0 : index
    %834 = vector.load %arg10[%c33_457, %c0_458, %c0_459] : memref<49x4x1xf32, #tpu.memory_space<vmem>>, vector<1x4x1xf32>
    %835 = vector.shape_cast %834 : vector<1x4x1xf32> to vector<4x1xf32>
    %836 = vector.broadcast %835 : vector<4x1xf32> to vector<4x512xf32>
    %837 = arith.mulf %833, %836 : vector<4x512xf32>
    %838 = arith.addf %832, %837 : vector<4x512xf32>
    %c487_i32_460 = arith.constant 487 : i32
    %839 = tpu.dynamic_rotate %636 by %c487_i32_460 dim 1 : vector<4x512xf32>, i32 -> vector<4x512xf32>
    %c34_461 = arith.constant 34 : index
    %c0_462 = arith.constant 0 : index
    %c0_463 = arith.constant 0 : index
    %840 = vector.load %arg10[%c34_461, %c0_462, %c0_463] : memref<49x4x1xf32, #tpu.memory_space<vmem>>, vector<1x4x1xf32>
    %841 = vector.shape_cast %840 : vector<1x4x1xf32> to vector<4x1xf32>
    %842 = vector.broadcast %841 : vector<4x1xf32> to vector<4x512xf32>
    %843 = arith.mulf %839, %842 : vector<4x512xf32>
    %844 = arith.addf %838, %843 : vector<4x512xf32>
    %c471_i32_464 = arith.constant 471 : i32
    %845 = tpu.dynamic_rotate %636 by %c471_i32_464 dim 1 : vector<4x512xf32>, i32 -> vector<4x512xf32>
    %c35_465 = arith.constant 35 : index
    %c0_466 = arith.constant 0 : index
    %c0_467 = arith.constant 0 : index
    %846 = vector.load %arg10[%c35_465, %c0_466, %c0_467] : memref<49x4x1xf32, #tpu.memory_space<vmem>>, vector<1x4x1xf32>
    %847 = vector.shape_cast %846 : vector<1x4x1xf32> to vector<4x1xf32>
    %848 = vector.broadcast %847 : vector<4x1xf32> to vector<4x512xf32>
    %849 = arith.mulf %845, %848 : vector<4x512xf32>
    %850 = arith.addf %844, %849 : vector<4x512xf32>
    %c470_i32_468 = arith.constant 470 : i32
    %851 = tpu.dynamic_rotate %636 by %c470_i32_468 dim 1 : vector<4x512xf32>, i32 -> vector<4x512xf32>
    %c36_469 = arith.constant 36 : index
    %c0_470 = arith.constant 0 : index
    %c0_471 = arith.constant 0 : index
    %852 = vector.load %arg10[%c36_469, %c0_470, %c0_471] : memref<49x4x1xf32, #tpu.memory_space<vmem>>, vector<1x4x1xf32>
    %853 = vector.shape_cast %852 : vector<1x4x1xf32> to vector<4x1xf32>
    %854 = vector.broadcast %853 : vector<4x1xf32> to vector<4x512xf32>
    %855 = arith.mulf %851, %854 : vector<4x512xf32>
    %856 = arith.addf %850, %855 : vector<4x512xf32>
    %c469_i32_472 = arith.constant 469 : i32
    %857 = tpu.dynamic_rotate %636 by %c469_i32_472 dim 1 : vector<4x512xf32>, i32 -> vector<4x512xf32>
    %c37_473 = arith.constant 37 : index
    %c0_474 = arith.constant 0 : index
    %c0_475 = arith.constant 0 : index
    %858 = vector.load %arg10[%c37_473, %c0_474, %c0_475] : memref<49x4x1xf32, #tpu.memory_space<vmem>>, vector<1x4x1xf32>
    %859 = vector.shape_cast %858 : vector<1x4x1xf32> to vector<4x1xf32>
    %860 = vector.broadcast %859 : vector<4x1xf32> to vector<4x512xf32>
    %861 = arith.mulf %857, %860 : vector<4x512xf32>
    %862 = arith.addf %856, %861 : vector<4x512xf32>
    %c468_i32_476 = arith.constant 468 : i32
    %863 = tpu.dynamic_rotate %636 by %c468_i32_476 dim 1 : vector<4x512xf32>, i32 -> vector<4x512xf32>
    %c38_477 = arith.constant 38 : index
    %c0_478 = arith.constant 0 : index
    %c0_479 = arith.constant 0 : index
    %864 = vector.load %arg10[%c38_477, %c0_478, %c0_479] : memref<49x4x1xf32, #tpu.memory_space<vmem>>, vector<1x4x1xf32>
    %865 = vector.shape_cast %864 : vector<1x4x1xf32> to vector<4x1xf32>
    %866 = vector.broadcast %865 : vector<4x1xf32> to vector<4x512xf32>
    %867 = arith.mulf %863, %866 : vector<4x512xf32>
    %868 = arith.addf %862, %867 : vector<4x512xf32>
    %c467_i32_480 = arith.constant 467 : i32
    %869 = tpu.dynamic_rotate %636 by %c467_i32_480 dim 1 : vector<4x512xf32>, i32 -> vector<4x512xf32>
    %c39_481 = arith.constant 39 : index
    %c0_482 = arith.constant 0 : index
    %c0_483 = arith.constant 0 : index
    %870 = vector.load %arg10[%c39_481, %c0_482, %c0_483] : memref<49x4x1xf32, #tpu.memory_space<vmem>>, vector<1x4x1xf32>
    %871 = vector.shape_cast %870 : vector<1x4x1xf32> to vector<4x1xf32>
    %872 = vector.broadcast %871 : vector<4x1xf32> to vector<4x512xf32>
    %873 = arith.mulf %869, %872 : vector<4x512xf32>
    %874 = arith.addf %868, %873 : vector<4x512xf32>
    %c466_i32_484 = arith.constant 466 : i32
    %875 = tpu.dynamic_rotate %636 by %c466_i32_484 dim 1 : vector<4x512xf32>, i32 -> vector<4x512xf32>
    %c40_485 = arith.constant 40 : index
    %c0_486 = arith.constant 0 : index
    %c0_487 = arith.constant 0 : index
    %876 = vector.load %arg10[%c40_485, %c0_486, %c0_487] : memref<49x4x1xf32, #tpu.memory_space<vmem>>, vector<1x4x1xf32>
    %877 = vector.shape_cast %876 : vector<1x4x1xf32> to vector<4x1xf32>
    %878 = vector.broadcast %877 : vector<4x1xf32> to vector<4x512xf32>
    %879 = arith.mulf %875, %878 : vector<4x512xf32>
    %880 = arith.addf %874, %879 : vector<4x512xf32>
    %c465_i32_488 = arith.constant 465 : i32
    %881 = tpu.dynamic_rotate %636 by %c465_i32_488 dim 1 : vector<4x512xf32>, i32 -> vector<4x512xf32>
    %c41_489 = arith.constant 41 : index
    %c0_490 = arith.constant 0 : index
    %c0_491 = arith.constant 0 : index
    %882 = vector.load %arg10[%c41_489, %c0_490, %c0_491] : memref<49x4x1xf32, #tpu.memory_space<vmem>>, vector<1x4x1xf32>
    %883 = vector.shape_cast %882 : vector<1x4x1xf32> to vector<4x1xf32>
    %884 = vector.broadcast %883 : vector<4x1xf32> to vector<4x512xf32>
    %885 = arith.mulf %881, %884 : vector<4x512xf32>
    %886 = arith.addf %880, %885 : vector<4x512xf32>
    %c449_i32_492 = arith.constant 449 : i32
    %887 = tpu.dynamic_rotate %636 by %c449_i32_492 dim 1 : vector<4x512xf32>, i32 -> vector<4x512xf32>
    %c42_493 = arith.constant 42 : index
    %c0_494 = arith.constant 0 : index
    %c0_495 = arith.constant 0 : index
    %888 = vector.load %arg10[%c42_493, %c0_494, %c0_495] : memref<49x4x1xf32, #tpu.memory_space<vmem>>, vector<1x4x1xf32>
    %889 = vector.shape_cast %888 : vector<1x4x1xf32> to vector<4x1xf32>
    %890 = vector.broadcast %889 : vector<4x1xf32> to vector<4x512xf32>
    %891 = arith.mulf %887, %890 : vector<4x512xf32>
    %892 = arith.addf %886, %891 : vector<4x512xf32>
    %c448_i32_496 = arith.constant 448 : i32
    %893 = tpu.dynamic_rotate %636 by %c448_i32_496 dim 1 : vector<4x512xf32>, i32 -> vector<4x512xf32>
    %c43_497 = arith.constant 43 : index
    %c0_498 = arith.constant 0 : index
    %c0_499 = arith.constant 0 : index
    %894 = vector.load %arg10[%c43_497, %c0_498, %c0_499] : memref<49x4x1xf32, #tpu.memory_space<vmem>>, vector<1x4x1xf32>
    %895 = vector.shape_cast %894 : vector<1x4x1xf32> to vector<4x1xf32>
    %896 = vector.broadcast %895 : vector<4x1xf32> to vector<4x512xf32>
    %897 = arith.mulf %893, %896 : vector<4x512xf32>
    %898 = arith.addf %892, %897 : vector<4x512xf32>
    %c447_i32_500 = arith.constant 447 : i32
    %899 = tpu.dynamic_rotate %636 by %c447_i32_500 dim 1 : vector<4x512xf32>, i32 -> vector<4x512xf32>
    %c44_501 = arith.constant 44 : index
    %c0_502 = arith.constant 0 : index
    %c0_503 = arith.constant 0 : index
    %900 = vector.load %arg10[%c44_501, %c0_502, %c0_503] : memref<49x4x1xf32, #tpu.memory_space<vmem>>, vector<1x4x1xf32>
    %901 = vector.shape_cast %900 : vector<1x4x1xf32> to vector<4x1xf32>
    %902 = vector.broadcast %901 : vector<4x1xf32> to vector<4x512xf32>
    %903 = arith.mulf %899, %902 : vector<4x512xf32>
    %904 = arith.addf %898, %903 : vector<4x512xf32>
    %c446_i32_504 = arith.constant 446 : i32
    %905 = tpu.dynamic_rotate %636 by %c446_i32_504 dim 1 : vector<4x512xf32>, i32 -> vector<4x512xf32>
    %c45_505 = arith.constant 45 : index
    %c0_506 = arith.constant 0 : index
    %c0_507 = arith.constant 0 : index
    %906 = vector.load %arg10[%c45_505, %c0_506, %c0_507] : memref<49x4x1xf32, #tpu.memory_space<vmem>>, vector<1x4x1xf32>
    %907 = vector.shape_cast %906 : vector<1x4x1xf32> to vector<4x1xf32>
    %908 = vector.broadcast %907 : vector<4x1xf32> to vector<4x512xf32>
    %909 = arith.mulf %905, %908 : vector<4x512xf32>
    %910 = arith.addf %904, %909 : vector<4x512xf32>
    %c445_i32_508 = arith.constant 445 : i32
    %911 = tpu.dynamic_rotate %636 by %c445_i32_508 dim 1 : vector<4x512xf32>, i32 -> vector<4x512xf32>
    %c46_509 = arith.constant 46 : index
    %c0_510 = arith.constant 0 : index
    %c0_511 = arith.constant 0 : index
    %912 = vector.load %arg10[%c46_509, %c0_510, %c0_511] : memref<49x4x1xf32, #tpu.memory_space<vmem>>, vector<1x4x1xf32>
    %913 = vector.shape_cast %912 : vector<1x4x1xf32> to vector<4x1xf32>
    %914 = vector.broadcast %913 : vector<4x1xf32> to vector<4x512xf32>
    %915 = arith.mulf %911, %914 : vector<4x512xf32>
    %916 = arith.addf %910, %915 : vector<4x512xf32>
    %c444_i32_512 = arith.constant 444 : i32
    %917 = tpu.dynamic_rotate %636 by %c444_i32_512 dim 1 : vector<4x512xf32>, i32 -> vector<4x512xf32>
    %c47_513 = arith.constant 47 : index
    %c0_514 = arith.constant 0 : index
    %c0_515 = arith.constant 0 : index
    %918 = vector.load %arg10[%c47_513, %c0_514, %c0_515] : memref<49x4x1xf32, #tpu.memory_space<vmem>>, vector<1x4x1xf32>
    %919 = vector.shape_cast %918 : vector<1x4x1xf32> to vector<4x1xf32>
    %920 = vector.broadcast %919 : vector<4x1xf32> to vector<4x512xf32>
    %921 = arith.mulf %917, %920 : vector<4x512xf32>
    %922 = arith.addf %916, %921 : vector<4x512xf32>
    %c443_i32_516 = arith.constant 443 : i32
    %923 = tpu.dynamic_rotate %636 by %c443_i32_516 dim 1 : vector<4x512xf32>, i32 -> vector<4x512xf32>
    %c48_517 = arith.constant 48 : index
    %c0_518 = arith.constant 0 : index
    %c0_519 = arith.constant 0 : index
    %924 = vector.load %arg10[%c48_517, %c0_518, %c0_519] : memref<49x4x1xf32, #tpu.memory_space<vmem>>, vector<1x4x1xf32>
    %925 = vector.shape_cast %924 : vector<1x4x1xf32> to vector<4x1xf32>
    %926 = vector.broadcast %925 : vector<4x1xf32> to vector<4x512xf32>
    %927 = arith.mulf %923, %926 : vector<4x512xf32>
    %928 = arith.addf %922, %927 : vector<4x512xf32>
    %cst_520 = arith.constant dense<0.000000e+00> : vector<32x512xf32>
    %929 = tpu.matmul %622, %588, %cst_520 {dimension_numbers = #tpu.dot_dimension_numbers<[1], [0], [0], [1], [0, 0, 1, 1], [], []>} : vector<32x8xf32>, vector<8x512xf32>, vector<32x512xf32> -> vector<32x512xf32>
    %930 = vector.broadcast %624 : vector<32x1xf32> to vector<32x512xf32>
    %931 = arith.addf %929, %930 : vector<32x512xf32>
    %cst_521 = arith.constant 0.000000e+00 : f32
    %932 = vector.broadcast %cst_521 : f32 to vector<32x512xf32>
    %933 = arith.maximumf %931, %932 : vector<32x512xf32>
    %cst_522 = arith.constant dense<0.000000e+00> : vector<4x512xf32>
    %934 = tpu.matmul %625, %933, %cst_522 {dimension_numbers = #tpu.dot_dimension_numbers<[1], [0], [0], [1], [0, 0, 1, 1], [], []>} : vector<4x32xf32>, vector<32x512xf32>, vector<4x512xf32> -> vector<4x512xf32>
    %935 = vector.broadcast %626 : vector<4x1xf32> to vector<4x512xf32>
    %936 = arith.addf %934, %935 : vector<4x512xf32>
    %937 = vector.broadcast %0 : vector<1x512xf32> to vector<4x512xf32>
    %938 = arith.mulf %936, %937 : vector<4x512xf32>
    %c69_i32_523 = arith.constant 69 : i32
    %939 = tpu.dynamic_rotate %938 by %c69_i32_523 dim 1 : vector<4x512xf32>, i32 -> vector<4x512xf32>
    %c0_524 = arith.constant 0 : index
    %c0_525 = arith.constant 0 : index
    %c0_526 = arith.constant 0 : index
    %940 = vector.load %arg10[%c0_524, %c0_525, %c0_526] : memref<49x4x1xf32, #tpu.memory_space<vmem>>, vector<1x4x1xf32>
    %941 = vector.shape_cast %940 : vector<1x4x1xf32> to vector<4x1xf32>
    %942 = vector.broadcast %941 : vector<4x1xf32> to vector<4x512xf32>
    %943 = arith.mulf %939, %942 : vector<4x512xf32>
    %c68_i32_527 = arith.constant 68 : i32
    %944 = tpu.dynamic_rotate %938 by %c68_i32_527 dim 1 : vector<4x512xf32>, i32 -> vector<4x512xf32>
    %c1_528 = arith.constant 1 : index
    %c0_529 = arith.constant 0 : index
    %c0_530 = arith.constant 0 : index
    %945 = vector.load %arg10[%c1_528, %c0_529, %c0_530] : memref<49x4x1xf32, #tpu.memory_space<vmem>>, vector<1x4x1xf32>
    %946 = vector.shape_cast %945 : vector<1x4x1xf32> to vector<4x1xf32>
    %947 = vector.broadcast %946 : vector<4x1xf32> to vector<4x512xf32>
    %948 = arith.mulf %944, %947 : vector<4x512xf32>
    %949 = arith.addf %943, %948 : vector<4x512xf32>
    %c67_i32_531 = arith.constant 67 : i32
    %950 = tpu.dynamic_rotate %938 by %c67_i32_531 dim 1 : vector<4x512xf32>, i32 -> vector<4x512xf32>
    %c2_532 = arith.constant 2 : index
    %c0_533 = arith.constant 0 : index
    %c0_534 = arith.constant 0 : index
    %951 = vector.load %arg10[%c2_532, %c0_533, %c0_534] : memref<49x4x1xf32, #tpu.memory_space<vmem>>, vector<1x4x1xf32>
    %952 = vector.shape_cast %951 : vector<1x4x1xf32> to vector<4x1xf32>
    %953 = vector.broadcast %952 : vector<4x1xf32> to vector<4x512xf32>
    %954 = arith.mulf %950, %953 : vector<4x512xf32>
    %955 = arith.addf %949, %954 : vector<4x512xf32>
    %c66_i32_535 = arith.constant 66 : i32
    %956 = tpu.dynamic_rotate %938 by %c66_i32_535 dim 1 : vector<4x512xf32>, i32 -> vector<4x512xf32>
    %c3_536 = arith.constant 3 : index
    %c0_537 = arith.constant 0 : index
    %c0_538 = arith.constant 0 : index
    %957 = vector.load %arg10[%c3_536, %c0_537, %c0_538] : memref<49x4x1xf32, #tpu.memory_space<vmem>>, vector<1x4x1xf32>
    %958 = vector.shape_cast %957 : vector<1x4x1xf32> to vector<4x1xf32>
    %959 = vector.broadcast %958 : vector<4x1xf32> to vector<4x512xf32>
    %960 = arith.mulf %956, %959 : vector<4x512xf32>
    %961 = arith.addf %955, %960 : vector<4x512xf32>
    %c65_i32_539 = arith.constant 65 : i32
    %962 = tpu.dynamic_rotate %938 by %c65_i32_539 dim 1 : vector<4x512xf32>, i32 -> vector<4x512xf32>
    %c4_540 = arith.constant 4 : index
    %c0_541 = arith.constant 0 : index
    %c0_542 = arith.constant 0 : index
    %963 = vector.load %arg10[%c4_540, %c0_541, %c0_542] : memref<49x4x1xf32, #tpu.memory_space<vmem>>, vector<1x4x1xf32>
    %964 = vector.shape_cast %963 : vector<1x4x1xf32> to vector<4x1xf32>
    %965 = vector.broadcast %964 : vector<4x1xf32> to vector<4x512xf32>
    %966 = arith.mulf %962, %965 : vector<4x512xf32>
    %967 = arith.addf %961, %966 : vector<4x512xf32>
    %c64_i32_543 = arith.constant 64 : i32
    %968 = tpu.dynamic_rotate %938 by %c64_i32_543 dim 1 : vector<4x512xf32>, i32 -> vector<4x512xf32>
    %c5_544 = arith.constant 5 : index
    %c0_545 = arith.constant 0 : index
    %c0_546 = arith.constant 0 : index
    %969 = vector.load %arg10[%c5_544, %c0_545, %c0_546] : memref<49x4x1xf32, #tpu.memory_space<vmem>>, vector<1x4x1xf32>
    %970 = vector.shape_cast %969 : vector<1x4x1xf32> to vector<4x1xf32>
    %971 = vector.broadcast %970 : vector<4x1xf32> to vector<4x512xf32>
    %972 = arith.mulf %968, %971 : vector<4x512xf32>
    %973 = arith.addf %967, %972 : vector<4x512xf32>
    %c63_i32_547 = arith.constant 63 : i32
    %974 = tpu.dynamic_rotate %938 by %c63_i32_547 dim 1 : vector<4x512xf32>, i32 -> vector<4x512xf32>
    %c6_548 = arith.constant 6 : index
    %c0_549 = arith.constant 0 : index
    %c0_550 = arith.constant 0 : index
    %975 = vector.load %arg10[%c6_548, %c0_549, %c0_550] : memref<49x4x1xf32, #tpu.memory_space<vmem>>, vector<1x4x1xf32>
    %976 = vector.shape_cast %975 : vector<1x4x1xf32> to vector<4x1xf32>
    %977 = vector.broadcast %976 : vector<4x1xf32> to vector<4x512xf32>
    %978 = arith.mulf %974, %977 : vector<4x512xf32>
    %979 = arith.addf %973, %978 : vector<4x512xf32>
    %c47_i32_551 = arith.constant 47 : i32
    %980 = tpu.dynamic_rotate %938 by %c47_i32_551 dim 1 : vector<4x512xf32>, i32 -> vector<4x512xf32>
    %c7_552 = arith.constant 7 : index
    %c0_553 = arith.constant 0 : index
    %c0_554 = arith.constant 0 : index
    %981 = vector.load %arg10[%c7_552, %c0_553, %c0_554] : memref<49x4x1xf32, #tpu.memory_space<vmem>>, vector<1x4x1xf32>
    %982 = vector.shape_cast %981 : vector<1x4x1xf32> to vector<4x1xf32>
    %983 = vector.broadcast %982 : vector<4x1xf32> to vector<4x512xf32>
    %984 = arith.mulf %980, %983 : vector<4x512xf32>
    %985 = arith.addf %979, %984 : vector<4x512xf32>
    %c46_i32_555 = arith.constant 46 : i32
    %986 = tpu.dynamic_rotate %938 by %c46_i32_555 dim 1 : vector<4x512xf32>, i32 -> vector<4x512xf32>
    %c8_556 = arith.constant 8 : index
    %c0_557 = arith.constant 0 : index
    %c0_558 = arith.constant 0 : index
    %987 = vector.load %arg10[%c8_556, %c0_557, %c0_558] : memref<49x4x1xf32, #tpu.memory_space<vmem>>, vector<1x4x1xf32>
    %988 = vector.shape_cast %987 : vector<1x4x1xf32> to vector<4x1xf32>
    %989 = vector.broadcast %988 : vector<4x1xf32> to vector<4x512xf32>
    %990 = arith.mulf %986, %989 : vector<4x512xf32>
    %991 = arith.addf %985, %990 : vector<4x512xf32>
    %c45_i32_559 = arith.constant 45 : i32
    %992 = tpu.dynamic_rotate %938 by %c45_i32_559 dim 1 : vector<4x512xf32>, i32 -> vector<4x512xf32>
    %c9_560 = arith.constant 9 : index
    %c0_561 = arith.constant 0 : index
    %c0_562 = arith.constant 0 : index
    %993 = vector.load %arg10[%c9_560, %c0_561, %c0_562] : memref<49x4x1xf32, #tpu.memory_space<vmem>>, vector<1x4x1xf32>
    %994 = vector.shape_cast %993 : vector<1x4x1xf32> to vector<4x1xf32>
    %995 = vector.broadcast %994 : vector<4x1xf32> to vector<4x512xf32>
    %996 = arith.mulf %992, %995 : vector<4x512xf32>
    %997 = arith.addf %991, %996 : vector<4x512xf32>
    %c44_i32_563 = arith.constant 44 : i32
    %998 = tpu.dynamic_rotate %938 by %c44_i32_563 dim 1 : vector<4x512xf32>, i32 -> vector<4x512xf32>
    %c10_564 = arith.constant 10 : index
    %c0_565 = arith.constant 0 : index
    %c0_566 = arith.constant 0 : index
    %999 = vector.load %arg10[%c10_564, %c0_565, %c0_566] : memref<49x4x1xf32, #tpu.memory_space<vmem>>, vector<1x4x1xf32>
    %1000 = vector.shape_cast %999 : vector<1x4x1xf32> to vector<4x1xf32>
    %1001 = vector.broadcast %1000 : vector<4x1xf32> to vector<4x512xf32>
    %1002 = arith.mulf %998, %1001 : vector<4x512xf32>
    %1003 = arith.addf %997, %1002 : vector<4x512xf32>
    %c43_i32_567 = arith.constant 43 : i32
    %1004 = tpu.dynamic_rotate %938 by %c43_i32_567 dim 1 : vector<4x512xf32>, i32 -> vector<4x512xf32>
    %c11_568 = arith.constant 11 : index
    %c0_569 = arith.constant 0 : index
    %c0_570 = arith.constant 0 : index
    %1005 = vector.load %arg10[%c11_568, %c0_569, %c0_570] : memref<49x4x1xf32, #tpu.memory_space<vmem>>, vector<1x4x1xf32>
    %1006 = vector.shape_cast %1005 : vector<1x4x1xf32> to vector<4x1xf32>
    %1007 = vector.broadcast %1006 : vector<4x1xf32> to vector<4x512xf32>
    %1008 = arith.mulf %1004, %1007 : vector<4x512xf32>
    %1009 = arith.addf %1003, %1008 : vector<4x512xf32>
    %c42_i32_571 = arith.constant 42 : i32
    %1010 = tpu.dynamic_rotate %938 by %c42_i32_571 dim 1 : vector<4x512xf32>, i32 -> vector<4x512xf32>
    %c12_572 = arith.constant 12 : index
    %c0_573 = arith.constant 0 : index
    %c0_574 = arith.constant 0 : index
    %1011 = vector.load %arg10[%c12_572, %c0_573, %c0_574] : memref<49x4x1xf32, #tpu.memory_space<vmem>>, vector<1x4x1xf32>
    %1012 = vector.shape_cast %1011 : vector<1x4x1xf32> to vector<4x1xf32>
    %1013 = vector.broadcast %1012 : vector<4x1xf32> to vector<4x512xf32>
    %1014 = arith.mulf %1010, %1013 : vector<4x512xf32>
    %1015 = arith.addf %1009, %1014 : vector<4x512xf32>
    %c41_i32_575 = arith.constant 41 : i32
    %1016 = tpu.dynamic_rotate %938 by %c41_i32_575 dim 1 : vector<4x512xf32>, i32 -> vector<4x512xf32>
    %c13_576 = arith.constant 13 : index
    %c0_577 = arith.constant 0 : index
    %c0_578 = arith.constant 0 : index
    %1017 = vector.load %arg10[%c13_576, %c0_577, %c0_578] : memref<49x4x1xf32, #tpu.memory_space<vmem>>, vector<1x4x1xf32>
    %1018 = vector.shape_cast %1017 : vector<1x4x1xf32> to vector<4x1xf32>
    %1019 = vector.broadcast %1018 : vector<4x1xf32> to vector<4x512xf32>
    %1020 = arith.mulf %1016, %1019 : vector<4x512xf32>
    %1021 = arith.addf %1015, %1020 : vector<4x512xf32>
    %c25_i32_579 = arith.constant 25 : i32
    %1022 = tpu.dynamic_rotate %938 by %c25_i32_579 dim 1 : vector<4x512xf32>, i32 -> vector<4x512xf32>
    %c14_580 = arith.constant 14 : index
    %c0_581 = arith.constant 0 : index
    %c0_582 = arith.constant 0 : index
    %1023 = vector.load %arg10[%c14_580, %c0_581, %c0_582] : memref<49x4x1xf32, #tpu.memory_space<vmem>>, vector<1x4x1xf32>
    %1024 = vector.shape_cast %1023 : vector<1x4x1xf32> to vector<4x1xf32>
    %1025 = vector.broadcast %1024 : vector<4x1xf32> to vector<4x512xf32>
    %1026 = arith.mulf %1022, %1025 : vector<4x512xf32>
    %1027 = arith.addf %1021, %1026 : vector<4x512xf32>
    %c24_i32_583 = arith.constant 24 : i32
    %1028 = tpu.dynamic_rotate %938 by %c24_i32_583 dim 1 : vector<4x512xf32>, i32 -> vector<4x512xf32>
    %c15_584 = arith.constant 15 : index
    %c0_585 = arith.constant 0 : index
    %c0_586 = arith.constant 0 : index
    %1029 = vector.load %arg10[%c15_584, %c0_585, %c0_586] : memref<49x4x1xf32, #tpu.memory_space<vmem>>, vector<1x4x1xf32>
    %1030 = vector.shape_cast %1029 : vector<1x4x1xf32> to vector<4x1xf32>
    %1031 = vector.broadcast %1030 : vector<4x1xf32> to vector<4x512xf32>
    %1032 = arith.mulf %1028, %1031 : vector<4x512xf32>
    %1033 = arith.addf %1027, %1032 : vector<4x512xf32>
    %c23_i32_587 = arith.constant 23 : i32
    %1034 = tpu.dynamic_rotate %938 by %c23_i32_587 dim 1 : vector<4x512xf32>, i32 -> vector<4x512xf32>
    %c16_588 = arith.constant 16 : index
    %c0_589 = arith.constant 0 : index
    %c0_590 = arith.constant 0 : index
    %1035 = vector.load %arg10[%c16_588, %c0_589, %c0_590] : memref<49x4x1xf32, #tpu.memory_space<vmem>>, vector<1x4x1xf32>
    %1036 = vector.shape_cast %1035 : vector<1x4x1xf32> to vector<4x1xf32>
    %1037 = vector.broadcast %1036 : vector<4x1xf32> to vector<4x512xf32>
    %1038 = arith.mulf %1034, %1037 : vector<4x512xf32>
    %1039 = arith.addf %1033, %1038 : vector<4x512xf32>
    %c22_i32_591 = arith.constant 22 : i32
    %1040 = tpu.dynamic_rotate %938 by %c22_i32_591 dim 1 : vector<4x512xf32>, i32 -> vector<4x512xf32>
    %c17_592 = arith.constant 17 : index
    %c0_593 = arith.constant 0 : index
    %c0_594 = arith.constant 0 : index
    %1041 = vector.load %arg10[%c17_592, %c0_593, %c0_594] : memref<49x4x1xf32, #tpu.memory_space<vmem>>, vector<1x4x1xf32>
    %1042 = vector.shape_cast %1041 : vector<1x4x1xf32> to vector<4x1xf32>
    %1043 = vector.broadcast %1042 : vector<4x1xf32> to vector<4x512xf32>
    %1044 = arith.mulf %1040, %1043 : vector<4x512xf32>
    %1045 = arith.addf %1039, %1044 : vector<4x512xf32>
    %c21_i32_595 = arith.constant 21 : i32
    %1046 = tpu.dynamic_rotate %938 by %c21_i32_595 dim 1 : vector<4x512xf32>, i32 -> vector<4x512xf32>
    %c18_596 = arith.constant 18 : index
    %c0_597 = arith.constant 0 : index
    %c0_598 = arith.constant 0 : index
    %1047 = vector.load %arg10[%c18_596, %c0_597, %c0_598] : memref<49x4x1xf32, #tpu.memory_space<vmem>>, vector<1x4x1xf32>
    %1048 = vector.shape_cast %1047 : vector<1x4x1xf32> to vector<4x1xf32>
    %1049 = vector.broadcast %1048 : vector<4x1xf32> to vector<4x512xf32>
    %1050 = arith.mulf %1046, %1049 : vector<4x512xf32>
    %1051 = arith.addf %1045, %1050 : vector<4x512xf32>
    %c20_i32_599 = arith.constant 20 : i32
    %1052 = tpu.dynamic_rotate %938 by %c20_i32_599 dim 1 : vector<4x512xf32>, i32 -> vector<4x512xf32>
    %c19_600 = arith.constant 19 : index
    %c0_601 = arith.constant 0 : index
    %c0_602 = arith.constant 0 : index
    %1053 = vector.load %arg10[%c19_600, %c0_601, %c0_602] : memref<49x4x1xf32, #tpu.memory_space<vmem>>, vector<1x4x1xf32>
    %1054 = vector.shape_cast %1053 : vector<1x4x1xf32> to vector<4x1xf32>
    %1055 = vector.broadcast %1054 : vector<4x1xf32> to vector<4x512xf32>
    %1056 = arith.mulf %1052, %1055 : vector<4x512xf32>
    %1057 = arith.addf %1051, %1056 : vector<4x512xf32>
    %c19_i32_603 = arith.constant 19 : i32
    %1058 = tpu.dynamic_rotate %938 by %c19_i32_603 dim 1 : vector<4x512xf32>, i32 -> vector<4x512xf32>
    %c20_604 = arith.constant 20 : index
    %c0_605 = arith.constant 0 : index
    %c0_606 = arith.constant 0 : index
    %1059 = vector.load %arg10[%c20_604, %c0_605, %c0_606] : memref<49x4x1xf32, #tpu.memory_space<vmem>>, vector<1x4x1xf32>
    %1060 = vector.shape_cast %1059 : vector<1x4x1xf32> to vector<4x1xf32>
    %1061 = vector.broadcast %1060 : vector<4x1xf32> to vector<4x512xf32>
    %1062 = arith.mulf %1058, %1061 : vector<4x512xf32>
    %1063 = arith.addf %1057, %1062 : vector<4x512xf32>
    %c3_i32_607 = arith.constant 3 : i32
    %1064 = tpu.dynamic_rotate %938 by %c3_i32_607 dim 1 : vector<4x512xf32>, i32 -> vector<4x512xf32>
    %c21_608 = arith.constant 21 : index
    %c0_609 = arith.constant 0 : index
    %c0_610 = arith.constant 0 : index
    %1065 = vector.load %arg10[%c21_608, %c0_609, %c0_610] : memref<49x4x1xf32, #tpu.memory_space<vmem>>, vector<1x4x1xf32>
    %1066 = vector.shape_cast %1065 : vector<1x4x1xf32> to vector<4x1xf32>
    %1067 = vector.broadcast %1066 : vector<4x1xf32> to vector<4x512xf32>
    %1068 = arith.mulf %1064, %1067 : vector<4x512xf32>
    %1069 = arith.addf %1063, %1068 : vector<4x512xf32>
    %c2_i32_611 = arith.constant 2 : i32
    %1070 = tpu.dynamic_rotate %938 by %c2_i32_611 dim 1 : vector<4x512xf32>, i32 -> vector<4x512xf32>
    %c22_612 = arith.constant 22 : index
    %c0_613 = arith.constant 0 : index
    %c0_614 = arith.constant 0 : index
    %1071 = vector.load %arg10[%c22_612, %c0_613, %c0_614] : memref<49x4x1xf32, #tpu.memory_space<vmem>>, vector<1x4x1xf32>
    %1072 = vector.shape_cast %1071 : vector<1x4x1xf32> to vector<4x1xf32>
    %1073 = vector.broadcast %1072 : vector<4x1xf32> to vector<4x512xf32>
    %1074 = arith.mulf %1070, %1073 : vector<4x512xf32>
    %1075 = arith.addf %1069, %1074 : vector<4x512xf32>
    %c1_i32_615 = arith.constant 1 : i32
    %1076 = tpu.dynamic_rotate %938 by %c1_i32_615 dim 1 : vector<4x512xf32>, i32 -> vector<4x512xf32>
    %c23_616 = arith.constant 23 : index
    %c0_617 = arith.constant 0 : index
    %c0_618 = arith.constant 0 : index
    %1077 = vector.load %arg10[%c23_616, %c0_617, %c0_618] : memref<49x4x1xf32, #tpu.memory_space<vmem>>, vector<1x4x1xf32>
    %1078 = vector.shape_cast %1077 : vector<1x4x1xf32> to vector<4x1xf32>
    %1079 = vector.broadcast %1078 : vector<4x1xf32> to vector<4x512xf32>
    %1080 = arith.mulf %1076, %1079 : vector<4x512xf32>
    %1081 = arith.addf %1075, %1080 : vector<4x512xf32>
    %c24_619 = arith.constant 24 : index
    %c0_620 = arith.constant 0 : index
    %c0_621 = arith.constant 0 : index
    %1082 = vector.load %arg10[%c24_619, %c0_620, %c0_621] : memref<49x4x1xf32, #tpu.memory_space<vmem>>, vector<1x4x1xf32>
    %1083 = vector.shape_cast %1082 : vector<1x4x1xf32> to vector<4x1xf32>
    %1084 = vector.broadcast %1083 : vector<4x1xf32> to vector<4x512xf32>
    %1085 = arith.mulf %938, %1084 : vector<4x512xf32>
    %1086 = arith.addf %1081, %1085 : vector<4x512xf32>
    %c511_i32_622 = arith.constant 511 : i32
    %1087 = tpu.dynamic_rotate %938 by %c511_i32_622 dim 1 : vector<4x512xf32>, i32 -> vector<4x512xf32>
    %c25_623 = arith.constant 25 : index
    %c0_624 = arith.constant 0 : index
    %c0_625 = arith.constant 0 : index
    %1088 = vector.load %arg10[%c25_623, %c0_624, %c0_625] : memref<49x4x1xf32, #tpu.memory_space<vmem>>, vector<1x4x1xf32>
    %1089 = vector.shape_cast %1088 : vector<1x4x1xf32> to vector<4x1xf32>
    %1090 = vector.broadcast %1089 : vector<4x1xf32> to vector<4x512xf32>
    %1091 = arith.mulf %1087, %1090 : vector<4x512xf32>
    %1092 = arith.addf %1086, %1091 : vector<4x512xf32>
    %c510_i32_626 = arith.constant 510 : i32
    %1093 = tpu.dynamic_rotate %938 by %c510_i32_626 dim 1 : vector<4x512xf32>, i32 -> vector<4x512xf32>
    %c26_627 = arith.constant 26 : index
    %c0_628 = arith.constant 0 : index
    %c0_629 = arith.constant 0 : index
    %1094 = vector.load %arg10[%c26_627, %c0_628, %c0_629] : memref<49x4x1xf32, #tpu.memory_space<vmem>>, vector<1x4x1xf32>
    %1095 = vector.shape_cast %1094 : vector<1x4x1xf32> to vector<4x1xf32>
    %1096 = vector.broadcast %1095 : vector<4x1xf32> to vector<4x512xf32>
    %1097 = arith.mulf %1093, %1096 : vector<4x512xf32>
    %1098 = arith.addf %1092, %1097 : vector<4x512xf32>
    %c509_i32_630 = arith.constant 509 : i32
    %1099 = tpu.dynamic_rotate %938 by %c509_i32_630 dim 1 : vector<4x512xf32>, i32 -> vector<4x512xf32>
    %c27_631 = arith.constant 27 : index
    %c0_632 = arith.constant 0 : index
    %c0_633 = arith.constant 0 : index
    %1100 = vector.load %arg10[%c27_631, %c0_632, %c0_633] : memref<49x4x1xf32, #tpu.memory_space<vmem>>, vector<1x4x1xf32>
    %1101 = vector.shape_cast %1100 : vector<1x4x1xf32> to vector<4x1xf32>
    %1102 = vector.broadcast %1101 : vector<4x1xf32> to vector<4x512xf32>
    %1103 = arith.mulf %1099, %1102 : vector<4x512xf32>
    %1104 = arith.addf %1098, %1103 : vector<4x512xf32>
    %c493_i32_634 = arith.constant 493 : i32
    %1105 = tpu.dynamic_rotate %938 by %c493_i32_634 dim 1 : vector<4x512xf32>, i32 -> vector<4x512xf32>
    %c28_635 = arith.constant 28 : index
    %c0_636 = arith.constant 0 : index
    %c0_637 = arith.constant 0 : index
    %1106 = vector.load %arg10[%c28_635, %c0_636, %c0_637] : memref<49x4x1xf32, #tpu.memory_space<vmem>>, vector<1x4x1xf32>
    %1107 = vector.shape_cast %1106 : vector<1x4x1xf32> to vector<4x1xf32>
    %1108 = vector.broadcast %1107 : vector<4x1xf32> to vector<4x512xf32>
    %1109 = arith.mulf %1105, %1108 : vector<4x512xf32>
    %1110 = arith.addf %1104, %1109 : vector<4x512xf32>
    %c492_i32_638 = arith.constant 492 : i32
    %1111 = tpu.dynamic_rotate %938 by %c492_i32_638 dim 1 : vector<4x512xf32>, i32 -> vector<4x512xf32>
    %c29_639 = arith.constant 29 : index
    %c0_640 = arith.constant 0 : index
    %c0_641 = arith.constant 0 : index
    %1112 = vector.load %arg10[%c29_639, %c0_640, %c0_641] : memref<49x4x1xf32, #tpu.memory_space<vmem>>, vector<1x4x1xf32>
    %1113 = vector.shape_cast %1112 : vector<1x4x1xf32> to vector<4x1xf32>
    %1114 = vector.broadcast %1113 : vector<4x1xf32> to vector<4x512xf32>
    %1115 = arith.mulf %1111, %1114 : vector<4x512xf32>
    %1116 = arith.addf %1110, %1115 : vector<4x512xf32>
    %c491_i32_642 = arith.constant 491 : i32
    %1117 = tpu.dynamic_rotate %938 by %c491_i32_642 dim 1 : vector<4x512xf32>, i32 -> vector<4x512xf32>
    %c30_643 = arith.constant 30 : index
    %c0_644 = arith.constant 0 : index
    %c0_645 = arith.constant 0 : index
    %1118 = vector.load %arg10[%c30_643, %c0_644, %c0_645] : memref<49x4x1xf32, #tpu.memory_space<vmem>>, vector<1x4x1xf32>
    %1119 = vector.shape_cast %1118 : vector<1x4x1xf32> to vector<4x1xf32>
    %1120 = vector.broadcast %1119 : vector<4x1xf32> to vector<4x512xf32>
    %1121 = arith.mulf %1117, %1120 : vector<4x512xf32>
    %1122 = arith.addf %1116, %1121 : vector<4x512xf32>
    %c490_i32_646 = arith.constant 490 : i32
    %1123 = tpu.dynamic_rotate %938 by %c490_i32_646 dim 1 : vector<4x512xf32>, i32 -> vector<4x512xf32>
    %c31_647 = arith.constant 31 : index
    %c0_648 = arith.constant 0 : index
    %c0_649 = arith.constant 0 : index
    %1124 = vector.load %arg10[%c31_647, %c0_648, %c0_649] : memref<49x4x1xf32, #tpu.memory_space<vmem>>, vector<1x4x1xf32>
    %1125 = vector.shape_cast %1124 : vector<1x4x1xf32> to vector<4x1xf32>
    %1126 = vector.broadcast %1125 : vector<4x1xf32> to vector<4x512xf32>
    %1127 = arith.mulf %1123, %1126 : vector<4x512xf32>
    %1128 = arith.addf %1122, %1127 : vector<4x512xf32>
    %c489_i32_650 = arith.constant 489 : i32
    %1129 = tpu.dynamic_rotate %938 by %c489_i32_650 dim 1 : vector<4x512xf32>, i32 -> vector<4x512xf32>
    %c32_651 = arith.constant 32 : index
    %c0_652 = arith.constant 0 : index
    %c0_653 = arith.constant 0 : index
    %1130 = vector.load %arg10[%c32_651, %c0_652, %c0_653] : memref<49x4x1xf32, #tpu.memory_space<vmem>>, vector<1x4x1xf32>
    %1131 = vector.shape_cast %1130 : vector<1x4x1xf32> to vector<4x1xf32>
    %1132 = vector.broadcast %1131 : vector<4x1xf32> to vector<4x512xf32>
    %1133 = arith.mulf %1129, %1132 : vector<4x512xf32>
    %1134 = arith.addf %1128, %1133 : vector<4x512xf32>
    %c488_i32_654 = arith.constant 488 : i32
    %1135 = tpu.dynamic_rotate %938 by %c488_i32_654 dim 1 : vector<4x512xf32>, i32 -> vector<4x512xf32>
    %c33_655 = arith.constant 33 : index
    %c0_656 = arith.constant 0 : index
    %c0_657 = arith.constant 0 : index
    %1136 = vector.load %arg10[%c33_655, %c0_656, %c0_657] : memref<49x4x1xf32, #tpu.memory_space<vmem>>, vector<1x4x1xf32>
    %1137 = vector.shape_cast %1136 : vector<1x4x1xf32> to vector<4x1xf32>
    %1138 = vector.broadcast %1137 : vector<4x1xf32> to vector<4x512xf32>
    %1139 = arith.mulf %1135, %1138 : vector<4x512xf32>
    %1140 = arith.addf %1134, %1139 : vector<4x512xf32>
    %c487_i32_658 = arith.constant 487 : i32
    %1141 = tpu.dynamic_rotate %938 by %c487_i32_658 dim 1 : vector<4x512xf32>, i32 -> vector<4x512xf32>
    %c34_659 = arith.constant 34 : index
    %c0_660 = arith.constant 0 : index
    %c0_661 = arith.constant 0 : index
    %1142 = vector.load %arg10[%c34_659, %c0_660, %c0_661] : memref<49x4x1xf32, #tpu.memory_space<vmem>>, vector<1x4x1xf32>
    %1143 = vector.shape_cast %1142 : vector<1x4x1xf32> to vector<4x1xf32>
    %1144 = vector.broadcast %1143 : vector<4x1xf32> to vector<4x512xf32>
    %1145 = arith.mulf %1141, %1144 : vector<4x512xf32>
    %1146 = arith.addf %1140, %1145 : vector<4x512xf32>
    %c471_i32_662 = arith.constant 471 : i32
    %1147 = tpu.dynamic_rotate %938 by %c471_i32_662 dim 1 : vector<4x512xf32>, i32 -> vector<4x512xf32>
    %c35_663 = arith.constant 35 : index
    %c0_664 = arith.constant 0 : index
    %c0_665 = arith.constant 0 : index
    %1148 = vector.load %arg10[%c35_663, %c0_664, %c0_665] : memref<49x4x1xf32, #tpu.memory_space<vmem>>, vector<1x4x1xf32>
    %1149 = vector.shape_cast %1148 : vector<1x4x1xf32> to vector<4x1xf32>
    %1150 = vector.broadcast %1149 : vector<4x1xf32> to vector<4x512xf32>
    %1151 = arith.mulf %1147, %1150 : vector<4x512xf32>
    %1152 = arith.addf %1146, %1151 : vector<4x512xf32>
    %c470_i32_666 = arith.constant 470 : i32
    %1153 = tpu.dynamic_rotate %938 by %c470_i32_666 dim 1 : vector<4x512xf32>, i32 -> vector<4x512xf32>
    %c36_667 = arith.constant 36 : index
    %c0_668 = arith.constant 0 : index
    %c0_669 = arith.constant 0 : index
    %1154 = vector.load %arg10[%c36_667, %c0_668, %c0_669] : memref<49x4x1xf32, #tpu.memory_space<vmem>>, vector<1x4x1xf32>
    %1155 = vector.shape_cast %1154 : vector<1x4x1xf32> to vector<4x1xf32>
    %1156 = vector.broadcast %1155 : vector<4x1xf32> to vector<4x512xf32>
    %1157 = arith.mulf %1153, %1156 : vector<4x512xf32>
    %1158 = arith.addf %1152, %1157 : vector<4x512xf32>
    %c469_i32_670 = arith.constant 469 : i32
    %1159 = tpu.dynamic_rotate %938 by %c469_i32_670 dim 1 : vector<4x512xf32>, i32 -> vector<4x512xf32>
    %c37_671 = arith.constant 37 : index
    %c0_672 = arith.constant 0 : index
    %c0_673 = arith.constant 0 : index
    %1160 = vector.load %arg10[%c37_671, %c0_672, %c0_673] : memref<49x4x1xf32, #tpu.memory_space<vmem>>, vector<1x4x1xf32>
    %1161 = vector.shape_cast %1160 : vector<1x4x1xf32> to vector<4x1xf32>
    %1162 = vector.broadcast %1161 : vector<4x1xf32> to vector<4x512xf32>
    %1163 = arith.mulf %1159, %1162 : vector<4x512xf32>
    %1164 = arith.addf %1158, %1163 : vector<4x512xf32>
    %c468_i32_674 = arith.constant 468 : i32
    %1165 = tpu.dynamic_rotate %938 by %c468_i32_674 dim 1 : vector<4x512xf32>, i32 -> vector<4x512xf32>
    %c38_675 = arith.constant 38 : index
    %c0_676 = arith.constant 0 : index
    %c0_677 = arith.constant 0 : index
    %1166 = vector.load %arg10[%c38_675, %c0_676, %c0_677] : memref<49x4x1xf32, #tpu.memory_space<vmem>>, vector<1x4x1xf32>
    %1167 = vector.shape_cast %1166 : vector<1x4x1xf32> to vector<4x1xf32>
    %1168 = vector.broadcast %1167 : vector<4x1xf32> to vector<4x512xf32>
    %1169 = arith.mulf %1165, %1168 : vector<4x512xf32>
    %1170 = arith.addf %1164, %1169 : vector<4x512xf32>
    %c467_i32_678 = arith.constant 467 : i32
    %1171 = tpu.dynamic_rotate %938 by %c467_i32_678 dim 1 : vector<4x512xf32>, i32 -> vector<4x512xf32>
    %c39_679 = arith.constant 39 : index
    %c0_680 = arith.constant 0 : index
    %c0_681 = arith.constant 0 : index
    %1172 = vector.load %arg10[%c39_679, %c0_680, %c0_681] : memref<49x4x1xf32, #tpu.memory_space<vmem>>, vector<1x4x1xf32>
    %1173 = vector.shape_cast %1172 : vector<1x4x1xf32> to vector<4x1xf32>
    %1174 = vector.broadcast %1173 : vector<4x1xf32> to vector<4x512xf32>
    %1175 = arith.mulf %1171, %1174 : vector<4x512xf32>
    %1176 = arith.addf %1170, %1175 : vector<4x512xf32>
    %c466_i32_682 = arith.constant 466 : i32
    %1177 = tpu.dynamic_rotate %938 by %c466_i32_682 dim 1 : vector<4x512xf32>, i32 -> vector<4x512xf32>
    %c40_683 = arith.constant 40 : index
    %c0_684 = arith.constant 0 : index
    %c0_685 = arith.constant 0 : index
    %1178 = vector.load %arg10[%c40_683, %c0_684, %c0_685] : memref<49x4x1xf32, #tpu.memory_space<vmem>>, vector<1x4x1xf32>
    %1179 = vector.shape_cast %1178 : vector<1x4x1xf32> to vector<4x1xf32>
    %1180 = vector.broadcast %1179 : vector<4x1xf32> to vector<4x512xf32>
    %1181 = arith.mulf %1177, %1180 : vector<4x512xf32>
    %1182 = arith.addf %1176, %1181 : vector<4x512xf32>
    %c465_i32_686 = arith.constant 465 : i32
    %1183 = tpu.dynamic_rotate %938 by %c465_i32_686 dim 1 : vector<4x512xf32>, i32 -> vector<4x512xf32>
    %c41_687 = arith.constant 41 : index
    %c0_688 = arith.constant 0 : index
    %c0_689 = arith.constant 0 : index
    %1184 = vector.load %arg10[%c41_687, %c0_688, %c0_689] : memref<49x4x1xf32, #tpu.memory_space<vmem>>, vector<1x4x1xf32>
    %1185 = vector.shape_cast %1184 : vector<1x4x1xf32> to vector<4x1xf32>
    %1186 = vector.broadcast %1185 : vector<4x1xf32> to vector<4x512xf32>
    %1187 = arith.mulf %1183, %1186 : vector<4x512xf32>
    %1188 = arith.addf %1182, %1187 : vector<4x512xf32>
    %c449_i32_690 = arith.constant 449 : i32
    %1189 = tpu.dynamic_rotate %938 by %c449_i32_690 dim 1 : vector<4x512xf32>, i32 -> vector<4x512xf32>
    %c42_691 = arith.constant 42 : index
    %c0_692 = arith.constant 0 : index
    %c0_693 = arith.constant 0 : index
    %1190 = vector.load %arg10[%c42_691, %c0_692, %c0_693] : memref<49x4x1xf32, #tpu.memory_space<vmem>>, vector<1x4x1xf32>
    %1191 = vector.shape_cast %1190 : vector<1x4x1xf32> to vector<4x1xf32>
    %1192 = vector.broadcast %1191 : vector<4x1xf32> to vector<4x512xf32>
    %1193 = arith.mulf %1189, %1192 : vector<4x512xf32>
    %1194 = arith.addf %1188, %1193 : vector<4x512xf32>
    %c448_i32_694 = arith.constant 448 : i32
    %1195 = tpu.dynamic_rotate %938 by %c448_i32_694 dim 1 : vector<4x512xf32>, i32 -> vector<4x512xf32>
    %c43_695 = arith.constant 43 : index
    %c0_696 = arith.constant 0 : index
    %c0_697 = arith.constant 0 : index
    %1196 = vector.load %arg10[%c43_695, %c0_696, %c0_697] : memref<49x4x1xf32, #tpu.memory_space<vmem>>, vector<1x4x1xf32>
    %1197 = vector.shape_cast %1196 : vector<1x4x1xf32> to vector<4x1xf32>
    %1198 = vector.broadcast %1197 : vector<4x1xf32> to vector<4x512xf32>
    %1199 = arith.mulf %1195, %1198 : vector<4x512xf32>
    %1200 = arith.addf %1194, %1199 : vector<4x512xf32>
    %c447_i32_698 = arith.constant 447 : i32
    %1201 = tpu.dynamic_rotate %938 by %c447_i32_698 dim 1 : vector<4x512xf32>, i32 -> vector<4x512xf32>
    %c44_699 = arith.constant 44 : index
    %c0_700 = arith.constant 0 : index
    %c0_701 = arith.constant 0 : index
    %1202 = vector.load %arg10[%c44_699, %c0_700, %c0_701] : memref<49x4x1xf32, #tpu.memory_space<vmem>>, vector<1x4x1xf32>
    %1203 = vector.shape_cast %1202 : vector<1x4x1xf32> to vector<4x1xf32>
    %1204 = vector.broadcast %1203 : vector<4x1xf32> to vector<4x512xf32>
    %1205 = arith.mulf %1201, %1204 : vector<4x512xf32>
    %1206 = arith.addf %1200, %1205 : vector<4x512xf32>
    %c446_i32_702 = arith.constant 446 : i32
    %1207 = tpu.dynamic_rotate %938 by %c446_i32_702 dim 1 : vector<4x512xf32>, i32 -> vector<4x512xf32>
    %c45_703 = arith.constant 45 : index
    %c0_704 = arith.constant 0 : index
    %c0_705 = arith.constant 0 : index
    %1208 = vector.load %arg10[%c45_703, %c0_704, %c0_705] : memref<49x4x1xf32, #tpu.memory_space<vmem>>, vector<1x4x1xf32>
    %1209 = vector.shape_cast %1208 : vector<1x4x1xf32> to vector<4x1xf32>
    %1210 = vector.broadcast %1209 : vector<4x1xf32> to vector<4x512xf32>
    %1211 = arith.mulf %1207, %1210 : vector<4x512xf32>
    %1212 = arith.addf %1206, %1211 : vector<4x512xf32>
    %c445_i32_706 = arith.constant 445 : i32
    %1213 = tpu.dynamic_rotate %938 by %c445_i32_706 dim 1 : vector<4x512xf32>, i32 -> vector<4x512xf32>
    %c46_707 = arith.constant 46 : index
    %c0_708 = arith.constant 0 : index
    %c0_709 = arith.constant 0 : index
    %1214 = vector.load %arg10[%c46_707, %c0_708, %c0_709] : memref<49x4x1xf32, #tpu.memory_space<vmem>>, vector<1x4x1xf32>
    %1215 = vector.shape_cast %1214 : vector<1x4x1xf32> to vector<4x1xf32>
    %1216 = vector.broadcast %1215 : vector<4x1xf32> to vector<4x512xf32>
    %1217 = arith.mulf %1213, %1216 : vector<4x512xf32>
    %1218 = arith.addf %1212, %1217 : vector<4x512xf32>
    %c444_i32_710 = arith.constant 444 : i32
    %1219 = tpu.dynamic_rotate %938 by %c444_i32_710 dim 1 : vector<4x512xf32>, i32 -> vector<4x512xf32>
    %c47_711 = arith.constant 47 : index
    %c0_712 = arith.constant 0 : index
    %c0_713 = arith.constant 0 : index
    %1220 = vector.load %arg10[%c47_711, %c0_712, %c0_713] : memref<49x4x1xf32, #tpu.memory_space<vmem>>, vector<1x4x1xf32>
    %1221 = vector.shape_cast %1220 : vector<1x4x1xf32> to vector<4x1xf32>
    %1222 = vector.broadcast %1221 : vector<4x1xf32> to vector<4x512xf32>
    %1223 = arith.mulf %1219, %1222 : vector<4x512xf32>
    %1224 = arith.addf %1218, %1223 : vector<4x512xf32>
    %c443_i32_714 = arith.constant 443 : i32
    %1225 = tpu.dynamic_rotate %938 by %c443_i32_714 dim 1 : vector<4x512xf32>, i32 -> vector<4x512xf32>
    %c48_715 = arith.constant 48 : index
    %c0_716 = arith.constant 0 : index
    %c0_717 = arith.constant 0 : index
    %1226 = vector.load %arg10[%c48_715, %c0_716, %c0_717] : memref<49x4x1xf32, #tpu.memory_space<vmem>>, vector<1x4x1xf32>
    %1227 = vector.shape_cast %1226 : vector<1x4x1xf32> to vector<4x1xf32>
    %1228 = vector.broadcast %1227 : vector<4x1xf32> to vector<4x512xf32>
    %1229 = arith.mulf %1225, %1228 : vector<4x512xf32>
    %1230 = arith.addf %1224, %1229 : vector<4x512xf32>
    %cst_718 = arith.constant dense<0.000000e+00> : vector<4x1xf32>
    %1231 = tpu.matmul %928, %0, %cst_718 {dimension_numbers = #tpu.dot_dimension_numbers<[1], [1], [0], [0], [0, 0, 1, 0], [], []>} : vector<4x512xf32>, vector<1x512xf32>, vector<4x1xf32> -> vector<4x1xf32>
    %1232 = arith.mulf %928, %928 : vector<4x512xf32>
    %cst_719 = arith.constant dense<0.000000e+00> : vector<4x1xf32>
    %1233 = tpu.matmul %1232, %0, %cst_719 {dimension_numbers = #tpu.dot_dimension_numbers<[1], [1], [0], [0], [0, 0, 1, 0], [], []>} : vector<4x512xf32>, vector<1x512xf32>, vector<4x1xf32> -> vector<4x1xf32>
    %cst_720 = arith.constant dense<0.000000e+00> : vector<4x1xf32>
    %1234 = tpu.matmul %1230, %0, %cst_720 {dimension_numbers = #tpu.dot_dimension_numbers<[1], [1], [0], [0], [0, 0, 1, 0], [], []>} : vector<4x512xf32>, vector<1x512xf32>, vector<4x1xf32> -> vector<4x1xf32>
    %1235 = arith.mulf %1230, %1230 : vector<4x512xf32>
    %cst_721 = arith.constant dense<0.000000e+00> : vector<4x1xf32>
    %1236 = tpu.matmul %1235, %0, %cst_721 {dimension_numbers = #tpu.dot_dimension_numbers<[1], [1], [0], [0], [0, 0, 1, 0], [], []>} : vector<4x512xf32>, vector<1x512xf32>, vector<4x1xf32> -> vector<4x1xf32>
    %1237 = arith.addf %1231, %1234 : vector<4x1xf32>
    %1238 = arith.addf %1233, %1236 : vector<4x1xf32>
    %cst_722 = arith.constant 0.001953125 : f32
    %1239 = vector.broadcast %cst_722 : f32 to vector<4x1xf32>
    %1240 = arith.mulf %1237, %1239 : vector<4x1xf32>
    %cst_723 = arith.constant 0.001953125 : f32
    %1241 = vector.broadcast %cst_723 : f32 to vector<4x1xf32>
    %1242 = arith.mulf %1238, %1241 : vector<4x1xf32>
    %1243 = arith.mulf %1240, %1240 : vector<4x1xf32>
    %1244 = arith.subf %1242, %1243 : vector<4x1xf32>
    %cst_724 = arith.constant 0.000000e+00 : f32
    %1245 = vector.broadcast %cst_724 : f32 to vector<4x1xf32>
    %1246 = arith.maximumf %1244, %1245 : vector<4x1xf32>
    %c0_725 = arith.constant 0 : index
    %c0_726 = arith.constant 0 : index
    %1247 = vector.load %arg13[%c0_725, %c0_726] : memref<16x4xf32, #tpu.memory_space<vmem>>, vector<16x4xf32>
    %c0_727 = arith.constant 0 : index
    %c0_728 = arith.constant 0 : index
    %1248 = vector.load %arg14[%c0_727, %c0_728] : memref<16x1xf32, #tpu.memory_space<vmem>>, vector<16x1xf32>
    %c0_729 = arith.constant 0 : index
    %c0_730 = arith.constant 0 : index
    %1249 = vector.load %arg11[%c0_729, %c0_730] : memref<4x1xf32, #tpu.memory_space<vmem>>, vector<4x1xf32>
    %c0_731 = arith.constant 0 : index
    %c0_732 = arith.constant 0 : index
    %1250 = vector.load %arg12[%c0_731, %c0_732] : memref<4x1xf32, #tpu.memory_space<vmem>>, vector<4x1xf32>
    %cst_733 = arith.constant 9.99999974E-6 : f32
    %1251 = vector.broadcast %cst_733 : f32 to vector<4x1xf32>
    %1252 = arith.addf %1246, %1251 : vector<4x1xf32>
    %1253 = math.rsqrt %1252 : vector<4x1xf32>
    %1254 = arith.mulf %1249, %1253 : vector<4x1xf32>
    %1255 = arith.mulf %1240, %1254 : vector<4x1xf32>
    %1256 = arith.subf %1250, %1255 : vector<4x1xf32>
    %1257 = tpu.iota {dimensions = array<i32: 0>} : vector<4x4xi32>
    %1258 = tpu.iota {dimensions = array<i32: 1>} : vector<4x4xi32>
    %1259 = arith.cmpi eq, %1257, %1258 : vector<4x4xi32>
    %1260 = arith.extui %1259 : vector<4x4xi1> to vector<4x4xi32>
    %1261 = arith.sitofp %1260 : vector<4x4xi32> to vector<4x4xf32>
    %1262 = vector.broadcast %1254 : vector<4x1xf32> to vector<4x4xf32>
    %1263 = arith.mulf %1261, %1262 : vector<4x4xf32>
    %cst_734 = arith.constant dense<0.000000e+00> : vector<16x4xf32>
    %1264 = tpu.matmul %1247, %1263, %cst_734 {dimension_numbers = #tpu.dot_dimension_numbers<[1], [0], [0], [1], [0, 0, 1, 1], [], []>} : vector<16x4xf32>, vector<4x4xf32>, vector<16x4xf32> -> vector<16x4xf32>
    %cst_735 = arith.constant dense<0.000000e+00> : vector<16x1xf32>
    %1265 = tpu.matmul %1247, %1256, %cst_735 {dimension_numbers = #tpu.dot_dimension_numbers<[1], [0], [0], [1], [0, 0, 1, 1], [], []>} : vector<16x4xf32>, vector<4x1xf32>, vector<16x1xf32> -> vector<16x1xf32>
    %1266 = arith.addf %1265, %1248 : vector<16x1xf32>
    %c0_736 = arith.constant 0 : index
    %c0_737 = arith.constant 0 : index
    %1267 = vector.load %arg15[%c0_736, %c0_737] : memref<4x16xf32, #tpu.memory_space<vmem>>, vector<4x16xf32>
    %c0_738 = arith.constant 0 : index
    %c0_739 = arith.constant 0 : index
    %1268 = vector.load %arg16[%c0_738, %c0_739] : memref<4x1xf32, #tpu.memory_space<vmem>>, vector<4x1xf32>
    %cst_740 = arith.constant dense<0.000000e+00> : vector<16x512xf32>
    %1269 = tpu.matmul %1264, %928, %cst_740 {dimension_numbers = #tpu.dot_dimension_numbers<[1], [0], [0], [1], [0, 0, 1, 1], [], []>} : vector<16x4xf32>, vector<4x512xf32>, vector<16x512xf32> -> vector<16x512xf32>
    %1270 = vector.broadcast %1266 : vector<16x1xf32> to vector<16x512xf32>
    %1271 = arith.addf %1269, %1270 : vector<16x512xf32>
    %cst_741 = arith.constant 0.000000e+00 : f32
    %1272 = vector.broadcast %cst_741 : f32 to vector<16x512xf32>
    %1273 = arith.maximumf %1271, %1272 : vector<16x512xf32>
    %cst_742 = arith.constant dense<0.000000e+00> : vector<4x512xf32>
    %1274 = tpu.matmul %1267, %1273, %cst_742 {dimension_numbers = #tpu.dot_dimension_numbers<[1], [0], [0], [1], [0, 0, 1, 1], [], []>} : vector<4x16xf32>, vector<16x512xf32>, vector<4x512xf32> -> vector<4x512xf32>
    %1275 = vector.broadcast %1268 : vector<4x1xf32> to vector<4x512xf32>
    %1276 = arith.addf %1274, %1275 : vector<4x512xf32>
    %c0_743 = arith.constant 0 : index
    %c0_744 = arith.constant 0 : index
    %c0_745 = arith.constant 0 : index
    %1277 = vector.load %arg17[%c0_743, %c0_744, %c0_745] : memref<2x4x512xf32, #tpu.memory_space<vmem>>, vector<1x4x512xf32>
    %1278 = vector.shape_cast %1277 : vector<1x4x512xf32> to vector<4x512xf32>
    %1279 = vector.shape_cast %1276 : vector<4x512xf32> to vector<1x4x512xf32>
    tpu.vector_store %arg17[%c0_743, %c0_744, %c0_745], %1279 {strides = array<i32>} : memref<2x4x512xf32, #tpu.memory_space<vmem>>, vector<1x4x512xf32>,
    %cst_746 = arith.constant dense<0.000000e+00> : vector<16x512xf32>
    %1280 = tpu.matmul %1264, %1230, %cst_746 {dimension_numbers = #tpu.dot_dimension_numbers<[1], [0], [0], [1], [0, 0, 1, 1], [], []>} : vector<16x4xf32>, vector<4x512xf32>, vector<16x512xf32> -> vector<16x512xf32>
    %1281 = vector.broadcast %1266 : vector<16x1xf32> to vector<16x512xf32>
    %1282 = arith.addf %1280, %1281 : vector<16x512xf32>
    %cst_747 = arith.constant 0.000000e+00 : f32
    %1283 = vector.broadcast %cst_747 : f32 to vector<16x512xf32>
    %1284 = arith.maximumf %1282, %1283 : vector<16x512xf32>
    %cst_748 = arith.constant dense<0.000000e+00> : vector<4x512xf32>
    %1285 = tpu.matmul %1267, %1284, %cst_748 {dimension_numbers = #tpu.dot_dimension_numbers<[1], [0], [0], [1], [0, 0, 1, 1], [], []>} : vector<4x16xf32>, vector<16x512xf32>, vector<4x512xf32> -> vector<4x512xf32>
    %1286 = vector.broadcast %1268 : vector<4x1xf32> to vector<4x512xf32>
    %1287 = arith.addf %1285, %1286 : vector<4x512xf32>
    %c1_749 = arith.constant 1 : index
    %c0_750 = arith.constant 0 : index
    %c0_751 = arith.constant 0 : index
    %1288 = vector.load %arg17[%c1_749, %c0_750, %c0_751] : memref<2x4x512xf32, #tpu.memory_space<vmem>>, vector<1x4x512xf32>
    %1289 = vector.shape_cast %1288 : vector<1x4x512xf32> to vector<4x512xf32>
    %1290 = vector.shape_cast %1287 : vector<4x512xf32> to vector<1x4x512xf32>
    tpu.vector_store %arg17[%c1_749, %c0_750, %c0_751], %1290 {strides = array<i32>} : memref<2x4x512xf32, #tpu.memory_space<vmem>>, vector<1x4x512xf32>,
    return
  }
  func.func @transform_0(%arg0: i32) -> (i32, i32) {
    %c0_i32 = arith.constant 0 : i32
    %c0_i32_0 = arith.constant 0 : i32
    %c0_i32_1 = arith.constant 0 : i32
    return %c0_i32, %c0_i32_0 : i32, i32
  }
  func.func @transform_1(%arg0: i32) -> (i32, i32, i32) {
    %c0_i32 = arith.constant 0 : i32
    %c0_i32_0 = arith.constant 0 : i32
    %c0_i32_1 = arith.constant 0 : i32
    %c0_i32_2 = arith.constant 0 : i32
    return %c0_i32, %c0_i32_0, %c0_i32_1 : i32, i32, i32
  }
  func.func @transform_2(%arg0: i32) -> (i32, i32, i32) {
    %c0_i32 = arith.constant 0 : i32
    %c0_i32_0 = arith.constant 0 : i32
    %c0_i32_1 = arith.constant 0 : i32
    %c0_i32_2 = arith.constant 0 : i32
    return %c0_i32, %c0_i32_0, %c0_i32_1 : i32, i32, i32
  }
  func.func @transform_3(%arg0: i32) -> (i32, i32) {
    %c0_i32 = arith.constant 0 : i32
    %c0_i32_0 = arith.constant 0 : i32
    %c0_i32_1 = arith.constant 0 : i32
    return %c0_i32, %c0_i32_0 : i32, i32
  }
  func.func @transform_4(%arg0: i32) -> (i32, i32) {
    %c0_i32 = arith.constant 0 : i32
    %c0_i32_0 = arith.constant 0 : i32
    %c0_i32_1 = arith.constant 0 : i32
    return %c0_i32, %c0_i32_0 : i32, i32
  }
  func.func @transform_5(%arg0: i32) -> (i32, i32) {
    %c0_i32 = arith.constant 0 : i32
    %c0_i32_0 = arith.constant 0 : i32
    %c0_i32_1 = arith.constant 0 : i32
    return %c0_i32, %c0_i32_0 : i32, i32
  }
  func.func @transform_6(%arg0: i32) -> (i32, i32) {
    %c0_i32 = arith.constant 0 : i32
    %c0_i32_0 = arith.constant 0 : i32
    %c0_i32_1 = arith.constant 0 : i32
    return %c0_i32, %c0_i32_0 : i32, i32
  }
  func.func @transform_7(%arg0: i32) -> (i32, i32) {
    %c0_i32 = arith.constant 0 : i32
    %c0_i32_0 = arith.constant 0 : i32
    %c0_i32_1 = arith.constant 0 : i32
    return %c0_i32, %c0_i32_0 : i32, i32
  }
  func.func @transform_8(%arg0: i32) -> (i32, i32) {
    %c0_i32 = arith.constant 0 : i32
    %c0_i32_0 = arith.constant 0 : i32
    %c0_i32_1 = arith.constant 0 : i32
    return %c0_i32, %c0_i32_0 : i32, i32
  }
  func.func @transform_9(%arg0: i32) -> (i32, i32, i32) {
    %c0_i32 = arith.constant 0 : i32
    %c0_i32_0 = arith.constant 0 : i32
    %c0_i32_1 = arith.constant 0 : i32
    %c0_i32_2 = arith.constant 0 : i32
    return %c0_i32, %c0_i32_0, %c0_i32_1 : i32, i32, i32
  }
  func.func @transform_10(%arg0: i32) -> (i32, i32) {
    %c0_i32 = arith.constant 0 : i32
    %c0_i32_0 = arith.constant 0 : i32
    %c0_i32_1 = arith.constant 0 : i32
    return %c0_i32, %c0_i32_0 : i32, i32
  }
  func.func @transform_11(%arg0: i32) -> (i32, i32) {
    %c0_i32 = arith.constant 0 : i32
    %c0_i32_0 = arith.constant 0 : i32
    %c0_i32_1 = arith.constant 0 : i32
    return %c0_i32, %c0_i32_0 : i32, i32
  }
  func.func @transform_12(%arg0: i32) -> (i32, i32) {
    %c0_i32 = arith.constant 0 : i32
    %c0_i32_0 = arith.constant 0 : i32
    %c0_i32_1 = arith.constant 0 : i32
    return %c0_i32, %c0_i32_0 : i32, i32
  }
  func.func @transform_13(%arg0: i32) -> (i32, i32) {
    %c0_i32 = arith.constant 0 : i32
    %c0_i32_0 = arith.constant 0 : i32
    %c0_i32_1 = arith.constant 0 : i32
    return %c0_i32, %c0_i32_0 : i32, i32
  }
  func.func @transform_14(%arg0: i32) -> (i32, i32) {
    %c0_i32 = arith.constant 0 : i32
    %c0_i32_0 = arith.constant 0 : i32
    %c0_i32_1 = arith.constant 0 : i32
    return %c0_i32, %c0_i32_0 : i32, i32
  }
  func.func @transform_15(%arg0: i32) -> (i32, i32) {
    %c0_i32 = arith.constant 0 : i32
    %c0_i32_0 = arith.constant 0 : i32
    %c0_i32_1 = arith.constant 0 : i32
    return %c0_i32, %c0_i32_0 : i32, i32
  }
  func.func @transform_16(%arg0: i32) -> (i32, i32, i32) {
    %c0_i32 = arith.constant 0 : i32
    %c0_i32_0 = arith.constant 0 : i32
    %c0_i32_1 = arith.constant 0 : i32
    %c0_i32_2 = arith.constant 0 : i32
    return %c0_i32, %c0_i32_0, %c0_i32_1 : i32, i32, i32
  }
}

</mosaic_0001>

<llo_original>
// kernel: decoder_block_forward.1
$region0: #{decoder_block_forward.1}
  #allocation0 [shape = 'u32[]', space=smem, size = 0x4, offset = 0x4, fixed_abs, tag = 'smem constant byte address 0x4 - core index']
  #allocation1 [shape = 'u32[144,128]{1,0:T(1,128)}', space=vmem, size = 0x12000, scoped, tag = 'internal scratch']
  %s0 = inlined_call_operand.vmem [shape: f32[1,512], index: 0, kind: input, shape index: {}]
  %s1 = inlined_call_operand.vmem [shape: f32[2,8,512], index: 1, kind: input, shape index: {}]
  %s2 = inlined_call_operand.vmem [shape: f32[49,8,1], index: 2, kind: input, shape index: {}]
  %s3 = inlined_call_operand.vmem [shape: f32[8,1], index: 3, kind: input, shape index: {}]
  %s4 = inlined_call_operand.vmem [shape: f32[8,1], index: 4, kind: input, shape index: {}]
  %s5 = inlined_call_operand.vmem [shape: f32[32,8], index: 5, kind: input, shape index: {}]
  %s6 = inlined_call_operand.vmem [shape: f32[32,1], index: 6, kind: input, shape index: {}]
  %s7 = inlined_call_operand.vmem [shape: f32[4,32], index: 7, kind: input, shape index: {}]
  %s8 = inlined_call_operand.vmem [shape: f32[4,1], index: 8, kind: input, shape index: {}]
  %s9 = inlined_call_operand.vmem [shape: f32[49,4,1], index: 9, kind: input, shape index: {}]
  %s10 = inlined_call_operand.vmem [shape: f32[4,1], index: 10, kind: input, shape index: {}]
  %s11 = inlined_call_operand.vmem [shape: f32[4,1], index: 11, kind: input, shape index: {}]
  %s12 = inlined_call_operand.vmem [shape: f32[16,4], index: 12, kind: input, shape index: {}]
  %s13 = inlined_call_operand.vmem [shape: f32[16,1], index: 13, kind: input, shape index: {}]
  %s14 = inlined_call_operand.vmem [shape: f32[4,16], index: 14, kind: input, shape index: {}]
  %s15 = inlined_call_operand.vmem [shape: f32[4,1], index: 15, kind: input, shape index: {}]
  %s16 = inlined_call_operand.vmem [shape: f32[2,4,512], index: 16, kind: output, shape index: {}]
  %s17 = sld [smem:[#allocation0]]
  $region74: #{decoder_block_forward.1} parent=0
    _
  %s19 = ssub.s32 1, %s17
  %s20 = scalar_select 0, %s19, %s17
  // Predicated region
  $region2: #{decoder_block_forward.1} parent=0 // pred_check
    _
  $region3: #{decoder_block_forward.1} parent=0 // pred_check_branch
    %22 = sbr.rel (0) target = $region5
  $region4: #{decoder_block_forward.1} parent=0 // pred_region
    _
  $region5: #{decoder_block_forward.1} parent=0 // pred_fallthru
    _
  // Predicated region
  $region6: #{decoder_block_forward.1} parent=0 // pred_check
    _
  $region7: #{decoder_block_forward.1} parent=0 // pred_check_branch
    %24 = sbr.rel (0) target = $region9
  $region8: #{decoder_block_forward.1} parent=0 // pred_region
    _
  $region9: #{decoder_block_forward.1} parent=0 // pred_fallthru
    _
  // Predicated region
  $region10: #{decoder_block_forward.1} parent=0 // pred_check
    _
  $region11: #{decoder_block_forward.1} parent=0 // pred_check_branch
    %26 = sbr.rel (0) target = $region13
  $region12: #{decoder_block_forward.1} parent=0 // pred_region
    _
  $region13: #{decoder_block_forward.1} parent=0 // pred_fallthru
    _
  // Predicated region
  $region14: #{decoder_block_forward.1} parent=0 // pred_check
    _
  $region15: #{decoder_block_forward.1} parent=0 // pred_check_branch
    %28 = sbr.rel (0) target = $region17
  $region16: #{decoder_block_forward.1} parent=0 // pred_region
    _
  $region17: #{decoder_block_forward.1} parent=0 // pred_fallthru
    _
  // Predicated region
  $region18: #{decoder_block_forward.1} parent=0 // pred_check
    _
  $region19: #{decoder_block_forward.1} parent=0 // pred_check_branch
    %30 = sbr.rel (0) target = $region21
  $region20: #{decoder_block_forward.1} parent=0 // pred_region
    _
  $region21: #{decoder_block_forward.1} parent=0 // pred_fallthru
    _
  // Predicated region
  $region22: #{decoder_block_forward.1} parent=0 // pred_check
    _
  $region23: #{decoder_block_forward.1} parent=0 // pred_check_branch
    %32 = sbr.rel (0) target = $region25
  $region24: #{decoder_block_forward.1} parent=0 // pred_region
    _
  $region25: #{decoder_block_forward.1} parent=0 // pred_fallthru
    _
  // Predicated region
  $region26: #{decoder_block_forward.1} parent=0 // pred_check
    _
  $region27: #{decoder_block_forward.1} parent=0 // pred_check_branch
    %34 = sbr.rel (0) target = $region29
  $region28: #{decoder_block_forward.1} parent=0 // pred_region
    _
  $region29: #{decoder_block_forward.1} parent=0 // pred_fallthru
    _
  // Predicated region
  $region30: #{decoder_block_forward.1} parent=0 // pred_check
    _
  $region31: #{decoder_block_forward.1} parent=0 // pred_check_branch
    %36 = sbr.rel (0) target = $region33
  $region32: #{decoder_block_forward.1} parent=0 // pred_region
    _
  $region33: #{decoder_block_forward.1} parent=0 // pred_fallthru
    _
  // Predicated region
  $region34: #{decoder_block_forward.1} parent=0 // pred_check
    _
  $region35: #{decoder_block_forward.1} parent=0 // pred_check_branch
    %38 = sbr.rel (0) target = $region37
  $region36: #{decoder_block_forward.1} parent=0 // pred_region
    _
  $region37: #{decoder_block_forward.1} parent=0 // pred_fallthru
    _
  // Predicated region
  $region38: #{decoder_block_forward.1} parent=0 // pred_check
    _
  $region39: #{decoder_block_forward.1} parent=0 // pred_check_branch
    %40 = sbr.rel (0) target = $region41
  $region40: #{decoder_block_forward.1} parent=0 // pred_region
    _
  $region41: #{decoder_block_forward.1} parent=0 // pred_fallthru
    _
  // Predicated region
  $region42: #{decoder_block_forward.1} parent=0 // pred_check
    _
  $region43: #{decoder_block_forward.1} parent=0 // pred_check_branch
    %42 = sbr.rel (0) target = $region45
  $region44: #{decoder_block_forward.1} parent=0 // pred_region
    _
  $region45: #{decoder_block_forward.1} parent=0 // pred_fallthru
    _
  // Predicated region
  $region46: #{decoder_block_forward.1} parent=0 // pred_check
    _
  $region47: #{decoder_block_forward.1} parent=0 // pred_check_branch
    %44 = sbr.rel (0) target = $region49
  $region48: #{decoder_block_forward.1} parent=0 // pred_region
    _
  $region49: #{decoder_block_forward.1} parent=0 // pred_fallthru
    _
  // Predicated region
  $region50: #{decoder_block_forward.1} parent=0 // pred_check
    _
  $region51: #{decoder_block_forward.1} parent=0 // pred_check_branch
    %46 = sbr.rel (0) target = $region53
  $region52: #{decoder_block_forward.1} parent=0 // pred_region
    _
  $region53: #{decoder_block_forward.1} parent=0 // pred_fallthru
    _
  // Predicated region
  $region54: #{decoder_block_forward.1} parent=0 // pred_check
    _
  $region55: #{decoder_block_forward.1} parent=0 // pred_check_branch
    %48 = sbr.rel (0) target = $region57
  $region56: #{decoder_block_forward.1} parent=0 // pred_region
    _
  $region57: #{decoder_block_forward.1} parent=0 // pred_fallthru
    _
  // Predicated region
  $region58: #{decoder_block_forward.1} parent=0 // pred_check
    _
  $region59: #{decoder_block_forward.1} parent=0 // pred_check_branch
    %50 = sbr.rel (0) target = $region61
  $region60: #{decoder_block_forward.1} parent=0 // pred_region
    _
  $region61: #{decoder_block_forward.1} parent=0 // pred_fallthru
    _
  // Predicated region
  $region62: #{decoder_block_forward.1} parent=0 // pred_check
    _
  $region63: #{decoder_block_forward.1} parent=0 // pred_check_branch
    %52 = sbr.rel (0) target = $region65
  $region64: #{decoder_block_forward.1} parent=0 // pred_region
    _
  $region65: #{decoder_block_forward.1} parent=0 // pred_fallthru
    _
  %v53 = vld [vmem:[%s0] sm:$0xf]
  %v54 = vld [vmem:[%s1] sm:$0xff]
  %v55 = vld [vmem:[%s1 + $0x8] sm:$0xff]
  %v56 = vld [vmem:[%s1 + $0x10] sm:$0xff]
  %v57 = vld [vmem:[%s1 + $0x18] sm:$0xff]
  %58 = vrot.lane.b32.xlu0 %v54, 69
  %v59 = vpop.permute.xlu0 %58
  %60 = vrot.lane.b32.xlu0 %v55, 69
  %v61 = vpop.permute.xlu0 %60
  %62 = vrot.lane.b32.xlu0 %v56, 69
  %v63 = vpop.permute.xlu0 %62
  %64 = vrot.lane.b32.xlu0 %v57, 69
  %v65 = vpop.permute.xlu0 %64
  %v66 = vlaneseq
  %v67 = vand.u32 %v66, 127
  %vm68 = vcmp.lt.s32.totalorder %v67, 69
  %v69 = vsel %vm68, %v63, %v65
  %v70 = vsel %vm68, %v61, %v63
  %v71 = vsel %vm68, %v59, %v61
  %v72 = vsel %vm68, %v65, %v59
  %v73 = vld [vmem:[%s2] sm:$0xff]
  %75 = vset.pattern.permute.xlu0 0
  %76 = vperm.xlu0 %75, %v73
  %v77 = vpop.permute.xlu0 %76
  %v79 = vmul.f32 %v72, %v77
  %v80 = vmul.f32 %v71, %v77
  %v81 = vmul.f32 %v70, %v77
  %v82 = vmul.f32 %v69, %v77
  %83 = vrot.lane.b32.xlu0 %v54, 68
  %v84 = vpop.permute.xlu0 %83
  %85 = vrot.lane.b32.xlu0 %v55, 68
  %v86 = vpop.permute.xlu0 %85
  %87 = vrot.lane.b32.xlu0 %v56, 68
  %v88 = vpop.permute.xlu0 %87
  %89 = vrot.lane.b32.xlu0 %v57, 68
  %v90 = vpop.permute.xlu0 %89
  %vm91 = vcmp.lt.s32.totalorder %v67, 68
  %v92 = vsel %vm91, %v88, %v90
  %v93 = vsel %vm91, %v86, %v88
  %v94 = vsel %vm91, %v84, %v86
  %v95 = vsel %vm91, %v90, %v84
  %s96 = scalar_lea.vmem %s2, 8
  %v97 = vld [vmem:[%s96] sm:$0xff]
  %99 = vset.pattern.permute.xlu0 0
  %100 = vperm.xlu0 %99, %v97
  %v101 = vpop.permute.xlu0 %100
  %v103 = vmul.f32 %v95, %v101
  %v104 = vmul.f32 %v94, %v101
  %v105 = vmul.f32 %v93, %v101
  %v106 = vmul.f32 %v92, %v101
  %v107 = vadd.f32 %v79, %v103
  %v108 = vadd.f32 %v80, %v104
  %v109 = vadd.f32 %v81, %v105
  %v110 = vadd.f32 %v82, %v106
  %111 = vrot.lane.b32.xlu0 %v54, 67
  %v112 = vpop.permute.xlu0 %111
  %113 = vrot.lane.b32.xlu0 %v55, 67
  %v114 = vpop.permute.xlu0 %113
  %115 = vrot.lane.b32.xlu0 %v56, 67
  %v116 = vpop.permute.xlu0 %115
  %117 = vrot.lane.b32.xlu0 %v57, 67
  %v118 = vpop.permute.xlu0 %117
  %vm119 = vcmp.lt.s32.totalorder %v67, 67
  %v120 = vsel %vm119, %v116, %v118
  %v121 = vsel %vm119, %v114, %v116
  %v122 = vsel %vm119, %v112, %v114
  %v123 = vsel %vm119, %v118, %v112
  %s124 = scalar_lea.vmem %s2, 16
  %v125 = vld [vmem:[%s124] sm:$0xff]
  %127 = vset.pattern.permute.xlu0 0
  %128 = vperm.xlu0 %127, %v125
  %v129 = vpop.permute.xlu0 %128
  %v131 = vmul.f32 %v123, %v129
  %v132 = vmul.f32 %v122, %v129
  %v133 = vmul.f32 %v121, %v129
  %v134 = vmul.f32 %v120, %v129
  %v135 = vadd.f32 %v107, %v131
  %v136 = vadd.f32 %v108, %v132
  %v137 = vadd.f32 %v109, %v133
  %v138 = vadd.f32 %v110, %v134
  %139 = vrot.lane.b32.xlu0 %v54, 66
  %v140 = vpop.permute.xlu0 %139
  %141 = vrot.lane.b32.xlu0 %v55, 66
  %v142 = vpop.permute.xlu0 %141
  %143 = vrot.lane.b32.xlu0 %v56, 66
  %v144 = vpop.permute.xlu0 %143
  %145 = vrot.lane.b32.xlu0 %v57, 66
  %v146 = vpop.permute.xlu0 %145
  %vm147 = vcmp.lt.s32.totalorder %v67, 66
  %v148 = vsel %vm147, %v144, %v146
  %v149 = vsel %vm147, %v142, %v144
  %v150 = vsel %vm147, %v140, %v142
  %v151 = vsel %vm147, %v146, %v140
  %s152 = scalar_lea.vmem %s2, 24
  %v153 = vld [vmem:[%s152] sm:$0xff]
  %155 = vset.pattern.permute.xlu0 0
  %156 = vperm.xlu0 %155, %v153
  %v157 = vpop.permute.xlu0 %156
  %v159 = vmul.f32 %v151, %v157
  %v160 = vmul.f32 %v150, %v157
  %v161 = vmul.f32 %v149, %v157
  %v162 = vmul.f32 %v148, %v157
  %v163 = vadd.f32 %v135, %v159
  %v164 = vadd.f32 %v136, %v160
  %v165 = vadd.f32 %v137, %v161
  %v166 = vadd.f32 %v138, %v162
  %167 = vrot.lane.b32.xlu0 %v54, 65
  %v168 = vpop.permute.xlu0 %167
  %169 = vrot.lane.b32.xlu0 %v55, 65
  %v170 = vpop.permute.xlu0 %169
  %171 = vrot.lane.b32.xlu0 %v56, 65
  %v172 = vpop.permute.xlu0 %171
  %173 = vrot.lane.b32.xlu0 %v57, 65
  %v174 = vpop.permute.xlu0 %173
  %vm175 = vcmp.lt.s32.totalorder %v67, 65
  %v176 = vsel %vm175, %v172, %v174
  %v177 = vsel %vm175, %v170, %v172
  %v178 = vsel %vm175, %v168, %v170
  %v179 = vsel %vm175, %v174, %v168
  %s180 = scalar_lea.vmem %s2, 32
  %v181 = vld [vmem:[%s180] sm:$0xff]
  %183 = vset.pattern.permute.xlu0 0
  %184 = vperm.xlu0 %183, %v181
  %v185 = vpop.permute.xlu0 %184
  %v187 = vmul.f32 %v179, %v185
  %v188 = vmul.f32 %v178, %v185
  %v189 = vmul.f32 %v177, %v185
  %v190 = vmul.f32 %v176, %v185
  %v191 = vadd.f32 %v163, %v187
  %v192 = vadd.f32 %v164, %v188
  %v193 = vadd.f32 %v165, %v189
  %v194 = vadd.f32 %v166, %v190
  %195 = vrot.lane.b32.xlu0 %v54, 64
  %v196 = vpop.permute.xlu0 %195
  %197 = vrot.lane.b32.xlu0 %v55, 64
  %v198 = vpop.permute.xlu0 %197
  %199 = vrot.lane.b32.xlu0 %v56, 64
  %v200 = vpop.permute.xlu0 %199
  %201 = vrot.lane.b32.xlu0 %v57, 64
  %v202 = vpop.permute.xlu0 %201
  %vm203 = vcmp.lt.s32.totalorder %v67, 64
  %v204 = vsel %vm203, %v200, %v202
  %v205 = vsel %vm203, %v198, %v200
  %v206 = vsel %vm203, %v196, %v198
  %v207 = vsel %vm203, %v202, %v196
  %s208 = scalar_lea.vmem %s2, 40
  %v209 = vld [vmem:[%s208] sm:$0xff]
  %211 = vset.pattern.permute.xlu0 0
  %212 = vperm.xlu0 %211, %v209
  %v213 = vpop.permute.xlu0 %212
  %v215 = vmul.f32 %v207, %v213
  %v216 = vmul.f32 %v206, %v213
  %v217 = vmul.f32 %v205, %v213
  %v218 = vmul.f32 %v204, %v213
  %v219 = vadd.f32 %v191, %v215
  %v220 = vadd.f32 %v192, %v216
  %v221 = vadd.f32 %v193, %v217
  %v222 = vadd.f32 %v194, %v218
  %223 = vrot.lane.b32.xlu0 %v54, 63
  %v224 = vpop.permute.xlu0 %223
  %225 = vrot.lane.b32.xlu0 %v55, 63
  %v226 = vpop.permute.xlu0 %225
  %227 = vrot.lane.b32.xlu0 %v56, 63
  %v228 = vpop.permute.xlu0 %227
  %229 = vrot.lane.b32.xlu0 %v57, 63
  %v230 = vpop.permute.xlu0 %229
  %vm231 = vcmp.lt.s32.totalorder %v67, 63
  %v232 = vsel %vm231, %v228, %v230
  %v233 = vsel %vm231, %v226, %v228
  %v234 = vsel %vm231, %v224, %v226
  %v235 = vsel %vm231, %v230, %v224
  %s236 = scalar_lea.vmem %s2, 48
  %v237 = vld [vmem:[%s236] sm:$0xff]
  %239 = vset.pattern.permute.xlu0 0
  %240 = vperm.xlu0 %239, %v237
  %v241 = vpop.permute.xlu0 %240
  %v243 = vmul.f32 %v235, %v241
  %v244 = vmul.f32 %v234, %v241
  %v245 = vmul.f32 %v233, %v241
  %v246 = vmul.f32 %v232, %v241
  %v247 = vadd.f32 %v219, %v243
  %v248 = vadd.f32 %v220, %v244
  %v249 = vadd.f32 %v221, %v245
  %v250 = vadd.f32 %v222, %v246
  %251 = vrot.lane.b32.xlu0 %v54, 47
  %v252 = vpop.permute.xlu0 %251
  %253 = vrot.lane.b32.xlu0 %v55, 47
  %v254 = vpop.permute.xlu0 %253
  %255 = vrot.lane.b32.xlu0 %v56, 47
  %v256 = vpop.permute.xlu0 %255
  %257 = vrot.lane.b32.xlu0 %v57, 47
  %v258 = vpop.permute.xlu0 %257
  %vm259 = vcmp.lt.s32.totalorder %v67, 47
  %v260 = vsel %vm259, %v256, %v258
  %v261 = vsel %vm259, %v254, %v256
  %v262 = vsel %vm259, %v252, %v254
  %v263 = vsel %vm259, %v258, %v252
  %s264 = scalar_lea.vmem %s2, 56
  %v265 = vld [vmem:[%s264] sm:$0xff]
  %267 = vset.pattern.permute.xlu0 0
  %268 = vperm.xlu0 %267, %v265
  %v269 = vpop.permute.xlu0 %268
  %v271 = vmul.f32 %v263, %v269
  %v272 = vmul.f32 %v262, %v269
  %v273 = vmul.f32 %v261, %v269
  %v274 = vmul.f32 %v260, %v269
  %v275 = vadd.f32 %v247, %v271
  %v276 = vadd.f32 %v248, %v272
  %v277 = vadd.f32 %v249, %v273
  %v278 = vadd.f32 %v250, %v274
  %279 = vrot.lane.b32.xlu0 %v54, 46
  %v280 = vpop.permute.xlu0 %279
  %281 = vrot.lane.b32.xlu0 %v55, 46
  %v282 = vpop.permute.xlu0 %281
  %283 = vrot.lane.b32.xlu0 %v56, 46
  %v284 = vpop.permute.xlu0 %283
  %285 = vrot.lane.b32.xlu0 %v57, 46
  %v286 = vpop.permute.xlu0 %285
  %vm287 = vcmp.lt.s32.totalorder %v67, 46
  %v288 = vsel %vm287, %v284, %v286
  %v289 = vsel %vm287, %v282, %v284
  %v290 = vsel %vm287, %v280, %v282
  %v291 = vsel %vm287, %v286, %v280
  %s292 = scalar_lea.vmem %s2, 64
  %v293 = vld [vmem:[%s292] sm:$0xff]
  %295 = vset.pattern.permute.xlu0 0
  %296 = vperm.xlu0 %295, %v293
  %v297 = vpop.permute.xlu0 %296
  %v299 = vmul.f32 %v291, %v297
  %v300 = vmul.f32 %v290, %v297
  %v301 = vmul.f32 %v289, %v297
  %v302 = vmul.f32 %v288, %v297
  %v303 = vadd.f32 %v275, %v299
  %v304 = vadd.f32 %v276, %v300
  %v305 = vadd.f32 %v277, %v301
  %v306 = vadd.f32 %v278, %v302
  %307 = vrot.lane.b32.xlu0 %v54, 45
  %v308 = vpop.permute.xlu0 %307
  %309 = vrot.lane.b32.xlu0 %v55, 45
  %v310 = vpop.permute.xlu0 %309
  %311 = vrot.lane.b32.xlu0 %v56, 45
  %v312 = vpop.permute.xlu0 %311
  %313 = vrot.lane.b32.xlu0 %v57, 45
  %v314 = vpop.permute.xlu0 %313
  %vm315 = vcmp.lt.s32.totalorder %v67, 45
  %v316 = vsel %vm315, %v312, %v314
  %v317 = vsel %vm315, %v310, %v312
  %v318 = vsel %vm315, %v308, %v310
  %v319 = vsel %vm315, %v314, %v308
  %s320 = scalar_lea.vmem %s2, 72
  %v321 = vld [vmem:[%s320] sm:$0xff]
  %323 = vset.pattern.permute.xlu0 0
  %324 = vperm.xlu0 %323, %v321
  %v325 = vpop.permute.xlu0 %324
  %v327 = vmul.f32 %v319, %v325
  %v328 = vmul.f32 %v318, %v325
  %v329 = vmul.f32 %v317, %v325
  %v330 = vmul.f32 %v316, %v325
  %v331 = vadd.f32 %v303, %v327
  %v332 = vadd.f32 %v304, %v328
  %v333 = vadd.f32 %v305, %v329
  %v334 = vadd.f32 %v306, %v330
  %335 = vrot.lane.b32.xlu0 %v54, 44
  %v336 = vpop.permute.xlu0 %335
  %337 = vrot.lane.b32.xlu0 %v55, 44
  %v338 = vpop.permute.xlu0 %337
  %339 = vrot.lane.b32.xlu0 %v56, 44
  %v340 = vpop.permute.xlu0 %339
  %341 = vrot.lane.b32.xlu0 %v57, 44
  %v342 = vpop.permute.xlu0 %341
  %vm343 = vcmp.lt.s32.totalorder %v67, 44
  %v344 = vsel %vm343, %v340, %v342
  %v345 = vsel %vm343, %v338, %v340
  %v346 = vsel %vm343, %v336, %v338
  %v347 = vsel %vm343, %v342, %v336
  %s348 = scalar_lea.vmem %s2, 80
  %v349 = vld [vmem:[%s348] sm:$0xff]
  %351 = vset.pattern.permute.xlu0 0
  %352 = vperm.xlu0 %351, %v349
  %v353 = vpop.permute.xlu0 %352
  %v355 = vmul.f32 %v347, %v353
  %v356 = vmul.f32 %v346, %v353
  %v357 = vmul.f32 %v345, %v353
  %v358 = vmul.f32 %v344, %v353
  %v359 = vadd.f32 %v331, %v355
  %v360 = vadd.f32 %v332, %v356
  %v361 = vadd.f32 %v333, %v357
  %v362 = vadd.f32 %v334, %v358
  %363 = vrot.lane.b32.xlu0 %v54, 43
  %v364 = vpop.permute.xlu0 %363
  %365 = vrot.lane.b32.xlu0 %v55, 43
  %v366 = vpop.permute.xlu0 %365
  %367 = vrot.lane.b32.xlu0 %v56, 43
  %v368 = vpop.permute.xlu0 %367
  %369 = vrot.lane.b32.xlu0 %v57, 43
  %v370 = vpop.permute.xlu0 %369
  %vm371 = vcmp.lt.s32.totalorder %v67, 43
  %v372 = vsel %vm371, %v368, %v370
  %v373 = vsel %vm371, %v366, %v368
  %v374 = vsel %vm371, %v364, %v366
  %v375 = vsel %vm371, %v370, %v364
  %s376 = scalar_lea.vmem %s2, 88
  %v377 = vld [vmem:[%s376] sm:$0xff]
  %379 = vset.pattern.permute.xlu0 0
  %380 = vperm.xlu0 %379, %v377
  %v381 = vpop.permute.xlu0 %380
  %v383 = vmul.f32 %v375, %v381
  %v384 = vmul.f32 %v374, %v381
  %v385 = vmul.f32 %v373, %v381
  %v386 = vmul.f32 %v372, %v381
  %v387 = vadd.f32 %v359, %v383
  %v388 = vadd.f32 %v360, %v384
  %v389 = vadd.f32 %v361, %v385
  %v390 = vadd.f32 %v362, %v386
  %391 = vrot.lane.b32.xlu0 %v54, 42
  %v392 = vpop.permute.xlu0 %391
  %393 = vrot.lane.b32.xlu0 %v55, 42
  %v394 = vpop.permute.xlu0 %393
  %395 = vrot.lane.b32.xlu0 %v56, 42
  %v396 = vpop.permute.xlu0 %395
  %397 = vrot.lane.b32.xlu0 %v57, 42
  %v398 = vpop.permute.xlu0 %397
  %vm399 = vcmp.lt.s32.totalorder %v67, 42
  %v400 = vsel %vm399, %v396, %v398
  %v401 = vsel %vm399, %v394, %v396
  %v402 = vsel %vm399, %v392, %v394
  %v403 = vsel %vm399, %v398, %v392
  %s404 = scalar_lea.vmem %s2, 96
  %v405 = vld [vmem:[%s404] sm:$0xff]
  %407 = vset.pattern.permute.xlu0 0
  %408 = vperm.xlu0 %407, %v405
  %v409 = vpop.permute.xlu0 %408
  %v411 = vmul.f32 %v403, %v409
  %v412 = vmul.f32 %v402, %v409
  %v413 = vmul.f32 %v401, %v409
  %v414 = vmul.f32 %v400, %v409
  %v415 = vadd.f32 %v387, %v411
  %v416 = vadd.f32 %v388, %v412
  %v417 = vadd.f32 %v389, %v413
  %v418 = vadd.f32 %v390, %v414
  %419 = vrot.lane.b32.xlu0 %v54, 41
  %v420 = vpop.permute.xlu0 %419
  %421 = vrot.lane.b32.xlu0 %v55, 41
  %v422 = vpop.permute.xlu0 %421
  %423 = vrot.lane.b32.xlu0 %v56, 41
  %v424 = vpop.permute.xlu0 %423
  %425 = vrot.lane.b32.xlu0 %v57, 41
  %v426 = vpop.permute.xlu0 %425
  %vm427 = vcmp.lt.s32.totalorder %v67, 41
  %v428 = vsel %vm427, %v424, %v426
  %v429 = vsel %vm427, %v422, %v424
  %v430 = vsel %vm427, %v420, %v422
  %v431 = vsel %vm427, %v426, %v420
  %s432 = scalar_lea.vmem %s2, 104
  %v433 = vld [vmem:[%s432] sm:$0xff]
  %435 = vset.pattern.permute.xlu0 0
  %436 = vperm.xlu0 %435, %v433
  %v437 = vpop.permute.xlu0 %436
  %v439 = vmul.f32 %v431, %v437
  %v440 = vmul.f32 %v430, %v437
  %v441 = vmul.f32 %v429, %v437
  %v442 = vmul.f32 %v428, %v437
  %v443 = vadd.f32 %v415, %v439
  %v444 = vadd.f32 %v416, %v440
  %v445 = vadd.f32 %v417, %v441
  %v446 = vadd.f32 %v418, %v442
  %447 = vrot.lane.b32.xlu0 %v54, 25
  %v448 = vpop.permute.xlu0 %447
  %449 = vrot.lane.b32.xlu0 %v55, 25
  %v450 = vpop.permute.xlu0 %449
  %451 = vrot.lane.b32.xlu0 %v56, 25
  %v452 = vpop.permute.xlu0 %451
  %453 = vrot.lane.b32.xlu0 %v57, 25
  %v454 = vpop.permute.xlu0 %453
  %vm455 = vcmp.lt.s32.totalorder %v67, 25
  %v456 = vsel %vm455, %v452, %v454
  %v457 = vsel %vm455, %v450, %v452
  %v458 = vsel %vm455, %v448, %v450
  %v459 = vsel %vm455, %v454, %v448
  %s460 = scalar_lea.vmem %s2, 112
  %v461 = vld [vmem:[%s460] sm:$0xff]
  %463 = vset.pattern.permute.xlu0 0
  %464 = vperm.xlu0 %463, %v461
  %v465 = vpop.permute.xlu0 %464
  %v467 = vmul.f32 %v459, %v465
  %v468 = vmul.f32 %v458, %v465
  %v469 = vmul.f32 %v457, %v465
  %v470 = vmul.f32 %v456, %v465
  %v471 = vadd.f32 %v443, %v467
  %v472 = vadd.f32 %v444, %v468
  %v473 = vadd.f32 %v445, %v469
  %v474 = vadd.f32 %v446, %v470
  %475 = vrot.lane.b32.xlu0 %v54, 24
  %v476 = vpop.permute.xlu0 %475
  %477 = vrot.lane.b32.xlu0 %v55, 24
  %v478 = vpop.permute.xlu0 %477
  %479 = vrot.lane.b32.xlu0 %v56, 24
  %v480 = vpop.permute.xlu0 %479
  %481 = vrot.lane.b32.xlu0 %v57, 24
  %v482 = vpop.permute.xlu0 %481
  %vm483 = vcmp.lt.s32.totalorder %v67, 24
  %v484 = vsel %vm483, %v480, %v482
  %v485 = vsel %vm483, %v478, %v480
  %v486 = vsel %vm483, %v476, %v478
  %v487 = vsel %vm483, %v482, %v476
  %s488 = scalar_lea.vmem %s2, 120
  %v489 = vld [vmem:[%s488] sm:$0xff]
  %491 = vset.pattern.permute.xlu0 0
  %492 = vperm.xlu0 %491, %v489
  %v493 = vpop.permute.xlu0 %492
  %v495 = vmul.f32 %v487, %v493
  %v496 = vmul.f32 %v486, %v493
  %v497 = vmul.f32 %v485, %v493
  %v498 = vmul.f32 %v484, %v493
  %v499 = vadd.f32 %v471, %v495
  %v500 = vadd.f32 %v472, %v496
  %v501 = vadd.f32 %v473, %v497
  %v502 = vadd.f32 %v474, %v498
  %503 = vrot.lane.b32.xlu0 %v54, 23
  %v504 = vpop.permute.xlu0 %503
  %505 = vrot.lane.b32.xlu0 %v55, 23
  %v506 = vpop.permute.xlu0 %505
  %507 = vrot.lane.b32.xlu0 %v56, 23
  %v508 = vpop.permute.xlu0 %507
  %509 = vrot.lane.b32.xlu0 %v57, 23
  %v510 = vpop.permute.xlu0 %509
  %vm511 = vcmp.lt.s32.totalorder %v67, 23
  %v512 = vsel %vm511, %v508, %v510
  %v513 = vsel %vm511, %v506, %v508
  %v514 = vsel %vm511, %v504, %v506
  %v515 = vsel %vm511, %v510, %v504
  %s516 = scalar_lea.vmem %s2, 128
  %v517 = vld [vmem:[%s516] sm:$0xff]
  %519 = vset.pattern.permute.xlu0 0
  %520 = vperm.xlu0 %519, %v517
  %v521 = vpop.permute.xlu0 %520
  %v523 = vmul.f32 %v515, %v521
  %v524 = vmul.f32 %v514, %v521
  %v525 = vmul.f32 %v513, %v521
  %v526 = vmul.f32 %v512, %v521
  %v527 = vadd.f32 %v499, %v523
  %v528 = vadd.f32 %v500, %v524
  %v529 = vadd.f32 %v501, %v525
  %v530 = vadd.f32 %v502, %v526
  %531 = vrot.lane.b32.xlu0 %v54, 22
  %v532 = vpop.permute.xlu0 %531
  %533 = vrot.lane.b32.xlu0 %v55, 22
  %v534 = vpop.permute.xlu0 %533
  %535 = vrot.lane.b32.xlu0 %v56, 22
  %v536 = vpop.permute.xlu0 %535
  %537 = vrot.lane.b32.xlu0 %v57, 22
  %v538 = vpop.permute.xlu0 %537
  %vm539 = vcmp.lt.s32.totalorder %v67, 22
  %v540 = vsel %vm539, %v536, %v538
  %v541 = vsel %vm539, %v534, %v536
  %v542 = vsel %vm539, %v532, %v534
  %v543 = vsel %vm539, %v538, %v532
  %s544 = scalar_lea.vmem %s2, 136
  %v545 = vld [vmem:[%s544] sm:$0xff]
  %547 = vset.pattern.permute.xlu0 0
  %548 = vperm.xlu0 %547, %v545
  %v549 = vpop.permute.xlu0 %548
  %v551 = vmul.f32 %v543, %v549
  %v552 = vmul.f32 %v542, %v549
  %v553 = vmul.f32 %v541, %v549
  %v554 = vmul.f32 %v540, %v549
  %v555 = vadd.f32 %v527, %v551
  %v556 = vadd.f32 %v528, %v552
  %v557 = vadd.f32 %v529, %v553
  %v558 = vadd.f32 %v530, %v554
  %559 = vrot.lane.b32.xlu0 %v54, 21
  %v560 = vpop.permute.xlu0 %559
  %561 = vrot.lane.b32.xlu0 %v55, 21
  %v562 = vpop.permute.xlu0 %561
  %563 = vrot.lane.b32.xlu0 %v56, 21
  %v564 = vpop.permute.xlu0 %563
  %565 = vrot.lane.b32.xlu0 %v57, 21
  %v566 = vpop.permute.xlu0 %565
  %vm567 = vcmp.lt.s32.totalorder %v67, 21
  %v568 = vsel %vm567, %v564, %v566
  %v569 = vsel %vm567, %v562, %v564
  %v570 = vsel %vm567, %v560, %v562
  %v571 = vsel %vm567, %v566, %v560
  %s572 = scalar_lea.vmem %s2, 144
  %v573 = vld [vmem:[%s572] sm:$0xff]
  %575 = vset.pattern.permute.xlu0 0
  %576 = vperm.xlu0 %575, %v573
  %v577 = vpop.permute.xlu0 %576
  %v579 = vmul.f32 %v571, %v577
  %v580 = vmul.f32 %v570, %v577
  %v581 = vmul.f32 %v569, %v577
  %v582 = vmul.f32 %v568, %v577
  %v583 = vadd.f32 %v555, %v579
  %v584 = vadd.f32 %v556, %v580
  %v585 = vadd.f32 %v557, %v581
  %v586 = vadd.f32 %v558, %v582
  %587 = vrot.lane.b32.xlu0 %v54, 20
  %v588 = vpop.permute.xlu0 %587
  %589 = vrot.lane.b32.xlu0 %v55, 20
  %v590 = vpop.permute.xlu0 %589
  %591 = vrot.lane.b32.xlu0 %v56, 20
  %v592 = vpop.permute.xlu0 %591
  %593 = vrot.lane.b32.xlu0 %v57, 20
  %v594 = vpop.permute.xlu0 %593
  %vm595 = vcmp.lt.s32.totalorder %v67, 20
  %v596 = vsel %vm595, %v592, %v594
  %v597 = vsel %vm595, %v590, %v592
  %v598 = vsel %vm595, %v588, %v590
  %v599 = vsel %vm595, %v594, %v588
  %s600 = scalar_lea.vmem %s2, 152
  %v601 = vld [vmem:[%s600] sm:$0xff]
  %603 = vset.pattern.permute.xlu0 0
  %604 = vperm.xlu0 %603, %v601
  %v605 = vpop.permute.xlu0 %604
  %v607 = vmul.f32 %v599, %v605
  %v608 = vmul.f32 %v598, %v605
  %v609 = vmul.f32 %v597, %v605
  %v610 = vmul.f32 %v596, %v605
  %v611 = vadd.f32 %v583, %v607
  %v612 = vadd.f32 %v584, %v608
  %v613 = vadd.f32 %v585, %v609
  %v614 = vadd.f32 %v586, %v610
  %615 = vrot.lane.b32.xlu0 %v54, 19
  %v616 = vpop.permute.xlu0 %615
  %617 = vrot.lane.b32.xlu0 %v55, 19
  %v618 = vpop.permute.xlu0 %617
  %619 = vrot.lane.b32.xlu0 %v56, 19
  %v620 = vpop.permute.xlu0 %619
  %621 = vrot.lane.b32.xlu0 %v57, 19
  %v622 = vpop.permute.xlu0 %621
  %vm623 = vcmp.lt.s32.totalorder %v67, 19
  %v624 = vsel %vm623, %v620, %v622
  %v625 = vsel %vm623, %v618, %v620
  %v626 = vsel %vm623, %v616, %v618
  %v627 = vsel %vm623, %v622, %v616
  %s628 = scalar_lea.vmem %s2, 160
  %v629 = vld [vmem:[%s628] sm:$0xff]
  %631 = vset.pattern.permute.xlu0 0
  %632 = vperm.xlu0 %631, %v629
  %v633 = vpop.permute.xlu0 %632
  %v635 = vmul.f32 %v627, %v633
  %v636 = vmul.f32 %v626, %v633
  %v637 = vmul.f32 %v625, %v633
  %v638 = vmul.f32 %v624, %v633
  %v639 = vadd.f32 %v611, %v635
  %v640 = vadd.f32 %v612, %v636
  %v641 = vadd.f32 %v613, %v637
  %v642 = vadd.f32 %v614, %v638
  %643 = vrot.lane.b32.xlu0 %v54, 3
  %v644 = vpop.permute.xlu0 %643
  %645 = vrot.lane.b32.xlu0 %v55, 3
  %v646 = vpop.permute.xlu0 %645
  %647 = vrot.lane.b32.xlu0 %v56, 3
  %v648 = vpop.permute.xlu0 %647
  %649 = vrot.lane.b32.xlu0 %v57, 3
  %v650 = vpop.permute.xlu0 %649
  %vm651 = vcmp.lt.s32.totalorder %v67, 3
  %v652 = vsel %vm651, %v648, %v650
  %v653 = vsel %vm651, %v646, %v648
  %v654 = vsel %vm651, %v644, %v646
  %v655 = vsel %vm651, %v650, %v644
  %s656 = scalar_lea.vmem %s2, 168
  %v657 = vld [vmem:[%s656] sm:$0xff]
  %659 = vset.pattern.permute.xlu0 0
  %660 = vperm.xlu0 %659, %v657
  %v661 = vpop.permute.xlu0 %660
  %v663 = vmul.f32 %v655, %v661
  %v664 = vmul.f32 %v654, %v661
  %v665 = vmul.f32 %v653, %v661
  %v666 = vmul.f32 %v652, %v661
  %v667 = vadd.f32 %v639, %v663
  %v668 = vadd.f32 %v640, %v664
  %v669 = vadd.f32 %v641, %v665
  %v670 = vadd.f32 %v642, %v666
  %671 = vrot.lane.b32.xlu0 %v54, 2
  %v672 = vpop.permute.xlu0 %671
  %673 = vrot.lane.b32.xlu0 %v55, 2
  %v674 = vpop.permute.xlu0 %673
  %675 = vrot.lane.b32.xlu0 %v56, 2
  %v676 = vpop.permute.xlu0 %675
  %677 = vrot.lane.b32.xlu0 %v57, 2
  %v678 = vpop.permute.xlu0 %677
  %vm679 = vcmp.lt.s32.totalorder %v67, 2
  %v680 = vsel %vm679, %v676, %v678
  %v681 = vsel %vm679, %v674, %v676
  %v682 = vsel %vm679, %v672, %v674
  %v683 = vsel %vm679, %v678, %v672
  %s684 = scalar_lea.vmem %s2, 176
  %v685 = vld [vmem:[%s684] sm:$0xff]
  %687 = vset.pattern.permute.xlu0 0
  %688 = vperm.xlu0 %687, %v685
  %v689 = vpop.permute.xlu0 %688
  %v691 = vmul.f32 %v683, %v689
  %v692 = vmul.f32 %v682, %v689
  %v693 = vmul.f32 %v681, %v689
  %v694 = vmul.f32 %v680, %v689
  %v695 = vadd.f32 %v667, %v691
  %v696 = vadd.f32 %v668, %v692
  %v697 = vadd.f32 %v669, %v693
  %v698 = vadd.f32 %v670, %v694
  %699 = vrot.lane.b32.xlu0 %v54, 1
  %v700 = vpop.permute.xlu0 %699
  %701 = vrot.lane.b32.xlu0 %v55, 1
  %v702 = vpop.permute.xlu0 %701
  %703 = vrot.lane.b32.xlu0 %v56, 1
  %v704 = vpop.permute.xlu0 %703
  %705 = vrot.lane.b32.xlu0 %v57, 1
  %v706 = vpop.permute.xlu0 %705
  %vm707 = vcmp.lt.s32.totalorder %v67, 1
  %v708 = vsel %vm707, %v704, %v706
  %v709 = vsel %vm707, %v702, %v704
  %v710 = vsel %vm707, %v700, %v702
  %v711 = vsel %vm707, %v706, %v700
  %s712 = scalar_lea.vmem %s2, 184
  %v713 = vld [vmem:[%s712] sm:$0xff]
  %715 = vset.pattern.permute.xlu0 0
  %716 = vperm.xlu0 %715, %v713
  %v717 = vpop.permute.xlu0 %716
  %v719 = vmul.f32 %v711, %v717
  %v720 = vmul.f32 %v710, %v717
  %v721 = vmul.f32 %v709, %v717
  %v722 = vmul.f32 %v708, %v717
  %v723 = vadd.f32 %v695, %v719
  %v724 = vadd.f32 %v696, %v720
  %v725 = vadd.f32 %v697, %v721
  %v726 = vadd.f32 %v698, %v722
  %s727 = scalar_lea.vmem %s2, 192
  %v728 = vld [vmem:[%s727] sm:$0xff]
  %730 = vset.pattern.permute.xlu0 0
  %731 = vperm.xlu0 %730, %v728
  %v732 = vpop.permute.xlu0 %731
  %v734 = vmul.f32 %v54, %v732
  %v735 = vmul.f32 %v55, %v732
  %v736 = vmul.f32 %v56, %v732
  %v737 = vmul.f32 %v57, %v732
  %v738 = vadd.f32 %v723, %v734
  %v739 = vadd.f32 %v724, %v735
  %v740 = vadd.f32 %v725, %v736
  %v741 = vadd.f32 %v726, %v737
  %742 = vrot.lane.b32.xlu0 %v54, 127
  %v743 = vpop.permute.xlu0 %742
  %744 = vrot.lane.b32.xlu0 %v55, 127
  %v745 = vpop.permute.xlu0 %744
  %746 = vrot.lane.b32.xlu0 %v56, 127
  %v747 = vpop.permute.xlu0 %746
  %748 = vrot.lane.b32.xlu0 %v57, 127
  %v749 = vpop.permute.xlu0 %748
  %vm750 = vcmp.lt.s32.totalorder %v67, 127
  %v751 = vsel %vm750, %v747, %v749
  %v752 = vsel %vm750, %v745, %v747
  %v753 = vsel %vm750, %v743, %v745
  %v754 = vsel %vm750, %v749, %v743
  %s755 = scalar_lea.vmem %s2, 200
  %v756 = vld [vmem:[%s755] sm:$0xff]
  %758 = vset.pattern.permute.xlu0 0
  %759 = vperm.xlu0 %758, %v756
  %v760 = vpop.permute.xlu0 %759
  %v762 = vmul.f32 %v753, %v760
  %v763 = vmul.f32 %v752, %v760
  %v764 = vmul.f32 %v751, %v760
  %v765 = vmul.f32 %v754, %v760
  %v766 = vadd.f32 %v738, %v762
  %v767 = vadd.f32 %v739, %v763
  %v768 = vadd.f32 %v740, %v764
  %v769 = vadd.f32 %v741, %v765
  %770 = vrot.lane.b32.xlu0 %v54, 126
  %v771 = vpop.permute.xlu0 %770
  %772 = vrot.lane.b32.xlu0 %v55, 126
  %v773 = vpop.permute.xlu0 %772
  %774 = vrot.lane.b32.xlu0 %v56, 126
  %v775 = vpop.permute.xlu0 %774
  %776 = vrot.lane.b32.xlu0 %v57, 126
  %v777 = vpop.permute.xlu0 %776
  %vm778 = vcmp.lt.s32.totalorder %v67, 126
  %v779 = vsel %vm778, %v775, %v777
  %v780 = vsel %vm778, %v773, %v775
  %v781 = vsel %vm778, %v771, %v773
  %v782 = vsel %vm778, %v777, %v771
  %s783 = scalar_lea.vmem %s2, 208
  %v784 = vld [vmem:[%s783] sm:$0xff]
  %786 = vset.pattern.permute.xlu0 0
  %787 = vperm.xlu0 %786, %v784
  %v788 = vpop.permute.xlu0 %787
  %v790 = vmul.f32 %v781, %v788
  %v791 = vmul.f32 %v780, %v788
  %v792 = vmul.f32 %v779, %v788
  %v793 = vmul.f32 %v782, %v788
  %v794 = vadd.f32 %v766, %v790
  %v795 = vadd.f32 %v767, %v791
  %v796 = vadd.f32 %v768, %v792
  %v797 = vadd.f32 %v769, %v793
  %798 = vrot.lane.b32.xlu0 %v54, 125
  %v799 = vpop.permute.xlu0 %798
  %800 = vrot.lane.b32.xlu0 %v55, 125
  %v801 = vpop.permute.xlu0 %800
  %802 = vrot.lane.b32.xlu0 %v56, 125
  %v803 = vpop.permute.xlu0 %802
  %804 = vrot.lane.b32.xlu0 %v57, 125
  %v805 = vpop.permute.xlu0 %804
  %vm806 = vcmp.lt.s32.totalorder %v67, 125
  %v807 = vsel %vm806, %v803, %v805
  %v808 = vsel %vm806, %v801, %v803
  %v809 = vsel %vm806, %v799, %v801
  %v810 = vsel %vm806, %v805, %v799
  %s811 = scalar_lea.vmem %s2, 216
  %v812 = vld [vmem:[%s811] sm:$0xff]
  %814 = vset.pattern.permute.xlu0 0
  %815 = vperm.xlu0 %814, %v812
  %v816 = vpop.permute.xlu0 %815
  %v818 = vmul.f32 %v809, %v816
  %v819 = vmul.f32 %v808, %v816
  %v820 = vmul.f32 %v807, %v816
  %v821 = vmul.f32 %v810, %v816
  %v822 = vadd.f32 %v794, %v818
  %v823 = vadd.f32 %v795, %v819
  %v824 = vadd.f32 %v796, %v820
  %v825 = vadd.f32 %v797, %v821
  %826 = vrot.lane.b32.xlu0 %v54, 109
  %v827 = vpop.permute.xlu0 %826
  %828 = vrot.lane.b32.xlu0 %v55, 109
  %v829 = vpop.permute.xlu0 %828
  %830 = vrot.lane.b32.xlu0 %v56, 109
  %v831 = vpop.permute.xlu0 %830
  %832 = vrot.lane.b32.xlu0 %v57, 109
  %v833 = vpop.permute.xlu0 %832
  %vm834 = vcmp.lt.s32.totalorder %v67, 109
  %v835 = vsel %vm834, %v831, %v833
  %v836 = vsel %vm834, %v829, %v831
  %v837 = vsel %vm834, %v827, %v829
  %v838 = vsel %vm834, %v833, %v827
  %s839 = scalar_lea.vmem %s2, 224
  %v840 = vld [vmem:[%s839] sm:$0xff]
  %842 = vset.pattern.permute.xlu0 0
  %843 = vperm.xlu0 %842, %v840
  %v844 = vpop.permute.xlu0 %843
  %v846 = vmul.f32 %v837, %v844
  %v847 = vmul.f32 %v836, %v844
  %v848 = vmul.f32 %v835, %v844
  %v849 = vmul.f32 %v838, %v844
  %v850 = vadd.f32 %v822, %v846
  %v851 = vadd.f32 %v823, %v847
  %v852 = vadd.f32 %v824, %v848
  %v853 = vadd.f32 %v825, %v849
  %854 = vrot.lane.b32.xlu0 %v54, 108
  %v855 = vpop.permute.xlu0 %854
  %856 = vrot.lane.b32.xlu0 %v55, 108
  %v857 = vpop.permute.xlu0 %856
  %858 = vrot.lane.b32.xlu0 %v56, 108
  %v859 = vpop.permute.xlu0 %858
  %860 = vrot.lane.b32.xlu0 %v57, 108
  %v861 = vpop.permute.xlu0 %860
  %vm862 = vcmp.lt.s32.totalorder %v67, 108
  %v863 = vsel %vm862, %v859, %v861
  %v864 = vsel %vm862, %v857, %v859
  %v865 = vsel %vm862, %v855, %v857
  %v866 = vsel %vm862, %v861, %v855
  %s867 = scalar_lea.vmem %s2, 232
  %v868 = vld [vmem:[%s867] sm:$0xff]
  %870 = vset.pattern.permute.xlu0 0
  %871 = vperm.xlu0 %870, %v868
  %v872 = vpop.permute.xlu0 %871
  %v874 = vmul.f32 %v865, %v872
  %v875 = vmul.f32 %v864, %v872
  %v876 = vmul.f32 %v863, %v872
  %v877 = vmul.f32 %v866, %v872
  %v878 = vadd.f32 %v850, %v874
  %v879 = vadd.f32 %v851, %v875
  %v880 = vadd.f32 %v852, %v876
  %v881 = vadd.f32 %v853, %v877
  %882 = vrot.lane.b32.xlu0 %v54, 107
  %v883 = vpop.permute.xlu0 %882
  %884 = vrot.lane.b32.xlu0 %v55, 107
  %v885 = vpop.permute.xlu0 %884
  %886 = vrot.lane.b32.xlu0 %v56, 107
  %v887 = vpop.permute.xlu0 %886
  %888 = vrot.lane.b32.xlu0 %v57, 107
  %v889 = vpop.permute.xlu0 %888
  %vm890 = vcmp.lt.s32.totalorder %v67, 107
  %v891 = vsel %vm890, %v887, %v889
  %v892 = vsel %vm890, %v885, %v887
  %v893 = vsel %vm890, %v883, %v885
  %v894 = vsel %vm890, %v889, %v883
  %s895 = scalar_lea.vmem %s2, 240
  %v896 = vld [vmem:[%s895] sm:$0xff]
  %898 = vset.pattern.permute.xlu0 0
  %899 = vperm.xlu0 %898, %v896
  %v900 = vpop.permute.xlu0 %899
  %v902 = vmul.f32 %v893, %v900
  %v903 = vmul.f32 %v892, %v900
  %v904 = vmul.f32 %v891, %v900
  %v905 = vmul.f32 %v894, %v900
  %v906 = vadd.f32 %v878, %v902
  %v907 = vadd.f32 %v879, %v903
  %v908 = vadd.f32 %v880, %v904
  %v909 = vadd.f32 %v881, %v905
  %910 = vrot.lane.b32.xlu0 %v54, 106
  %v911 = vpop.permute.xlu0 %910
  %912 = vrot.lane.b32.xlu0 %v55, 106
  %v913 = vpop.permute.xlu0 %912
  %914 = vrot.lane.b32.xlu0 %v56, 106
  %v915 = vpop.permute.xlu0 %914
  %916 = vrot.lane.b32.xlu0 %v57, 106
  %v917 = vpop.permute.xlu0 %916
  %vm918 = vcmp.lt.s32.totalorder %v67, 106
  %v919 = vsel %vm918, %v915, %v917
  %v920 = vsel %vm918, %v913, %v915
  %v921 = vsel %vm918, %v911, %v913
  %v922 = vsel %vm918, %v917, %v911
  %s923 = scalar_lea.vmem %s2, 248
  %v924 = vld [vmem:[%s923] sm:$0xff]
  %926 = vset.pattern.permute.xlu0 0
  %927 = vperm.xlu0 %926, %v924
  %v928 = vpop.permute.xlu0 %927
  %v930 = vmul.f32 %v921, %v928
  %v931 = vmul.f32 %v920, %v928
  %v932 = vmul.f32 %v919, %v928
  %v933 = vmul.f32 %v922, %v928
  %v934 = vadd.f32 %v906, %v930
  %v935 = vadd.f32 %v907, %v931
  %v936 = vadd.f32 %v908, %v932
  %v937 = vadd.f32 %v909, %v933
  %938 = vrot.lane.b32.xlu0 %v54, 105
  %v939 = vpop.permute.xlu0 %938
  %940 = vrot.lane.b32.xlu0 %v55, 105
  %v941 = vpop.permute.xlu0 %940
  %942 = vrot.lane.b32.xlu0 %v56, 105
  %v943 = vpop.permute.xlu0 %942
  %944 = vrot.lane.b32.xlu0 %v57, 105
  %v945 = vpop.permute.xlu0 %944
  %vm946 = vcmp.lt.s32.totalorder %v67, 105
  %v947 = vsel %vm946, %v943, %v945
  %v948 = vsel %vm946, %v941, %v943
  %v949 = vsel %vm946, %v939, %v941
  %v950 = vsel %vm946, %v945, %v939
  %s951 = scalar_lea.vmem %s2, 256
  %v952 = vld [vmem:[%s951] sm:$0xff]
  %954 = vset.pattern.permute.xlu0 0
  %955 = vperm.xlu0 %954, %v952
  %v956 = vpop.permute.xlu0 %955
  %v958 = vmul.f32 %v949, %v956
  %v959 = vmul.f32 %v948, %v956
  %v960 = vmul.f32 %v947, %v956
  %v961 = vmul.f32 %v950, %v956
  %v962 = vadd.f32 %v934, %v958
  %v963 = vadd.f32 %v935, %v959
  %v964 = vadd.f32 %v936, %v960
  %v965 = vadd.f32 %v937, %v961
  %966 = vrot.lane.b32.xlu0 %v54, 104
  %v967 = vpop.permute.xlu0 %966
  %968 = vrot.lane.b32.xlu0 %v55, 104
  %v969 = vpop.permute.xlu0 %968
  %970 = vrot.lane.b32.xlu0 %v56, 104
  %v971 = vpop.permute.xlu0 %970
  %972 = vrot.lane.b32.xlu0 %v57, 104
  %v973 = vpop.permute.xlu0 %972
  %vm974 = vcmp.lt.s32.totalorder %v67, 104
  %v975 = vsel %vm974, %v971, %v973
  %v976 = vsel %vm974, %v969, %v971
  %v977 = vsel %vm974, %v967, %v969
  %v978 = vsel %vm974, %v973, %v967
  %s979 = scalar_lea.vmem %s2, 264
  %v980 = vld [vmem:[%s979] sm:$0xff]
  %982 = vset.pattern.permute.xlu0 0
  %983 = vperm.xlu0 %982, %v980
  %v984 = vpop.permute.xlu0 %983
  %v986 = vmul.f32 %v977, %v984
  %v987 = vmul.f32 %v976, %v984
  %v988 = vmul.f32 %v975, %v984
  %v989 = vmul.f32 %v978, %v984
  %v990 = vadd.f32 %v962, %v986
  %v991 = vadd.f32 %v963, %v987
  %v992 = vadd.f32 %v964, %v988
  %v993 = vadd.f32 %v965, %v989
  %994 = vrot.lane.b32.xlu0 %v54, 103
  %v995 = vpop.permute.xlu0 %994
  %996 = vrot.lane.b32.xlu0 %v55, 103
  %v997 = vpop.permute.xlu0 %996
  %998 = vrot.lane.b32.xlu0 %v56, 103
  %v999 = vpop.permute.xlu0 %998
  %1000 = vrot.lane.b32.xlu0 %v57, 103
  %v1001 = vpop.permute.xlu0 %1000
  %vm1002 = vcmp.lt.s32.totalorder %v67, 103
  %v1003 = vsel %vm1002, %v999, %v1001
  %v1004 = vsel %vm1002, %v997, %v999
  %v1005 = vsel %vm1002, %v995, %v997
  %v1006 = vsel %vm1002, %v1001, %v995
  %s1007 = scalar_lea.vmem %s2, 272
  %v1008 = vld [vmem:[%s1007] sm:$0xff]
  %1010 = vset.pattern.permute.xlu0 0
  %1011 = vperm.xlu0 %1010, %v1008
  %v1012 = vpop.permute.xlu0 %1011
  %v1014 = vmul.f32 %v1005, %v1012
  %v1015 = vmul.f32 %v1004, %v1012
  %v1016 = vmul.f32 %v1003, %v1012
  %v1017 = vmul.f32 %v1006, %v1012
  %v1018 = vadd.f32 %v990, %v1014
  %v1019 = vadd.f32 %v991, %v1015
  %v1020 = vadd.f32 %v992, %v1016
  %v1021 = vadd.f32 %v993, %v1017
  %1022 = vrot.lane.b32.xlu0 %v54, 87
  %v1023 = vpop.permute.xlu0 %1022
  %1024 = vrot.lane.b32.xlu0 %v55, 87
  %v1025 = vpop.permute.xlu0 %1024
  %1026 = vrot.lane.b32.xlu0 %v56, 87
  %v1027 = vpop.permute.xlu0 %1026
  %1028 = vrot.lane.b32.xlu0 %v57, 87
  %v1029 = vpop.permute.xlu0 %1028
  %vm1030 = vcmp.lt.s32.totalorder %v67, 87
  %v1031 = vsel %vm1030, %v1027, %v1029
  %v1032 = vsel %vm1030, %v1025, %v1027
  %v1033 = vsel %vm1030, %v1023, %v1025
  %v1034 = vsel %vm1030, %v1029, %v1023
  %s1035 = scalar_lea.vmem %s2, 280
  %v1036 = vld [vmem:[%s1035] sm:$0xff]
  %1038 = vset.pattern.permute.xlu0 0
  %1039 = vperm.xlu0 %1038, %v1036
  %v1040 = vpop.permute.xlu0 %1039
  %v1042 = vmul.f32 %v1033, %v1040
  %v1043 = vmul.f32 %v1032, %v1040
  %v1044 = vmul.f32 %v1031, %v1040
  %v1045 = vmul.f32 %v1034, %v1040
  %v1046 = vadd.f32 %v1018, %v1042
  %v1047 = vadd.f32 %v1019, %v1043
  %v1048 = vadd.f32 %v1020, %v1044
  %v1049 = vadd.f32 %v1021, %v1045
  %1050 = vrot.lane.b32.xlu0 %v54, 86
  %v1051 = vpop.permute.xlu0 %1050
  %1052 = vrot.lane.b32.xlu0 %v55, 86
  %v1053 = vpop.permute.xlu0 %1052
  %1054 = vrot.lane.b32.xlu0 %v56, 86
  %v1055 = vpop.permute.xlu0 %1054
  %1056 = vrot.lane.b32.xlu0 %v57, 86
  %v1057 = vpop.permute.xlu0 %1056
  %vm1058 = vcmp.lt.s32.totalorder %v67, 86
  %v1059 = vsel %vm1058, %v1055, %v1057
  %v1060 = vsel %vm1058, %v1053, %v1055
  %v1061 = vsel %vm1058, %v1051, %v1053
  %v1062 = vsel %vm1058, %v1057, %v1051
  %s1063 = scalar_lea.vmem %s2, 288
  %v1064 = vld [vmem:[%s1063] sm:$0xff]
  %1066 = vset.pattern.permute.xlu0 0
  %1067 = vperm.xlu0 %1066, %v1064
  %v1068 = vpop.permute.xlu0 %1067
  %v1070 = vmul.f32 %v1061, %v1068
  %v1071 = vmul.f32 %v1060, %v1068
  %v1072 = vmul.f32 %v1059, %v1068
  %v1073 = vmul.f32 %v1062, %v1068
  %v1074 = vadd.f32 %v1046, %v1070
  %v1075 = vadd.f32 %v1047, %v1071
  %v1076 = vadd.f32 %v1048, %v1072
  %v1077 = vadd.f32 %v1049, %v1073
  %1078 = vrot.lane.b32.xlu0 %v54, 85
  %v1079 = vpop.permute.xlu0 %1078
  %1080 = vrot.lane.b32.xlu0 %v55, 85
  %v1081 = vpop.permute.xlu0 %1080
  %1082 = vrot.lane.b32.xlu0 %v56, 85
  %v1083 = vpop.permute.xlu0 %1082
  %1084 = vrot.lane.b32.xlu0 %v57, 85
  %v1085 = vpop.permute.xlu0 %1084
  %vm1086 = vcmp.lt.s32.totalorder %v67, 85
  %v1087 = vsel %vm1086, %v1083, %v1085
  %v1088 = vsel %vm1086, %v1081, %v1083
  %v1089 = vsel %vm1086, %v1079, %v1081
  %v1090 = vsel %vm1086, %v1085, %v1079
  %s1091 = scalar_lea.vmem %s2, 296
  %v1092 = vld [vmem:[%s1091] sm:$0xff]
  %1094 = vset.pattern.permute.xlu0 0
  %1095 = vperm.xlu0 %1094, %v1092
  %v1096 = vpop.permute.xlu0 %1095
  %v1098 = vmul.f32 %v1089, %v1096
  %v1099 = vmul.f32 %v1088, %v1096
  %v1100 = vmul.f32 %v1087, %v1096
  %v1101 = vmul.f32 %v1090, %v1096
  %v1102 = vadd.f32 %v1074, %v1098
  %v1103 = vadd.f32 %v1075, %v1099
  %v1104 = vadd.f32 %v1076, %v1100
  %v1105 = vadd.f32 %v1077, %v1101
  %1106 = vrot.lane.b32.xlu0 %v54, 84
  %v1107 = vpop.permute.xlu0 %1106
  %1108 = vrot.lane.b32.xlu0 %v55, 84
  %v1109 = vpop.permute.xlu0 %1108
  %1110 = vrot.lane.b32.xlu0 %v56, 84
  %v1111 = vpop.permute.xlu0 %1110
  %1112 = vrot.lane.b32.xlu0 %v57, 84
  %v1113 = vpop.permute.xlu0 %1112
  %vm1114 = vcmp.lt.s32.totalorder %v67, 84
  %v1115 = vsel %vm1114, %v1111, %v1113
  %v1116 = vsel %vm1114, %v1109, %v1111
  %v1117 = vsel %vm1114, %v1107, %v1109
  %v1118 = vsel %vm1114, %v1113, %v1107
  %s1119 = scalar_lea.vmem %s2, 304
  %v1120 = vld [vmem:[%s1119] sm:$0xff]
  %1122 = vset.pattern.permute.xlu0 0
  %1123 = vperm.xlu0 %1122, %v1120
  %v1124 = vpop.permute.xlu0 %1123
  %v1126 = vmul.f32 %v1117, %v1124
  %v1127 = vmul.f32 %v1116, %v1124
  %v1128 = vmul.f32 %v1115, %v1124
  %v1129 = vmul.f32 %v1118, %v1124
  %v1130 = vadd.f32 %v1102, %v1126
  %v1131 = vadd.f32 %v1103, %v1127
  %v1132 = vadd.f32 %v1104, %v1128
  %v1133 = vadd.f32 %v1105, %v1129
  %1134 = vrot.lane.b32.xlu0 %v54, 83
  %v1135 = vpop.permute.xlu0 %1134
  %1136 = vrot.lane.b32.xlu0 %v55, 83
  %v1137 = vpop.permute.xlu0 %1136
  %1138 = vrot.lane.b32.xlu0 %v56, 83
  %v1139 = vpop.permute.xlu0 %1138
  %1140 = vrot.lane.b32.xlu0 %v57, 83
  %v1141 = vpop.permute.xlu0 %1140
  %vm1142 = vcmp.lt.s32.totalorder %v67, 83
  %v1143 = vsel %vm1142, %v1139, %v1141
  %v1144 = vsel %vm1142, %v1137, %v1139
  %v1145 = vsel %vm1142, %v1135, %v1137
  %v1146 = vsel %vm1142, %v1141, %v1135
  %s1147 = scalar_lea.vmem %s2, 312
  %v1148 = vld [vmem:[%s1147] sm:$0xff]
  %1150 = vset.pattern.permute.xlu0 0
  %1151 = vperm.xlu0 %1150, %v1148
  %v1152 = vpop.permute.xlu0 %1151
  %v1154 = vmul.f32 %v1145, %v1152
  %v1155 = vmul.f32 %v1144, %v1152
  %v1156 = vmul.f32 %v1143, %v1152
  %v1157 = vmul.f32 %v1146, %v1152
  %v1158 = vadd.f32 %v1130, %v1154
  %v1159 = vadd.f32 %v1131, %v1155
  %v1160 = vadd.f32 %v1132, %v1156
  %v1161 = vadd.f32 %v1133, %v1157
  %1162 = vrot.lane.b32.xlu0 %v54, 82
  %v1163 = vpop.permute.xlu0 %1162
  %1164 = vrot.lane.b32.xlu0 %v55, 82
  %v1165 = vpop.permute.xlu0 %1164
  %1166 = vrot.lane.b32.xlu0 %v56, 82
  %v1167 = vpop.permute.xlu0 %1166
  %1168 = vrot.lane.b32.xlu0 %v57, 82
  %v1169 = vpop.permute.xlu0 %1168
  %vm1170 = vcmp.lt.s32.totalorder %v67, 82
  %v1171 = vsel %vm1170, %v1167, %v1169
  %v1172 = vsel %vm1170, %v1165, %v1167
  %v1173 = vsel %vm1170, %v1163, %v1165
  %v1174 = vsel %vm1170, %v1169, %v1163
  %s1175 = scalar_lea.vmem %s2, 320
  %v1176 = vld [vmem:[%s1175] sm:$0xff]
  %1178 = vset.pattern.permute.xlu0 0
  %1179 = vperm.xlu0 %1178, %v1176
  %v1180 = vpop.permute.xlu0 %1179
  %v1182 = vmul.f32 %v1173, %v1180
  %v1183 = vmul.f32 %v1172, %v1180
  %v1184 = vmul.f32 %v1171, %v1180
  %v1185 = vmul.f32 %v1174, %v1180
  %v1186 = vadd.f32 %v1158, %v1182
  %v1187 = vadd.f32 %v1159, %v1183
  %v1188 = vadd.f32 %v1160, %v1184
  %v1189 = vadd.f32 %v1161, %v1185
  %1190 = vrot.lane.b32.xlu0 %v54, 81
  %v1191 = vpop.permute.xlu0 %1190
  %1192 = vrot.lane.b32.xlu0 %v55, 81
  %v1193 = vpop.permute.xlu0 %1192
  %1194 = vrot.lane.b32.xlu0 %v56, 81
  %v1195 = vpop.permute.xlu0 %1194
  %1196 = vrot.lane.b32.xlu0 %v57, 81
  %v1197 = vpop.permute.xlu0 %1196
  %vm1198 = vcmp.lt.s32.totalorder %v67, 81
  %v1199 = vsel %vm1198, %v1195, %v1197
  %v1200 = vsel %vm1198, %v1193, %v1195
  %v1201 = vsel %vm1198, %v1191, %v1193
  %v1202 = vsel %vm1198, %v1197, %v1191
  %s1203 = scalar_lea.vmem %s2, 328
  %v1204 = vld [vmem:[%s1203] sm:$0xff]
  %1206 = vset.pattern.permute.xlu0 0
  %1207 = vperm.xlu0 %1206, %v1204
  %v1208 = vpop.permute.xlu0 %1207
  %v1210 = vmul.f32 %v1201, %v1208
  %v1211 = vmul.f32 %v1200, %v1208
  %v1212 = vmul.f32 %v1199, %v1208
  %v1213 = vmul.f32 %v1202, %v1208
  %v1214 = vadd.f32 %v1186, %v1210
  %v1215 = vadd.f32 %v1187, %v1211
  %v1216 = vadd.f32 %v1188, %v1212
  %v1217 = vadd.f32 %v1189, %v1213
  %s1218 = scalar_lea.vmem %s2, 336
  %v1219 = vld [vmem:[%s1218] sm:$0xff]
  %1221 = vset.pattern.permute.xlu0 0
  %1222 = vperm.xlu0 %1221, %v1219
  %v1223 = vpop.permute.xlu0 %1222
  %v1225 = vmul.f32 %v178, %v1223
  %v1226 = vmul.f32 %v177, %v1223
  %v1227 = vmul.f32 %v176, %v1223
  %v1228 = vmul.f32 %v179, %v1223
  %v1229 = vadd.f32 %v1214, %v1225
  %v1230 = vadd.f32 %v1215, %v1226
  %v1231 = vadd.f32 %v1216, %v1227
  %v1232 = vadd.f32 %v1217, %v1228
  %s1233 = scalar_lea.vmem %s2, 344
  %v1234 = vld [vmem:[%s1233] sm:$0xff]
  %1236 = vset.pattern.permute.xlu0 0
  %1237 = vperm.xlu0 %1236, %v1234
  %v1238 = vpop.permute.xlu0 %1237
  %v1240 = vmul.f32 %v206, %v1238
  %v1241 = vmul.f32 %v205, %v1238
  %v1242 = vmul.f32 %v204, %v1238
  %v1243 = vmul.f32 %v207, %v1238
  %v1244 = vadd.f32 %v1229, %v1240
  %v1245 = vadd.f32 %v1230, %v1241
  %v1246 = vadd.f32 %v1231, %v1242
  %v1247 = vadd.f32 %v1232, %v1243
  %s1248 = scalar_lea.vmem %s2, 352
  %v1249 = vld [vmem:[%s1248] sm:$0xff]
  %1251 = vset.pattern.permute.xlu0 0
  %1252 = vperm.xlu0 %1251, %v1249
  %v1253 = vpop.permute.xlu0 %1252
  %v1255 = vmul.f32 %v234, %v1253
  %v1256 = vmul.f32 %v233, %v1253
  %v1257 = vmul.f32 %v232, %v1253
  %v1258 = vmul.f32 %v235, %v1253
  %v1259 = vadd.f32 %v1244, %v1255
  %v1260 = vadd.f32 %v1245, %v1256
  %v1261 = vadd.f32 %v1246, %v1257
  %v1262 = vadd.f32 %v1247, %v1258
  %1263 = vrot.lane.b32.xlu0 %v54, 62
  %v1264 = vpop.permute.xlu0 %1263
  %1265 = vrot.lane.b32.xlu0 %v55, 62
  %v1266 = vpop.permute.xlu0 %1265
  %1267 = vrot.lane.b32.xlu0 %v56, 62
  %v1268 = vpop.permute.xlu0 %1267
  %1269 = vrot.lane.b32.xlu0 %v57, 62
  %v1270 = vpop.permute.xlu0 %1269
  %vm1271 = vcmp.lt.s32.totalorder %v67, 62
  %v1272 = vsel %vm1271, %v1268, %v1270
  %v1273 = vsel %vm1271, %v1266, %v1268
  %v1274 = vsel %vm1271, %v1264, %v1266
  %v1275 = vsel %vm1271, %v1270, %v1264
  %s1276 = scalar_lea.vmem %s2, 360
  %v1277 = vld [vmem:[%s1276] sm:$0xff]
  %1279 = vset.pattern.permute.xlu0 0
  %1280 = vperm.xlu0 %1279, %v1277
  %v1281 = vpop.permute.xlu0 %1280
  %v1283 = vmul.f32 %v1274, %v1281
  %v1284 = vmul.f32 %v1273, %v1281
  %v1285 = vmul.f32 %v1272, %v1281
  %v1286 = vmul.f32 %v1275, %v1281
  %v1287 = vadd.f32 %v1259, %v1283
  %v1288 = vadd.f32 %v1260, %v1284
  %v1289 = vadd.f32 %v1261, %v1285
  %v1290 = vadd.f32 %v1262, %v1286
  %1291 = vrot.lane.b32.xlu0 %v54, 61
  %v1292 = vpop.permute.xlu0 %1291
  %1293 = vrot.lane.b32.xlu0 %v55, 61
  %v1294 = vpop.permute.xlu0 %1293
  %1295 = vrot.lane.b32.xlu0 %v56, 61
  %v1296 = vpop.permute.xlu0 %1295
  %1297 = vrot.lane.b32.xlu0 %v57, 61
  %v1298 = vpop.permute.xlu0 %1297
  %vm1299 = vcmp.lt.s32.totalorder %v67, 61
  %v1300 = vsel %vm1299, %v1296, %v1298
  %v1301 = vsel %vm1299, %v1294, %v1296
  %v1302 = vsel %vm1299, %v1292, %v1294
  %v1303 = vsel %vm1299, %v1298, %v1292
  %s1304 = scalar_lea.vmem %s2, 368
  %v1305 = vld [vmem:[%s1304] sm:$0xff]
  %1307 = vset.pattern.permute.xlu0 0
  %1308 = vperm.xlu0 %1307, %v1305
  %v1309 = vpop.permute.xlu0 %1308
  %v1311 = vmul.f32 %v1302, %v1309
  %v1312 = vmul.f32 %v1301, %v1309
  %v1313 = vmul.f32 %v1300, %v1309
  %v1314 = vmul.f32 %v1303, %v1309
  %v1315 = vadd.f32 %v1287, %v1311
  %v1316 = vadd.f32 %v1288, %v1312
  %v1317 = vadd.f32 %v1289, %v1313
  %v1318 = vadd.f32 %v1290, %v1314
  %1319 = vrot.lane.b32.xlu0 %v54, 60
  %v1320 = vpop.permute.xlu0 %1319
  %1321 = vrot.lane.b32.xlu0 %v55, 60
  %v1322 = vpop.permute.xlu0 %1321
  %1323 = vrot.lane.b32.xlu0 %v56, 60
  %v1324 = vpop.permute.xlu0 %1323
  %1325 = vrot.lane.b32.xlu0 %v57, 60
  %v1326 = vpop.permute.xlu0 %1325
  %vm1327 = vcmp.lt.s32.totalorder %v67, 60
  %v1328 = vsel %vm1327, %v1324, %v1326
  %v1329 = vsel %vm1327, %v1322, %v1324
  %v1330 = vsel %vm1327, %v1320, %v1322
  %v1331 = vsel %vm1327, %v1326, %v1320
  %s1332 = scalar_lea.vmem %s2, 376
  %v1333 = vld [vmem:[%s1332] sm:$0xff]
  %1335 = vset.pattern.permute.xlu0 0
  %1336 = vperm.xlu0 %1335, %v1333
  %v1337 = vpop.permute.xlu0 %1336
  %v1339 = vmul.f32 %v1330, %v1337
  %v1340 = vmul.f32 %v1329, %v1337
  %v1341 = vmul.f32 %v1328, %v1337
  %v1342 = vmul.f32 %v1331, %v1337
  %v1343 = vadd.f32 %v1315, %v1339
  %v1344 = vadd.f32 %v1316, %v1340
  %v1345 = vadd.f32 %v1317, %v1341
  %v1346 = vadd.f32 %v1318, %v1342
  %1347 = vrot.lane.b32.xlu0 %v54, 59
  %v1348 = vpop.permute.xlu0 %1347
  %1349 = vrot.lane.b32.xlu0 %v55, 59
  %v1350 = vpop.permute.xlu0 %1349
  %1351 = vrot.lane.b32.xlu0 %v56, 59
  %v1352 = vpop.permute.xlu0 %1351
  %1353 = vrot.lane.b32.xlu0 %v57, 59
  %v1354 = vpop.permute.xlu0 %1353
  %vm1355 = vcmp.lt.s32.totalorder %v67, 59
  %v1356 = vsel %vm1355, %v1352, %v1354
  %v1357 = vsel %vm1355, %v1350, %v1352
  %v1358 = vsel %vm1355, %v1348, %v1350
  %v1359 = vsel %vm1355, %v1354, %v1348
  %s1360 = scalar_lea.vmem %s2, 384
  %v1361 = vld [vmem:[%s1360] sm:$0xff]
  %1363 = vset.pattern.permute.xlu0 0
  %1364 = vperm.xlu0 %1363, %v1361
  %v1365 = vpop.permute.xlu0 %1364
  %v1367 = vmul.f32 %v1358, %v1365
  %v1368 = vmul.f32 %v1357, %v1365
  %v1369 = vmul.f32 %v1356, %v1365
  %v1370 = vmul.f32 %v1359, %v1365
  %v1371 = vadd.f32 %v1343, %v1367
  %v1372 = vadd.f32 %v1344, %v1368
  %v1373 = vadd.f32 %v1345, %v1369
  %v1374 = vadd.f32 %v1346, %v1370
  %s1375 = scalar_lea.vmem %s1, 32
  %v1376 = vld [vmem:[%s1375] sm:$0xff]
  %v1377 = vld [vmem:[%s1375 + $0x8] sm:$0xff]
  %v1378 = vld [vmem:[%s1375 + $0x10] sm:$0xff]
  %v1379 = vld [vmem:[%s1375 + $0x18] sm:$0xff]
  %1380 = vrot.lane.b32.xlu0 %v1376, 69
  %v1381 = vpop.permute.xlu0 %1380
  %1382 = vrot.lane.b32.xlu0 %v1377, 69
  %v1383 = vpop.permute.xlu0 %1382
  %1384 = vrot.lane.b32.xlu0 %v1378, 69
  %v1385 = vpop.permute.xlu0 %1384
  %1386 = vrot.lane.b32.xlu0 %v1379, 69
  %v1387 = vpop.permute.xlu0 %1386
  %v1388 = vsel %vm68, %v1385, %v1387
  %v1389 = vsel %vm68, %v1383, %v1385
  %v1390 = vsel %vm68, %v1381, %v1383
  %v1391 = vsel %vm68, %v1387, %v1381
  %v1392 = vmul.f32 %v1391, %v77
  %v1393 = vmul.f32 %v1390, %v77
  %v1394 = vmul.f32 %v1389, %v77
  %v1395 = vmul.f32 %v1388, %v77
  %1396 = vrot.lane.b32.xlu0 %v1376, 68
  %v1397 = vpop.permute.xlu0 %1396
  %1398 = vrot.lane.b32.xlu0 %v1377, 68
  %v1399 = vpop.permute.xlu0 %1398
  %1400 = vrot.lane.b32.xlu0 %v1378, 68
  %v1401 = vpop.permute.xlu0 %1400
  %1402 = vrot.lane.b32.xlu0 %v1379, 68
  %v1403 = vpop.permute.xlu0 %1402
  %v1404 = vsel %vm91, %v1401, %v1403
  %v1405 = vsel %vm91, %v1399, %v1401
  %v1406 = vsel %vm91, %v1397, %v1399
  %v1407 = vsel %vm91, %v1403, %v1397
  %v1408 = vmul.f32 %v1407, %v101
  %v1409 = vmul.f32 %v1406, %v101
  %v1410 = vmul.f32 %v1405, %v101
  %v1411 = vmul.f32 %v1404, %v101
  %v1412 = vadd.f32 %v1392, %v1408
  %v1413 = vadd.f32 %v1393, %v1409
  %v1414 = vadd.f32 %v1394, %v1410
  %v1415 = vadd.f32 %v1395, %v1411
  %1416 = vrot.lane.b32.xlu0 %v1376, 67
  %v1417 = vpop.permute.xlu0 %1416
  %1418 = vrot.lane.b32.xlu0 %v1377, 67
  %v1419 = vpop.permute.xlu0 %1418
  %1420 = vrot.lane.b32.xlu0 %v1378, 67
  %v1421 = vpop.permute.xlu0 %1420
  %1422 = vrot.lane.b32.xlu0 %v1379, 67
  %v1423 = vpop.permute.xlu0 %1422
  %v1424 = vsel %vm119, %v1421, %v1423
  %v1425 = vsel %vm119, %v1419, %v1421
  %v1426 = vsel %vm119, %v1417, %v1419
  %v1427 = vsel %vm119, %v1423, %v1417
  %v1428 = vmul.f32 %v1427, %v129
  %v1429 = vmul.f32 %v1426, %v129
  %v1430 = vmul.f32 %v1425, %v129
  %v1431 = vmul.f32 %v1424, %v129
  %v1432 = vadd.f32 %v1412, %v1428
  %v1433 = vadd.f32 %v1413, %v1429
  %v1434 = vadd.f32 %v1414, %v1430
  %v1435 = vadd.f32 %v1415, %v1431
  %1436 = vrot.lane.b32.xlu0 %v1376, 66
  %v1437 = vpop.permute.xlu0 %1436
  %1438 = vrot.lane.b32.xlu0 %v1377, 66
  %v1439 = vpop.permute.xlu0 %1438
  %1440 = vrot.lane.b32.xlu0 %v1378, 66
  %v1441 = vpop.permute.xlu0 %1440
  %1442 = vrot.lane.b32.xlu0 %v1379, 66
  %v1443 = vpop.permute.xlu0 %1442
  %v1444 = vsel %vm147, %v1441, %v1443
  %v1445 = vsel %vm147, %v1439, %v1441
  %v1446 = vsel %vm147, %v1437, %v1439
  %v1447 = vsel %vm147, %v1443, %v1437
  %v1448 = vmul.f32 %v1447, %v157
  %v1449 = vmul.f32 %v1446, %v157
  %v1450 = vmul.f32 %v1445, %v157
  %v1451 = vmul.f32 %v1444, %v157
  %v1452 = vadd.f32 %v1432, %v1448
  %v1453 = vadd.f32 %v1433, %v1449
  %v1454 = vadd.f32 %v1434, %v1450
  %v1455 = vadd.f32 %v1435, %v1451
  %1456 = vrot.lane.b32.xlu0 %v1376, 65
  %v1457 = vpop.permute.xlu0 %1456
  %1458 = vrot.lane.b32.xlu0 %v1377, 65
  %v1459 = vpop.permute.xlu0 %1458
  %1460 = vrot.lane.b32.xlu0 %v1378, 65
  %v1461 = vpop.permute.xlu0 %1460
  %1462 = vrot.lane.b32.xlu0 %v1379, 65
  %v1463 = vpop.permute.xlu0 %1462
  %v1464 = vsel %vm175, %v1461, %v1463
  %v1465 = vsel %vm175, %v1459, %v1461
  %v1466 = vsel %vm175, %v1457, %v1459
  %v1467 = vsel %vm175, %v1463, %v1457
  %v1468 = vmul.f32 %v1467, %v185
  %v1469 = vmul.f32 %v1466, %v185
  %v1470 = vmul.f32 %v1465, %v185
  %v1471 = vmul.f32 %v1464, %v185
  %v1472 = vadd.f32 %v1452, %v1468
  %v1473 = vadd.f32 %v1453, %v1469
  %v1474 = vadd.f32 %v1454, %v1470
  %v1475 = vadd.f32 %v1455, %v1471
  %1476 = vrot.lane.b32.xlu0 %v1376, 64
  %v1477 = vpop.permute.xlu0 %1476
  %1478 = vrot.lane.b32.xlu0 %v1377, 64
  %v1479 = vpop.permute.xlu0 %1478
  %1480 = vrot.lane.b32.xlu0 %v1378, 64
  %v1481 = vpop.permute.xlu0 %1480
  %1482 = vrot.lane.b32.xlu0 %v1379, 64
  %v1483 = vpop.permute.xlu0 %1482
  %v1484 = vsel %vm203, %v1481, %v1483
  %v1485 = vsel %vm203, %v1479, %v1481
  %v1486 = vsel %vm203, %v1477, %v1479
  %v1487 = vsel %vm203, %v1483, %v1477
  %v1488 = vmul.f32 %v1487, %v213
  %v1489 = vmul.f32 %v1486, %v213
  %v1490 = vmul.f32 %v1485, %v213
  %v1491 = vmul.f32 %v1484, %v213
  %v1492 = vadd.f32 %v1472, %v1488
  %v1493 = vadd.f32 %v1473, %v1489
  %v1494 = vadd.f32 %v1474, %v1490
  %v1495 = vadd.f32 %v1475, %v1491
  %1496 = vrot.lane.b32.xlu0 %v1376, 63
  %v1497 = vpop.permute.xlu0 %1496
  %1498 = vrot.lane.b32.xlu0 %v1377, 63
  %v1499 = vpop.permute.xlu0 %1498
  %1500 = vrot.lane.b32.xlu0 %v1378, 63
  %v1501 = vpop.permute.xlu0 %1500
  %1502 = vrot.lane.b32.xlu0 %v1379, 63
  %v1503 = vpop.permute.xlu0 %1502
  %v1504 = vsel %vm231, %v1501, %v1503
  %v1505 = vsel %vm231, %v1499, %v1501
  %v1506 = vsel %vm231, %v1497, %v1499
  %v1507 = vsel %vm231, %v1503, %v1497
  %v1508 = vmul.f32 %v1507, %v241
  %v1509 = vmul.f32 %v1506, %v241
  %v1510 = vmul.f32 %v1505, %v241
  %v1511 = vmul.f32 %v1504, %v241
  %v1512 = vadd.f32 %v1492, %v1508
  %v1513 = vadd.f32 %v1493, %v1509
  %v1514 = vadd.f32 %v1494, %v1510
  %v1515 = vadd.f32 %v1495, %v1511
  %1516 = vrot.lane.b32.xlu0 %v1376, 47
  %v1517 = vpop.permute.xlu0 %1516
  %1518 = vrot.lane.b32.xlu0 %v1377, 47
  %v1519 = vpop.permute.xlu0 %1518
  %1520 = vrot.lane.b32.xlu0 %v1378, 47
  %v1521 = vpop.permute.xlu0 %1520
  %1522 = vrot.lane.b32.xlu0 %v1379, 47
  %v1523 = vpop.permute.xlu0 %1522
  %v1524 = vsel %vm259, %v1521, %v1523
  %v1525 = vsel %vm259, %v1519, %v1521
  %v1526 = vsel %vm259, %v1517, %v1519
  %v1527 = vsel %vm259, %v1523, %v1517
  %v1528 = vmul.f32 %v1527, %v269
  %v1529 = vmul.f32 %v1526, %v269
  %v1530 = vmul.f32 %v1525, %v269
  %v1531 = vmul.f32 %v1524, %v269
  %v1532 = vadd.f32 %v1512, %v1528
  %v1533 = vadd.f32 %v1513, %v1529
  %v1534 = vadd.f32 %v1514, %v1530
  %v1535 = vadd.f32 %v1515, %v1531
  %1536 = vrot.lane.b32.xlu0 %v1376, 46
  %v1537 = vpop.permute.xlu0 %1536
  %1538 = vrot.lane.b32.xlu0 %v1377, 46
  %v1539 = vpop.permute.xlu0 %1538
  %1540 = vrot.lane.b32.xlu0 %v1378, 46
  %v1541 = vpop.permute.xlu0 %1540
  %1542 = vrot.lane.b32.xlu0 %v1379, 46
  %v1543 = vpop.permute.xlu0 %1542
  %v1544 = vsel %vm287, %v1541, %v1543
  %v1545 = vsel %vm287, %v1539, %v1541
  %v1546 = vsel %vm287, %v1537, %v1539
  %v1547 = vsel %vm287, %v1543, %v1537
  %v1548 = vmul.f32 %v1547, %v297
  %v1549 = vmul.f32 %v1546, %v297
  %v1550 = vmul.f32 %v1545, %v297
  %v1551 = vmul.f32 %v1544, %v297
  %v1552 = vadd.f32 %v1532, %v1548
  %v1553 = vadd.f32 %v1533, %v1549
  %v1554 = vadd.f32 %v1534, %v1550
  %v1555 = vadd.f32 %v1535, %v1551
  %1556 = vrot.lane.b32.xlu0 %v1376, 45
  %v1557 = vpop.permute.xlu0 %1556
  %1558 = vrot.lane.b32.xlu0 %v1377, 45
  %v1559 = vpop.permute.xlu0 %1558
  %1560 = vrot.lane.b32.xlu0 %v1378, 45
  %v1561 = vpop.permute.xlu0 %1560
  %1562 = vrot.lane.b32.xlu0 %v1379, 45
  %v1563 = vpop.permute.xlu0 %1562
  %v1564 = vsel %vm315, %v1561, %v1563
  %v1565 = vsel %vm315, %v1559, %v1561
  %v1566 = vsel %vm315, %v1557, %v1559
  %v1567 = vsel %vm315, %v1563, %v1557
  %v1568 = vmul.f32 %v1567, %v325
  %v1569 = vmul.f32 %v1566, %v325
  %v1570 = vmul.f32 %v1565, %v325
  %v1571 = vmul.f32 %v1564, %v325
  %v1572 = vadd.f32 %v1552, %v1568
  %v1573 = vadd.f32 %v1553, %v1569
  %v1574 = vadd.f32 %v1554, %v1570
  %v1575 = vadd.f32 %v1555, %v1571
  %1576 = vrot.lane.b32.xlu0 %v1376, 44
  %v1577 = vpop.permute.xlu0 %1576
  %1578 = vrot.lane.b32.xlu0 %v1377, 44
  %v1579 = vpop.permute.xlu0 %1578
  %1580 = vrot.lane.b32.xlu0 %v1378, 44
  %v1581 = vpop.permute.xlu0 %1580
  %1582 = vrot.lane.b32.xlu0 %v1379, 44
  %v1583 = vpop.permute.xlu0 %1582
  %v1584 = vsel %vm343, %v1581, %v1583
  %v1585 = vsel %vm343, %v1579, %v1581
  %v1586 = vsel %vm343, %v1577, %v1579
  %v1587 = vsel %vm343, %v1583, %v1577
  %v1588 = vmul.f32 %v1587, %v353
  %v1589 = vmul.f32 %v1586, %v353
  %v1590 = vmul.f32 %v1585, %v353
  %v1591 = vmul.f32 %v1584, %v353
  %v1592 = vadd.f32 %v1572, %v1588
  %v1593 = vadd.f32 %v1573, %v1589
  %v1594 = vadd.f32 %v1574, %v1590
  %v1595 = vadd.f32 %v1575, %v1591
  %1596 = vrot.lane.b32.xlu0 %v1376, 43
  %v1597 = vpop.permute.xlu0 %1596
  %1598 = vrot.lane.b32.xlu0 %v1377, 43
  %v1599 = vpop.permute.xlu0 %1598
  %1600 = vrot.lane.b32.xlu0 %v1378, 43
  %v1601 = vpop.permute.xlu0 %1600
  %1602 = vrot.lane.b32.xlu0 %v1379, 43
  %v1603 = vpop.permute.xlu0 %1602
  %v1604 = vsel %vm371, %v1601, %v1603
  %v1605 = vsel %vm371, %v1599, %v1601
  %v1606 = vsel %vm371, %v1597, %v1599
  %v1607 = vsel %vm371, %v1603, %v1597
  %v1608 = vmul.f32 %v1607, %v381
  %v1609 = vmul.f32 %v1606, %v381
  %v1610 = vmul.f32 %v1605, %v381
  %v1611 = vmul.f32 %v1604, %v381
  %v1612 = vadd.f32 %v1592, %v1608
  %v1613 = vadd.f32 %v1593, %v1609
  %v1614 = vadd.f32 %v1594, %v1610
  %v1615 = vadd.f32 %v1595, %v1611
  %1616 = vrot.lane.b32.xlu0 %v1376, 42
  %v1617 = vpop.permute.xlu0 %1616
  %1618 = vrot.lane.b32.xlu0 %v1377, 42
  %v1619 = vpop.permute.xlu0 %1618
  %1620 = vrot.lane.b32.xlu0 %v1378, 42
  %v1621 = vpop.permute.xlu0 %1620
  %1622 = vrot.lane.b32.xlu0 %v1379, 42
  %v1623 = vpop.permute.xlu0 %1622
  %v1624 = vsel %vm399, %v1621, %v1623
  %v1625 = vsel %vm399, %v1619, %v1621
  %v1626 = vsel %vm399, %v1617, %v1619
  %v1627 = vsel %vm399, %v1623, %v1617
  %v1628 = vmul.f32 %v1627, %v409
  %v1629 = vmul.f32 %v1626, %v409
  %v1630 = vmul.f32 %v1625, %v409
  %v1631 = vmul.f32 %v1624, %v409
  %v1632 = vadd.f32 %v1612, %v1628
  %v1633 = vadd.f32 %v1613, %v1629
  %v1634 = vadd.f32 %v1614, %v1630
  %v1635 = vadd.f32 %v1615, %v1631
  %1636 = vrot.lane.b32.xlu0 %v1376, 41
  %v1637 = vpop.permute.xlu0 %1636
  %1638 = vrot.lane.b32.xlu0 %v1377, 41
  %v1639 = vpop.permute.xlu0 %1638
  %1640 = vrot.lane.b32.xlu0 %v1378, 41
  %v1641 = vpop.permute.xlu0 %1640
  %1642 = vrot.lane.b32.xlu0 %v1379, 41
  %v1643 = vpop.permute.xlu0 %1642
  %v1644 = vsel %vm427, %v1641, %v1643
  %v1645 = vsel %vm427, %v1639, %v1641
  %v1646 = vsel %vm427, %v1637, %v1639
  %v1647 = vsel %vm427, %v1643, %v1637
  %v1648 = vmul.f32 %v1647, %v437
  %v1649 = vmul.f32 %v1646, %v437
  %v1650 = vmul.f32 %v1645, %v437
  %v1651 = vmul.f32 %v1644, %v437
  %v1652 = vadd.f32 %v1632, %v1648
  %v1653 = vadd.f32 %v1633, %v1649
  %v1654 = vadd.f32 %v1634, %v1650
  %v1655 = vadd.f32 %v1635, %v1651
  %1656 = vrot.lane.b32.xlu0 %v1376, 25
  %v1657 = vpop.permute.xlu0 %1656
  %1658 = vrot.lane.b32.xlu0 %v1377, 25
  %v1659 = vpop.permute.xlu0 %1658
  %1660 = vrot.lane.b32.xlu0 %v1378, 25
  %v1661 = vpop.permute.xlu0 %1660
  %1662 = vrot.lane.b32.xlu0 %v1379, 25
  %v1663 = vpop.permute.xlu0 %1662
  %v1664 = vsel %vm455, %v1661, %v1663
  %v1665 = vsel %vm455, %v1659, %v1661
  %v1666 = vsel %vm455, %v1657, %v1659
  %v1667 = vsel %vm455, %v1663, %v1657
  %v1668 = vmul.f32 %v1667, %v465
  %v1669 = vmul.f32 %v1666, %v465
  %v1670 = vmul.f32 %v1665, %v465
  %v1671 = vmul.f32 %v1664, %v465
  %v1672 = vadd.f32 %v1652, %v1668
  %v1673 = vadd.f32 %v1653, %v1669
  %v1674 = vadd.f32 %v1654, %v1670
  %v1675 = vadd.f32 %v1655, %v1671
  %1676 = vrot.lane.b32.xlu0 %v1376, 24
  %v1677 = vpop.permute.xlu0 %1676
  %1678 = vrot.lane.b32.xlu0 %v1377, 24
  %v1679 = vpop.permute.xlu0 %1678
  %1680 = vrot.lane.b32.xlu0 %v1378, 24
  %v1681 = vpop.permute.xlu0 %1680
  %1682 = vrot.lane.b32.xlu0 %v1379, 24
  %v1683 = vpop.permute.xlu0 %1682
  %v1684 = vsel %vm483, %v1681, %v1683
  %v1685 = vsel %vm483, %v1679, %v1681
  %v1686 = vsel %vm483, %v1677, %v1679
  %v1687 = vsel %vm483, %v1683, %v1677
  %v1688 = vmul.f32 %v1687, %v493
  %v1689 = vmul.f32 %v1686, %v493
  %v1690 = vmul.f32 %v1685, %v493
  %v1691 = vmul.f32 %v1684, %v493
  %v1692 = vadd.f32 %v1672, %v1688
  %v1693 = vadd.f32 %v1673, %v1689
  %v1694 = vadd.f32 %v1674, %v1690
  %v1695 = vadd.f32 %v1675, %v1691
  %1696 = vrot.lane.b32.xlu0 %v1376, 23
  %v1697 = vpop.permute.xlu0 %1696
  %1698 = vrot.lane.b32.xlu0 %v1377, 23
  %v1699 = vpop.permute.xlu0 %1698
  %1700 = vrot.lane.b32.xlu0 %v1378, 23
  %v1701 = vpop.permute.xlu0 %1700
  %1702 = vrot.lane.b32.xlu0 %v1379, 23
  %v1703 = vpop.permute.xlu0 %1702
  %v1704 = vsel %vm511, %v1701, %v1703
  %v1705 = vsel %vm511, %v1699, %v1701
  %v1706 = vsel %vm511, %v1697, %v1699
  %v1707 = vsel %vm511, %v1703, %v1697
  %v1708 = vmul.f32 %v1707, %v521
  %v1709 = vmul.f32 %v1706, %v521
  %v1710 = vmul.f32 %v1705, %v521
  %v1711 = vmul.f32 %v1704, %v521
  %v1712 = vadd.f32 %v1692, %v1708
  %v1713 = vadd.f32 %v1693, %v1709
  %v1714 = vadd.f32 %v1694, %v1710
  %v1715 = vadd.f32 %v1695, %v1711
  %1716 = vrot.lane.b32.xlu0 %v1376, 22
  %v1717 = vpop.permute.xlu0 %1716
  %1718 = vrot.lane.b32.xlu0 %v1377, 22
  %v1719 = vpop.permute.xlu0 %1718
  %1720 = vrot.lane.b32.xlu0 %v1378, 22
  %v1721 = vpop.permute.xlu0 %1720
  %1722 = vrot.lane.b32.xlu0 %v1379, 22
  %v1723 = vpop.permute.xlu0 %1722
  %v1724 = vsel %vm539, %v1721, %v1723
  %v1725 = vsel %vm539, %v1719, %v1721
  %v1726 = vsel %vm539, %v1717, %v1719
  %v1727 = vsel %vm539, %v1723, %v1717
  %v1728 = vmul.f32 %v1727, %v549
  %v1729 = vmul.f32 %v1726, %v549
  %v1730 = vmul.f32 %v1725, %v549
  %v1731 = vmul.f32 %v1724, %v549
  %v1732 = vadd.f32 %v1712, %v1728
  %v1733 = vadd.f32 %v1713, %v1729
  %v1734 = vadd.f32 %v1714, %v1730
  %v1735 = vadd.f32 %v1715, %v1731
  %1736 = vrot.lane.b32.xlu0 %v1376, 21
  %v1737 = vpop.permute.xlu0 %1736
  %1738 = vrot.lane.b32.xlu0 %v1377, 21
  %v1739 = vpop.permute.xlu0 %1738
  %1740 = vrot.lane.b32.xlu0 %v1378, 21
  %v1741 = vpop.permute.xlu0 %1740
  %1742 = vrot.lane.b32.xlu0 %v1379, 21
  %v1743 = vpop.permute.xlu0 %1742
  %v1744 = vsel %vm567, %v1741, %v1743
  %v1745 = vsel %vm567, %v1739, %v1741
  %v1746 = vsel %vm567, %v1737, %v1739
  %v1747 = vsel %vm567, %v1743, %v1737
  %v1748 = vmul.f32 %v1747, %v577
  %v1749 = vmul.f32 %v1746, %v577
  %v1750 = vmul.f32 %v1745, %v577
  %v1751 = vmul.f32 %v1744, %v577
  %v1752 = vadd.f32 %v1732, %v1748
  %v1753 = vadd.f32 %v1733, %v1749
  %v1754 = vadd.f32 %v1734, %v1750
  %v1755 = vadd.f32 %v1735, %v1751
  %1756 = vrot.lane.b32.xlu0 %v1376, 20
  %v1757 = vpop.permute.xlu0 %1756
  %1758 = vrot.lane.b32.xlu0 %v1377, 20
  %v1759 = vpop.permute.xlu0 %1758
  %1760 = vrot.lane.b32.xlu0 %v1378, 20
  %v1761 = vpop.permute.xlu0 %1760
  %1762 = vrot.lane.b32.xlu0 %v1379, 20
  %v1763 = vpop.permute.xlu0 %1762
  %v1764 = vsel %vm595, %v1761, %v1763
  %v1765 = vsel %vm595, %v1759, %v1761
  %v1766 = vsel %vm595, %v1757, %v1759
  %v1767 = vsel %vm595, %v1763, %v1757
  %v1768 = vmul.f32 %v1767, %v605
  %v1769 = vmul.f32 %v1766, %v605
  %v1770 = vmul.f32 %v1765, %v605
  %v1771 = vmul.f32 %v1764, %v605
  %v1772 = vadd.f32 %v1752, %v1768
  %v1773 = vadd.f32 %v1753, %v1769
  %v1774 = vadd.f32 %v1754, %v1770
  %v1775 = vadd.f32 %v1755, %v1771
  %1776 = vrot.lane.b32.xlu0 %v1376, 19
  %v1777 = vpop.permute.xlu0 %1776
  %1778 = vrot.lane.b32.xlu0 %v1377, 19
  %v1779 = vpop.permute.xlu0 %1778
  %1780 = vrot.lane.b32.xlu0 %v1378, 19
  %v1781 = vpop.permute.xlu0 %1780
  %1782 = vrot.lane.b32.xlu0 %v1379, 19
  %v1783 = vpop.permute.xlu0 %1782
  %v1784 = vsel %vm623, %v1781, %v1783
  %v1785 = vsel %vm623, %v1779, %v1781
  %v1786 = vsel %vm623, %v1777, %v1779
  %v1787 = vsel %vm623, %v1783, %v1777
  %v1788 = vmul.f32 %v1787, %v633
  %v1789 = vmul.f32 %v1786, %v633
  %v1790 = vmul.f32 %v1785, %v633
  %v1791 = vmul.f32 %v1784, %v633
  %v1792 = vadd.f32 %v1772, %v1788
  %v1793 = vadd.f32 %v1773, %v1789
  %v1794 = vadd.f32 %v1774, %v1790
  %v1795 = vadd.f32 %v1775, %v1791
  %1796 = vrot.lane.b32.xlu0 %v1376, 3
  %v1797 = vpop.permute.xlu0 %1796
  %1798 = vrot.lane.b32.xlu0 %v1377, 3
  %v1799 = vpop.permute.xlu0 %1798
  %1800 = vrot.lane.b32.xlu0 %v1378, 3
  %v1801 = vpop.permute.xlu0 %1800
  %1802 = vrot.lane.b32.xlu0 %v1379, 3
  %v1803 = vpop.permute.xlu0 %1802
  %v1804 = vsel %vm651, %v1801, %v1803
  %v1805 = vsel %vm651, %v1799, %v1801
  %v1806 = vsel %vm651, %v1797, %v1799
  %v1807 = vsel %vm651, %v1803, %v1797
  %v1808 = vmul.f32 %v1807, %v661
  %v1809 = vmul.f32 %v1806, %v661
  %v1810 = vmul.f32 %v1805, %v661
  %v1811 = vmul.f32 %v1804, %v661
  %v1812 = vadd.f32 %v1792, %v1808
  %v1813 = vadd.f32 %v1793, %v1809
  %v1814 = vadd.f32 %v1794, %v1810
  %v1815 = vadd.f32 %v1795, %v1811
  %1816 = vrot.lane.b32.xlu0 %v1376, 2
  %v1817 = vpop.permute.xlu0 %1816
  %1818 = vrot.lane.b32.xlu0 %v1377, 2
  %v1819 = vpop.permute.xlu0 %1818
  %1820 = vrot.lane.b32.xlu0 %v1378, 2
  %v1821 = vpop.permute.xlu0 %1820
  %1822 = vrot.lane.b32.xlu0 %v1379, 2
  %v1823 = vpop.permute.xlu0 %1822
  %v1824 = vsel %vm679, %v1821, %v1823
  %v1825 = vsel %vm679, %v1819, %v1821
  %v1826 = vsel %vm679, %v1817, %v1819
  %v1827 = vsel %vm679, %v1823, %v1817
  %v1828 = vmul.f32 %v1827, %v689
  %v1829 = vmul.f32 %v1826, %v689
  %v1830 = vmul.f32 %v1825, %v689
  %v1831 = vmul.f32 %v1824, %v689
  %v1832 = vadd.f32 %v1812, %v1828
  %v1833 = vadd.f32 %v1813, %v1829
  %v1834 = vadd.f32 %v1814, %v1830
  %v1835 = vadd.f32 %v1815, %v1831
  %1836 = vrot.lane.b32.xlu0 %v1376, 1
  %v1837 = vpop.permute.xlu0 %1836
  %1838 = vrot.lane.b32.xlu0 %v1377, 1
  %v1839 = vpop.permute.xlu0 %1838
  %1840 = vrot.lane.b32.xlu0 %v1378, 1
  %v1841 = vpop.permute.xlu0 %1840
  %1842 = vrot.lane.b32.xlu0 %v1379, 1
  %v1843 = vpop.permute.xlu0 %1842
  %v1844 = vsel %vm707, %v1841, %v1843
  %v1845 = vsel %vm707, %v1839, %v1841
  %v1846 = vsel %vm707, %v1837, %v1839
  %v1847 = vsel %vm707, %v1843, %v1837
  %v1848 = vmul.f32 %v1847, %v717
  %v1849 = vmul.f32 %v1846, %v717
  %v1850 = vmul.f32 %v1845, %v717
  %v1851 = vmul.f32 %v1844, %v717
  %v1852 = vadd.f32 %v1832, %v1848
  %v1853 = vadd.f32 %v1833, %v1849
  %v1854 = vadd.f32 %v1834, %v1850
  %v1855 = vadd.f32 %v1835, %v1851
  %v1856 = vmul.f32 %v1376, %v732
  %v1857 = vmul.f32 %v1377, %v732
  %v1858 = vmul.f32 %v1378, %v732
  %v1859 = vmul.f32 %v1379, %v732
  %v1860 = vadd.f32 %v1852, %v1856
  %v1861 = vadd.f32 %v1853, %v1857
  %v1862 = vadd.f32 %v1854, %v1858
  %v1863 = vadd.f32 %v1855, %v1859
  %1864 = vrot.lane.b32.xlu0 %v1376, 127
  %v1865 = vpop.permute.xlu0 %1864
  %1866 = vrot.lane.b32.xlu0 %v1377, 127
  %v1867 = vpop.permute.xlu0 %1866
  %1868 = vrot.lane.b32.xlu0 %v1378, 127
  %v1869 = vpop.permute.xlu0 %1868
  %1870 = vrot.lane.b32.xlu0 %v1379, 127
  %v1871 = vpop.permute.xlu0 %1870
  %v1872 = vsel %vm750, %v1869, %v1871
  %v1873 = vsel %vm750, %v1867, %v1869
  %v1874 = vsel %vm750, %v1865, %v1867
  %v1875 = vsel %vm750, %v1871, %v1865
  %v1876 = vmul.f32 %v1874, %v760
  %v1877 = vmul.f32 %v1873, %v760
  %v1878 = vmul.f32 %v1872, %v760
  %v1879 = vmul.f32 %v1875, %v760
  %v1880 = vadd.f32 %v1860, %v1876
  %v1881 = vadd.f32 %v1861, %v1877
  %v1882 = vadd.f32 %v1862, %v1878
  %v1883 = vadd.f32 %v1863, %v1879
  %1884 = vrot.lane.b32.xlu0 %v1376, 126
  %v1885 = vpop.permute.xlu0 %1884
  %1886 = vrot.lane.b32.xlu0 %v1377, 126
  %v1887 = vpop.permute.xlu0 %1886
  %1888 = vrot.lane.b32.xlu0 %v1378, 126
  %v1889 = vpop.permute.xlu0 %1888
  %1890 = vrot.lane.b32.xlu0 %v1379, 126
  %v1891 = vpop.permute.xlu0 %1890
  %v1892 = vsel %vm778, %v1889, %v1891
  %v1893 = vsel %vm778, %v1887, %v1889
  %v1894 = vsel %vm778, %v1885, %v1887
  %v1895 = vsel %vm778, %v1891, %v1885
  %v1896 = vmul.f32 %v1894, %v788
  %v1897 = vmul.f32 %v1893, %v788
  %v1898 = vmul.f32 %v1892, %v788
  %v1899 = vmul.f32 %v1895, %v788
  %v1900 = vadd.f32 %v1880, %v1896
  %v1901 = vadd.f32 %v1881, %v1897
  %v1902 = vadd.f32 %v1882, %v1898
  %v1903 = vadd.f32 %v1883, %v1899
  %1904 = vrot.lane.b32.xlu0 %v1376, 125
  %v1905 = vpop.permute.xlu0 %1904
  %1906 = vrot.lane.b32.xlu0 %v1377, 125
  %v1907 = vpop.permute.xlu0 %1906
  %1908 = vrot.lane.b32.xlu0 %v1378, 125
  %v1909 = vpop.permute.xlu0 %1908
  %1910 = vrot.lane.b32.xlu0 %v1379, 125
  %v1911 = vpop.permute.xlu0 %1910
  %v1912 = vsel %vm806, %v1909, %v1911
  %v1913 = vsel %vm806, %v1907, %v1909
  %v1914 = vsel %vm806, %v1905, %v1907
  %v1915 = vsel %vm806, %v1911, %v1905
  %v1916 = vmul.f32 %v1914, %v816
  %v1917 = vmul.f32 %v1913, %v816
  %v1918 = vmul.f32 %v1912, %v816
  %v1919 = vmul.f32 %v1915, %v816
  %v1920 = vadd.f32 %v1900, %v1916
  %v1921 = vadd.f32 %v1901, %v1917
  %v1922 = vadd.f32 %v1902, %v1918
  %v1923 = vadd.f32 %v1903, %v1919
  %1924 = vrot.lane.b32.xlu0 %v1376, 109
  %v1925 = vpop.permute.xlu0 %1924
  %1926 = vrot.lane.b32.xlu0 %v1377, 109
  %v1927 = vpop.permute.xlu0 %1926
  %1928 = vrot.lane.b32.xlu0 %v1378, 109
  %v1929 = vpop.permute.xlu0 %1928
  %1930 = vrot.lane.b32.xlu0 %v1379, 109
  %v1931 = vpop.permute.xlu0 %1930
  %v1932 = vsel %vm834, %v1929, %v1931
  %v1933 = vsel %vm834, %v1927, %v1929
  %v1934 = vsel %vm834, %v1925, %v1927
  %v1935 = vsel %vm834, %v1931, %v1925
  %v1936 = vmul.f32 %v1934, %v844
  %v1937 = vmul.f32 %v1933, %v844
  %v1938 = vmul.f32 %v1932, %v844
  %v1939 = vmul.f32 %v1935, %v844
  %v1940 = vadd.f32 %v1920, %v1936
  %v1941 = vadd.f32 %v1921, %v1937
  %v1942 = vadd.f32 %v1922, %v1938
  %v1943 = vadd.f32 %v1923, %v1939
  %1944 = vrot.lane.b32.xlu0 %v1376, 108
  %v1945 = vpop.permute.xlu0 %1944
  %1946 = vrot.lane.b32.xlu0 %v1377, 108
  %v1947 = vpop.permute.xlu0 %1946
  %1948 = vrot.lane.b32.xlu0 %v1378, 108
  %v1949 = vpop.permute.xlu0 %1948
  %1950 = vrot.lane.b32.xlu0 %v1379, 108
  %v1951 = vpop.permute.xlu0 %1950
  %v1952 = vsel %vm862, %v1949, %v1951
  %v1953 = vsel %vm862, %v1947, %v1949
  %v1954 = vsel %vm862, %v1945, %v1947
  %v1955 = vsel %vm862, %v1951, %v1945
  %v1956 = vmul.f32 %v1954, %v872
  %v1957 = vmul.f32 %v1953, %v872
  %v1958 = vmul.f32 %v1952, %v872
  %v1959 = vmul.f32 %v1955, %v872
  %v1960 = vadd.f32 %v1940, %v1956
  %v1961 = vadd.f32 %v1941, %v1957
  %v1962 = vadd.f32 %v1942, %v1958
  %v1963 = vadd.f32 %v1943, %v1959
  %1964 = vrot.lane.b32.xlu0 %v1376, 107
  %v1965 = vpop.permute.xlu0 %1964
  %1966 = vrot.lane.b32.xlu0 %v1377, 107
  %v1967 = vpop.permute.xlu0 %1966
  %1968 = vrot.lane.b32.xlu0 %v1378, 107
  %v1969 = vpop.permute.xlu0 %1968
  %1970 = vrot.lane.b32.xlu0 %v1379, 107
  %v1971 = vpop.permute.xlu0 %1970
  %v1972 = vsel %vm890, %v1969, %v1971
  %v1973 = vsel %vm890, %v1967, %v1969
  %v1974 = vsel %vm890, %v1965, %v1967
  %v1975 = vsel %vm890, %v1971, %v1965
  %v1976 = vmul.f32 %v1974, %v900
  %v1977 = vmul.f32 %v1973, %v900
  %v1978 = vmul.f32 %v1972, %v900
  %v1979 = vmul.f32 %v1975, %v900
  %v1980 = vadd.f32 %v1960, %v1976
  %v1981 = vadd.f32 %v1961, %v1977
  %v1982 = vadd.f32 %v1962, %v1978
  %v1983 = vadd.f32 %v1963, %v1979
  %1984 = vrot.lane.b32.xlu0 %v1376, 106
  %v1985 = vpop.permute.xlu0 %1984
  %1986 = vrot.lane.b32.xlu0 %v1377, 106
  %v1987 = vpop.permute.xlu0 %1986
  %1988 = vrot.lane.b32.xlu0 %v1378, 106
  %v1989 = vpop.permute.xlu0 %1988
  %1990 = vrot.lane.b32.xlu0 %v1379, 106
  %v1991 = vpop.permute.xlu0 %1990
  %v1992 = vsel %vm918, %v1989, %v1991
  %v1993 = vsel %vm918, %v1987, %v1989
  %v1994 = vsel %vm918, %v1985, %v1987
  %v1995 = vsel %vm918, %v1991, %v1985
  %v1996 = vmul.f32 %v1994, %v928
  %v1997 = vmul.f32 %v1993, %v928
  %v1998 = vmul.f32 %v1992, %v928
  %v1999 = vmul.f32 %v1995, %v928
  %v2000 = vadd.f32 %v1980, %v1996
  %v2001 = vadd.f32 %v1981, %v1997
  %v2002 = vadd.f32 %v1982, %v1998
  %v2003 = vadd.f32 %v1983, %v1999
  %2004 = vrot.lane.b32.xlu0 %v1376, 105
  %v2005 = vpop.permute.xlu0 %2004
  %2006 = vrot.lane.b32.xlu0 %v1377, 105
  %v2007 = vpop.permute.xlu0 %2006
  %2008 = vrot.lane.b32.xlu0 %v1378, 105
  %v2009 = vpop.permute.xlu0 %2008
  %2010 = vrot.lane.b32.xlu0 %v1379, 105
  %v2011 = vpop.permute.xlu0 %2010
  %v2012 = vsel %vm946, %v2009, %v2011
  %v2013 = vsel %vm946, %v2007, %v2009
  %v2014 = vsel %vm946, %v2005, %v2007
  %v2015 = vsel %vm946, %v2011, %v2005
  %v2016 = vmul.f32 %v2014, %v956
  %v2017 = vmul.f32 %v2013, %v956
  %v2018 = vmul.f32 %v2012, %v956
  %v2019 = vmul.f32 %v2015, %v956
  %v2020 = vadd.f32 %v2000, %v2016
  %v2021 = vadd.f32 %v2001, %v2017
  %v2022 = vadd.f32 %v2002, %v2018
  %v2023 = vadd.f32 %v2003, %v2019
  %2024 = vrot.lane.b32.xlu0 %v1376, 104
  %v2025 = vpop.permute.xlu0 %2024
  %2026 = vrot.lane.b32.xlu0 %v1377, 104
  %v2027 = vpop.permute.xlu0 %2026
  %2028 = vrot.lane.b32.xlu0 %v1378, 104
  %v2029 = vpop.permute.xlu0 %2028
  %2030 = vrot.lane.b32.xlu0 %v1379, 104
  %v2031 = vpop.permute.xlu0 %2030
  %v2032 = vsel %vm974, %v2029, %v2031
  %v2033 = vsel %vm974, %v2027, %v2029
  %v2034 = vsel %vm974, %v2025, %v2027
  %v2035 = vsel %vm974, %v2031, %v2025
  %v2036 = vmul.f32 %v2034, %v984
  %v2037 = vmul.f32 %v2033, %v984
  %v2038 = vmul.f32 %v2032, %v984
  %v2039 = vmul.f32 %v2035, %v984
  %v2040 = vadd.f32 %v2020, %v2036
  %v2041 = vadd.f32 %v2021, %v2037
  %v2042 = vadd.f32 %v2022, %v2038
  %v2043 = vadd.f32 %v2023, %v2039
  %2044 = vrot.lane.b32.xlu0 %v1376, 103
  %v2045 = vpop.permute.xlu0 %2044
  %2046 = vrot.lane.b32.xlu0 %v1377, 103
  %v2047 = vpop.permute.xlu0 %2046
  %2048 = vrot.lane.b32.xlu0 %v1378, 103
  %v2049 = vpop.permute.xlu0 %2048
  %2050 = vrot.lane.b32.xlu0 %v1379, 103
  %v2051 = vpop.permute.xlu0 %2050
  %v2052 = vsel %vm1002, %v2049, %v2051
  %v2053 = vsel %vm1002, %v2047, %v2049
  %v2054 = vsel %vm1002, %v2045, %v2047
  %v2055 = vsel %vm1002, %v2051, %v2045
  %v2056 = vmul.f32 %v2054, %v1012
  %v2057 = vmul.f32 %v2053, %v1012
  %v2058 = vmul.f32 %v2052, %v1012
  %v2059 = vmul.f32 %v2055, %v1012
  %v2060 = vadd.f32 %v2040, %v2056
  %v2061 = vadd.f32 %v2041, %v2057
  %v2062 = vadd.f32 %v2042, %v2058
  %v2063 = vadd.f32 %v2043, %v2059
  %2064 = vrot.lane.b32.xlu0 %v1376, 87
  %v2065 = vpop.permute.xlu0 %2064
  %2066 = vrot.lane.b32.xlu0 %v1377, 87
  %v2067 = vpop.permute.xlu0 %2066
  %2068 = vrot.lane.b32.xlu0 %v1378, 87
  %v2069 = vpop.permute.xlu0 %2068
  %2070 = vrot.lane.b32.xlu0 %v1379, 87
  %v2071 = vpop.permute.xlu0 %2070
  %v2072 = vsel %vm1030, %v2069, %v2071
  %v2073 = vsel %vm1030, %v2067, %v2069
  %v2074 = vsel %vm1030, %v2065, %v2067
  %v2075 = vsel %vm1030, %v2071, %v2065
  %v2076 = vmul.f32 %v2074, %v1040
  %v2077 = vmul.f32 %v2073, %v1040
  %v2078 = vmul.f32 %v2072, %v1040
  %v2079 = vmul.f32 %v2075, %v1040
  %v2080 = vadd.f32 %v2060, %v2076
  %v2081 = vadd.f32 %v2061, %v2077
  %v2082 = vadd.f32 %v2062, %v2078
  %v2083 = vadd.f32 %v2063, %v2079
  %2084 = vrot.lane.b32.xlu0 %v1376, 86
  %v2085 = vpop.permute.xlu0 %2084
  %2086 = vrot.lane.b32.xlu0 %v1377, 86
  %v2087 = vpop.permute.xlu0 %2086
  %2088 = vrot.lane.b32.xlu0 %v1378, 86
  %v2089 = vpop.permute.xlu0 %2088
  %2090 = vrot.lane.b32.xlu0 %v1379, 86
  %v2091 = vpop.permute.xlu0 %2090
  %v2092 = vsel %vm1058, %v2089, %v2091
  %v2093 = vsel %vm1058, %v2087, %v2089
  %v2094 = vsel %vm1058, %v2085, %v2087
  %v2095 = vsel %vm1058, %v2091, %v2085
  %v2096 = vmul.f32 %v2094, %v1068
  %v2097 = vmul.f32 %v2093, %v1068
  %v2098 = vmul.f32 %v2092, %v1068
  %v2099 = vmul.f32 %v2095, %v1068
  %v2100 = vadd.f32 %v2080, %v2096
  %v2101 = vadd.f32 %v2081, %v2097
  %v2102 = vadd.f32 %v2082, %v2098
  %v2103 = vadd.f32 %v2083, %v2099
  %2104 = vrot.lane.b32.xlu0 %v1376, 85
  %v2105 = vpop.permute.xlu0 %2104
  %2106 = vrot.lane.b32.xlu0 %v1377, 85
  %v2107 = vpop.permute.xlu0 %2106
  %2108 = vrot.lane.b32.xlu0 %v1378, 85
  %v2109 = vpop.permute.xlu0 %2108
  %2110 = vrot.lane.b32.xlu0 %v1379, 85
  %v2111 = vpop.permute.xlu0 %2110
  %v2112 = vsel %vm1086, %v2109, %v2111
  %v2113 = vsel %vm1086, %v2107, %v2109
  %v2114 = vsel %vm1086, %v2105, %v2107
  %v2115 = vsel %vm1086, %v2111, %v2105
  %v2116 = vmul.f32 %v2114, %v1096
  %v2117 = vmul.f32 %v2113, %v1096
  %v2118 = vmul.f32 %v2112, %v1096
  %v2119 = vmul.f32 %v2115, %v1096
  %v2120 = vadd.f32 %v2100, %v2116
  %v2121 = vadd.f32 %v2101, %v2117
  %v2122 = vadd.f32 %v2102, %v2118
  %v2123 = vadd.f32 %v2103, %v2119
  %2124 = vrot.lane.b32.xlu0 %v1376, 84
  %v2125 = vpop.permute.xlu0 %2124
  %2126 = vrot.lane.b32.xlu0 %v1377, 84
  %v2127 = vpop.permute.xlu0 %2126
  %2128 = vrot.lane.b32.xlu0 %v1378, 84
  %v2129 = vpop.permute.xlu0 %2128
  %2130 = vrot.lane.b32.xlu0 %v1379, 84
  %v2131 = vpop.permute.xlu0 %2130
  %v2132 = vsel %vm1114, %v2129, %v2131
  %v2133 = vsel %vm1114, %v2127, %v2129
  %v2134 = vsel %vm1114, %v2125, %v2127
  %v2135 = vsel %vm1114, %v2131, %v2125
  %v2136 = vmul.f32 %v2134, %v1124
  %v2137 = vmul.f32 %v2133, %v1124
  %v2138 = vmul.f32 %v2132, %v1124
  %v2139 = vmul.f32 %v2135, %v1124
  %v2140 = vadd.f32 %v2120, %v2136
  %v2141 = vadd.f32 %v2121, %v2137
  %v2142 = vadd.f32 %v2122, %v2138
  %v2143 = vadd.f32 %v2123, %v2139
  %2144 = vrot.lane.b32.xlu0 %v1376, 83
  %v2145 = vpop.permute.xlu0 %2144
  %2146 = vrot.lane.b32.xlu0 %v1377, 83
  %v2147 = vpop.permute.xlu0 %2146
  %2148 = vrot.lane.b32.xlu0 %v1378, 83
  %v2149 = vpop.permute.xlu0 %2148
  %2150 = vrot.lane.b32.xlu0 %v1379, 83
  %v2151 = vpop.permute.xlu0 %2150
  %v2152 = vsel %vm1142, %v2149, %v2151
  %v2153 = vsel %vm1142, %v2147, %v2149
  %v2154 = vsel %vm1142, %v2145, %v2147
  %v2155 = vsel %vm1142, %v2151, %v2145
  %v2156 = vmul.f32 %v2154, %v1152
  %v2157 = vmul.f32 %v2153, %v1152
  %v2158 = vmul.f32 %v2152, %v1152
  %v2159 = vmul.f32 %v2155, %v1152
  %v2160 = vadd.f32 %v2140, %v2156
  %v2161 = vadd.f32 %v2141, %v2157
  %v2162 = vadd.f32 %v2142, %v2158
  %v2163 = vadd.f32 %v2143, %v2159
  %2164 = vrot.lane.b32.xlu0 %v1376, 82
  %v2165 = vpop.permute.xlu0 %2164
  %2166 = vrot.lane.b32.xlu0 %v1377, 82
  %v2167 = vpop.permute.xlu0 %2166
  %2168 = vrot.lane.b32.xlu0 %v1378, 82
  %v2169 = vpop.permute.xlu0 %2168
  %2170 = vrot.lane.b32.xlu0 %v1379, 82
  %v2171 = vpop.permute.xlu0 %2170
  %v2172 = vsel %vm1170, %v2169, %v2171
  %v2173 = vsel %vm1170, %v2167, %v2169
  %v2174 = vsel %vm1170, %v2165, %v2167
  %v2175 = vsel %vm1170, %v2171, %v2165
  %v2176 = vmul.f32 %v2174, %v1180
  %v2177 = vmul.f32 %v2173, %v1180
  %v2178 = vmul.f32 %v2172, %v1180
  %v2179 = vmul.f32 %v2175, %v1180
  %v2180 = vadd.f32 %v2160, %v2176
  %v2181 = vadd.f32 %v2161, %v2177
  %v2182 = vadd.f32 %v2162, %v2178
  %v2183 = vadd.f32 %v2163, %v2179
  %2184 = vrot.lane.b32.xlu0 %v1376, 81
  %v2185 = vpop.permute.xlu0 %2184
  %2186 = vrot.lane.b32.xlu0 %v1377, 81
  %v2187 = vpop.permute.xlu0 %2186
  %2188 = vrot.lane.b32.xlu0 %v1378, 81
  %v2189 = vpop.permute.xlu0 %2188
  %2190 = vrot.lane.b32.xlu0 %v1379, 81
  %v2191 = vpop.permute.xlu0 %2190
  %v2192 = vsel %vm1198, %v2189, %v2191
  %v2193 = vsel %vm1198, %v2187, %v2189
  %v2194 = vsel %vm1198, %v2185, %v2187
  %v2195 = vsel %vm1198, %v2191, %v2185
  %v2196 = vmul.f32 %v2194, %v1208
  %v2197 = vmul.f32 %v2193, %v1208
  %v2198 = vmul.f32 %v2192, %v1208
  %v2199 = vmul.f32 %v2195, %v1208
  %v2200 = vadd.f32 %v2180, %v2196
  %v2201 = vadd.f32 %v2181, %v2197
  %v2202 = vadd.f32 %v2182, %v2198
  %v2203 = vadd.f32 %v2183, %v2199
  %v2204 = vmul.f32 %v1466, %v1223
  %v2205 = vmul.f32 %v1465, %v1223
  %v2206 = vmul.f32 %v1464, %v1223
  %v2207 = vmul.f32 %v1467, %v1223
  %v2208 = vadd.f32 %v2200, %v2204
  %v2209 = vadd.f32 %v2201, %v2205
  %v2210 = vadd.f32 %v2202, %v2206
  %v2211 = vadd.f32 %v2203, %v2207
  %v2212 = vmul.f32 %v1486, %v1238
  %v2213 = vmul.f32 %v1485, %v1238
  %v2214 = vmul.f32 %v1484, %v1238
  %v2215 = vmul.f32 %v1487, %v1238
  %v2216 = vadd.f32 %v2208, %v2212
  %v2217 = vadd.f32 %v2209, %v2213
  %v2218 = vadd.f32 %v2210, %v2214
  %v2219 = vadd.f32 %v2211, %v2215
  %v2220 = vmul.f32 %v1506, %v1253
  %v2221 = vmul.f32 %v1505, %v1253
  %v2222 = vmul.f32 %v1504, %v1253
  %v2223 = vmul.f32 %v1507, %v1253
  %v2224 = vadd.f32 %v2216, %v2220
  %v2225 = vadd.f32 %v2217, %v2221
  %v2226 = vadd.f32 %v2218, %v2222
  %v2227 = vadd.f32 %v2219, %v2223
  %2228 = vrot.lane.b32.xlu0 %v1376, 62
  %v2229 = vpop.permute.xlu0 %2228
  %2230 = vrot.lane.b32.xlu0 %v1377, 62
  %v2231 = vpop.permute.xlu0 %2230
  %2232 = vrot.lane.b32.xlu0 %v1378, 62
  %v2233 = vpop.permute.xlu0 %2232
  %2234 = vrot.lane.b32.xlu0 %v1379, 62
  %v2235 = vpop.permute.xlu0 %2234
  %v2236 = vsel %vm1271, %v2233, %v2235
  %v2237 = vsel %vm1271, %v2231, %v2233
  %v2238 = vsel %vm1271, %v2229, %v2231
  %v2239 = vsel %vm1271, %v2235, %v2229
  %v2240 = vmul.f32 %v2238, %v1281
  %v2241 = vmul.f32 %v2237, %v1281
  %v2242 = vmul.f32 %v2236, %v1281
  %v2243 = vmul.f32 %v2239, %v1281
  %v2244 = vadd.f32 %v2224, %v2240
  %v2245 = vadd.f32 %v2225, %v2241
  %v2246 = vadd.f32 %v2226, %v2242
  %v2247 = vadd.f32 %v2227, %v2243
  %2248 = vrot.lane.b32.xlu0 %v1376, 61
  %v2249 = vpop.permute.xlu0 %2248
  %2250 = vrot.lane.b32.xlu0 %v1377, 61
  %v2251 = vpop.permute.xlu0 %2250
  %2252 = vrot.lane.b32.xlu0 %v1378, 61
  %v2253 = vpop.permute.xlu0 %2252
  %2254 = vrot.lane.b32.xlu0 %v1379, 61
  %v2255 = vpop.permute.xlu0 %2254
  %v2256 = vsel %vm1299, %v2253, %v2255
  %v2257 = vsel %vm1299, %v2251, %v2253
  %v2258 = vsel %vm1299, %v2249, %v2251
  %v2259 = vsel %vm1299, %v2255, %v2249
  %v2260 = vmul.f32 %v2258, %v1309
  %v2261 = vmul.f32 %v2257, %v1309
  %v2262 = vmul.f32 %v2256, %v1309
  %v2263 = vmul.f32 %v2259, %v1309
  %v2264 = vadd.f32 %v2244, %v2260
  %v2265 = vadd.f32 %v2245, %v2261
  %v2266 = vadd.f32 %v2246, %v2262
  %v2267 = vadd.f32 %v2247, %v2263
  %2268 = vrot.lane.b32.xlu0 %v1376, 60
  %v2269 = vpop.permute.xlu0 %2268
  %2270 = vrot.lane.b32.xlu0 %v1377, 60
  %v2271 = vpop.permute.xlu0 %2270
  %2272 = vrot.lane.b32.xlu0 %v1378, 60
  %v2273 = vpop.permute.xlu0 %2272
  %2274 = vrot.lane.b32.xlu0 %v1379, 60
  %v2275 = vpop.permute.xlu0 %2274
  %v2276 = vsel %vm1327, %v2273, %v2275
  %v2277 = vsel %vm1327, %v2271, %v2273
  %v2278 = vsel %vm1327, %v2269, %v2271
  %v2279 = vsel %vm1327, %v2275, %v2269
  %v2280 = vmul.f32 %v2278, %v1337
  %v2281 = vmul.f32 %v2277, %v1337
  %v2282 = vmul.f32 %v2276, %v1337
  %v2283 = vmul.f32 %v2279, %v1337
  %v2284 = vadd.f32 %v2264, %v2280
  %v2285 = vadd.f32 %v2265, %v2281
  %v2286 = vadd.f32 %v2266, %v2282
  %v2287 = vadd.f32 %v2267, %v2283
  %2288 = vrot.lane.b32.xlu0 %v1376, 59
  %v2289 = vpop.permute.xlu0 %2288
  %2290 = vrot.lane.b32.xlu0 %v1377, 59
  %v2291 = vpop.permute.xlu0 %2290
  %2292 = vrot.lane.b32.xlu0 %v1378, 59
  %v2293 = vpop.permute.xlu0 %2292
  %2294 = vrot.lane.b32.xlu0 %v1379, 59
  %v2295 = vpop.permute.xlu0 %2294
  %v2296 = vsel %vm1355, %v2293, %v2295
  %v2297 = vsel %vm1355, %v2291, %v2293
  %v2298 = vsel %vm1355, %v2289, %v2291
  %v2299 = vsel %vm1355, %v2295, %v2289
  %v2300 = vmul.f32 %v2298, %v1365
  %v2301 = vmul.f32 %v2297, %v1365
  %v2302 = vmul.f32 %v2296, %v1365
  %v2303 = vmul.f32 %v2299, %v1365
  %v2304 = vadd.f32 %v2284, %v2300
  %v2305 = vadd.f32 %v2285, %v2301
  %v2306 = vadd.f32 %v2286, %v2302
  %v2307 = vadd.f32 %v2287, %v2303
  %v2308 = vmul.f32 %v1371, %v1371
  %v2309 = vmul.f32 %v1372, %v1372
  %v2310 = vmul.f32 %v1373, %v1373
  %v2311 = vmul.f32 %v1374, %v1374
  %v2313 = vlaneseq
  %v2314 = vshrl.u32 %v2313, 7
  %v2315 = vsub.s32 0, %v2314
  %v2316 = vrot.slane %v53, %v2315
  %v2317 = vlaneseq
  %v2318 = vshrl.u32 %v2317, 7
  %v2319 = vsub.s32 1, %v2318
  %v2320 = vrot.slane %v53, %v2319
  %v2321 = vlaneseq
  %v2322 = vshrl.u32 %v2321, 7
  %v2323 = vsub.s32 2, %v2322
  %v2324 = vrot.slane %v53, %v2323
  %v2325 = vlaneseq
  %v2326 = vshrl.u32 %v2325, 7
  %v2327 = vsub.s32 3, %v2326
  %v2328 = vrot.slane %v53, %v2327
  %v2333 = vmul.f32 %v2304, %v2316
  %v2334 = vmul.f32 %v2305, %v2320
  %v2335 = vmul.f32 %v2306, %v2324
  %v2336 = vmul.f32 %v2307, %v2328
  %v2337 = vadd.f32 %v2333, %v2334
  %v2338 = vadd.f32 %v2337, %v2335
  %v2339 = vadd.f32 %v2338, %v2336
  %2340 = vadd.xlane.f32.xlu0 %v2339
  %v2341 = vpop.xlane.xlu0 %2340
  %v2342 = vmul.f32 %v2304, %v2304
  %v2343 = vmul.f32 %v2305, %v2305
  %v2344 = vmul.f32 %v2306, %v2306
  %v2345 = vmul.f32 %v2307, %v2307
  %v2346 = vmul.f32 %v2342, %v2316
  %v2347 = vmul.f32 %v2343, %v2320
  %v2348 = vmul.f32 %v2344, %v2324
  %v2349 = vmul.f32 %v2345, %v2328
  %v2350 = vadd.f32 %v2346, %v2347
  %v2351 = vadd.f32 %v2350, %v2348
  %v2352 = vadd.f32 %v2351, %v2349
  %2353 = vadd.xlane.f32.xlu0 %v2352
  %v2354 = vpop.xlane.xlu0 %2353
  %v2355 = vmul.f32 %v1371, %v2316
  %v2356 = vmul.f32 %v1372, %v2320
  %v2357 = vmul.f32 %v1373, %v2324
  %v2358 = vmul.f32 %v1374, %v2328
  %v2359 = vadd.f32 %v2355, %v2356
  %v2360 = vadd.f32 %v2359, %v2357
  %v2361 = vadd.f32 %v2360, %v2358
  %2362 = vadd.xlane.f32.xlu0 %v2361
  %v2363 = vpop.xlane.xlu0 %2362
  %v2364 = vadd.f32 %v2363, %v2341
  %v2365 = vmul.f32 %v2308, %v2316
  %v2366 = vmul.f32 %v2309, %v2320
  %v2367 = vmul.f32 %v2310, %v2324
  %v2368 = vmul.f32 %v2311, %v2328
  %v2369 = vadd.f32 %v2365, %v2366
  %v2370 = vadd.f32 %v2369, %v2367
  %v2371 = vadd.f32 %v2370, %v2368
  %2372 = vadd.xlane.f32.xlu0 %v2371
  %v2373 = vpop.xlane.xlu0 %2372
  %v2374 = vadd.f32 %v2373, %v2354
  %v2375 = vmul.f32 %v2364, 0.001953125
  %v2376 = vmul.f32 %v2374, 0.001953125
  %v2377 = vmul.f32 %v2375, %v2375
  %v2378 = vsub.f32 %v2376, %v2377
  %v2379 = vmax.f32 %v2378, 0.0
  %v2380 = vld [vmem:[%s5] sm:$0xff]
  %v2381 = vld [vmem:[%s5 + $0x8] sm:$0xff]
  %v2382 = vld [vmem:[%s5 + $0x10] sm:$0xff]
  %v2383 = vld [vmem:[%s5 + $0x18] sm:$0xff]
  %v2384 = vld [vmem:[%s6] sm:$0xff]
  %v2385 = vld [vmem:[%s6 + $0x8] sm:$0xff]
  %v2386 = vld [vmem:[%s6 + $0x10] sm:$0xff]
  %v2387 = vld [vmem:[%s6 + $0x18] sm:$0xff]
  %v2388 = vld [vmem:[%s3] sm:$0xff]
  %v2389 = vld [vmem:[%s4] sm:$0xff]
  %v2390 = vadd.f32 %v2379, 1e-05
  %v2391 = vrsqrt.pop %v2390
  %v2392 = vmul.f32 %v2388, %v2391
  %v2393 = vmul.f32 %v2375, %v2392
  %v2394 = vsub.f32 %v2389, %v2393
  %v2395 = vlaneseq
  %v2396 = vshrl.u32 %v2395, 7
  %vm2397 = vcmp.eq.s32.totalorder %v2396, %v67
  %v2398 = vsel %vm2397, 1, 0
  %v2399 = vcvt.s32.f32 %v2398
  %2401 = vset.pattern.permute.xlu0 0
  %2402 = vperm.xlu0 %2401, %v2392
  %v2403 = vpop.permute.xlu0 %2402
  %v2405 = vmul.f32 %v2399, %v2403
  %vm2406 = vcmask 64512
  %v2408 = vsel %vm2406, %v2380, 0
  %v2411 = vsel %vm2406, %v2381, 0
  %v2414 = vsel %vm2406, %v2382, 0
  %v2417 = vsel %vm2406, %v2383, 0
  %2419 = vmatprep.subr.mxu0 0.0
  %2420 = vmatpush1.msra.mxu0 0.0
  %2421 = vmatprep.subr.mxu0 0.0
  %2422 = vmatpush1.msra.mxu0 0.0
  %2423 = vmatprep.subr.mxu0 0.0
  %2424 = vmatpush1.msra.mxu0 0.0
  %2425 = vmatprep.subr.mxu0 0.0
  %2426 = vmatpush1.msra.mxu0 0.0
  %2427 = vmatprep.subr.mxu0 0.0
  %2428 = vmatpush1.msra.mxu0 0.0
  %2429 = vmatprep.subr.mxu0 0.0
  %2430 = vmatpush1.msra.mxu0 0.0
  %2431 = vmatprep.subr.mxu0 0.0
  %2432 = vmatpush1.msra.mxu0 0.0
  %2433 = vmatprep.subr.mxu0 0.0
  %2434 = vmatpush1.msra.mxu0 0.0
  %2435 = vmatprep.subr.mxu0 0.0
  %2436 = vmatpush1.msra.mxu0 0.0
  %2437 = vmatprep.subr.mxu0 0.0
  %2438 = vmatpush1.msra.mxu0 0.0
  %2439 = vmatprep.subr.mxu0 0.0
  %2440 = vmatpush1.msra.mxu0 0.0
  %2441 = vmatprep.subr.mxu0 0.0
  %2442 = vmatpush1.msra.mxu0 0.0
  %2443 = vmatprep.subr.mxu0 0.0
  %2444 = vmatpush1.msra.mxu0 0.0
  %2445 = vmatprep.subr.mxu0 0.0
  %2446 = vmatpush1.msra.mxu0 0.0
  %2447 = vmatprep.subr.mxu0 0.0
  %2448 = vmatpush1.msra.mxu0 0.0
  %2449 = vmatprep.subr.mxu0 0.0
  %2450 = vmatpush1.msra.mxu0 %v2405
  %2451 = vmatprep.subr.mxu0 0.0
  %2452 = vmatpush2.msra.mxu0 0.0
  %2453 = vmatprep.subr.mxu0 0.0
  %2454 = vmatpush2.msra.mxu0 0.0
  %2455 = vmatprep.subr.mxu0 0.0
  %2456 = vmatpush2.msra.mxu0 0.0
  %2457 = vmatprep.subr.mxu0 0.0
  %2458 = vmatpush2.msra.mxu0 0.0
  %2459 = vmatprep.subr.mxu0 0.0
  %2460 = vmatpush2.msra.mxu0 0.0
  %2461 = vmatprep.subr.mxu0 0.0
  %2462 = vmatpush2.msra.mxu0 0.0
  %2463 = vmatprep.subr.mxu0 0.0
  %2464 = vmatpush2.msra.mxu0 0.0
  %2465 = vmatprep.subr.mxu0 0.0
  %2466 = vmatpush2.msra.mxu0 0.0
  %2467 = vmatprep.subr.mxu0 0.0
  %2468 = vmatpush2.msra.mxu0 0.0
  %2469 = vmatprep.subr.mxu0 0.0
  %2470 = vmatpush2.msra.mxu0 0.0
  %2471 = vmatprep.subr.mxu0 0.0
  %2472 = vmatpush2.msra.mxu0 0.0
  %2473 = vmatprep.subr.mxu0 0.0
  %2474 = vmatpush2.msra.mxu0 0.0
  %2475 = vmatprep.subr.mxu0 0.0
  %2476 = vmatpush2.msra.mxu0 0.0
  %2477 = vmatprep.subr.mxu0 0.0
  %2478 = vmatpush2.msra.mxu0 0.0
  %2479 = vmatprep.subr.mxu0 0.0
  %2480 = vmatpush2.msra.mxu0 0.0
  %2481 = vmatprep.subr.mxu0 0.0
  %2482 = vmatpush2.msra.mxu0 0.0
  %2483 = vmatprep.mubr.f32.mxu0 0.0
  %2484 = vmatmul.mubr.f32.gmra.mxu0 %v2408
  %v2485 = vpop.f32.mrf.mxu0
  %v2486 = vadd.f32 0.0, %v2485
  %v2487 = vpop.f32.mrf.mxu0
  %2488 = vmatprep.mubr.f32.mxu0 0.0
  %2489 = vmatmul.mubr.f32.gmra.mxu0 %v2411
  %v2490 = vpop.f32.mrf.mxu0
  %v2491 = vadd.f32 0.0, %v2490
  %v2492 = vpop.f32.mrf.mxu0
  %2493 = vmatprep.mubr.f32.mxu0 0.0
  %2494 = vmatmul.mubr.f32.gmra.mxu0 %v2414
  %v2495 = vpop.f32.mrf.mxu0
  %v2496 = vadd.f32 0.0, %v2495
  %v2497 = vpop.f32.mrf.mxu0
  %2498 = vmatprep.mubr.f32.mxu0 0.0
  %2499 = vmatmul.mubr.f32.gmra.mxu0 %v2417
  %v2500 = vpop.f32.mrf.mxu0
  %v2501 = vadd.f32 0.0, %v2500
  %v2502 = vpop.f32.mrf.mxu0
  %2503 = vdwg.mxu0
  %2504 = vmatprep.subr.mxu0 0.0
  %2505 = vmatpush1.msra.mxu0 0.0
  %2506 = vmatprep.subr.mxu0 0.0
  %2507 = vmatpush1.msra.mxu0 0.0
  %2508 = vmatprep.subr.mxu0 0.0
  %2509 = vmatpush1.msra.mxu0 0.0
  %2510 = vmatprep.subr.mxu0 0.0
  %2511 = vmatpush1.msra.mxu0 0.0
  %2512 = vmatprep.subr.mxu0 0.0
  %2513 = vmatpush1.msra.mxu0 0.0
  %2514 = vmatprep.subr.mxu0 0.0
  %2515 = vmatpush1.msra.mxu0 0.0
  %2516 = vmatprep.subr.mxu0 0.0
  %2517 = vmatpush1.msra.mxu0 0.0
  %2518 = vmatprep.subr.mxu0 0.0
  %2519 = vmatpush1.msra.mxu0 0.0
  %2520 = vmatprep.subr.mxu0 0.0
  %2521 = vmatpush1.msra.mxu0 0.0
  %2522 = vmatprep.subr.mxu0 0.0
  %2523 = vmatpush1.msra.mxu0 0.0
  %2524 = vmatprep.subr.mxu0 0.0
  %2525 = vmatpush1.msra.mxu0 0.0
  %2526 = vmatprep.subr.mxu0 0.0
  %2527 = vmatpush1.msra.mxu0 0.0
  %2528 = vmatprep.subr.mxu0 0.0
  %2529 = vmatpush1.msra.mxu0 0.0
  %2530 = vmatprep.subr.mxu0 0.0
  %2531 = vmatpush1.msra.mxu0 0.0
  %2532 = vmatprep.subr.mxu0 0.0
  %2533 = vmatpush1.msra.mxu0 0.0
  %2534 = vmatprep.subr.mxu0 0.0
  %2535 = vmatpush1.msra.mxu0 %v2394
  %2536 = vmatprep.subr.mxu0 0.0
  %2537 = vmatpush2.msra.mxu0 0.0
  %2538 = vmatprep.subr.mxu0 0.0
  %2539 = vmatpush2.msra.mxu0 0.0
  %2540 = vmatprep.subr.mxu0 0.0
  %2541 = vmatpush2.msra.mxu0 0.0
  %2542 = vmatprep.subr.mxu0 0.0
  %2543 = vmatpush2.msra.mxu0 0.0
  %2544 = vmatprep.subr.mxu0 0.0
  %2545 = vmatpush2.msra.mxu0 0.0
  %2546 = vmatprep.subr.mxu0 0.0
  %2547 = vmatpush2.msra.mxu0 0.0
  %2548 = vmatprep.subr.mxu0 0.0
  %2549 = vmatpush2.msra.mxu0 0.0
  %2550 = vmatprep.subr.mxu0 0.0
  %2551 = vmatpush2.msra.mxu0 0.0
  %2552 = vmatprep.subr.mxu0 0.0
  %2553 = vmatpush2.msra.mxu0 0.0
  %2554 = vmatprep.subr.mxu0 0.0
  %2555 = vmatpush2.msra.mxu0 0.0
  %2556 = vmatprep.subr.mxu0 0.0
  %2557 = vmatpush2.msra.mxu0 0.0
  %2558 = vmatprep.subr.mxu0 0.0
  %2559 = vmatpush2.msra.mxu0 0.0
  %2560 = vmatprep.subr.mxu0 0.0
  %2561 = vmatpush2.msra.mxu0 0.0
  %2562 = vmatprep.subr.mxu0 0.0
  %2563 = vmatpush2.msra.mxu0 0.0
  %2564 = vmatprep.subr.mxu0 0.0
  %2565 = vmatpush2.msra.mxu0 0.0
  %2566 = vmatprep.subr.mxu0 0.0
  %2567 = vmatpush2.msra.mxu0 0.0
  %2568 = vmatprep.mubr.f32.mxu0 0.0
  %2569 = vmatmul.mubr.f32.gmra.mxu0 %v2408
  %v2570 = vpop.f32.mrf.mxu0
  %v2571 = vadd.f32 %v2384, %v2570
  %v2572 = vpop.f32.mrf.mxu0
  %2573 = vmatprep.mubr.f32.mxu0 0.0
  %2574 = vmatmul.mubr.f32.gmra.mxu0 %v2411
  %v2575 = vpop.f32.mrf.mxu0
  %v2576 = vadd.f32 %v2385, %v2575
  %v2577 = vpop.f32.mrf.mxu0
  %2578 = vmatprep.mubr.f32.mxu0 0.0
  %2579 = vmatmul.mubr.f32.gmra.mxu0 %v2414
  %v2580 = vpop.f32.mrf.mxu0
  %v2581 = vadd.f32 %v2386, %v2580
  %v2582 = vpop.f32.mrf.mxu0
  %2583 = vmatprep.mubr.f32.mxu0 0.0
  %2584 = vmatmul.mubr.f32.gmra.mxu0 %v2417
  %v2585 = vpop.f32.mrf.mxu0
  %v2586 = vadd.f32 %v2387, %v2585
  %v2587 = vpop.f32.mrf.mxu0
  %2588 = vdwg.mxu0
  %v2589 = vld [vmem:[%s7] sm:$0xf]
  %v2590 = vld [vmem:[%s8] sm:$0xf]
  %2592 = vset.pattern.permute.xlu0 0
  %2593 = vperm.xlu0 %2592, %v2571
  %v2594 = vpop.permute.xlu0 %2593
  %2597 = vset.pattern.permute.xlu0 0
  %2598 = vperm.xlu0 %2597, %v2576
  %v2599 = vpop.permute.xlu0 %2598
  %2602 = vset.pattern.permute.xlu0 0
  %2603 = vperm.xlu0 %2602, %v2581
  %v2604 = vpop.permute.xlu0 %2603
  %2607 = vset.pattern.permute.xlu0 0
  %2608 = vperm.xlu0 %2607, %v2586
  %v2609 = vpop.permute.xlu0 %2608
  %v2612 = vsel %vm2406, %v2486, 0
  %v2615 = vsel %vm2406, %v2491, 0
  %v2618 = vsel %vm2406, %v2496, 0
  %v2621 = vsel %vm2406, %v2501, 0
  %2623 = vmatprep.subr.mxu0 0.0
  %2624 = vmatpush1.msra.mxu0 0.0
  %2625 = vmatprep.subr.mxu0 0.0
  %2626 = vmatpush1.msra.mxu0 0.0
  %2627 = vmatprep.subr.mxu0 0.0
  %2628 = vmatpush1.msra.mxu0 0.0
  %2629 = vmatprep.subr.mxu0 0.0
  %2630 = vmatpush1.msra.mxu0 0.0
  %2631 = vmatprep.subr.mxu0 0.0
  %2632 = vmatpush1.msra.mxu0 0.0
  %2633 = vmatprep.subr.mxu0 0.0
  %2634 = vmatpush1.msra.mxu0 0.0
  %2635 = vmatprep.subr.mxu0 0.0
  %2636 = vmatpush1.msra.mxu0 0.0
  %2637 = vmatprep.subr.mxu0 0.0
  %2638 = vmatpush1.msra.mxu0 0.0
  %2639 = vmatprep.subr.mxu0 0.0
  %2640 = vmatpush1.msra.mxu0 0.0
  %2641 = vmatprep.subr.mxu0 0.0
  %2642 = vmatpush1.msra.mxu0 0.0
  %2643 = vmatprep.subr.mxu0 0.0
  %2644 = vmatpush1.msra.mxu0 0.0
  %2645 = vmatprep.subr.mxu0 0.0
  %2646 = vmatpush1.msra.mxu0 0.0
  %2647 = vmatprep.subr.mxu0 0.0
  %2648 = vmatpush1.msra.mxu0 0.0
  %2649 = vmatprep.subr.mxu0 0.0
  %2650 = vmatpush1.msra.mxu0 0.0
  %2651 = vmatprep.subr.mxu0 0.0
  %2652 = vmatpush1.msra.mxu0 0.0
  %2653 = vmatprep.subr.mxu0 %v1372
  %2654 = vmatpush1.msra.mxu0 %v1371
  %2655 = vmatprep.subr.mxu0 0.0
  %2656 = vmatpush2.msra.mxu0 0.0
  %2657 = vmatprep.subr.mxu0 0.0
  %2658 = vmatpush2.msra.mxu0 0.0
  %2659 = vmatprep.subr.mxu0 0.0
  %2660 = vmatpush2.msra.mxu0 0.0
  %2661 = vmatprep.subr.mxu0 0.0
  %2662 = vmatpush2.msra.mxu0 0.0
  %2663 = vmatprep.subr.mxu0 0.0
  %2664 = vmatpush2.msra.mxu0 0.0
  %2665 = vmatprep.subr.mxu0 0.0
  %2666 = vmatpush2.msra.mxu0 0.0
  %2667 = vmatprep.subr.mxu0 0.0
  %2668 = vmatpush2.msra.mxu0 0.0
  %2669 = vmatprep.subr.mxu0 0.0
  %2670 = vmatpush2.msra.mxu0 0.0
  %2671 = vmatprep.subr.mxu0 0.0
  %2672 = vmatpush2.msra.mxu0 0.0
  %2673 = vmatprep.subr.mxu0 0.0
  %2674 = vmatpush2.msra.mxu0 0.0
  %2675 = vmatprep.subr.mxu0 0.0
  %2676 = vmatpush2.msra.mxu0 0.0
  %2677 = vmatprep.subr.mxu0 0.0
  %2678 = vmatpush2.msra.mxu0 0.0
  %2679 = vmatprep.subr.mxu0 0.0
  %2680 = vmatpush2.msra.mxu0 0.0
  %2681 = vmatprep.subr.mxu0 0.0
  %2682 = vmatpush2.msra.mxu0 0.0
  %2683 = vmatprep.subr.mxu0 0.0
  %2684 = vmatpush2.msra.mxu0 0.0
  %2685 = vmatprep.subr.mxu0 0.0
  %2686 = vmatpush2.msra.mxu0 0.0
  %2687 = vmatprep.mubr.f32.mxu0 0.0
  %2688 = vmatmul.mubr.f32.gmra.mxu0 %v2612
  %v2689 = vpop.f32.mrf.mxu0
  %v2690 = vadd.f32 %v2594, %v2689
  %v2691 = vpop.f32.mrf.mxu0
  %v2692 = vadd.f32 %v2594, %v2691
  %2693 = vmatprep.mubr.f32.mxu0 0.0
  %2694 = vmatmul.mubr.f32.gmra.mxu0 %v2615
  %v2695 = vpop.f32.mrf.mxu0
  %v2696 = vadd.f32 %v2599, %v2695
  %v2697 = vpop.f32.mrf.mxu0
  %v2698 = vadd.f32 %v2599, %v2697
  %2699 = vmatprep.mubr.f32.mxu0 0.0
  %2700 = vmatmul.mubr.f32.gmra.mxu0 %v2618
  %v2701 = vpop.f32.mrf.mxu0
  %v2702 = vadd.f32 %v2604, %v2701
  %v2703 = vpop.f32.mrf.mxu0
  %v2704 = vadd.f32 %v2604, %v2703
  %2705 = vmatprep.mubr.f32.mxu0 0.0
  %2706 = vmatmul.mubr.f32.gmra.mxu0 %v2621
  %v2707 = vpop.f32.mrf.mxu0
  %v2708 = vadd.f32 %v2609, %v2707
  %v2709 = vpop.f32.mrf.mxu0
  %v2710 = vadd.f32 %v2609, %v2709
  %2711 = vdwg.mxu0
  %2712 = vmatprep.subr.mxu0 0.0
  %2713 = vmatpush1.msra.mxu0 0.0
  %2714 = vmatprep.subr.mxu0 0.0
  %2715 = vmatpush1.msra.mxu0 0.0
  %2716 = vmatprep.subr.mxu0 0.0
  %2717 = vmatpush1.msra.mxu0 0.0
  %2718 = vmatprep.subr.mxu0 0.0
  %2719 = vmatpush1.msra.mxu0 0.0
  %2720 = vmatprep.subr.mxu0 0.0
  %2721 = vmatpush1.msra.mxu0 0.0
  %2722 = vmatprep.subr.mxu0 0.0
  %2723 = vmatpush1.msra.mxu0 0.0
  %2724 = vmatprep.subr.mxu0 0.0
  %2725 = vmatpush1.msra.mxu0 0.0
  %2726 = vmatprep.subr.mxu0 0.0
  %2727 = vmatpush1.msra.mxu0 0.0
  %2728 = vmatprep.subr.mxu0 0.0
  %2729 = vmatpush1.msra.mxu0 0.0
  %2730 = vmatprep.subr.mxu0 0.0
  %2731 = vmatpush1.msra.mxu0 0.0
  %2732 = vmatprep.subr.mxu0 0.0
  %2733 = vmatpush1.msra.mxu0 0.0
  %2734 = vmatprep.subr.mxu0 0.0
  %2735 = vmatpush1.msra.mxu0 0.0
  %2736 = vmatprep.subr.mxu0 0.0
  %2737 = vmatpush1.msra.mxu0 0.0
  %2738 = vmatprep.subr.mxu0 0.0
  %2739 = vmatpush1.msra.mxu0 0.0
  %2740 = vmatprep.subr.mxu0 0.0
  %2741 = vmatpush1.msra.mxu0 0.0
  %2742 = vmatprep.subr.mxu0 %v1374
  %2743 = vmatpush1.msra.mxu0 %v1373
  %2744 = vmatprep.subr.mxu0 0.0
  %2745 = vmatpush2.msra.mxu0 0.0
  %2746 = vmatprep.subr.mxu0 0.0
  %2747 = vmatpush2.msra.mxu0 0.0
  %2748 = vmatprep.subr.mxu0 0.0
  %2749 = vmatpush2.msra.mxu0 0.0
  %2750 = vmatprep.subr.mxu0 0.0
  %2751 = vmatpush2.msra.mxu0 0.0
  %2752 = vmatprep.subr.mxu0 0.0
  %2753 = vmatpush2.msra.mxu0 0.0
  %2754 = vmatprep.subr.mxu0 0.0
  %2755 = vmatpush2.msra.mxu0 0.0
  %2756 = vmatprep.subr.mxu0 0.0
  %2757 = vmatpush2.msra.mxu0 0.0
  %2758 = vmatprep.subr.mxu0 0.0
  %2759 = vmatpush2.msra.mxu0 0.0
  %2760 = vmatprep.subr.mxu0 0.0
  %2761 = vmatpush2.msra.mxu0 0.0
  %2762 = vmatprep.subr.mxu0 0.0
  %2763 = vmatpush2.msra.mxu0 0.0
  %2764 = vmatprep.subr.mxu0 0.0
  %2765 = vmatpush2.msra.mxu0 0.0
  %2766 = vmatprep.subr.mxu0 0.0
  %2767 = vmatpush2.msra.mxu0 0.0
  %2768 = vmatprep.subr.mxu0 0.0
  %2769 = vmatpush2.msra.mxu0 0.0
  %2770 = vmatprep.subr.mxu0 0.0
  %2771 = vmatpush2.msra.mxu0 0.0
  %2772 = vmatprep.subr.mxu0 0.0
  %2773 = vmatpush2.msra.mxu0 0.0
  %2774 = vmatprep.subr.mxu0 0.0
  %2775 = vmatpush2.msra.mxu0 0.0
  %2776 = vmatprep.mubr.f32.mxu0 0.0
  %2777 = vmatmul.mubr.f32.gmra.mxu0 %v2612
  %v2778 = vpop.f32.mrf.mxu0
  %v2779 = vadd.f32 %v2594, %v2778
  %v2780 = vpop.f32.mrf.mxu0
  %v2781 = vadd.f32 %v2594, %v2780
  %2782 = vmatprep.mubr.f32.mxu0 0.0
  %2783 = vmatmul.mubr.f32.gmra.mxu0 %v2615
  %v2784 = vpop.f32.mrf.mxu0
  %v2785 = vadd.f32 %v2599, %v2784
  %v2786 = vpop.f32.mrf.mxu0
  %v2787 = vadd.f32 %v2599, %v2786
  %2788 = vmatprep.mubr.f32.mxu0 0.0
  %2789 = vmatmul.mubr.f32.gmra.mxu0 %v2618
  %v2790 = vpop.f32.mrf.mxu0
  %v2791 = vadd.f32 %v2604, %v2790
  %v2792 = vpop.f32.mrf.mxu0
  %v2793 = vadd.f32 %v2604, %v2792
  %2794 = vmatprep.mubr.f32.mxu0 0.0
  %2795 = vmatmul.mubr.f32.gmra.mxu0 %v2621
  %v2796 = vpop.f32.mrf.mxu0
  %v2797 = vadd.f32 %v2609, %v2796
  %v2798 = vpop.f32.mrf.mxu0
  %v2799 = vadd.f32 %v2609, %v2798
  %2800 = vdwg.mxu0
  %v2801 = vmax.f32 %v2690, 0.0
  %v2802 = vmax.f32 %v2692, 0.0
  %v2803 = vmax.f32 %v2779, 0.0
  %v2804 = vmax.f32 %v2781, 0.0
  %v2805 = vmax.f32 %v2696, 0.0
  %v2806 = vmax.f32 %v2698, 0.0
  %v2807 = vmax.f32 %v2785, 0.0
  %v2808 = vmax.f32 %v2787, 0.0
  %v2809 = vmax.f32 %v2702, 0.0
  %v2810 = vmax.f32 %v2704, 0.0
  %v2811 = vmax.f32 %v2791, 0.0
  %v2812 = vmax.f32 %v2793, 0.0
  %v2813 = vmax.f32 %v2708, 0.0
  %v2814 = vmax.f32 %v2710, 0.0
  %v2815 = vmax.f32 %v2797, 0.0
  %v2816 = vmax.f32 %v2799, 0.0
  %2818 = vset.pattern.permute.xlu0 0
  %2819 = vperm.xlu0 %2818, %v2590
  %v2820 = vpop.permute.xlu0 %2819
  %vm2822 = vcmask 261120
  %v2824 = vsel %vm2822, %v2589, 0
  %2826 = vmatprep.subr.mxu0 0.0
  %2827 = vmatpush1.msra.mxu0 0.0
  %2828 = vmatprep.subr.mxu0 0.0
  %2829 = vmatpush1.msra.mxu0 0.0
  %2830 = vmatprep.subr.mxu0 0.0
  %2831 = vmatpush1.msra.mxu0 0.0
  %2832 = vmatprep.subr.mxu0 0.0
  %2833 = vmatpush1.msra.mxu0 0.0
  %2834 = vmatprep.subr.mxu0 0.0
  %2835 = vmatpush1.msra.mxu0 0.0
  %2836 = vmatprep.subr.mxu0 0.0
  %2837 = vmatpush1.msra.mxu0 0.0
  %2838 = vmatprep.subr.mxu0 0.0
  %2839 = vmatpush1.msra.mxu0 0.0
  %2840 = vmatprep.subr.mxu0 0.0
  %2841 = vmatpush1.msra.mxu0 0.0
  %2842 = vmatprep.subr.mxu0 0.0
  %2843 = vmatpush1.msra.mxu0 0.0
  %2844 = vmatprep.subr.mxu0 0.0
  %2845 = vmatpush1.msra.mxu0 0.0
  %2846 = vmatprep.subr.mxu0 0.0
  %2847 = vmatpush1.msra.mxu0 0.0
  %2848 = vmatprep.subr.mxu0 0.0
  %2849 = vmatpush1.msra.mxu0 0.0
  %2850 = vmatprep.subr.mxu0 %v2814
  %2851 = vmatpush1.msra.mxu0 %v2813
  %2852 = vmatprep.subr.mxu0 %v2810
  %2853 = vmatpush1.msra.mxu0 %v2809
  %2854 = vmatprep.subr.mxu0 %v2806
  %2855 = vmatpush1.msra.mxu0 %v2805
  %2856 = vmatprep.subr.mxu0 %v2802
  %2857 = vmatpush1.msra.mxu0 %v2801
  %2858 = vmatprep.subr.mxu0 0.0
  %2859 = vmatpush2.msra.mxu0 0.0
  %2860 = vmatprep.subr.mxu0 0.0
  %2861 = vmatpush2.msra.mxu0 0.0
  %2862 = vmatprep.subr.mxu0 0.0
  %2863 = vmatpush2.msra.mxu0 0.0
  %2864 = vmatprep.subr.mxu0 0.0
  %2865 = vmatpush2.msra.mxu0 0.0
  %2866 = vmatprep.subr.mxu0 0.0
  %2867 = vmatpush2.msra.mxu0 0.0
  %2868 = vmatprep.subr.mxu0 0.0
  %2869 = vmatpush2.msra.mxu0 0.0
  %2870 = vmatprep.subr.mxu0 0.0
  %2871 = vmatpush2.msra.mxu0 0.0
  %2872 = vmatprep.subr.mxu0 0.0
  %2873 = vmatpush2.msra.mxu0 0.0
  %2874 = vmatprep.subr.mxu0 0.0
  %2875 = vmatpush2.msra.mxu0 0.0
  %2876 = vmatprep.subr.mxu0 0.0
  %2877 = vmatpush2.msra.mxu0 0.0
  %2878 = vmatprep.subr.mxu0 0.0
  %2879 = vmatpush2.msra.mxu0 0.0
  %2880 = vmatprep.subr.mxu0 0.0
  %2881 = vmatpush2.msra.mxu0 0.0
  %2882 = vmatprep.subr.mxu0 0.0
  %2883 = vmatpush2.msra.mxu0 0.0
  %2884 = vmatprep.subr.mxu0 0.0
  %2885 = vmatpush2.msra.mxu0 0.0
  %2886 = vmatprep.subr.mxu0 0.0
  %2887 = vmatpush2.msra.mxu0 0.0
  %2888 = vmatprep.subr.mxu0 0.0
  %2889 = vmatpush2.msra.mxu0 0.0
  %2890 = vmatprep.mubr.f32.mxu0 0.0
  %2891 = vmatmul.mubr.f32.gmra.mxu0 %v2824
  %v2892 = vpop.f32.mrf.mxu0
  %v2893 = vadd.f32 %v2820, %v2892
  %v2894 = vpop.f32.mrf.mxu0
  %v2895 = vadd.f32 %v2820, %v2894
  %2896 = vdwg.mxu0
  %2897 = vmatprep.subr.mxu0 0.0
  %2898 = vmatpush1.msra.mxu0 0.0
  %2899 = vmatprep.subr.mxu0 0.0
  %2900 = vmatpush1.msra.mxu0 0.0
  %2901 = vmatprep.subr.mxu0 0.0
  %2902 = vmatpush1.msra.mxu0 0.0
  %2903 = vmatprep.subr.mxu0 0.0
  %2904 = vmatpush1.msra.mxu0 0.0
  %2905 = vmatprep.subr.mxu0 0.0
  %2906 = vmatpush1.msra.mxu0 0.0
  %2907 = vmatprep.subr.mxu0 0.0
  %2908 = vmatpush1.msra.mxu0 0.0
  %2909 = vmatprep.subr.mxu0 0.0
  %2910 = vmatpush1.msra.mxu0 0.0
  %2911 = vmatprep.subr.mxu0 0.0
  %2912 = vmatpush1.msra.mxu0 0.0
  %2913 = vmatprep.subr.mxu0 0.0
  %2914 = vmatpush1.msra.mxu0 0.0
  %2915 = vmatprep.subr.mxu0 0.0
  %2916 = vmatpush1.msra.mxu0 0.0
  %2917 = vmatprep.subr.mxu0 0.0
  %2918 = vmatpush1.msra.mxu0 0.0
  %2919 = vmatprep.subr.mxu0 0.0
  %2920 = vmatpush1.msra.mxu0 0.0
  %2921 = vmatprep.subr.mxu0 %v2816
  %2922 = vmatpush1.msra.mxu0 %v2815
  %2923 = vmatprep.subr.mxu0 %v2812
  %2924 = vmatpush1.msra.mxu0 %v2811
  %2925 = vmatprep.subr.mxu0 %v2808
  %2926 = vmatpush1.msra.mxu0 %v2807
  %2927 = vmatprep.subr.mxu0 %v2804
  %2928 = vmatpush1.msra.mxu0 %v2803
  %2929 = vmatprep.subr.mxu0 0.0
  %2930 = vmatpush2.msra.mxu0 0.0
  %2931 = vmatprep.subr.mxu0 0.0
  %2932 = vmatpush2.msra.mxu0 0.0
  %2933 = vmatprep.subr.mxu0 0.0
  %2934 = vmatpush2.msra.mxu0 0.0
  %2935 = vmatprep.subr.mxu0 0.0
  %2936 = vmatpush2.msra.mxu0 0.0
  %2937 = vmatprep.subr.mxu0 0.0
  %2938 = vmatpush2.msra.mxu0 0.0
  %2939 = vmatprep.subr.mxu0 0.0
  %2940 = vmatpush2.msra.mxu0 0.0
  %2941 = vmatprep.subr.mxu0 0.0
  %2942 = vmatpush2.msra.mxu0 0.0
  %2943 = vmatprep.subr.mxu0 0.0
  %2944 = vmatpush2.msra.mxu0 0.0
  %2945 = vmatprep.subr.mxu0 0.0
  %2946 = vmatpush2.msra.mxu0 0.0
  %2947 = vmatprep.subr.mxu0 0.0
  %2948 = vmatpush2.msra.mxu0 0.0
  %2949 = vmatprep.subr.mxu0 0.0
  %2950 = vmatpush2.msra.mxu0 0.0
  %2951 = vmatprep.subr.mxu0 0.0
  %2952 = vmatpush2.msra.mxu0 0.0
  %2953 = vmatprep.subr.mxu0 0.0
  %2954 = vmatpush2.msra.mxu0 0.0
  %2955 = vmatprep.subr.mxu0 0.0
  %2956 = vmatpush2.msra.mxu0 0.0
  %2957 = vmatprep.subr.mxu0 0.0
  %2958 = vmatpush2.msra.mxu0 0.0
  %2959 = vmatprep.subr.mxu0 0.0
  %2960 = vmatpush2.msra.mxu0 0.0
  %2961 = vmatprep.mubr.f32.mxu0 0.0
  %2962 = vmatmul.mubr.f32.gmra.mxu0 %v2824
  %v2963 = vpop.f32.mrf.mxu0
  %v2964 = vadd.f32 %v2820, %v2963
  %v2965 = vpop.f32.mrf.mxu0
  %v2966 = vadd.f32 %v2820, %v2965
  %2967 = vdwg.mxu0
  %v2968 = vmul.f32 %v2893, %v2316
  %v2969 = vmul.f32 %v2895, %v2320
  %v2970 = vmul.f32 %v2964, %v2324
  %v2971 = vmul.f32 %v2966, %v2328
  %2972 = vrot.lane.b32.xlu0 %v2968, 69
  %v2973 = vpop.permute.xlu0 %2972
  %2974 = vrot.lane.b32.xlu0 %v2969, 69
  %v2975 = vpop.permute.xlu0 %2974
  %2976 = vrot.lane.b32.xlu0 %v2970, 69
  %v2977 = vpop.permute.xlu0 %2976
  %2978 = vrot.lane.b32.xlu0 %v2971, 69
  %v2979 = vpop.permute.xlu0 %2978
  %v2980 = vsel %vm68, %v2977, %v2979
  %v2981 = vsel %vm68, %v2975, %v2977
  %v2982 = vsel %vm68, %v2973, %v2975
  %v2983 = vsel %vm68, %v2979, %v2973
  %v2984 = vld [vmem:[%s9] sm:$0xf]
  %2986 = vset.pattern.permute.xlu0 0
  %2987 = vperm.xlu0 %2986, %v2984
  %v2988 = vpop.permute.xlu0 %2987
  %v2990 = vmul.f32 %v2983, %v2988
  %v2991 = vmul.f32 %v2982, %v2988
  %v2992 = vmul.f32 %v2981, %v2988
  %v2993 = vmul.f32 %v2980, %v2988
  %2994 = vrot.lane.b32.xlu0 %v2968, 68
  %v2995 = vpop.permute.xlu0 %2994
  %2996 = vrot.lane.b32.xlu0 %v2969, 68
  %v2997 = vpop.permute.xlu0 %2996
  %2998 = vrot.lane.b32.xlu0 %v2970, 68
  %v2999 = vpop.permute.xlu0 %2998
  %3000 = vrot.lane.b32.xlu0 %v2971, 68
  %v3001 = vpop.permute.xlu0 %3000
  %v3002 = vsel %vm91, %v2999, %v3001
  %v3003 = vsel %vm91, %v2997, %v2999
  %v3004 = vsel %vm91, %v2995, %v2997
  %v3005 = vsel %vm91, %v3001, %v2995
  %s3006 = scalar_lea.vmem %s9, 4
  %v3007 = vld [vmem:[%s3006] sm:$0xf]
  %3009 = vset.pattern.permute.xlu0 0
  %3010 = vperm.xlu0 %3009, %v3007
  %v3011 = vpop.permute.xlu0 %3010
  %v3013 = vmul.f32 %v3005, %v3011
  %v3014 = vmul.f32 %v3004, %v3011
  %v3015 = vmul.f32 %v3003, %v3011
  %v3016 = vmul.f32 %v3002, %v3011
  %v3017 = vadd.f32 %v2990, %v3013
  %v3018 = vadd.f32 %v2991, %v3014
  %v3019 = vadd.f32 %v2992, %v3015
  %v3020 = vadd.f32 %v2993, %v3016
  %3021 = vrot.lane.b32.xlu0 %v2968, 67
  %v3022 = vpop.permute.xlu0 %3021
  %3023 = vrot.lane.b32.xlu0 %v2969, 67
  %v3024 = vpop.permute.xlu0 %3023
  %3025 = vrot.lane.b32.xlu0 %v2970, 67
  %v3026 = vpop.permute.xlu0 %3025
  %3027 = vrot.lane.b32.xlu0 %v2971, 67
  %v3028 = vpop.permute.xlu0 %3027
  %v3029 = vsel %vm119, %v3026, %v3028
  %v3030 = vsel %vm119, %v3024, %v3026
  %v3031 = vsel %vm119, %v3022, %v3024
  %v3032 = vsel %vm119, %v3028, %v3022
  %s3033 = scalar_lea.vmem %s9, 8
  %v3034 = vld [vmem:[%s3033] sm:$0xf]
  %3036 = vset.pattern.permute.xlu0 0
  %3037 = vperm.xlu0 %3036, %v3034
  %v3038 = vpop.permute.xlu0 %3037
  %v3040 = vmul.f32 %v3032, %v3038
  %v3041 = vmul.f32 %v3031, %v3038
  %v3042 = vmul.f32 %v3030, %v3038
  %v3043 = vmul.f32 %v3029, %v3038
  %v3044 = vadd.f32 %v3017, %v3040
  %v3045 = vadd.f32 %v3018, %v3041
  %v3046 = vadd.f32 %v3019, %v3042
  %v3047 = vadd.f32 %v3020, %v3043
  %3048 = vrot.lane.b32.xlu0 %v2968, 66
  %v3049 = vpop.permute.xlu0 %3048
  %3050 = vrot.lane.b32.xlu0 %v2969, 66
  %v3051 = vpop.permute.xlu0 %3050
  %3052 = vrot.lane.b32.xlu0 %v2970, 66
  %v3053 = vpop.permute.xlu0 %3052
  %3054 = vrot.lane.b32.xlu0 %v2971, 66
  %v3055 = vpop.permute.xlu0 %3054
  %v3056 = vsel %vm147, %v3053, %v3055
  %v3057 = vsel %vm147, %v3051, %v3053
  %v3058 = vsel %vm147, %v3049, %v3051
  %v3059 = vsel %vm147, %v3055, %v3049
  %s3060 = scalar_lea.vmem %s9, 12
  %v3061 = vld [vmem:[%s3060] sm:$0xf]
  %3063 = vset.pattern.permute.xlu0 0
  %3064 = vperm.xlu0 %3063, %v3061
  %v3065 = vpop.permute.xlu0 %3064
  %v3067 = vmul.f32 %v3059, %v3065
  %v3068 = vmul.f32 %v3058, %v3065
  %v3069 = vmul.f32 %v3057, %v3065
  %v3070 = vmul.f32 %v3056, %v3065
  %v3071 = vadd.f32 %v3044, %v3067
  %v3072 = vadd.f32 %v3045, %v3068
  %v3073 = vadd.f32 %v3046, %v3069
  %v3074 = vadd.f32 %v3047, %v3070
  %3075 = vrot.lane.b32.xlu0 %v2968, 65
  %v3076 = vpop.permute.xlu0 %3075
  %3077 = vrot.lane.b32.xlu0 %v2969, 65
  %v3078 = vpop.permute.xlu0 %3077
  %3079 = vrot.lane.b32.xlu0 %v2970, 65
  %v3080 = vpop.permute.xlu0 %3079
  %3081 = vrot.lane.b32.xlu0 %v2971, 65
  %v3082 = vpop.permute.xlu0 %3081
  %v3083 = vsel %vm175, %v3080, %v3082
  %v3084 = vsel %vm175, %v3078, %v3080
  %v3085 = vsel %vm175, %v3076, %v3078
  %v3086 = vsel %vm175, %v3082, %v3076
  %s3087 = scalar_lea.vmem %s9, 16
  %v3088 = vld [vmem:[%s3087] sm:$0xf]
  %3090 = vset.pattern.permute.xlu0 0
  %3091 = vperm.xlu0 %3090, %v3088
  %v3092 = vpop.permute.xlu0 %3091
  %v3094 = vmul.f32 %v3086, %v3092
  %v3095 = vmul.f32 %v3085, %v3092
  %v3096 = vmul.f32 %v3084, %v3092
  %v3097 = vmul.f32 %v3083, %v3092
  %v3098 = vadd.f32 %v3071, %v3094
  %v3099 = vadd.f32 %v3072, %v3095
  %v3100 = vadd.f32 %v3073, %v3096
  %v3101 = vadd.f32 %v3074, %v3097
  %3102 = vrot.lane.b32.xlu0 %v2968, 64
  %v3103 = vpop.permute.xlu0 %3102
  %3104 = vrot.lane.b32.xlu0 %v2969, 64
  %v3105 = vpop.permute.xlu0 %3104
  %3106 = vrot.lane.b32.xlu0 %v2970, 64
  %v3107 = vpop.permute.xlu0 %3106
  %3108 = vrot.lane.b32.xlu0 %v2971, 64
  %v3109 = vpop.permute.xlu0 %3108
  %v3110 = vsel %vm203, %v3107, %v3109
  %v3111 = vsel %vm203, %v3105, %v3107
  %v3112 = vsel %vm203, %v3103, %v3105
  %v3113 = vsel %vm203, %v3109, %v3103
  %s3114 = scalar_lea.vmem %s9, 20
  %v3115 = vld [vmem:[%s3114] sm:$0xf]
  %3117 = vset.pattern.permute.xlu0 0
  %3118 = vperm.xlu0 %3117, %v3115
  %v3119 = vpop.permute.xlu0 %3118
  %v3121 = vmul.f32 %v3113, %v3119
  %v3122 = vmul.f32 %v3112, %v3119
  %v3123 = vmul.f32 %v3111, %v3119
  %v3124 = vmul.f32 %v3110, %v3119
  %v3125 = vadd.f32 %v3098, %v3121
  %v3126 = vadd.f32 %v3099, %v3122
  %v3127 = vadd.f32 %v3100, %v3123
  %v3128 = vadd.f32 %v3101, %v3124
  %3129 = vrot.lane.b32.xlu0 %v2968, 63
  %v3130 = vpop.permute.xlu0 %3129
  %3131 = vrot.lane.b32.xlu0 %v2969, 63
  %v3132 = vpop.permute.xlu0 %3131
  %3133 = vrot.lane.b32.xlu0 %v2970, 63
  %v3134 = vpop.permute.xlu0 %3133
  %3135 = vrot.lane.b32.xlu0 %v2971, 63
  %v3136 = vpop.permute.xlu0 %3135
  %v3137 = vsel %vm231, %v3134, %v3136
  %v3138 = vsel %vm231, %v3132, %v3134
  %v3139 = vsel %vm231, %v3130, %v3132
  %v3140 = vsel %vm231, %v3136, %v3130
  %s3141 = scalar_lea.vmem %s9, 24
  %v3142 = vld [vmem:[%s3141] sm:$0xf]
  %3144 = vset.pattern.permute.xlu0 0
  %3145 = vperm.xlu0 %3144, %v3142
  %v3146 = vpop.permute.xlu0 %3145
  %v3148 = vmul.f32 %v3140, %v3146
  %v3149 = vmul.f32 %v3139, %v3146
  %v3150 = vmul.f32 %v3138, %v3146
  %v3151 = vmul.f32 %v3137, %v3146
  %v3152 = vadd.f32 %v3125, %v3148
  %v3153 = vadd.f32 %v3126, %v3149
  %v3154 = vadd.f32 %v3127, %v3150
  %v3155 = vadd.f32 %v3128, %v3151
  %3156 = vrot.lane.b32.xlu0 %v2968, 47
  %v3157 = vpop.permute.xlu0 %3156
  %3158 = vrot.lane.b32.xlu0 %v2969, 47
  %v3159 = vpop.permute.xlu0 %3158
  %3160 = vrot.lane.b32.xlu0 %v2970, 47
  %v3161 = vpop.permute.xlu0 %3160
  %3162 = vrot.lane.b32.xlu0 %v2971, 47
  %v3163 = vpop.permute.xlu0 %3162
  %v3164 = vsel %vm259, %v3161, %v3163
  %v3165 = vsel %vm259, %v3159, %v3161
  %v3166 = vsel %vm259, %v3157, %v3159
  %v3167 = vsel %vm259, %v3163, %v3157
  %s3168 = scalar_lea.vmem %s9, 28
  %v3169 = vld [vmem:[%s3168] sm:$0xf]
  %3171 = vset.pattern.permute.xlu0 0
  %3172 = vperm.xlu0 %3171, %v3169
  %v3173 = vpop.permute.xlu0 %3172
  %v3175 = vmul.f32 %v3167, %v3173
  %v3176 = vmul.f32 %v3166, %v3173
  %v3177 = vmul.f32 %v3165, %v3173
  %v3178 = vmul.f32 %v3164, %v3173
  %v3179 = vadd.f32 %v3152, %v3175
  %v3180 = vadd.f32 %v3153, %v3176
  %v3181 = vadd.f32 %v3154, %v3177
  %v3182 = vadd.f32 %v3155, %v3178
  %3183 = vrot.lane.b32.xlu0 %v2968, 46
  %v3184 = vpop.permute.xlu0 %3183
  %3185 = vrot.lane.b32.xlu0 %v2969, 46
  %v3186 = vpop.permute.xlu0 %3185
  %3187 = vrot.lane.b32.xlu0 %v2970, 46
  %v3188 = vpop.permute.xlu0 %3187
  %3189 = vrot.lane.b32.xlu0 %v2971, 46
  %v3190 = vpop.permute.xlu0 %3189
  %v3191 = vsel %vm287, %v3188, %v3190
  %v3192 = vsel %vm287, %v3186, %v3188
  %v3193 = vsel %vm287, %v3184, %v3186
  %v3194 = vsel %vm287, %v3190, %v3184
  %s3195 = scalar_lea.vmem %s9, 32
  %v3196 = vld [vmem:[%s3195] sm:$0xf]
  %3198 = vset.pattern.permute.xlu0 0
  %3199 = vperm.xlu0 %3198, %v3196
  %v3200 = vpop.permute.xlu0 %3199
  %v3202 = vmul.f32 %v3194, %v3200
  %v3203 = vmul.f32 %v3193, %v3200
  %v3204 = vmul.f32 %v3192, %v3200
  %v3205 = vmul.f32 %v3191, %v3200
  %v3206 = vadd.f32 %v3179, %v3202
  %v3207 = vadd.f32 %v3180, %v3203
  %v3208 = vadd.f32 %v3181, %v3204
  %v3209 = vadd.f32 %v3182, %v3205
  %3210 = vrot.lane.b32.xlu0 %v2968, 45
  %v3211 = vpop.permute.xlu0 %3210
  %3212 = vrot.lane.b32.xlu0 %v2969, 45
  %v3213 = vpop.permute.xlu0 %3212
  %3214 = vrot.lane.b32.xlu0 %v2970, 45
  %v3215 = vpop.permute.xlu0 %3214
  %3216 = vrot.lane.b32.xlu0 %v2971, 45
  %v3217 = vpop.permute.xlu0 %3216
  %v3218 = vsel %vm315, %v3215, %v3217
  %v3219 = vsel %vm315, %v3213, %v3215
  %v3220 = vsel %vm315, %v3211, %v3213
  %v3221 = vsel %vm315, %v3217, %v3211
  %s3222 = scalar_lea.vmem %s9, 36
  %v3223 = vld [vmem:[%s3222] sm:$0xf]
  %3225 = vset.pattern.permute.xlu0 0
  %3226 = vperm.xlu0 %3225, %v3223
  %v3227 = vpop.permute.xlu0 %3226
  %v3229 = vmul.f32 %v3221, %v3227
  %v3230 = vmul.f32 %v3220, %v3227
  %v3231 = vmul.f32 %v3219, %v3227
  %v3232 = vmul.f32 %v3218, %v3227
  %v3233 = vadd.f32 %v3206, %v3229
  %v3234 = vadd.f32 %v3207, %v3230
  %v3235 = vadd.f32 %v3208, %v3231
  %v3236 = vadd.f32 %v3209, %v3232
  %3237 = vrot.lane.b32.xlu0 %v2968, 44
  %v3238 = vpop.permute.xlu0 %3237
  %3239 = vrot.lane.b32.xlu0 %v2969, 44
  %v3240 = vpop.permute.xlu0 %3239
  %3241 = vrot.lane.b32.xlu0 %v2970, 44
  %v3242 = vpop.permute.xlu0 %3241
  %3243 = vrot.lane.b32.xlu0 %v2971, 44
  %v3244 = vpop.permute.xlu0 %3243
  %v3245 = vsel %vm343, %v3242, %v3244
  %v3246 = vsel %vm343, %v3240, %v3242
  %v3247 = vsel %vm343, %v3238, %v3240
  %v3248 = vsel %vm343, %v3244, %v3238
  %s3249 = scalar_lea.vmem %s9, 40
  %v3250 = vld [vmem:[%s3249] sm:$0xf]
  %3252 = vset.pattern.permute.xlu0 0
  %3253 = vperm.xlu0 %3252, %v3250
  %v3254 = vpop.permute.xlu0 %3253
  %v3256 = vmul.f32 %v3248, %v3254
  %v3257 = vmul.f32 %v3247, %v3254
  %v3258 = vmul.f32 %v3246, %v3254
  %v3259 = vmul.f32 %v3245, %v3254
  %v3260 = vadd.f32 %v3233, %v3256
  %v3261 = vadd.f32 %v3234, %v3257
  %v3262 = vadd.f32 %v3235, %v3258
  %v3263 = vadd.f32 %v3236, %v3259
  %3264 = vrot.lane.b32.xlu0 %v2968, 43
  %v3265 = vpop.permute.xlu0 %3264
  %3266 = vrot.lane.b32.xlu0 %v2969, 43
  %v3267 = vpop.permute.xlu0 %3266
  %3268 = vrot.lane.b32.xlu0 %v2970, 43
  %v3269 = vpop.permute.xlu0 %3268
  %3270 = vrot.lane.b32.xlu0 %v2971, 43
  %v3271 = vpop.permute.xlu0 %3270
  %v3272 = vsel %vm371, %v3269, %v3271
  %v3273 = vsel %vm371, %v3267, %v3269
  %v3274 = vsel %vm371, %v3265, %v3267
  %v3275 = vsel %vm371, %v3271, %v3265
  %s3276 = scalar_lea.vmem %s9, 44
  %v3277 = vld [vmem:[%s3276] sm:$0xf]
  %3279 = vset.pattern.permute.xlu0 0
  %3280 = vperm.xlu0 %3279, %v3277
  %v3281 = vpop.permute.xlu0 %3280
  %v3283 = vmul.f32 %v3275, %v3281
  %v3284 = vmul.f32 %v3274, %v3281
  %v3285 = vmul.f32 %v3273, %v3281
  %v3286 = vmul.f32 %v3272, %v3281
  %v3287 = vadd.f32 %v3260, %v3283
  %v3288 = vadd.f32 %v3261, %v3284
  %v3289 = vadd.f32 %v3262, %v3285
  %v3290 = vadd.f32 %v3263, %v3286
  %3291 = vrot.lane.b32.xlu0 %v2968, 42
  %v3292 = vpop.permute.xlu0 %3291
  %3293 = vrot.lane.b32.xlu0 %v2969, 42
  %v3294 = vpop.permute.xlu0 %3293
  %3295 = vrot.lane.b32.xlu0 %v2970, 42
  %v3296 = vpop.permute.xlu0 %3295
  %3297 = vrot.lane.b32.xlu0 %v2971, 42
  %v3298 = vpop.permute.xlu0 %3297
  %v3299 = vsel %vm399, %v3296, %v3298
  %v3300 = vsel %vm399, %v3294, %v3296
  %v3301 = vsel %vm399, %v3292, %v3294
  %v3302 = vsel %vm399, %v3298, %v3292
  %s3303 = scalar_lea.vmem %s9, 48
  %v3304 = vld [vmem:[%s3303] sm:$0xf]
  %3306 = vset.pattern.permute.xlu0 0
  %3307 = vperm.xlu0 %3306, %v3304
  %v3308 = vpop.permute.xlu0 %3307
  %v3310 = vmul.f32 %v3302, %v3308
  %v3311 = vmul.f32 %v3301, %v3308
  %v3312 = vmul.f32 %v3300, %v3308
  %v3313 = vmul.f32 %v3299, %v3308
  %v3314 = vadd.f32 %v3287, %v3310
  %v3315 = vadd.f32 %v3288, %v3311
  %v3316 = vadd.f32 %v3289, %v3312
  %v3317 = vadd.f32 %v3290, %v3313
  %3318 = vrot.lane.b32.xlu0 %v2968, 41
  %v3319 = vpop.permute.xlu0 %3318
  %3320 = vrot.lane.b32.xlu0 %v2969, 41
  %v3321 = vpop.permute.xlu0 %3320
  %3322 = vrot.lane.b32.xlu0 %v2970, 41
  %v3323 = vpop.permute.xlu0 %3322
  %3324 = vrot.lane.b32.xlu0 %v2971, 41
  %v3325 = vpop.permute.xlu0 %3324
  %v3326 = vsel %vm427, %v3323, %v3325
  %v3327 = vsel %vm427, %v3321, %v3323
  %v3328 = vsel %vm427, %v3319, %v3321
  %v3329 = vsel %vm427, %v3325, %v3319
  %s3330 = scalar_lea.vmem %s9, 52
  %v3331 = vld [vmem:[%s3330] sm:$0xf]
  %3333 = vset.pattern.permute.xlu0 0
  %3334 = vperm.xlu0 %3333, %v3331
  %v3335 = vpop.permute.xlu0 %3334
  %v3337 = vmul.f32 %v3329, %v3335
  %v3338 = vmul.f32 %v3328, %v3335
  %v3339 = vmul.f32 %v3327, %v3335
  %v3340 = vmul.f32 %v3326, %v3335
  %v3341 = vadd.f32 %v3314, %v3337
  %v3342 = vadd.f32 %v3315, %v3338
  %v3343 = vadd.f32 %v3316, %v3339
  %v3344 = vadd.f32 %v3317, %v3340
  %3345 = vrot.lane.b32.xlu0 %v2968, 25
  %v3346 = vpop.permute.xlu0 %3345
  %3347 = vrot.lane.b32.xlu0 %v2969, 25
  %v3348 = vpop.permute.xlu0 %3347
  %3349 = vrot.lane.b32.xlu0 %v2970, 25
  %v3350 = vpop.permute.xlu0 %3349
  %3351 = vrot.lane.b32.xlu0 %v2971, 25
  %v3352 = vpop.permute.xlu0 %3351
  %v3353 = vsel %vm455, %v3350, %v3352
  %v3354 = vsel %vm455, %v3348, %v3350
  %v3355 = vsel %vm455, %v3346, %v3348
  %v3356 = vsel %vm455, %v3352, %v3346
  %s3357 = scalar_lea.vmem %s9, 56
  %v3358 = vld [vmem:[%s3357] sm:$0xf]
  %3360 = vset.pattern.permute.xlu0 0
  %3361 = vperm.xlu0 %3360, %v3358
  %v3362 = vpop.permute.xlu0 %3361
  %v3364 = vmul.f32 %v3356, %v3362
  %v3365 = vmul.f32 %v3355, %v3362
  %v3366 = vmul.f32 %v3354, %v3362
  %v3367 = vmul.f32 %v3353, %v3362
  %v3368 = vadd.f32 %v3341, %v3364
  %v3369 = vadd.f32 %v3342, %v3365
  %v3370 = vadd.f32 %v3343, %v3366
  %v3371 = vadd.f32 %v3344, %v3367
  %3372 = vrot.lane.b32.xlu0 %v2968, 24
  %v3373 = vpop.permute.xlu0 %3372
  %3374 = vrot.lane.b32.xlu0 %v2969, 24
  %v3375 = vpop.permute.xlu0 %3374
  %3376 = vrot.lane.b32.xlu0 %v2970, 24
  %v3377 = vpop.permute.xlu0 %3376
  %3378 = vrot.lane.b32.xlu0 %v2971, 24
  %v3379 = vpop.permute.xlu0 %3378
  %v3380 = vsel %vm483, %v3377, %v3379
  %v3381 = vsel %vm483, %v3375, %v3377
  %v3382 = vsel %vm483, %v3373, %v3375
  %v3383 = vsel %vm483, %v3379, %v3373
  %s3384 = scalar_lea.vmem %s9, 60
  %v3385 = vld [vmem:[%s3384] sm:$0xf]
  %3387 = vset.pattern.permute.xlu0 0
  %3388 = vperm.xlu0 %3387, %v3385
  %v3389 = vpop.permute.xlu0 %3388
  %v3391 = vmul.f32 %v3383, %v3389
  %v3392 = vmul.f32 %v3382, %v3389
  %v3393 = vmul.f32 %v3381, %v3389
  %v3394 = vmul.f32 %v3380, %v3389
  %v3395 = vadd.f32 %v3368, %v3391
  %v3396 = vadd.f32 %v3369, %v3392
  %v3397 = vadd.f32 %v3370, %v3393
  %v3398 = vadd.f32 %v3371, %v3394
  %3399 = vrot.lane.b32.xlu0 %v2968, 23
  %v3400 = vpop.permute.xlu0 %3399
  %3401 = vrot.lane.b32.xlu0 %v2969, 23
  %v3402 = vpop.permute.xlu0 %3401
  %3403 = vrot.lane.b32.xlu0 %v2970, 23
  %v3404 = vpop.permute.xlu0 %3403
  %3405 = vrot.lane.b32.xlu0 %v2971, 23
  %v3406 = vpop.permute.xlu0 %3405
  %v3407 = vsel %vm511, %v3404, %v3406
  %v3408 = vsel %vm511, %v3402, %v3404
  %v3409 = vsel %vm511, %v3400, %v3402
  %v3410 = vsel %vm511, %v3406, %v3400
  %s3411 = scalar_lea.vmem %s9, 64
  %v3412 = vld [vmem:[%s3411] sm:$0xf]
  %3414 = vset.pattern.permute.xlu0 0
  %3415 = vperm.xlu0 %3414, %v3412
  %v3416 = vpop.permute.xlu0 %3415
  %v3418 = vmul.f32 %v3410, %v3416
  %v3419 = vmul.f32 %v3409, %v3416
  %v3420 = vmul.f32 %v3408, %v3416
  %v3421 = vmul.f32 %v3407, %v3416
  %v3422 = vadd.f32 %v3395, %v3418
  %v3423 = vadd.f32 %v3396, %v3419
  %v3424 = vadd.f32 %v3397, %v3420
  %v3425 = vadd.f32 %v3398, %v3421
  %3426 = vrot.lane.b32.xlu0 %v2968, 22
  %v3427 = vpop.permute.xlu0 %3426
  %3428 = vrot.lane.b32.xlu0 %v2969, 22
  %v3429 = vpop.permute.xlu0 %3428
  %3430 = vrot.lane.b32.xlu0 %v2970, 22
  %v3431 = vpop.permute.xlu0 %3430
  %3432 = vrot.lane.b32.xlu0 %v2971, 22
  %v3433 = vpop.permute.xlu0 %3432
  %v3434 = vsel %vm539, %v3431, %v3433
  %v3435 = vsel %vm539, %v3429, %v3431
  %v3436 = vsel %vm539, %v3427, %v3429
  %v3437 = vsel %vm539, %v3433, %v3427
  %s3438 = scalar_lea.vmem %s9, 68
  %v3439 = vld [vmem:[%s3438] sm:$0xf]
  %3441 = vset.pattern.permute.xlu0 0
  %3442 = vperm.xlu0 %3441, %v3439
  %v3443 = vpop.permute.xlu0 %3442
  %v3445 = vmul.f32 %v3437, %v3443
  %v3446 = vmul.f32 %v3436, %v3443
  %v3447 = vmul.f32 %v3435, %v3443
  %v3448 = vmul.f32 %v3434, %v3443
  %v3449 = vadd.f32 %v3422, %v3445
  %v3450 = vadd.f32 %v3423, %v3446
  %v3451 = vadd.f32 %v3424, %v3447
  %v3452 = vadd.f32 %v3425, %v3448
  %3453 = vrot.lane.b32.xlu0 %v2968, 21
  %v3454 = vpop.permute.xlu0 %3453
  %3455 = vrot.lane.b32.xlu0 %v2969, 21
  %v3456 = vpop.permute.xlu0 %3455
  %3457 = vrot.lane.b32.xlu0 %v2970, 21
  %v3458 = vpop.permute.xlu0 %3457
  %3459 = vrot.lane.b32.xlu0 %v2971, 21
  %v3460 = vpop.permute.xlu0 %3459
  %v3461 = vsel %vm567, %v3458, %v3460
  %v3462 = vsel %vm567, %v3456, %v3458
  %v3463 = vsel %vm567, %v3454, %v3456
  %v3464 = vsel %vm567, %v3460, %v3454
  %s3465 = scalar_lea.vmem %s9, 72
  %v3466 = vld [vmem:[%s3465] sm:$0xf]
  %3468 = vset.pattern.permute.xlu0 0
  %3469 = vperm.xlu0 %3468, %v3466
  %v3470 = vpop.permute.xlu0 %3469
  %v3472 = vmul.f32 %v3464, %v3470
  %v3473 = vmul.f32 %v3463, %v3470
  %v3474 = vmul.f32 %v3462, %v3470
  %v3475 = vmul.f32 %v3461, %v3470
  %v3476 = vadd.f32 %v3449, %v3472
  %v3477 = vadd.f32 %v3450, %v3473
  %v3478 = vadd.f32 %v3451, %v3474
  %v3479 = vadd.f32 %v3452, %v3475
  %3480 = vrot.lane.b32.xlu0 %v2968, 20
  %v3481 = vpop.permute.xlu0 %3480
  %3482 = vrot.lane.b32.xlu0 %v2969, 20
  %v3483 = vpop.permute.xlu0 %3482
  %3484 = vrot.lane.b32.xlu0 %v2970, 20
  %v3485 = vpop.permute.xlu0 %3484
  %3486 = vrot.lane.b32.xlu0 %v2971, 20
  %v3487 = vpop.permute.xlu0 %3486
  %v3488 = vsel %vm595, %v3485, %v3487
  %v3489 = vsel %vm595, %v3483, %v3485
  %v3490 = vsel %vm595, %v3481, %v3483
  %v3491 = vsel %vm595, %v3487, %v3481
  %s3492 = scalar_lea.vmem %s9, 76
  %v3493 = vld [vmem:[%s3492] sm:$0xf]
  %3495 = vset.pattern.permute.xlu0 0
  %3496 = vperm.xlu0 %3495, %v3493
  %v3497 = vpop.permute.xlu0 %3496
  %v3499 = vmul.f32 %v3491, %v3497
  %v3500 = vmul.f32 %v3490, %v3497
  %v3501 = vmul.f32 %v3489, %v3497
  %v3502 = vmul.f32 %v3488, %v3497
  %v3503 = vadd.f32 %v3476, %v3499
  %v3504 = vadd.f32 %v3477, %v3500
  %v3505 = vadd.f32 %v3478, %v3501
  %v3506 = vadd.f32 %v3479, %v3502
  %3507 = vrot.lane.b32.xlu0 %v2968, 19
  %v3508 = vpop.permute.xlu0 %3507
  %3509 = vrot.lane.b32.xlu0 %v2969, 19
  %v3510 = vpop.permute.xlu0 %3509
  %3511 = vrot.lane.b32.xlu0 %v2970, 19
  %v3512 = vpop.permute.xlu0 %3511
  %3513 = vrot.lane.b32.xlu0 %v2971, 19
  %v3514 = vpop.permute.xlu0 %3513
  %v3515 = vsel %vm623, %v3512, %v3514
  %v3516 = vsel %vm623, %v3510, %v3512
  %v3517 = vsel %vm623, %v3508, %v3510
  %v3518 = vsel %vm623, %v3514, %v3508
  %s3519 = scalar_lea.vmem %s9, 80
  %v3520 = vld [vmem:[%s3519] sm:$0xf]
  %3522 = vset.pattern.permute.xlu0 0
  %3523 = vperm.xlu0 %3522, %v3520
  %v3524 = vpop.permute.xlu0 %3523
  %v3526 = vmul.f32 %v3518, %v3524
  %v3527 = vmul.f32 %v3517, %v3524
  %v3528 = vmul.f32 %v3516, %v3524
  %v3529 = vmul.f32 %v3515, %v3524
  %v3530 = vadd.f32 %v3503, %v3526
  %v3531 = vadd.f32 %v3504, %v3527
  %v3532 = vadd.f32 %v3505, %v3528
  %v3533 = vadd.f32 %v3506, %v3529
  %3534 = vrot.lane.b32.xlu0 %v2968, 3
  %v3535 = vpop.permute.xlu0 %3534
  %3536 = vrot.lane.b32.xlu0 %v2969, 3
  %v3537 = vpop.permute.xlu0 %3536
  %3538 = vrot.lane.b32.xlu0 %v2970, 3
  %v3539 = vpop.permute.xlu0 %3538
  %3540 = vrot.lane.b32.xlu0 %v2971, 3
  %v3541 = vpop.permute.xlu0 %3540
  %v3542 = vsel %vm651, %v3539, %v3541
  %v3543 = vsel %vm651, %v3537, %v3539
  %v3544 = vsel %vm651, %v3535, %v3537
  %v3545 = vsel %vm651, %v3541, %v3535
  %s3546 = scalar_lea.vmem %s9, 84
  %v3547 = vld [vmem:[%s3546] sm:$0xf]
  %3549 = vset.pattern.permute.xlu0 0
  %3550 = vperm.xlu0 %3549, %v3547
  %v3551 = vpop.permute.xlu0 %3550
  %v3553 = vmul.f32 %v3545, %v3551
  %v3554 = vmul.f32 %v3544, %v3551
  %v3555 = vmul.f32 %v3543, %v3551
  %v3556 = vmul.f32 %v3542, %v3551
  %v3557 = vadd.f32 %v3530, %v3553
  %v3558 = vadd.f32 %v3531, %v3554
  %v3559 = vadd.f32 %v3532, %v3555
  %v3560 = vadd.f32 %v3533, %v3556
  %3561 = vrot.lane.b32.xlu0 %v2968, 2
  %v3562 = vpop.permute.xlu0 %3561
  %3563 = vrot.lane.b32.xlu0 %v2969, 2
  %v3564 = vpop.permute.xlu0 %3563
  %3565 = vrot.lane.b32.xlu0 %v2970, 2
  %v3566 = vpop.permute.xlu0 %3565
  %3567 = vrot.lane.b32.xlu0 %v2971, 2
  %v3568 = vpop.permute.xlu0 %3567
  %v3569 = vsel %vm679, %v3566, %v3568
  %v3570 = vsel %vm679, %v3564, %v3566
  %v3571 = vsel %vm679, %v3562, %v3564
  %v3572 = vsel %vm679, %v3568, %v3562
  %s3573 = scalar_lea.vmem %s9, 88
  %v3574 = vld [vmem:[%s3573] sm:$0xf]
  %3576 = vset.pattern.permute.xlu0 0
  %3577 = vperm.xlu0 %3576, %v3574
  %v3578 = vpop.permute.xlu0 %3577
  %v3580 = vmul.f32 %v3572, %v3578
  %v3581 = vmul.f32 %v3571, %v3578
  %v3582 = vmul.f32 %v3570, %v3578
  %v3583 = vmul.f32 %v3569, %v3578
  %v3584 = vadd.f32 %v3557, %v3580
  %v3585 = vadd.f32 %v3558, %v3581
  %v3586 = vadd.f32 %v3559, %v3582
  %v3587 = vadd.f32 %v3560, %v3583
  %3588 = vrot.lane.b32.xlu0 %v2968, 1
  %v3589 = vpop.permute.xlu0 %3588
  %3590 = vrot.lane.b32.xlu0 %v2969, 1
  %v3591 = vpop.permute.xlu0 %3590
  %3592 = vrot.lane.b32.xlu0 %v2970, 1
  %v3593 = vpop.permute.xlu0 %3592
  %3594 = vrot.lane.b32.xlu0 %v2971, 1
  %v3595 = vpop.permute.xlu0 %3594
  %v3596 = vsel %vm707, %v3593, %v3595
  %v3597 = vsel %vm707, %v3591, %v3593
  %v3598 = vsel %vm707, %v3589, %v3591
  %v3599 = vsel %vm707, %v3595, %v3589
  %s3600 = scalar_lea.vmem %s9, 92
  %v3601 = vld [vmem:[%s3600] sm:$0xf]
  %3603 = vset.pattern.permute.xlu0 0
  %3604 = vperm.xlu0 %3603, %v3601
  %v3605 = vpop.permute.xlu0 %3604
  %v3607 = vmul.f32 %v3599, %v3605
  %v3608 = vmul.f32 %v3598, %v3605
  %v3609 = vmul.f32 %v3597, %v3605
  %v3610 = vmul.f32 %v3596, %v3605
  %v3611 = vadd.f32 %v3584, %v3607
  %v3612 = vadd.f32 %v3585, %v3608
  %v3613 = vadd.f32 %v3586, %v3609
  %v3614 = vadd.f32 %v3587, %v3610
  %s3615 = scalar_lea.vmem %s9, 96
  %v3616 = vld [vmem:[%s3615] sm:$0xf]
  %3618 = vset.pattern.permute.xlu0 0
  %3619 = vperm.xlu0 %3618, %v3616
  %v3620 = vpop.permute.xlu0 %3619
  %v3622 = vmul.f32 %v2968, %v3620
  %v3623 = vmul.f32 %v2969, %v3620
  %v3624 = vmul.f32 %v2970, %v3620
  %v3625 = vmul.f32 %v2971, %v3620
  %v3626 = vadd.f32 %v3611, %v3622
  %v3627 = vadd.f32 %v3612, %v3623
  %v3628 = vadd.f32 %v3613, %v3624
  %v3629 = vadd.f32 %v3614, %v3625
  %3630 = vrot.lane.b32.xlu0 %v2968, 127
  %v3631 = vpop.permute.xlu0 %3630
  %3632 = vrot.lane.b32.xlu0 %v2969, 127
  %v3633 = vpop.permute.xlu0 %3632
  %3634 = vrot.lane.b32.xlu0 %v2970, 127
  %v3635 = vpop.permute.xlu0 %3634
  %3636 = vrot.lane.b32.xlu0 %v2971, 127
  %v3637 = vpop.permute.xlu0 %3636
  %v3638 = vsel %vm750, %v3635, %v3637
  %v3639 = vsel %vm750, %v3633, %v3635
  %v3640 = vsel %vm750, %v3631, %v3633
  %v3641 = vsel %vm750, %v3637, %v3631
  %s3642 = scalar_lea.vmem %s9, 100
  %v3643 = vld [vmem:[%s3642] sm:$0xf]
  %3645 = vset.pattern.permute.xlu0 0
  %3646 = vperm.xlu0 %3645, %v3643
  %v3647 = vpop.permute.xlu0 %3646
  %v3649 = vmul.f32 %v3640, %v3647
  %v3650 = vmul.f32 %v3639, %v3647
  %v3651 = vmul.f32 %v3638, %v3647
  %v3652 = vmul.f32 %v3641, %v3647
  %v3653 = vadd.f32 %v3626, %v3649
  %v3654 = vadd.f32 %v3627, %v3650
  %v3655 = vadd.f32 %v3628, %v3651
  %v3656 = vadd.f32 %v3629, %v3652
  %3657 = vrot.lane.b32.xlu0 %v2968, 126
  %v3658 = vpop.permute.xlu0 %3657
  %3659 = vrot.lane.b32.xlu0 %v2969, 126
  %v3660 = vpop.permute.xlu0 %3659
  %3661 = vrot.lane.b32.xlu0 %v2970, 126
  %v3662 = vpop.permute.xlu0 %3661
  %3663 = vrot.lane.b32.xlu0 %v2971, 126
  %v3664 = vpop.permute.xlu0 %3663
  %v3665 = vsel %vm778, %v3662, %v3664
  %v3666 = vsel %vm778, %v3660, %v3662
  %v3667 = vsel %vm778, %v3658, %v3660
  %v3668 = vsel %vm778, %v3664, %v3658
  %s3669 = scalar_lea.vmem %s9, 104
  %v3670 = vld [vmem:[%s3669] sm:$0xf]
  %3672 = vset.pattern.permute.xlu0 0
  %3673 = vperm.xlu0 %3672, %v3670
  %v3674 = vpop.permute.xlu0 %3673
  %v3676 = vmul.f32 %v3667, %v3674
  %v3677 = vmul.f32 %v3666, %v3674
  %v3678 = vmul.f32 %v3665, %v3674
  %v3679 = vmul.f32 %v3668, %v3674
  %v3680 = vadd.f32 %v3653, %v3676
  %v3681 = vadd.f32 %v3654, %v3677
  %v3682 = vadd.f32 %v3655, %v3678
  %v3683 = vadd.f32 %v3656, %v3679
  %3684 = vrot.lane.b32.xlu0 %v2968, 125
  %v3685 = vpop.permute.xlu0 %3684
  %3686 = vrot.lane.b32.xlu0 %v2969, 125
  %v3687 = vpop.permute.xlu0 %3686
  %3688 = vrot.lane.b32.xlu0 %v2970, 125
  %v3689 = vpop.permute.xlu0 %3688
  %3690 = vrot.lane.b32.xlu0 %v2971, 125
  %v3691 = vpop.permute.xlu0 %3690
  %v3692 = vsel %vm806, %v3689, %v3691
  %v3693 = vsel %vm806, %v3687, %v3689
  %v3694 = vsel %vm806, %v3685, %v3687
  %v3695 = vsel %vm806, %v3691, %v3685
  %s3696 = scalar_lea.vmem %s9, 108
  %v3697 = vld [vmem:[%s3696] sm:$0xf]
  %3699 = vset.pattern.permute.xlu0 0
  %3700 = vperm.xlu0 %3699, %v3697
  %v3701 = vpop.permute.xlu0 %3700
  %v3703 = vmul.f32 %v3694, %v3701
  %v3704 = vmul.f32 %v3693, %v3701
  %v3705 = vmul.f32 %v3692, %v3701
  %v3706 = vmul.f32 %v3695, %v3701
  %v3707 = vadd.f32 %v3680, %v3703
  %v3708 = vadd.f32 %v3681, %v3704
  %v3709 = vadd.f32 %v3682, %v3705
  %v3710 = vadd.f32 %v3683, %v3706
  %3711 = vrot.lane.b32.xlu0 %v2968, 109
  %v3712 = vpop.permute.xlu0 %3711
  %3713 = vrot.lane.b32.xlu0 %v2969, 109
  %v3714 = vpop.permute.xlu0 %3713
  %3715 = vrot.lane.b32.xlu0 %v2970, 109
  %v3716 = vpop.permute.xlu0 %3715
  %3717 = vrot.lane.b32.xlu0 %v2971, 109
  %v3718 = vpop.permute.xlu0 %3717
  %v3719 = vsel %vm834, %v3716, %v3718
  %v3720 = vsel %vm834, %v3714, %v3716
  %v3721 = vsel %vm834, %v3712, %v3714
  %v3722 = vsel %vm834, %v3718, %v3712
  %s3723 = scalar_lea.vmem %s9, 112
  %v3724 = vld [vmem:[%s3723] sm:$0xf]
  %3726 = vset.pattern.permute.xlu0 0
  %3727 = vperm.xlu0 %3726, %v3724
  %v3728 = vpop.permute.xlu0 %3727
  %v3730 = vmul.f32 %v3721, %v3728
  %v3731 = vmul.f32 %v3720, %v3728
  %v3732 = vmul.f32 %v3719, %v3728
  %v3733 = vmul.f32 %v3722, %v3728
  %v3734 = vadd.f32 %v3707, %v3730
  %v3735 = vadd.f32 %v3708, %v3731
  %v3736 = vadd.f32 %v3709, %v3732
  %v3737 = vadd.f32 %v3710, %v3733
  %3738 = vrot.lane.b32.xlu0 %v2968, 108
  %v3739 = vpop.permute.xlu0 %3738
  %3740 = vrot.lane.b32.xlu0 %v2969, 108
  %v3741 = vpop.permute.xlu0 %3740
  %3742 = vrot.lane.b32.xlu0 %v2970, 108
  %v3743 = vpop.permute.xlu0 %3742
  %3744 = vrot.lane.b32.xlu0 %v2971, 108
  %v3745 = vpop.permute.xlu0 %3744
  %v3746 = vsel %vm862, %v3743, %v3745
  %v3747 = vsel %vm862, %v3741, %v3743
  %v3748 = vsel %vm862, %v3739, %v3741
  %v3749 = vsel %vm862, %v3745, %v3739
  %s3750 = scalar_lea.vmem %s9, 116
  %v3751 = vld [vmem:[%s3750] sm:$0xf]
  %3753 = vset.pattern.permute.xlu0 0
  %3754 = vperm.xlu0 %3753, %v3751
  %v3755 = vpop.permute.xlu0 %3754
  %v3757 = vmul.f32 %v3748, %v3755
  %v3758 = vmul.f32 %v3747, %v3755
  %v3759 = vmul.f32 %v3746, %v3755
  %v3760 = vmul.f32 %v3749, %v3755
  %v3761 = vadd.f32 %v3734, %v3757
  %v3762 = vadd.f32 %v3735, %v3758
  %v3763 = vadd.f32 %v3736, %v3759
  %v3764 = vadd.f32 %v3737, %v3760
  %3765 = vrot.lane.b32.xlu0 %v2968, 107
  %v3766 = vpop.permute.xlu0 %3765
  %3767 = vrot.lane.b32.xlu0 %v2969, 107
  %v3768 = vpop.permute.xlu0 %3767
  %3769 = vrot.lane.b32.xlu0 %v2970, 107
  %v3770 = vpop.permute.xlu0 %3769
  %3771 = vrot.lane.b32.xlu0 %v2971, 107
  %v3772 = vpop.permute.xlu0 %3771
  %v3773 = vsel %vm890, %v3770, %v3772
  %v3774 = vsel %vm890, %v3768, %v3770
  %v3775 = vsel %vm890, %v3766, %v3768
  %v3776 = vsel %vm890, %v3772, %v3766
  %s3777 = scalar_lea.vmem %s9, 120
  %v3778 = vld [vmem:[%s3777] sm:$0xf]
  %3780 = vset.pattern.permute.xlu0 0
  %3781 = vperm.xlu0 %3780, %v3778
  %v3782 = vpop.permute.xlu0 %3781
  %v3784 = vmul.f32 %v3775, %v3782
  %v3785 = vmul.f32 %v3774, %v3782
  %v3786 = vmul.f32 %v3773, %v3782
  %v3787 = vmul.f32 %v3776, %v3782
  %v3788 = vadd.f32 %v3761, %v3784
  %v3789 = vadd.f32 %v3762, %v3785
  %v3790 = vadd.f32 %v3763, %v3786
  %v3791 = vadd.f32 %v3764, %v3787
  %3792 = vrot.lane.b32.xlu0 %v2968, 106
  %v3793 = vpop.permute.xlu0 %3792
  %3794 = vrot.lane.b32.xlu0 %v2969, 106
  %v3795 = vpop.permute.xlu0 %3794
  %3796 = vrot.lane.b32.xlu0 %v2970, 106
  %v3797 = vpop.permute.xlu0 %3796
  %3798 = vrot.lane.b32.xlu0 %v2971, 106
  %v3799 = vpop.permute.xlu0 %3798
  %v3800 = vsel %vm918, %v3797, %v3799
  %v3801 = vsel %vm918, %v3795, %v3797
  %v3802 = vsel %vm918, %v3793, %v3795
  %v3803 = vsel %vm918, %v3799, %v3793
  %s3804 = scalar_lea.vmem %s9, 124
  %v3805 = vld [vmem:[%s3804] sm:$0xf]
  %3807 = vset.pattern.permute.xlu0 0
  %3808 = vperm.xlu0 %3807, %v3805
  %v3809 = vpop.permute.xlu0 %3808
  %v3811 = vmul.f32 %v3802, %v3809
  %v3812 = vmul.f32 %v3801, %v3809
  %v3813 = vmul.f32 %v3800, %v3809
  %v3814 = vmul.f32 %v3803, %v3809
  %v3815 = vadd.f32 %v3788, %v3811
  %v3816 = vadd.f32 %v3789, %v3812
  %v3817 = vadd.f32 %v3790, %v3813
  %v3818 = vadd.f32 %v3791, %v3814
  %3819 = vrot.lane.b32.xlu0 %v2968, 105
  %v3820 = vpop.permute.xlu0 %3819
  %3821 = vrot.lane.b32.xlu0 %v2969, 105
  %v3822 = vpop.permute.xlu0 %3821
  %3823 = vrot.lane.b32.xlu0 %v2970, 105
  %v3824 = vpop.permute.xlu0 %3823
  %3825 = vrot.lane.b32.xlu0 %v2971, 105
  %v3826 = vpop.permute.xlu0 %3825
  %v3827 = vsel %vm946, %v3824, %v3826
  %v3828 = vsel %vm946, %v3822, %v3824
  %v3829 = vsel %vm946, %v3820, %v3822
  %v3830 = vsel %vm946, %v3826, %v3820
  %s3831 = scalar_lea.vmem %s9, 128
  %v3832 = vld [vmem:[%s3831] sm:$0xf]
  %3834 = vset.pattern.permute.xlu0 0
  %3835 = vperm.xlu0 %3834, %v3832
  %v3836 = vpop.permute.xlu0 %3835
  %v3838 = vmul.f32 %v3829, %v3836
  %v3839 = vmul.f32 %v3828, %v3836
  %v3840 = vmul.f32 %v3827, %v3836
  %v3841 = vmul.f32 %v3830, %v3836
  %v3842 = vadd.f32 %v3815, %v3838
  %v3843 = vadd.f32 %v3816, %v3839
  %v3844 = vadd.f32 %v3817, %v3840
  %v3845 = vadd.f32 %v3818, %v3841
  %3846 = vrot.lane.b32.xlu0 %v2968, 104
  %v3847 = vpop.permute.xlu0 %3846
  %3848 = vrot.lane.b32.xlu0 %v2969, 104
  %v3849 = vpop.permute.xlu0 %3848
  %3850 = vrot.lane.b32.xlu0 %v2970, 104
  %v3851 = vpop.permute.xlu0 %3850
  %3852 = vrot.lane.b32.xlu0 %v2971, 104
  %v3853 = vpop.permute.xlu0 %3852
  %v3854 = vsel %vm974, %v3851, %v3853
  %v3855 = vsel %vm974, %v3849, %v3851
  %v3856 = vsel %vm974, %v3847, %v3849
  %v3857 = vsel %vm974, %v3853, %v3847
  %s3858 = scalar_lea.vmem %s9, 132
  %v3859 = vld [vmem:[%s3858] sm:$0xf]
  %3861 = vset.pattern.permute.xlu0 0
  %3862 = vperm.xlu0 %3861, %v3859
  %v3863 = vpop.permute.xlu0 %3862
  %v3865 = vmul.f32 %v3856, %v3863
  %v3866 = vmul.f32 %v3855, %v3863
  %v3867 = vmul.f32 %v3854, %v3863
  %v3868 = vmul.f32 %v3857, %v3863
  %v3869 = vadd.f32 %v3842, %v3865
  %v3870 = vadd.f32 %v3843, %v3866
  %v3871 = vadd.f32 %v3844, %v3867
  %v3872 = vadd.f32 %v3845, %v3868
  %3873 = vrot.lane.b32.xlu0 %v2968, 103
  %v3874 = vpop.permute.xlu0 %3873
  %3875 = vrot.lane.b32.xlu0 %v2969, 103
  %v3876 = vpop.permute.xlu0 %3875
  %3877 = vrot.lane.b32.xlu0 %v2970, 103
  %v3878 = vpop.permute.xlu0 %3877
  %3879 = vrot.lane.b32.xlu0 %v2971, 103
  %v3880 = vpop.permute.xlu0 %3879
  %v3881 = vsel %vm1002, %v3878, %v3880
  %v3882 = vsel %vm1002, %v3876, %v3878
  %v3883 = vsel %vm1002, %v3874, %v3876
  %v3884 = vsel %vm1002, %v3880, %v3874
  %s3885 = scalar_lea.vmem %s9, 136
  %v3886 = vld [vmem:[%s3885] sm:$0xf]
  %3888 = vset.pattern.permute.xlu0 0
  %3889 = vperm.xlu0 %3888, %v3886
  %v3890 = vpop.permute.xlu0 %3889
  %v3892 = vmul.f32 %v3883, %v3890
  %v3893 = vmul.f32 %v3882, %v3890
  %v3894 = vmul.f32 %v3881, %v3890
  %v3895 = vmul.f32 %v3884, %v3890
  %v3896 = vadd.f32 %v3869, %v3892
  %v3897 = vadd.f32 %v3870, %v3893
  %v3898 = vadd.f32 %v3871, %v3894
  %v3899 = vadd.f32 %v3872, %v3895
  %3900 = vrot.lane.b32.xlu0 %v2968, 87
  %v3901 = vpop.permute.xlu0 %3900
  %3902 = vrot.lane.b32.xlu0 %v2969, 87
  %v3903 = vpop.permute.xlu0 %3902
  %3904 = vrot.lane.b32.xlu0 %v2970, 87
  %v3905 = vpop.permute.xlu0 %3904
  %3906 = vrot.lane.b32.xlu0 %v2971, 87
  %v3907 = vpop.permute.xlu0 %3906
  %v3908 = vsel %vm1030, %v3905, %v3907
  %v3909 = vsel %vm1030, %v3903, %v3905
  %v3910 = vsel %vm1030, %v3901, %v3903
  %v3911 = vsel %vm1030, %v3907, %v3901
  %s3912 = scalar_lea.vmem %s9, 140
  %v3913 = vld [vmem:[%s3912] sm:$0xf]
  %3915 = vset.pattern.permute.xlu0 0
  %3916 = vperm.xlu0 %3915, %v3913
  %v3917 = vpop.permute.xlu0 %3916
  %v3919 = vmul.f32 %v3910, %v3917
  %v3920 = vmul.f32 %v3909, %v3917
  %v3921 = vmul.f32 %v3908, %v3917
  %v3922 = vmul.f32 %v3911, %v3917
  %v3923 = vadd.f32 %v3896, %v3919
  %v3924 = vadd.f32 %v3897, %v3920
  %v3925 = vadd.f32 %v3898, %v3921
  %v3926 = vadd.f32 %v3899, %v3922
  %3927 = vrot.lane.b32.xlu0 %v2968, 86
  %v3928 = vpop.permute.xlu0 %3927
  %3929 = vrot.lane.b32.xlu0 %v2969, 86
  %v3930 = vpop.permute.xlu0 %3929
  %3931 = vrot.lane.b32.xlu0 %v2970, 86
  %v3932 = vpop.permute.xlu0 %3931
  %3933 = vrot.lane.b32.xlu0 %v2971, 86
  %v3934 = vpop.permute.xlu0 %3933
  %v3935 = vsel %vm1058, %v3932, %v3934
  %v3936 = vsel %vm1058, %v3930, %v3932
  %v3937 = vsel %vm1058, %v3928, %v3930
  %v3938 = vsel %vm1058, %v3934, %v3928
  %s3939 = scalar_lea.vmem %s9, 144
  %v3940 = vld [vmem:[%s3939] sm:$0xf]
  %3942 = vset.pattern.permute.xlu0 0
  %3943 = vperm.xlu0 %3942, %v3940
  %v3944 = vpop.permute.xlu0 %3943
  %v3946 = vmul.f32 %v3937, %v3944
  %v3947 = vmul.f32 %v3936, %v3944
  %v3948 = vmul.f32 %v3935, %v3944
  %v3949 = vmul.f32 %v3938, %v3944
  %v3950 = vadd.f32 %v3923, %v3946
  %v3951 = vadd.f32 %v3924, %v3947
  %v3952 = vadd.f32 %v3925, %v3948
  %v3953 = vadd.f32 %v3926, %v3949
  %3954 = vrot.lane.b32.xlu0 %v2968, 85
  %v3955 = vpop.permute.xlu0 %3954
  %3956 = vrot.lane.b32.xlu0 %v2969, 85
  %v3957 = vpop.permute.xlu0 %3956
  %3958 = vrot.lane.b32.xlu0 %v2970, 85
  %v3959 = vpop.permute.xlu0 %3958
  %3960 = vrot.lane.b32.xlu0 %v2971, 85
  %v3961 = vpop.permute.xlu0 %3960
  %v3962 = vsel %vm1086, %v3959, %v3961
  %v3963 = vsel %vm1086, %v3957, %v3959
  %v3964 = vsel %vm1086, %v3955, %v3957
  %v3965 = vsel %vm1086, %v3961, %v3955
  %s3966 = scalar_lea.vmem %s9, 148
  %v3967 = vld [vmem:[%s3966] sm:$0xf]
  %3969 = vset.pattern.permute.xlu0 0
  %3970 = vperm.xlu0 %3969, %v3967
  %v3971 = vpop.permute.xlu0 %3970
  %v3973 = vmul.f32 %v3964, %v3971
  %v3974 = vmul.f32 %v3963, %v3971
  %v3975 = vmul.f32 %v3962, %v3971
  %v3976 = vmul.f32 %v3965, %v3971
  %v3977 = vadd.f32 %v3950, %v3973
  %v3978 = vadd.f32 %v3951, %v3974
  %v3979 = vadd.f32 %v3952, %v3975
  %v3980 = vadd.f32 %v3953, %v3976
  %3981 = vrot.lane.b32.xlu0 %v2968, 84
  %v3982 = vpop.permute.xlu0 %3981
  %3983 = vrot.lane.b32.xlu0 %v2969, 84
  %v3984 = vpop.permute.xlu0 %3983
  %3985 = vrot.lane.b32.xlu0 %v2970, 84
  %v3986 = vpop.permute.xlu0 %3985
  %3987 = vrot.lane.b32.xlu0 %v2971, 84
  %v3988 = vpop.permute.xlu0 %3987
  %v3989 = vsel %vm1114, %v3986, %v3988
  %v3990 = vsel %vm1114, %v3984, %v3986
  %v3991 = vsel %vm1114, %v3982, %v3984
  %v3992 = vsel %vm1114, %v3988, %v3982
  %s3993 = scalar_lea.vmem %s9, 152
  %v3994 = vld [vmem:[%s3993] sm:$0xf]
  %3996 = vset.pattern.permute.xlu0 0
  %3997 = vperm.xlu0 %3996, %v3994
  %v3998 = vpop.permute.xlu0 %3997
  %v4000 = vmul.f32 %v3991, %v3998
  %v4001 = vmul.f32 %v3990, %v3998
  %v4002 = vmul.f32 %v3989, %v3998
  %v4003 = vmul.f32 %v3992, %v3998
  %v4004 = vadd.f32 %v3977, %v4000
  %v4005 = vadd.f32 %v3978, %v4001
  %v4006 = vadd.f32 %v3979, %v4002
  %v4007 = vadd.f32 %v3980, %v4003
  %4008 = vrot.lane.b32.xlu0 %v2968, 83
  %v4009 = vpop.permute.xlu0 %4008
  %4010 = vrot.lane.b32.xlu0 %v2969, 83
  %v4011 = vpop.permute.xlu0 %4010
  %4012 = vrot.lane.b32.xlu0 %v2970, 83
  %v4013 = vpop.permute.xlu0 %4012
  %4014 = vrot.lane.b32.xlu0 %v2971, 83
  %v4015 = vpop.permute.xlu0 %4014
  %v4016 = vsel %vm1142, %v4013, %v4015
  %v4017 = vsel %vm1142, %v4011, %v4013
  %v4018 = vsel %vm1142, %v4009, %v4011
  %v4019 = vsel %vm1142, %v4015, %v4009
  %s4020 = scalar_lea.vmem %s9, 156
  %v4021 = vld [vmem:[%s4020] sm:$0xf]
  %4023 = vset.pattern.permute.xlu0 0
  %4024 = vperm.xlu0 %4023, %v4021
  %v4025 = vpop.permute.xlu0 %4024
  %v4027 = vmul.f32 %v4018, %v4025
  %v4028 = vmul.f32 %v4017, %v4025
  %v4029 = vmul.f32 %v4016, %v4025
  %v4030 = vmul.f32 %v4019, %v4025
  %v4031 = vadd.f32 %v4004, %v4027
  %v4032 = vadd.f32 %v4005, %v4028
  %v4033 = vadd.f32 %v4006, %v4029
  %v4034 = vadd.f32 %v4007, %v4030
  %4035 = vrot.lane.b32.xlu0 %v2968, 82
  %v4036 = vpop.permute.xlu0 %4035
  %4037 = vrot.lane.b32.xlu0 %v2969, 82
  %v4038 = vpop.permute.xlu0 %4037
  %4039 = vrot.lane.b32.xlu0 %v2970, 82
  %v4040 = vpop.permute.xlu0 %4039
  %4041 = vrot.lane.b32.xlu0 %v2971, 82
  %v4042 = vpop.permute.xlu0 %4041
  %v4043 = vsel %vm1170, %v4040, %v4042
  %v4044 = vsel %vm1170, %v4038, %v4040
  %v4045 = vsel %vm1170, %v4036, %v4038
  %v4046 = vsel %vm1170, %v4042, %v4036
  %s4047 = scalar_lea.vmem %s9, 160
  %v4048 = vld [vmem:[%s4047] sm:$0xf]
  %4050 = vset.pattern.permute.xlu0 0
  %4051 = vperm.xlu0 %4050, %v4048
  %v4052 = vpop.permute.xlu0 %4051
  %v4054 = vmul.f32 %v4045, %v4052
  %v4055 = vmul.f32 %v4044, %v4052
  %v4056 = vmul.f32 %v4043, %v4052
  %v4057 = vmul.f32 %v4046, %v4052
  %v4058 = vadd.f32 %v4031, %v4054
  %v4059 = vadd.f32 %v4032, %v4055
  %v4060 = vadd.f32 %v4033, %v4056
  %v4061 = vadd.f32 %v4034, %v4057
  %4062 = vrot.lane.b32.xlu0 %v2968, 81
  %v4063 = vpop.permute.xlu0 %4062
  %4064 = vrot.lane.b32.xlu0 %v2969, 81
  %v4065 = vpop.permute.xlu0 %4064
  %4066 = vrot.lane.b32.xlu0 %v2970, 81
  %v4067 = vpop.permute.xlu0 %4066
  %4068 = vrot.lane.b32.xlu0 %v2971, 81
  %v4069 = vpop.permute.xlu0 %4068
  %v4070 = vsel %vm1198, %v4067, %v4069
  %v4071 = vsel %vm1198, %v4065, %v4067
  %v4072 = vsel %vm1198, %v4063, %v4065
  %v4073 = vsel %vm1198, %v4069, %v4063
  %s4074 = scalar_lea.vmem %s9, 164
  %v4075 = vld [vmem:[%s4074] sm:$0xf]
  %4077 = vset.pattern.permute.xlu0 0
  %4078 = vperm.xlu0 %4077, %v4075
  %v4079 = vpop.permute.xlu0 %4078
  %v4081 = vmul.f32 %v4072, %v4079
  %v4082 = vmul.f32 %v4071, %v4079
  %v4083 = vmul.f32 %v4070, %v4079
  %v4084 = vmul.f32 %v4073, %v4079
  %v4085 = vadd.f32 %v4058, %v4081
  %v4086 = vadd.f32 %v4059, %v4082
  %v4087 = vadd.f32 %v4060, %v4083
  %v4088 = vadd.f32 %v4061, %v4084
  %s4089 = scalar_lea.vmem %s9, 168
  %v4090 = vld [vmem:[%s4089] sm:$0xf]
  %4092 = vset.pattern.permute.xlu0 0
  %4093 = vperm.xlu0 %4092, %v4090
  %v4094 = vpop.permute.xlu0 %4093
  %v4096 = vmul.f32 %v3085, %v4094
  %v4097 = vmul.f32 %v3084, %v4094
  %v4098 = vmul.f32 %v3083, %v4094
  %v4099 = vmul.f32 %v3086, %v4094
  %v4100 = vadd.f32 %v4085, %v4096
  %v4101 = vadd.f32 %v4086, %v4097
  %v4102 = vadd.f32 %v4087, %v4098
  %v4103 = vadd.f32 %v4088, %v4099
  %s4104 = scalar_lea.vmem %s9, 172
  %v4105 = vld [vmem:[%s4104] sm:$0xf]
  %4107 = vset.pattern.permute.xlu0 0
  %4108 = vperm.xlu0 %4107, %v4105
  %v4109 = vpop.permute.xlu0 %4108
  %v4111 = vmul.f32 %v3112, %v4109
  %v4112 = vmul.f32 %v3111, %v4109
  %v4113 = vmul.f32 %v3110, %v4109
  %v4114 = vmul.f32 %v3113, %v4109
  %v4115 = vadd.f32 %v4100, %v4111
  %v4116 = vadd.f32 %v4101, %v4112
  %v4117 = vadd.f32 %v4102, %v4113
  %v4118 = vadd.f32 %v4103, %v4114
  %s4119 = scalar_lea.vmem %s9, 176
  %v4120 = vld [vmem:[%s4119] sm:$0xf]
  %4122 = vset.pattern.permute.xlu0 0
  %4123 = vperm.xlu0 %4122, %v4120
  %v4124 = vpop.permute.xlu0 %4123
  %v4126 = vmul.f32 %v3139, %v4124
  %v4127 = vmul.f32 %v3138, %v4124
  %v4128 = vmul.f32 %v3137, %v4124
  %v4129 = vmul.f32 %v3140, %v4124
  %v4130 = vadd.f32 %v4115, %v4126
  %v4131 = vadd.f32 %v4116, %v4127
  %v4132 = vadd.f32 %v4117, %v4128
  %v4133 = vadd.f32 %v4118, %v4129
  %4134 = vrot.lane.b32.xlu0 %v2968, 62
  %v4135 = vpop.permute.xlu0 %4134
  %4136 = vrot.lane.b32.xlu0 %v2969, 62
  %v4137 = vpop.permute.xlu0 %4136
  %4138 = vrot.lane.b32.xlu0 %v2970, 62
  %v4139 = vpop.permute.xlu0 %4138
  %4140 = vrot.lane.b32.xlu0 %v2971, 62
  %v4141 = vpop.permute.xlu0 %4140
  %v4142 = vsel %vm1271, %v4139, %v4141
  %v4143 = vsel %vm1271, %v4137, %v4139
  %v4144 = vsel %vm1271, %v4135, %v4137
  %v4145 = vsel %vm1271, %v4141, %v4135
  %s4146 = scalar_lea.vmem %s9, 180
  %v4147 = vld [vmem:[%s4146] sm:$0xf]
  %4149 = vset.pattern.permute.xlu0 0
  %4150 = vperm.xlu0 %4149, %v4147
  %v4151 = vpop.permute.xlu0 %4150
  %v4153 = vmul.f32 %v4144, %v4151
  %v4154 = vmul.f32 %v4143, %v4151
  %v4155 = vmul.f32 %v4142, %v4151
  %v4156 = vmul.f32 %v4145, %v4151
  %v4157 = vadd.f32 %v4130, %v4153
  %v4158 = vadd.f32 %v4131, %v4154
  %v4159 = vadd.f32 %v4132, %v4155
  %v4160 = vadd.f32 %v4133, %v4156
  %4161 = vrot.lane.b32.xlu0 %v2968, 61
  %v4162 = vpop.permute.xlu0 %4161
  %4163 = vrot.lane.b32.xlu0 %v2969, 61
  %v4164 = vpop.permute.xlu0 %4163
  %4165 = vrot.lane.b32.xlu0 %v2970, 61
  %v4166 = vpop.permute.xlu0 %4165
  %4167 = vrot.lane.b32.xlu0 %v2971, 61
  %v4168 = vpop.permute.xlu0 %4167
  %v4169 = vsel %vm1299, %v4166, %v4168
  %v4170 = vsel %vm1299, %v4164, %v4166
  %v4171 = vsel %vm1299, %v4162, %v4164
  %v4172 = vsel %vm1299, %v4168, %v4162
  %s4173 = scalar_lea.vmem %s9, 184
  %v4174 = vld [vmem:[%s4173] sm:$0xf]
  %4176 = vset.pattern.permute.xlu0 0
  %4177 = vperm.xlu0 %4176, %v4174
  %v4178 = vpop.permute.xlu0 %4177
  %v4180 = vmul.f32 %v4171, %v4178
  %v4181 = vmul.f32 %v4170, %v4178
  %v4182 = vmul.f32 %v4169, %v4178
  %v4183 = vmul.f32 %v4172, %v4178
  %v4184 = vadd.f32 %v4157, %v4180
  %v4185 = vadd.f32 %v4158, %v4181
  %v4186 = vadd.f32 %v4159, %v4182
  %v4187 = vadd.f32 %v4160, %v4183
  %4188 = vrot.lane.b32.xlu0 %v2968, 60
  %v4189 = vpop.permute.xlu0 %4188
  %4190 = vrot.lane.b32.xlu0 %v2969, 60
  %v4191 = vpop.permute.xlu0 %4190
  %4192 = vrot.lane.b32.xlu0 %v2970, 60
  %v4193 = vpop.permute.xlu0 %4192
  %4194 = vrot.lane.b32.xlu0 %v2971, 60
  %v4195 = vpop.permute.xlu0 %4194
  %v4196 = vsel %vm1327, %v4193, %v4195
  %v4197 = vsel %vm1327, %v4191, %v4193
  %v4198 = vsel %vm1327, %v4189, %v4191
  %v4199 = vsel %vm1327, %v4195, %v4189
  %s4200 = scalar_lea.vmem %s9, 188
  %v4201 = vld [vmem:[%s4200] sm:$0xf]
  %4203 = vset.pattern.permute.xlu0 0
  %4204 = vperm.xlu0 %4203, %v4201
  %v4205 = vpop.permute.xlu0 %4204
  %v4207 = vmul.f32 %v4198, %v4205
  %v4208 = vmul.f32 %v4197, %v4205
  %v4209 = vmul.f32 %v4196, %v4205
  %v4210 = vmul.f32 %v4199, %v4205
  %v4211 = vadd.f32 %v4184, %v4207
  %v4212 = vadd.f32 %v4185, %v4208
  %v4213 = vadd.f32 %v4186, %v4209
  %v4214 = vadd.f32 %v4187, %v4210
  %4215 = vrot.lane.b32.xlu0 %v2968, 59
  %v4216 = vpop.permute.xlu0 %4215
  %4217 = vrot.lane.b32.xlu0 %v2969, 59
  %v4218 = vpop.permute.xlu0 %4217
  %4219 = vrot.lane.b32.xlu0 %v2970, 59
  %v4220 = vpop.permute.xlu0 %4219
  %4221 = vrot.lane.b32.xlu0 %v2971, 59
  %v4222 = vpop.permute.xlu0 %4221
  %v4223 = vsel %vm1355, %v4220, %v4222
  %v4224 = vsel %vm1355, %v4218, %v4220
  %v4225 = vsel %vm1355, %v4216, %v4218
  %v4226 = vsel %vm1355, %v4222, %v4216
  %s4227 = scalar_lea.vmem %s9, 192
  %v4228 = vld [vmem:[%s4227] sm:$0xf]
  %4230 = vset.pattern.permute.xlu0 0
  %4231 = vperm.xlu0 %4230, %v4228
  %v4232 = vpop.permute.xlu0 %4231
  %v4234 = vmul.f32 %v4225, %v4232
  %v4235 = vmul.f32 %v4224, %v4232
  %v4236 = vmul.f32 %v4223, %v4232
  %v4237 = vmul.f32 %v4226, %v4232
  %v4238 = vadd.f32 %v4211, %v4234
  %v4239 = vadd.f32 %v4212, %v4235
  %v4240 = vadd.f32 %v4213, %v4236
  %v4241 = vadd.f32 %v4214, %v4237
  %4242 = vmatprep.subr.mxu0 0.0
  %4243 = vmatpush1.msra.mxu0 0.0
  %4244 = vmatprep.subr.mxu0 0.0
  %4245 = vmatpush1.msra.mxu0 0.0
  %4246 = vmatprep.subr.mxu0 0.0
  %4247 = vmatpush1.msra.mxu0 0.0
  %4248 = vmatprep.subr.mxu0 0.0
  %4249 = vmatpush1.msra.mxu0 0.0
  %4250 = vmatprep.subr.mxu0 0.0
  %4251 = vmatpush1.msra.mxu0 0.0
  %4252 = vmatprep.subr.mxu0 0.0
  %4253 = vmatpush1.msra.mxu0 0.0
  %4254 = vmatprep.subr.mxu0 0.0
  %4255 = vmatpush1.msra.mxu0 0.0
  %4256 = vmatprep.subr.mxu0 0.0
  %4257 = vmatpush1.msra.mxu0 0.0
  %4258 = vmatprep.subr.mxu0 0.0
  %4259 = vmatpush1.msra.mxu0 0.0
  %4260 = vmatprep.subr.mxu0 0.0
  %4261 = vmatpush1.msra.mxu0 0.0
  %4262 = vmatprep.subr.mxu0 0.0
  %4263 = vmatpush1.msra.mxu0 0.0
  %4264 = vmatprep.subr.mxu0 0.0
  %4265 = vmatpush1.msra.mxu0 0.0
  %4266 = vmatprep.subr.mxu0 0.0
  %4267 = vmatpush1.msra.mxu0 0.0
  %4268 = vmatprep.subr.mxu0 0.0
  %4269 = vmatpush1.msra.mxu0 0.0
  %4270 = vmatprep.subr.mxu0 0.0
  %4271 = vmatpush1.msra.mxu0 0.0
  %4272 = vmatprep.subr.mxu0 %v2305
  %4273 = vmatpush1.msra.mxu0 %v2304
  %4274 = vmatprep.subr.mxu0 0.0
  %4275 = vmatpush2.msra.mxu0 0.0
  %4276 = vmatprep.subr.mxu0 0.0
  %4277 = vmatpush2.msra.mxu0 0.0
  %4278 = vmatprep.subr.mxu0 0.0
  %4279 = vmatpush2.msra.mxu0 0.0
  %4280 = vmatprep.subr.mxu0 0.0
  %4281 = vmatpush2.msra.mxu0 0.0
  %4282 = vmatprep.subr.mxu0 0.0
  %4283 = vmatpush2.msra.mxu0 0.0
  %4284 = vmatprep.subr.mxu0 0.0
  %4285 = vmatpush2.msra.mxu0 0.0
  %4286 = vmatprep.subr.mxu0 0.0
  %4287 = vmatpush2.msra.mxu0 0.0
  %4288 = vmatprep.subr.mxu0 0.0
  %4289 = vmatpush2.msra.mxu0 0.0
  %4290 = vmatprep.subr.mxu0 0.0
  %4291 = vmatpush2.msra.mxu0 0.0
  %4292 = vmatprep.subr.mxu0 0.0
  %4293 = vmatpush2.msra.mxu0 0.0
  %4294 = vmatprep.subr.mxu0 0.0
  %4295 = vmatpush2.msra.mxu0 0.0
  %4296 = vmatprep.subr.mxu0 0.0
  %4297 = vmatpush2.msra.mxu0 0.0
  %4298 = vmatprep.subr.mxu0 0.0
  %4299 = vmatpush2.msra.mxu0 0.0
  %4300 = vmatprep.subr.mxu0 0.0
  %4301 = vmatpush2.msra.mxu0 0.0
  %4302 = vmatprep.subr.mxu0 0.0
  %4303 = vmatpush2.msra.mxu0 0.0
  %4304 = vmatprep.subr.mxu0 0.0
  %4305 = vmatpush2.msra.mxu0 0.0
  %4306 = vmatprep.mubr.f32.mxu0 0.0
  %4307 = vmatmul.mubr.f32.gmra.mxu0 %v2612
  %v4308 = vpop.f32.mrf.mxu0
  %v4309 = vadd.f32 %v2594, %v4308
  %v4310 = vpop.f32.mrf.mxu0
  %v4311 = vadd.f32 %v2594, %v4310
  %4312 = vmatprep.mubr.f32.mxu0 0.0
  %4313 = vmatmul.mubr.f32.gmra.mxu0 %v2615
  %v4314 = vpop.f32.mrf.mxu0
  %v4315 = vadd.f32 %v2599, %v4314
  %v4316 = vpop.f32.mrf.mxu0
  %v4317 = vadd.f32 %v2599, %v4316
  %4318 = vmatprep.mubr.f32.mxu0 0.0
  %4319 = vmatmul.mubr.f32.gmra.mxu0 %v2618
  %v4320 = vpop.f32.mrf.mxu0
  %v4321 = vadd.f32 %v2604, %v4320
  %v4322 = vpop.f32.mrf.mxu0
  %v4323 = vadd.f32 %v2604, %v4322
  %4324 = vmatprep.mubr.f32.mxu0 0.0
  %4325 = vmatmul.mubr.f32.gmra.mxu0 %v2621
  %v4326 = vpop.f32.mrf.mxu0
  %v4327 = vadd.f32 %v2609, %v4326
  %v4328 = vpop.f32.mrf.mxu0
  %v4329 = vadd.f32 %v2609, %v4328
  %4330 = vdwg.mxu0
  %4331 = vmatprep.subr.mxu0 0.0
  %4332 = vmatpush1.msra.mxu0 0.0
  %4333 = vmatprep.subr.mxu0 0.0
  %4334 = vmatpush1.msra.mxu0 0.0
  %4335 = vmatprep.subr.mxu0 0.0
  %4336 = vmatpush1.msra.mxu0 0.0
  %4337 = vmatprep.subr.mxu0 0.0
  %4338 = vmatpush1.msra.mxu0 0.0
  %4339 = vmatprep.subr.mxu0 0.0
  %4340 = vmatpush1.msra.mxu0 0.0
  %4341 = vmatprep.subr.mxu0 0.0
  %4342 = vmatpush1.msra.mxu0 0.0
  %4343 = vmatprep.subr.mxu0 0.0
  %4344 = vmatpush1.msra.mxu0 0.0
  %4345 = vmatprep.subr.mxu0 0.0
  %4346 = vmatpush1.msra.mxu0 0.0
  %4347 = vmatprep.subr.mxu0 0.0
  %4348 = vmatpush1.msra.mxu0 0.0
  %4349 = vmatprep.subr.mxu0 0.0
  %4350 = vmatpush1.msra.mxu0 0.0
  %4351 = vmatprep.subr.mxu0 0.0
  %4352 = vmatpush1.msra.mxu0 0.0
  %4353 = vmatprep.subr.mxu0 0.0
  %4354 = vmatpush1.msra.mxu0 0.0
  %4355 = vmatprep.subr.mxu0 0.0
  %4356 = vmatpush1.msra.mxu0 0.0
  %4357 = vmatprep.subr.mxu0 0.0
  %4358 = vmatpush1.msra.mxu0 0.0
  %4359 = vmatprep.subr.mxu0 0.0
  %4360 = vmatpush1.msra.mxu0 0.0
  %4361 = vmatprep.subr.mxu0 %v2307
  %4362 = vmatpush1.msra.mxu0 %v2306
  %4363 = vmatprep.subr.mxu0 0.0
  %4364 = vmatpush2.msra.mxu0 0.0
  %4365 = vmatprep.subr.mxu0 0.0
  %4366 = vmatpush2.msra.mxu0 0.0
  %4367 = vmatprep.subr.mxu0 0.0
  %4368 = vmatpush2.msra.mxu0 0.0
  %4369 = vmatprep.subr.mxu0 0.0
  %4370 = vmatpush2.msra.mxu0 0.0
  %4371 = vmatprep.subr.mxu0 0.0
  %4372 = vmatpush2.msra.mxu0 0.0
  %4373 = vmatprep.subr.mxu0 0.0
  %4374 = vmatpush2.msra.mxu0 0.0
  %4375 = vmatprep.subr.mxu0 0.0
  %4376 = vmatpush2.msra.mxu0 0.0
  %4377 = vmatprep.subr.mxu0 0.0
  %4378 = vmatpush2.msra.mxu0 0.0
  %4379 = vmatprep.subr.mxu0 0.0
  %4380 = vmatpush2.msra.mxu0 0.0
  %4381 = vmatprep.subr.mxu0 0.0
  %4382 = vmatpush2.msra.mxu0 0.0
  %4383 = vmatprep.subr.mxu0 0.0
  %4384 = vmatpush2.msra.mxu0 0.0
  %4385 = vmatprep.subr.mxu0 0.0
  %4386 = vmatpush2.msra.mxu0 0.0
  %4387 = vmatprep.subr.mxu0 0.0
  %4388 = vmatpush2.msra.mxu0 0.0
  %4389 = vmatprep.subr.mxu0 0.0
  %4390 = vmatpush2.msra.mxu0 0.0
  %4391 = vmatprep.subr.mxu0 0.0
  %4392 = vmatpush2.msra.mxu0 0.0
  %4393 = vmatprep.subr.mxu0 0.0
  %4394 = vmatpush2.msra.mxu0 0.0
  %4395 = vmatprep.mubr.f32.mxu0 0.0
  %4396 = vmatmul.mubr.f32.gmra.mxu0 %v2612
  %v4397 = vpop.f32.mrf.mxu0
  %v4398 = vadd.f32 %v2594, %v4397
  %v4399 = vpop.f32.mrf.mxu0
  %v4400 = vadd.f32 %v2594, %v4399
  %4401 = vmatprep.mubr.f32.mxu0 0.0
  %4402 = vmatmul.mubr.f32.gmra.mxu0 %v2615
  %v4403 = vpop.f32.mrf.mxu0
  %v4404 = vadd.f32 %v2599, %v4403
  %v4405 = vpop.f32.mrf.mxu0
  %v4406 = vadd.f32 %v2599, %v4405
  %4407 = vmatprep.mubr.f32.mxu0 0.0
  %4408 = vmatmul.mubr.f32.gmra.mxu0 %v2618
  %v4409 = vpop.f32.mrf.mxu0
  %v4410 = vadd.f32 %v2604, %v4409
  %v4411 = vpop.f32.mrf.mxu0
  %v4412 = vadd.f32 %v2604, %v4411
  %4413 = vmatprep.mubr.f32.mxu0 0.0
  %4414 = vmatmul.mubr.f32.gmra.mxu0 %v2621
  %v4415 = vpop.f32.mrf.mxu0
  %v4416 = vadd.f32 %v2609, %v4415
  %v4417 = vpop.f32.mrf.mxu0
  %v4418 = vadd.f32 %v2609, %v4417
  %4419 = vdwg.mxu0
  %v4420 = vmax.f32 %v4309, 0.0
  %v4421 = vmax.f32 %v4311, 0.0
  %v4422 = vmax.f32 %v4398, 0.0
  %v4423 = vmax.f32 %v4400, 0.0
  %v4424 = vmax.f32 %v4315, 0.0
  %v4425 = vmax.f32 %v4317, 0.0
  %v4426 = vmax.f32 %v4404, 0.0
  %v4427 = vmax.f32 %v4406, 0.0
  %v4428 = vmax.f32 %v4321, 0.0
  %v4429 = vmax.f32 %v4323, 0.0
  %v4430 = vmax.f32 %v4410, 0.0
  %v4431 = vmax.f32 %v4412, 0.0
  %v4432 = vmax.f32 %v4327, 0.0
  %v4433 = vmax.f32 %v4329, 0.0
  %v4434 = vmax.f32 %v4416, 0.0
  %v4435 = vmax.f32 %v4418, 0.0
  %4436 = vmatprep.subr.mxu0 0.0
  %4437 = vmatpush1.msra.mxu0 0.0
  %4438 = vmatprep.subr.mxu0 0.0
  %4439 = vmatpush1.msra.mxu0 0.0
  %4440 = vmatprep.subr.mxu0 0.0
  %4441 = vmatpush1.msra.mxu0 0.0
  %4442 = vmatprep.subr.mxu0 0.0
  %4443 = vmatpush1.msra.mxu0 0.0
  %4444 = vmatprep.subr.mxu0 0.0
  %4445 = vmatpush1.msra.mxu0 0.0
  %4446 = vmatprep.subr.mxu0 0.0
  %4447 = vmatpush1.msra.mxu0 0.0
  %4448 = vmatprep.subr.mxu0 0.0
  %4449 = vmatpush1.msra.mxu0 0.0
  %4450 = vmatprep.subr.mxu0 0.0
  %4451 = vmatpush1.msra.mxu0 0.0
  %4452 = vmatprep.subr.mxu0 0.0
  %4453 = vmatpush1.msra.mxu0 0.0
  %4454 = vmatprep.subr.mxu0 0.0
  %4455 = vmatpush1.msra.mxu0 0.0
  %4456 = vmatprep.subr.mxu0 0.0
  %4457 = vmatpush1.msra.mxu0 0.0
  %4458 = vmatprep.subr.mxu0 0.0
  %4459 = vmatpush1.msra.mxu0 0.0
  %4460 = vmatprep.subr.mxu0 %v4433
  %4461 = vmatpush1.msra.mxu0 %v4432
  %4462 = vmatprep.subr.mxu0 %v4429
  %4463 = vmatpush1.msra.mxu0 %v4428
  %4464 = vmatprep.subr.mxu0 %v4425
  %4465 = vmatpush1.msra.mxu0 %v4424
  %4466 = vmatprep.subr.mxu0 %v4421
  %4467 = vmatpush1.msra.mxu0 %v4420
  %4468 = vmatprep.subr.mxu0 0.0
  %4469 = vmatpush2.msra.mxu0 0.0
  %4470 = vmatprep.subr.mxu0 0.0
  %4471 = vmatpush2.msra.mxu0 0.0
  %4472 = vmatprep.subr.mxu0 0.0
  %4473 = vmatpush2.msra.mxu0 0.0
  %4474 = vmatprep.subr.mxu0 0.0
  %4475 = vmatpush2.msra.mxu0 0.0
  %4476 = vmatprep.subr.mxu0 0.0
  %4477 = vmatpush2.msra.mxu0 0.0
  %4478 = vmatprep.subr.mxu0 0.0
  %4479 = vmatpush2.msra.mxu0 0.0
  %4480 = vmatprep.subr.mxu0 0.0
  %4481 = vmatpush2.msra.mxu0 0.0
  %4482 = vmatprep.subr.mxu0 0.0
  %4483 = vmatpush2.msra.mxu0 0.0
  %4484 = vmatprep.subr.mxu0 0.0
  %4485 = vmatpush2.msra.mxu0 0.0
  %4486 = vmatprep.subr.mxu0 0.0
  %4487 = vmatpush2.msra.mxu0 0.0
  %4488 = vmatprep.subr.mxu0 0.0
  %4489 = vmatpush2.msra.mxu0 0.0
  %4490 = vmatprep.subr.mxu0 0.0
  %4491 = vmatpush2.msra.mxu0 0.0
  %4492 = vmatprep.subr.mxu0 0.0
  %4493 = vmatpush2.msra.mxu0 0.0
  %4494 = vmatprep.subr.mxu0 0.0
  %4495 = vmatpush2.msra.mxu0 0.0
  %4496 = vmatprep.subr.mxu0 0.0
  %4497 = vmatpush2.msra.mxu0 0.0
  %4498 = vmatprep.subr.mxu0 0.0
  %4499 = vmatpush2.msra.mxu0 0.0
  %4500 = vmatprep.mubr.f32.mxu0 0.0
  %4501 = vmatmul.mubr.f32.gmra.mxu0 %v2824
  %v4502 = vpop.f32.mrf.mxu0
  %v4503 = vadd.f32 %v2820, %v4502
  %v4504 = vpop.f32.mrf.mxu0
  %v4505 = vadd.f32 %v2820, %v4504
  %4506 = vdwg.mxu0
  %4507 = vmatprep.subr.mxu0 0.0
  %4508 = vmatpush1.msra.mxu0 0.0
  %4509 = vmatprep.subr.mxu0 0.0
  %4510 = vmatpush1.msra.mxu0 0.0
  %4511 = vmatprep.subr.mxu0 0.0
  %4512 = vmatpush1.msra.mxu0 0.0
  %4513 = vmatprep.subr.mxu0 0.0
  %4514 = vmatpush1.msra.mxu0 0.0
  %4515 = vmatprep.subr.mxu0 0.0
  %4516 = vmatpush1.msra.mxu0 0.0
  %4517 = vmatprep.subr.mxu0 0.0
  %4518 = vmatpush1.msra.mxu0 0.0
  %4519 = vmatprep.subr.mxu0 0.0
  %4520 = vmatpush1.msra.mxu0 0.0
  %4521 = vmatprep.subr.mxu0 0.0
  %4522 = vmatpush1.msra.mxu0 0.0
  %4523 = vmatprep.subr.mxu0 0.0
  %4524 = vmatpush1.msra.mxu0 0.0
  %4525 = vmatprep.subr.mxu0 0.0
  %4526 = vmatpush1.msra.mxu0 0.0
  %4527 = vmatprep.subr.mxu0 0.0
  %4528 = vmatpush1.msra.mxu0 0.0
  %4529 = vmatprep.subr.mxu0 0.0
  %4530 = vmatpush1.msra.mxu0 0.0
  %4531 = vmatprep.subr.mxu0 %v4435
  %4532 = vmatpush1.msra.mxu0 %v4434
  %4533 = vmatprep.subr.mxu0 %v4431
  %4534 = vmatpush1.msra.mxu0 %v4430
  %4535 = vmatprep.subr.mxu0 %v4427
  %4536 = vmatpush1.msra.mxu0 %v4426
  %4537 = vmatprep.subr.mxu0 %v4423
  %4538 = vmatpush1.msra.mxu0 %v4422
  %4539 = vmatprep.subr.mxu0 0.0
  %4540 = vmatpush2.msra.mxu0 0.0
  %4541 = vmatprep.subr.mxu0 0.0
  %4542 = vmatpush2.msra.mxu0 0.0
  %4543 = vmatprep.subr.mxu0 0.0
  %4544 = vmatpush2.msra.mxu0 0.0
  %4545 = vmatprep.subr.mxu0 0.0
  %4546 = vmatpush2.msra.mxu0 0.0
  %4547 = vmatprep.subr.mxu0 0.0
  %4548 = vmatpush2.msra.mxu0 0.0
  %4549 = vmatprep.subr.mxu0 0.0
  %4550 = vmatpush2.msra.mxu0 0.0
  %4551 = vmatprep.subr.mxu0 0.0
  %4552 = vmatpush2.msra.mxu0 0.0
  %4553 = vmatprep.subr.mxu0 0.0
  %4554 = vmatpush2.msra.mxu0 0.0
  %4555 = vmatprep.subr.mxu0 0.0
  %4556 = vmatpush2.msra.mxu0 0.0
  %4557 = vmatprep.subr.mxu0 0.0
  %4558 = vmatpush2.msra.mxu0 0.0
  %4559 = vmatprep.subr.mxu0 0.0
  %4560 = vmatpush2.msra.mxu0 0.0
  %4561 = vmatprep.subr.mxu0 0.0
  %4562 = vmatpush2.msra.mxu0 0.0
  %4563 = vmatprep.subr.mxu0 0.0
  %4564 = vmatpush2.msra.mxu0 0.0
  %4565 = vmatprep.subr.mxu0 0.0
  %4566 = vmatpush2.msra.mxu0 0.0
  %4567 = vmatprep.subr.mxu0 0.0
  %4568 = vmatpush2.msra.mxu0 0.0
  %4569 = vmatprep.subr.mxu0 0.0
  %4570 = vmatpush2.msra.mxu0 0.0
  %4571 = vmatprep.mubr.f32.mxu0 0.0
  %4572 = vmatmul.mubr.f32.gmra.mxu0 %v2824
  %v4573 = vpop.f32.mrf.mxu0
  %v4574 = vadd.f32 %v2820, %v4573
  %v4575 = vpop.f32.mrf.mxu0
  %v4576 = vadd.f32 %v2820, %v4575
  %4577 = vdwg.mxu0
  %v4578 = vmul.f32 %v4503, %v2316
  %v4579 = vmul.f32 %v4505, %v2320
  %v4580 = vmul.f32 %v4574, %v2324
  %v4581 = vmul.f32 %v4576, %v2328
  %4582 = vrot.lane.b32.xlu0 %v4578, 69
  %v4583 = vpop.permute.xlu0 %4582
  %4584 = vrot.lane.b32.xlu0 %v4579, 69
  %v4585 = vpop.permute.xlu0 %4584
  %4586 = vrot.lane.b32.xlu0 %v4580, 69
  %v4587 = vpop.permute.xlu0 %4586
  %4588 = vrot.lane.b32.xlu0 %v4581, 69
  %v4589 = vpop.permute.xlu0 %4588
  %v4590 = vsel %vm68, %v4587, %v4589
  %v4591 = vsel %vm68, %v4585, %v4587
  %v4592 = vsel %vm68, %v4583, %v4585
  %v4593 = vsel %vm68, %v4589, %v4583
  %v4594 = vmul.f32 %v4593, %v2988
  %v4595 = vmul.f32 %v4592, %v2988
  %v4596 = vmul.f32 %v4591, %v2988
  %v4597 = vmul.f32 %v4590, %v2988
  %4598 = vrot.lane.b32.xlu0 %v4578, 68
  %v4599 = vpop.permute.xlu0 %4598
  %4600 = vrot.lane.b32.xlu0 %v4579, 68
  %v4601 = vpop.permute.xlu0 %4600
  %4602 = vrot.lane.b32.xlu0 %v4580, 68
  %v4603 = vpop.permute.xlu0 %4602
  %4604 = vrot.lane.b32.xlu0 %v4581, 68
  %v4605 = vpop.permute.xlu0 %4604
  %v4606 = vsel %vm91, %v4603, %v4605
  %v4607 = vsel %vm91, %v4601, %v4603
  %v4608 = vsel %vm91, %v4599, %v4601
  %v4609 = vsel %vm91, %v4605, %v4599
  %v4610 = vmul.f32 %v4609, %v3011
  %v4611 = vmul.f32 %v4608, %v3011
  %v4612 = vmul.f32 %v4607, %v3011
  %v4613 = vmul.f32 %v4606, %v3011
  %v4614 = vadd.f32 %v4594, %v4610
  %v4615 = vadd.f32 %v4595, %v4611
  %v4616 = vadd.f32 %v4596, %v4612
  %v4617 = vadd.f32 %v4597, %v4613
  %4618 = vrot.lane.b32.xlu0 %v4578, 67
  %v4619 = vpop.permute.xlu0 %4618
  %4620 = vrot.lane.b32.xlu0 %v4579, 67
  %v4621 = vpop.permute.xlu0 %4620
  %4622 = vrot.lane.b32.xlu0 %v4580, 67
  %v4623 = vpop.permute.xlu0 %4622
  %4624 = vrot.lane.b32.xlu0 %v4581, 67
  %v4625 = vpop.permute.xlu0 %4624
  %v4626 = vsel %vm119, %v4623, %v4625
  %v4627 = vsel %vm119, %v4621, %v4623
  %v4628 = vsel %vm119, %v4619, %v4621
  %v4629 = vsel %vm119, %v4625, %v4619
  %v4630 = vmul.f32 %v4629, %v3038
  %v4631 = vmul.f32 %v4628, %v3038
  %v4632 = vmul.f32 %v4627, %v3038
  %v4633 = vmul.f32 %v4626, %v3038
  %v4634 = vadd.f32 %v4614, %v4630
  %v4635 = vadd.f32 %v4615, %v4631
  %v4636 = vadd.f32 %v4616, %v4632
  %v4637 = vadd.f32 %v4617, %v4633
  %4638 = vrot.lane.b32.xlu0 %v4578, 66
  %v4639 = vpop.permute.xlu0 %4638
  %4640 = vrot.lane.b32.xlu0 %v4579, 66
  %v4641 = vpop.permute.xlu0 %4640
  %4642 = vrot.lane.b32.xlu0 %v4580, 66
  %v4643 = vpop.permute.xlu0 %4642
  %4644 = vrot.lane.b32.xlu0 %v4581, 66
  %v4645 = vpop.permute.xlu0 %4644
  %v4646 = vsel %vm147, %v4643, %v4645
  %v4647 = vsel %vm147, %v4641, %v4643
  %v4648 = vsel %vm147, %v4639, %v4641
  %v4649 = vsel %vm147, %v4645, %v4639
  %v4650 = vmul.f32 %v4649, %v3065
  %v4651 = vmul.f32 %v4648, %v3065
  %v4652 = vmul.f32 %v4647, %v3065
  %v4653 = vmul.f32 %v4646, %v3065
  %v4654 = vadd.f32 %v4634, %v4650
  %v4655 = vadd.f32 %v4635, %v4651
  %v4656 = vadd.f32 %v4636, %v4652
  %v4657 = vadd.f32 %v4637, %v4653
  %4658 = vrot.lane.b32.xlu0 %v4578, 65
  %v4659 = vpop.permute.xlu0 %4658
  %4660 = vrot.lane.b32.xlu0 %v4579, 65
  %v4661 = vpop.permute.xlu0 %4660
  %4662 = vrot.lane.b32.xlu0 %v4580, 65
  %v4663 = vpop.permute.xlu0 %4662
  %4664 = vrot.lane.b32.xlu0 %v4581, 65
  %v4665 = vpop.permute.xlu0 %4664
  %v4666 = vsel %vm175, %v4663, %v4665
  %v4667 = vsel %vm175, %v4661, %v4663
  %v4668 = vsel %vm175, %v4659, %v4661
  %v4669 = vsel %vm175, %v4665, %v4659
  %v4670 = vmul.f32 %v4669, %v3092
  %v4671 = vmul.f32 %v4668, %v3092
  %v4672 = vmul.f32 %v4667, %v3092
  %v4673 = vmul.f32 %v4666, %v3092
  %v4674 = vadd.f32 %v4654, %v4670
  %v4675 = vadd.f32 %v4655, %v4671
  %v4676 = vadd.f32 %v4656, %v4672
  %v4677 = vadd.f32 %v4657, %v4673
  %4678 = vrot.lane.b32.xlu0 %v4578, 64
  %v4679 = vpop.permute.xlu0 %4678
  %4680 = vrot.lane.b32.xlu0 %v4579, 64
  %v4681 = vpop.permute.xlu0 %4680
  %4682 = vrot.lane.b32.xlu0 %v4580, 64
  %v4683 = vpop.permute.xlu0 %4682
  %4684 = vrot.lane.b32.xlu0 %v4581, 64
  %v4685 = vpop.permute.xlu0 %4684
  %v4686 = vsel %vm203, %v4683, %v4685
  %v4687 = vsel %vm203, %v4681, %v4683
  %v4688 = vsel %vm203, %v4679, %v4681
  %v4689 = vsel %vm203, %v4685, %v4679
  %v4690 = vmul.f32 %v4689, %v3119
  %v4691 = vmul.f32 %v4688, %v3119
  %v4692 = vmul.f32 %v4687, %v3119
  %v4693 = vmul.f32 %v4686, %v3119
  %v4694 = vadd.f32 %v4674, %v4690
  %v4695 = vadd.f32 %v4675, %v4691
  %v4696 = vadd.f32 %v4676, %v4692
  %v4697 = vadd.f32 %v4677, %v4693
  %4698 = vrot.lane.b32.xlu0 %v4578, 63
  %v4699 = vpop.permute.xlu0 %4698
  %4700 = vrot.lane.b32.xlu0 %v4579, 63
  %v4701 = vpop.permute.xlu0 %4700
  %4702 = vrot.lane.b32.xlu0 %v4580, 63
  %v4703 = vpop.permute.xlu0 %4702
  %4704 = vrot.lane.b32.xlu0 %v4581, 63
  %v4705 = vpop.permute.xlu0 %4704
  %v4706 = vsel %vm231, %v4703, %v4705
  %v4707 = vsel %vm231, %v4701, %v4703
  %v4708 = vsel %vm231, %v4699, %v4701
  %v4709 = vsel %vm231, %v4705, %v4699
  %v4710 = vmul.f32 %v4709, %v3146
  %v4711 = vmul.f32 %v4708, %v3146
  %v4712 = vmul.f32 %v4707, %v3146
  %v4713 = vmul.f32 %v4706, %v3146
  %v4714 = vadd.f32 %v4694, %v4710
  %v4715 = vadd.f32 %v4695, %v4711
  %v4716 = vadd.f32 %v4696, %v4712
  %v4717 = vadd.f32 %v4697, %v4713
  %4718 = vrot.lane.b32.xlu0 %v4578, 47
  %v4719 = vpop.permute.xlu0 %4718
  %4720 = vrot.lane.b32.xlu0 %v4579, 47
  %v4721 = vpop.permute.xlu0 %4720
  %4722 = vrot.lane.b32.xlu0 %v4580, 47
  %v4723 = vpop.permute.xlu0 %4722
  %4724 = vrot.lane.b32.xlu0 %v4581, 47
  %v4725 = vpop.permute.xlu0 %4724
  %v4726 = vsel %vm259, %v4723, %v4725
  %v4727 = vsel %vm259, %v4721, %v4723
  %v4728 = vsel %vm259, %v4719, %v4721
  %v4729 = vsel %vm259, %v4725, %v4719
  %v4730 = vmul.f32 %v4729, %v3173
  %v4731 = vmul.f32 %v4728, %v3173
  %v4732 = vmul.f32 %v4727, %v3173
  %v4733 = vmul.f32 %v4726, %v3173
  %v4734 = vadd.f32 %v4714, %v4730
  %v4735 = vadd.f32 %v4715, %v4731
  %v4736 = vadd.f32 %v4716, %v4732
  %v4737 = vadd.f32 %v4717, %v4733
  %4738 = vrot.lane.b32.xlu0 %v4578, 46
  %v4739 = vpop.permute.xlu0 %4738
  %4740 = vrot.lane.b32.xlu0 %v4579, 46
  %v4741 = vpop.permute.xlu0 %4740
  %4742 = vrot.lane.b32.xlu0 %v4580, 46
  %v4743 = vpop.permute.xlu0 %4742
  %4744 = vrot.lane.b32.xlu0 %v4581, 46
  %v4745 = vpop.permute.xlu0 %4744
  %v4746 = vsel %vm287, %v4743, %v4745
  %v4747 = vsel %vm287, %v4741, %v4743
  %v4748 = vsel %vm287, %v4739, %v4741
  %v4749 = vsel %vm287, %v4745, %v4739
  %v4750 = vmul.f32 %v4749, %v3200
  %v4751 = vmul.f32 %v4748, %v3200
  %v4752 = vmul.f32 %v4747, %v3200
  %v4753 = vmul.f32 %v4746, %v3200
  %v4754 = vadd.f32 %v4734, %v4750
  %v4755 = vadd.f32 %v4735, %v4751
  %v4756 = vadd.f32 %v4736, %v4752
  %v4757 = vadd.f32 %v4737, %v4753
  %4758 = vrot.lane.b32.xlu0 %v4578, 45
  %v4759 = vpop.permute.xlu0 %4758
  %4760 = vrot.lane.b32.xlu0 %v4579, 45
  %v4761 = vpop.permute.xlu0 %4760
  %4762 = vrot.lane.b32.xlu0 %v4580, 45
  %v4763 = vpop.permute.xlu0 %4762
  %4764 = vrot.lane.b32.xlu0 %v4581, 45
  %v4765 = vpop.permute.xlu0 %4764
  %v4766 = vsel %vm315, %v4763, %v4765
  %v4767 = vsel %vm315, %v4761, %v4763
  %v4768 = vsel %vm315, %v4759, %v4761
  %v4769 = vsel %vm315, %v4765, %v4759
  %v4770 = vmul.f32 %v4769, %v3227
  %v4771 = vmul.f32 %v4768, %v3227
  %v4772 = vmul.f32 %v4767, %v3227
  %v4773 = vmul.f32 %v4766, %v3227
  %v4774 = vadd.f32 %v4754, %v4770
  %v4775 = vadd.f32 %v4755, %v4771
  %v4776 = vadd.f32 %v4756, %v4772
  %v4777 = vadd.f32 %v4757, %v4773
  %4778 = vrot.lane.b32.xlu0 %v4578, 44
  %v4779 = vpop.permute.xlu0 %4778
  %4780 = vrot.lane.b32.xlu0 %v4579, 44
  %v4781 = vpop.permute.xlu0 %4780
  %4782 = vrot.lane.b32.xlu0 %v4580, 44
  %v4783 = vpop.permute.xlu0 %4782
  %4784 = vrot.lane.b32.xlu0 %v4581, 44
  %v4785 = vpop.permute.xlu0 %4784
  %v4786 = vsel %vm343, %v4783, %v4785
  %v4787 = vsel %vm343, %v4781, %v4783
  %v4788 = vsel %vm343, %v4779, %v4781
  %v4789 = vsel %vm343, %v4785, %v4779
  %v4790 = vmul.f32 %v4789, %v3254
  %v4791 = vmul.f32 %v4788, %v3254
  %v4792 = vmul.f32 %v4787, %v3254
  %v4793 = vmul.f32 %v4786, %v3254
  %v4794 = vadd.f32 %v4774, %v4790
  %v4795 = vadd.f32 %v4775, %v4791
  %v4796 = vadd.f32 %v4776, %v4792
  %v4797 = vadd.f32 %v4777, %v4793
  %4798 = vrot.lane.b32.xlu0 %v4578, 43
  %v4799 = vpop.permute.xlu0 %4798
  %4800 = vrot.lane.b32.xlu0 %v4579, 43
  %v4801 = vpop.permute.xlu0 %4800
  %4802 = vrot.lane.b32.xlu0 %v4580, 43
  %v4803 = vpop.permute.xlu0 %4802
  %4804 = vrot.lane.b32.xlu0 %v4581, 43
  %v4805 = vpop.permute.xlu0 %4804
  %v4806 = vsel %vm371, %v4803, %v4805
  %v4807 = vsel %vm371, %v4801, %v4803
  %v4808 = vsel %vm371, %v4799, %v4801
  %v4809 = vsel %vm371, %v4805, %v4799
  %v4810 = vmul.f32 %v4809, %v3281
  %v4811 = vmul.f32 %v4808, %v3281
  %v4812 = vmul.f32 %v4807, %v3281
  %v4813 = vmul.f32 %v4806, %v3281
  %v4814 = vadd.f32 %v4794, %v4810
  %v4815 = vadd.f32 %v4795, %v4811
  %v4816 = vadd.f32 %v4796, %v4812
  %v4817 = vadd.f32 %v4797, %v4813
  %4818 = vrot.lane.b32.xlu0 %v4578, 42
  %v4819 = vpop.permute.xlu0 %4818
  %4820 = vrot.lane.b32.xlu0 %v4579, 42
  %v4821 = vpop.permute.xlu0 %4820
  %4822 = vrot.lane.b32.xlu0 %v4580, 42
  %v4823 = vpop.permute.xlu0 %4822
  %4824 = vrot.lane.b32.xlu0 %v4581, 42
  %v4825 = vpop.permute.xlu0 %4824
  %v4826 = vsel %vm399, %v4823, %v4825
  %v4827 = vsel %vm399, %v4821, %v4823
  %v4828 = vsel %vm399, %v4819, %v4821
  %v4829 = vsel %vm399, %v4825, %v4819
  %v4830 = vmul.f32 %v4829, %v3308
  %v4831 = vmul.f32 %v4828, %v3308
  %v4832 = vmul.f32 %v4827, %v3308
  %v4833 = vmul.f32 %v4826, %v3308
  %v4834 = vadd.f32 %v4814, %v4830
  %v4835 = vadd.f32 %v4815, %v4831
  %v4836 = vadd.f32 %v4816, %v4832
  %v4837 = vadd.f32 %v4817, %v4833
  %4838 = vrot.lane.b32.xlu0 %v4578, 41
  %v4839 = vpop.permute.xlu0 %4838
  %4840 = vrot.lane.b32.xlu0 %v4579, 41
  %v4841 = vpop.permute.xlu0 %4840
  %4842 = vrot.lane.b32.xlu0 %v4580, 41
  %v4843 = vpop.permute.xlu0 %4842
  %4844 = vrot.lane.b32.xlu0 %v4581, 41
  %v4845 = vpop.permute.xlu0 %4844
  %v4846 = vsel %vm427, %v4843, %v4845
  %v4847 = vsel %vm427, %v4841, %v4843
  %v4848 = vsel %vm427, %v4839, %v4841
  %v4849 = vsel %vm427, %v4845, %v4839
  %v4850 = vmul.f32 %v4849, %v3335
  %v4851 = vmul.f32 %v4848, %v3335
  %v4852 = vmul.f32 %v4847, %v3335
  %v4853 = vmul.f32 %v4846, %v3335
  %v4854 = vadd.f32 %v4834, %v4850
  %v4855 = vadd.f32 %v4835, %v4851
  %v4856 = vadd.f32 %v4836, %v4852
  %v4857 = vadd.f32 %v4837, %v4853
  %4858 = vrot.lane.b32.xlu0 %v4578, 25
  %v4859 = vpop.permute.xlu0 %4858
  %4860 = vrot.lane.b32.xlu0 %v4579, 25
  %v4861 = vpop.permute.xlu0 %4860
  %4862 = vrot.lane.b32.xlu0 %v4580, 25
  %v4863 = vpop.permute.xlu0 %4862
  %4864 = vrot.lane.b32.xlu0 %v4581, 25
  %v4865 = vpop.permute.xlu0 %4864
  %v4866 = vsel %vm455, %v4863, %v4865
  %v4867 = vsel %vm455, %v4861, %v4863
  %v4868 = vsel %vm455, %v4859, %v4861
  %v4869 = vsel %vm455, %v4865, %v4859
  %v4870 = vmul.f32 %v4869, %v3362
  %v4871 = vmul.f32 %v4868, %v3362
  %v4872 = vmul.f32 %v4867, %v3362
  %v4873 = vmul.f32 %v4866, %v3362
  %v4874 = vadd.f32 %v4854, %v4870
  %v4875 = vadd.f32 %v4855, %v4871
  %v4876 = vadd.f32 %v4856, %v4872
  %v4877 = vadd.f32 %v4857, %v4873
  %4878 = vrot.lane.b32.xlu0 %v4578, 24
  %v4879 = vpop.permute.xlu0 %4878
  %4880 = vrot.lane.b32.xlu0 %v4579, 24
  %v4881 = vpop.permute.xlu0 %4880
  %4882 = vrot.lane.b32.xlu0 %v4580, 24
  %v4883 = vpop.permute.xlu0 %4882
  %4884 = vrot.lane.b32.xlu0 %v4581, 24
  %v4885 = vpop.permute.xlu0 %4884
  %v4886 = vsel %vm483, %v4883, %v4885
  %v4887 = vsel %vm483, %v4881, %v4883
  %v4888 = vsel %vm483, %v4879, %v4881
  %v4889 = vsel %vm483, %v4885, %v4879
  %v4890 = vmul.f32 %v4889, %v3389
  %v4891 = vmul.f32 %v4888, %v3389
  %v4892 = vmul.f32 %v4887, %v3389
  %v4893 = vmul.f32 %v4886, %v3389
  %v4894 = vadd.f32 %v4874, %v4890
  %v4895 = vadd.f32 %v4875, %v4891
  %v4896 = vadd.f32 %v4876, %v4892
  %v4897 = vadd.f32 %v4877, %v4893
  %4898 = vrot.lane.b32.xlu0 %v4578, 23
  %v4899 = vpop.permute.xlu0 %4898
  %4900 = vrot.lane.b32.xlu0 %v4579, 23
  %v4901 = vpop.permute.xlu0 %4900
  %4902 = vrot.lane.b32.xlu0 %v4580, 23
  %v4903 = vpop.permute.xlu0 %4902
  %4904 = vrot.lane.b32.xlu0 %v4581, 23
  %v4905 = vpop.permute.xlu0 %4904
  %v4906 = vsel %vm511, %v4903, %v4905
  %v4907 = vsel %vm511, %v4901, %v4903
  %v4908 = vsel %vm511, %v4899, %v4901
  %v4909 = vsel %vm511, %v4905, %v4899
  %v4910 = vmul.f32 %v4909, %v3416
  %v4911 = vmul.f32 %v4908, %v3416
  %v4912 = vmul.f32 %v4907, %v3416
  %v4913 = vmul.f32 %v4906, %v3416
  %v4914 = vadd.f32 %v4894, %v4910
  %v4915 = vadd.f32 %v4895, %v4911
  %v4916 = vadd.f32 %v4896, %v4912
  %v4917 = vadd.f32 %v4897, %v4913
  %4918 = vrot.lane.b32.xlu0 %v4578, 22
  %v4919 = vpop.permute.xlu0 %4918
  %4920 = vrot.lane.b32.xlu0 %v4579, 22
  %v4921 = vpop.permute.xlu0 %4920
  %4922 = vrot.lane.b32.xlu0 %v4580, 22
  %v4923 = vpop.permute.xlu0 %4922
  %4924 = vrot.lane.b32.xlu0 %v4581, 22
  %v4925 = vpop.permute.xlu0 %4924
  %v4926 = vsel %vm539, %v4923, %v4925
  %v4927 = vsel %vm539, %v4921, %v4923
  %v4928 = vsel %vm539, %v4919, %v4921
  %v4929 = vsel %vm539, %v4925, %v4919
  %v4930 = vmul.f32 %v4929, %v3443
  %v4931 = vmul.f32 %v4928, %v3443
  %v4932 = vmul.f32 %v4927, %v3443
  %v4933 = vmul.f32 %v4926, %v3443
  %v4934 = vadd.f32 %v4914, %v4930
  %v4935 = vadd.f32 %v4915, %v4931
  %v4936 = vadd.f32 %v4916, %v4932
  %v4937 = vadd.f32 %v4917, %v4933
  %4938 = vrot.lane.b32.xlu0 %v4578, 21
  %v4939 = vpop.permute.xlu0 %4938
  %4940 = vrot.lane.b32.xlu0 %v4579, 21
  %v4941 = vpop.permute.xlu0 %4940
  %4942 = vrot.lane.b32.xlu0 %v4580, 21
  %v4943 = vpop.permute.xlu0 %4942
  %4944 = vrot.lane.b32.xlu0 %v4581, 21
  %v4945 = vpop.permute.xlu0 %4944
  %v4946 = vsel %vm567, %v4943, %v4945
  %v4947 = vsel %vm567, %v4941, %v4943
  %v4948 = vsel %vm567, %v4939, %v4941
  %v4949 = vsel %vm567, %v4945, %v4939
  %v4950 = vmul.f32 %v4949, %v3470
  %v4951 = vmul.f32 %v4948, %v3470
  %v4952 = vmul.f32 %v4947, %v3470
  %v4953 = vmul.f32 %v4946, %v3470
  %v4954 = vadd.f32 %v4934, %v4950
  %v4955 = vadd.f32 %v4935, %v4951
  %v4956 = vadd.f32 %v4936, %v4952
  %v4957 = vadd.f32 %v4937, %v4953
  %4958 = vrot.lane.b32.xlu0 %v4578, 20
  %v4959 = vpop.permute.xlu0 %4958
  %4960 = vrot.lane.b32.xlu0 %v4579, 20
  %v4961 = vpop.permute.xlu0 %4960
  %4962 = vrot.lane.b32.xlu0 %v4580, 20
  %v4963 = vpop.permute.xlu0 %4962
  %4964 = vrot.lane.b32.xlu0 %v4581, 20
  %v4965 = vpop.permute.xlu0 %4964
  %v4966 = vsel %vm595, %v4963, %v4965
  %v4967 = vsel %vm595, %v4961, %v4963
  %v4968 = vsel %vm595, %v4959, %v4961
  %v4969 = vsel %vm595, %v4965, %v4959
  %v4970 = vmul.f32 %v4969, %v3497
  %v4971 = vmul.f32 %v4968, %v3497
  %v4972 = vmul.f32 %v4967, %v3497
  %v4973 = vmul.f32 %v4966, %v3497
  %v4974 = vadd.f32 %v4954, %v4970
  %v4975 = vadd.f32 %v4955, %v4971
  %v4976 = vadd.f32 %v4956, %v4972
  %v4977 = vadd.f32 %v4957, %v4973
  %4978 = vrot.lane.b32.xlu0 %v4578, 19
  %v4979 = vpop.permute.xlu0 %4978
  %4980 = vrot.lane.b32.xlu0 %v4579, 19
  %v4981 = vpop.permute.xlu0 %4980
  %4982 = vrot.lane.b32.xlu0 %v4580, 19
  %v4983 = vpop.permute.xlu0 %4982
  %4984 = vrot.lane.b32.xlu0 %v4581, 19
  %v4985 = vpop.permute.xlu0 %4984
  %v4986 = vsel %vm623, %v4983, %v4985
  %v4987 = vsel %vm623, %v4981, %v4983
  %v4988 = vsel %vm623, %v4979, %v4981
  %v4989 = vsel %vm623, %v4985, %v4979
  %v4990 = vmul.f32 %v4989, %v3524
  %v4991 = vmul.f32 %v4988, %v3524
  %v4992 = vmul.f32 %v4987, %v3524
  %v4993 = vmul.f32 %v4986, %v3524
  %v4994 = vadd.f32 %v4974, %v4990
  %v4995 = vadd.f32 %v4975, %v4991
  %v4996 = vadd.f32 %v4976, %v4992
  %v4997 = vadd.f32 %v4977, %v4993
  %4998 = vrot.lane.b32.xlu0 %v4578, 3
  %v4999 = vpop.permute.xlu0 %4998
  %5000 = vrot.lane.b32.xlu0 %v4579, 3
  %v5001 = vpop.permute.xlu0 %5000
  %5002 = vrot.lane.b32.xlu0 %v4580, 3
  %v5003 = vpop.permute.xlu0 %5002
  %5004 = vrot.lane.b32.xlu0 %v4581, 3
  %v5005 = vpop.permute.xlu0 %5004
  %v5006 = vsel %vm651, %v5003, %v5005
  %v5007 = vsel %vm651, %v5001, %v5003
  %v5008 = vsel %vm651, %v4999, %v5001
  %v5009 = vsel %vm651, %v5005, %v4999
  %v5010 = vmul.f32 %v5009, %v3551
  %v5011 = vmul.f32 %v5008, %v3551
  %v5012 = vmul.f32 %v5007, %v3551
  %v5013 = vmul.f32 %v5006, %v3551
  %v5014 = vadd.f32 %v4994, %v5010
  %v5015 = vadd.f32 %v4995, %v5011
  %v5016 = vadd.f32 %v4996, %v5012
  %v5017 = vadd.f32 %v4997, %v5013
  %5018 = vrot.lane.b32.xlu0 %v4578, 2
  %v5019 = vpop.permute.xlu0 %5018
  %5020 = vrot.lane.b32.xlu0 %v4579, 2
  %v5021 = vpop.permute.xlu0 %5020
  %5022 = vrot.lane.b32.xlu0 %v4580, 2
  %v5023 = vpop.permute.xlu0 %5022
  %5024 = vrot.lane.b32.xlu0 %v4581, 2
  %v5025 = vpop.permute.xlu0 %5024
  %v5026 = vsel %vm679, %v5023, %v5025
  %v5027 = vsel %vm679, %v5021, %v5023
  %v5028 = vsel %vm679, %v5019, %v5021
  %v5029 = vsel %vm679, %v5025, %v5019
  %v5030 = vmul.f32 %v5029, %v3578
  %v5031 = vmul.f32 %v5028, %v3578
  %v5032 = vmul.f32 %v5027, %v3578
  %v5033 = vmul.f32 %v5026, %v3578
  %v5034 = vadd.f32 %v5014, %v5030
  %v5035 = vadd.f32 %v5015, %v5031
  %v5036 = vadd.f32 %v5016, %v5032
  %v5037 = vadd.f32 %v5017, %v5033
  %5038 = vrot.lane.b32.xlu0 %v4578, 1
  %v5039 = vpop.permute.xlu0 %5038
  %5040 = vrot.lane.b32.xlu0 %v4579, 1
  %v5041 = vpop.permute.xlu0 %5040
  %5042 = vrot.lane.b32.xlu0 %v4580, 1
  %v5043 = vpop.permute.xlu0 %5042
  %5044 = vrot.lane.b32.xlu0 %v4581, 1
  %v5045 = vpop.permute.xlu0 %5044
  %v5046 = vsel %vm707, %v5043, %v5045
  %v5047 = vsel %vm707, %v5041, %v5043
  %v5048 = vsel %vm707, %v5039, %v5041
  %v5049 = vsel %vm707, %v5045, %v5039
  %v5050 = vmul.f32 %v5049, %v3605
  %v5051 = vmul.f32 %v5048, %v3605
  %v5052 = vmul.f32 %v5047, %v3605
  %v5053 = vmul.f32 %v5046, %v3605
  %v5054 = vadd.f32 %v5034, %v5050
  %v5055 = vadd.f32 %v5035, %v5051
  %v5056 = vadd.f32 %v5036, %v5052
  %v5057 = vadd.f32 %v5037, %v5053
  %v5058 = vmul.f32 %v4578, %v3620
  %v5059 = vmul.f32 %v4579, %v3620
  %v5060 = vmul.f32 %v4580, %v3620
  %v5061 = vmul.f32 %v4581, %v3620
  %v5062 = vadd.f32 %v5054, %v5058
  %v5063 = vadd.f32 %v5055, %v5059
  %v5064 = vadd.f32 %v5056, %v5060
  %v5065 = vadd.f32 %v5057, %v5061
  %5066 = vrot.lane.b32.xlu0 %v4578, 127
  %v5067 = vpop.permute.xlu0 %5066
  %5068 = vrot.lane.b32.xlu0 %v4579, 127
  %v5069 = vpop.permute.xlu0 %5068
  %5070 = vrot.lane.b32.xlu0 %v4580, 127
  %v5071 = vpop.permute.xlu0 %5070
  %5072 = vrot.lane.b32.xlu0 %v4581, 127
  %v5073 = vpop.permute.xlu0 %5072
  %v5074 = vsel %vm750, %v5071, %v5073
  %v5075 = vsel %vm750, %v5069, %v5071
  %v5076 = vsel %vm750, %v5067, %v5069
  %v5077 = vsel %vm750, %v5073, %v5067
  %v5078 = vmul.f32 %v5076, %v3647
  %v5079 = vmul.f32 %v5075, %v3647
  %v5080 = vmul.f32 %v5074, %v3647
  %v5081 = vmul.f32 %v5077, %v3647
  %v5082 = vadd.f32 %v5062, %v5078
  %v5083 = vadd.f32 %v5063, %v5079
  %v5084 = vadd.f32 %v5064, %v5080
  %v5085 = vadd.f32 %v5065, %v5081
  %5086 = vrot.lane.b32.xlu0 %v4578, 126
  %v5087 = vpop.permute.xlu0 %5086
  %5088 = vrot.lane.b32.xlu0 %v4579, 126
  %v5089 = vpop.permute.xlu0 %5088
  %5090 = vrot.lane.b32.xlu0 %v4580, 126
  %v5091 = vpop.permute.xlu0 %5090
  %5092 = vrot.lane.b32.xlu0 %v4581, 126
  %v5093 = vpop.permute.xlu0 %5092
  %v5094 = vsel %vm778, %v5091, %v5093
  %v5095 = vsel %vm778, %v5089, %v5091
  %v5096 = vsel %vm778, %v5087, %v5089
  %v5097 = vsel %vm778, %v5093, %v5087
  %v5098 = vmul.f32 %v5096, %v3674
  %v5099 = vmul.f32 %v5095, %v3674
  %v5100 = vmul.f32 %v5094, %v3674
  %v5101 = vmul.f32 %v5097, %v3674
  %v5102 = vadd.f32 %v5082, %v5098
  %v5103 = vadd.f32 %v5083, %v5099
  %v5104 = vadd.f32 %v5084, %v5100
  %v5105 = vadd.f32 %v5085, %v5101
  %5106 = vrot.lane.b32.xlu0 %v4578, 125
  %v5107 = vpop.permute.xlu0 %5106
  %5108 = vrot.lane.b32.xlu0 %v4579, 125
  %v5109 = vpop.permute.xlu0 %5108
  %5110 = vrot.lane.b32.xlu0 %v4580, 125
  %v5111 = vpop.permute.xlu0 %5110
  %5112 = vrot.lane.b32.xlu0 %v4581, 125
  %v5113 = vpop.permute.xlu0 %5112
  %v5114 = vsel %vm806, %v5111, %v5113
  %v5115 = vsel %vm806, %v5109, %v5111
  %v5116 = vsel %vm806, %v5107, %v5109
  %v5117 = vsel %vm806, %v5113, %v5107
  %v5118 = vmul.f32 %v5116, %v3701
  %v5119 = vmul.f32 %v5115, %v3701
  %v5120 = vmul.f32 %v5114, %v3701
  %v5121 = vmul.f32 %v5117, %v3701
  %v5122 = vadd.f32 %v5102, %v5118
  %v5123 = vadd.f32 %v5103, %v5119
  %v5124 = vadd.f32 %v5104, %v5120
  %v5125 = vadd.f32 %v5105, %v5121
  %5126 = vrot.lane.b32.xlu0 %v4578, 109
  %v5127 = vpop.permute.xlu0 %5126
  %5128 = vrot.lane.b32.xlu0 %v4579, 109
  %v5129 = vpop.permute.xlu0 %5128
  %5130 = vrot.lane.b32.xlu0 %v4580, 109
  %v5131 = vpop.permute.xlu0 %5130
  %5132 = vrot.lane.b32.xlu0 %v4581, 109
  %v5133 = vpop.permute.xlu0 %5132
  %v5134 = vsel %vm834, %v5131, %v5133
  %v5135 = vsel %vm834, %v5129, %v5131
  %v5136 = vsel %vm834, %v5127, %v5129
  %v5137 = vsel %vm834, %v5133, %v5127
  %v5138 = vmul.f32 %v5136, %v3728
  %v5139 = vmul.f32 %v5135, %v3728
  %v5140 = vmul.f32 %v5134, %v3728
  %v5141 = vmul.f32 %v5137, %v3728
  %v5142 = vadd.f32 %v5122, %v5138
  %v5143 = vadd.f32 %v5123, %v5139
  %v5144 = vadd.f32 %v5124, %v5140
  %v5145 = vadd.f32 %v5125, %v5141
  %5146 = vrot.lane.b32.xlu0 %v4578, 108
  %v5147 = vpop.permute.xlu0 %5146
  %5148 = vrot.lane.b32.xlu0 %v4579, 108
  %v5149 = vpop.permute.xlu0 %5148
  %5150 = vrot.lane.b32.xlu0 %v4580, 108
  %v5151 = vpop.permute.xlu0 %5150
  %5152 = vrot.lane.b32.xlu0 %v4581, 108
  %v5153 = vpop.permute.xlu0 %5152
  %v5154 = vsel %vm862, %v5151, %v5153
  %v5155 = vsel %vm862, %v5149, %v5151
  %v5156 = vsel %vm862, %v5147, %v5149
  %v5157 = vsel %vm862, %v5153, %v5147
  %v5158 = vmul.f32 %v5156, %v3755
  %v5159 = vmul.f32 %v5155, %v3755
  %v5160 = vmul.f32 %v5154, %v3755
  %v5161 = vmul.f32 %v5157, %v3755
  %v5162 = vadd.f32 %v5142, %v5158
  %v5163 = vadd.f32 %v5143, %v5159
  %v5164 = vadd.f32 %v5144, %v5160
  %v5165 = vadd.f32 %v5145, %v5161
  %5166 = vrot.lane.b32.xlu0 %v4578, 107
  %v5167 = vpop.permute.xlu0 %5166
  %5168 = vrot.lane.b32.xlu0 %v4579, 107
  %v5169 = vpop.permute.xlu0 %5168
  %5170 = vrot.lane.b32.xlu0 %v4580, 107
  %v5171 = vpop.permute.xlu0 %5170
  %5172 = vrot.lane.b32.xlu0 %v4581, 107
  %v5173 = vpop.permute.xlu0 %5172
  %v5174 = vsel %vm890, %v5171, %v5173
  %v5175 = vsel %vm890, %v5169, %v5171
  %v5176 = vsel %vm890, %v5167, %v5169
  %v5177 = vsel %vm890, %v5173, %v5167
  %v5178 = vmul.f32 %v5176, %v3782
  %v5179 = vmul.f32 %v5175, %v3782
  %v5180 = vmul.f32 %v5174, %v3782
  %v5181 = vmul.f32 %v5177, %v3782
  %v5182 = vadd.f32 %v5162, %v5178
  %v5183 = vadd.f32 %v5163, %v5179
  %v5184 = vadd.f32 %v5164, %v5180
  %v5185 = vadd.f32 %v5165, %v5181
  %5186 = vrot.lane.b32.xlu0 %v4578, 106
  %v5187 = vpop.permute.xlu0 %5186
  %5188 = vrot.lane.b32.xlu0 %v4579, 106
  %v5189 = vpop.permute.xlu0 %5188
  %5190 = vrot.lane.b32.xlu0 %v4580, 106
  %v5191 = vpop.permute.xlu0 %5190
  %5192 = vrot.lane.b32.xlu0 %v4581, 106
  %v5193 = vpop.permute.xlu0 %5192
  %v5194 = vsel %vm918, %v5191, %v5193
  %v5195 = vsel %vm918, %v5189, %v5191
  %v5196 = vsel %vm918, %v5187, %v5189
  %v5197 = vsel %vm918, %v5193, %v5187
  %v5198 = vmul.f32 %v5196, %v3809
  %v5199 = vmul.f32 %v5195, %v3809
  %v5200 = vmul.f32 %v5194, %v3809
  %v5201 = vmul.f32 %v5197, %v3809
  %v5202 = vadd.f32 %v5182, %v5198
  %v5203 = vadd.f32 %v5183, %v5199
  %v5204 = vadd.f32 %v5184, %v5200
  %v5205 = vadd.f32 %v5185, %v5201
  %5206 = vrot.lane.b32.xlu0 %v4578, 105
  %v5207 = vpop.permute.xlu0 %5206
  %5208 = vrot.lane.b32.xlu0 %v4579, 105
  %v5209 = vpop.permute.xlu0 %5208
  %5210 = vrot.lane.b32.xlu0 %v4580, 105
  %v5211 = vpop.permute.xlu0 %5210
  %5212 = vrot.lane.b32.xlu0 %v4581, 105
  %v5213 = vpop.permute.xlu0 %5212
  %v5214 = vsel %vm946, %v5211, %v5213
  %v5215 = vsel %vm946, %v5209, %v5211
  %v5216 = vsel %vm946, %v5207, %v5209
  %v5217 = vsel %vm946, %v5213, %v5207
  %v5218 = vmul.f32 %v5216, %v3836
  %v5219 = vmul.f32 %v5215, %v3836
  %v5220 = vmul.f32 %v5214, %v3836
  %v5221 = vmul.f32 %v5217, %v3836
  %v5222 = vadd.f32 %v5202, %v5218
  %v5223 = vadd.f32 %v5203, %v5219
  %v5224 = vadd.f32 %v5204, %v5220
  %v5225 = vadd.f32 %v5205, %v5221
  %5226 = vrot.lane.b32.xlu0 %v4578, 104
  %v5227 = vpop.permute.xlu0 %5226
  %5228 = vrot.lane.b32.xlu0 %v4579, 104
  %v5229 = vpop.permute.xlu0 %5228
  %5230 = vrot.lane.b32.xlu0 %v4580, 104
  %v5231 = vpop.permute.xlu0 %5230
  %5232 = vrot.lane.b32.xlu0 %v4581, 104
  %v5233 = vpop.permute.xlu0 %5232
  %v5234 = vsel %vm974, %v5231, %v5233
  %v5235 = vsel %vm974, %v5229, %v5231
  %v5236 = vsel %vm974, %v5227, %v5229
  %v5237 = vsel %vm974, %v5233, %v5227
  %v5238 = vmul.f32 %v5236, %v3863
  %v5239 = vmul.f32 %v5235, %v3863
  %v5240 = vmul.f32 %v5234, %v3863
  %v5241 = vmul.f32 %v5237, %v3863
  %v5242 = vadd.f32 %v5222, %v5238
  %v5243 = vadd.f32 %v5223, %v5239
  %v5244 = vadd.f32 %v5224, %v5240
  %v5245 = vadd.f32 %v5225, %v5241
  %5246 = vrot.lane.b32.xlu0 %v4578, 103
  %v5247 = vpop.permute.xlu0 %5246
  %5248 = vrot.lane.b32.xlu0 %v4579, 103
  %v5249 = vpop.permute.xlu0 %5248
  %5250 = vrot.lane.b32.xlu0 %v4580, 103
  %v5251 = vpop.permute.xlu0 %5250
  %5252 = vrot.lane.b32.xlu0 %v4581, 103
  %v5253 = vpop.permute.xlu0 %5252
  %v5254 = vsel %vm1002, %v5251, %v5253
  %v5255 = vsel %vm1002, %v5249, %v5251
  %v5256 = vsel %vm1002, %v5247, %v5249
  %v5257 = vsel %vm1002, %v5253, %v5247
  %v5258 = vmul.f32 %v5256, %v3890
  %v5259 = vmul.f32 %v5255, %v3890
  %v5260 = vmul.f32 %v5254, %v3890
  %v5261 = vmul.f32 %v5257, %v3890
  %v5262 = vadd.f32 %v5242, %v5258
  %v5263 = vadd.f32 %v5243, %v5259
  %v5264 = vadd.f32 %v5244, %v5260
  %v5265 = vadd.f32 %v5245, %v5261
  %5266 = vrot.lane.b32.xlu0 %v4578, 87
  %v5267 = vpop.permute.xlu0 %5266
  %5268 = vrot.lane.b32.xlu0 %v4579, 87
  %v5269 = vpop.permute.xlu0 %5268
  %5270 = vrot.lane.b32.xlu0 %v4580, 87
  %v5271 = vpop.permute.xlu0 %5270
  %5272 = vrot.lane.b32.xlu0 %v4581, 87
  %v5273 = vpop.permute.xlu0 %5272
  %v5274 = vsel %vm1030, %v5271, %v5273
  %v5275 = vsel %vm1030, %v5269, %v5271
  %v5276 = vsel %vm1030, %v5267, %v5269
  %v5277 = vsel %vm1030, %v5273, %v5267
  %v5278 = vmul.f32 %v5276, %v3917
  %v5279 = vmul.f32 %v5275, %v3917
  %v5280 = vmul.f32 %v5274, %v3917
  %v5281 = vmul.f32 %v5277, %v3917
  %v5282 = vadd.f32 %v5262, %v5278
  %v5283 = vadd.f32 %v5263, %v5279
  %v5284 = vadd.f32 %v5264, %v5280
  %v5285 = vadd.f32 %v5265, %v5281
  %5286 = vrot.lane.b32.xlu0 %v4578, 86
  %v5287 = vpop.permute.xlu0 %5286
  %5288 = vrot.lane.b32.xlu0 %v4579, 86
  %v5289 = vpop.permute.xlu0 %5288
  %5290 = vrot.lane.b32.xlu0 %v4580, 86
  %v5291 = vpop.permute.xlu0 %5290
  %5292 = vrot.lane.b32.xlu0 %v4581, 86
  %v5293 = vpop.permute.xlu0 %5292
  %v5294 = vsel %vm1058, %v5291, %v5293
  %v5295 = vsel %vm1058, %v5289, %v5291
  %v5296 = vsel %vm1058, %v5287, %v5289
  %v5297 = vsel %vm1058, %v5293, %v5287
  %v5298 = vmul.f32 %v5296, %v3944
  %v5299 = vmul.f32 %v5295, %v3944
  %v5300 = vmul.f32 %v5294, %v3944
  %v5301 = vmul.f32 %v5297, %v3944
  %v5302 = vadd.f32 %v5282, %v5298
  %v5303 = vadd.f32 %v5283, %v5299
  %v5304 = vadd.f32 %v5284, %v5300
  %v5305 = vadd.f32 %v5285, %v5301
  %5306 = vrot.lane.b32.xlu0 %v4578, 85
  %v5307 = vpop.permute.xlu0 %5306
  %5308 = vrot.lane.b32.xlu0 %v4579, 85
  %v5309 = vpop.permute.xlu0 %5308
  %5310 = vrot.lane.b32.xlu0 %v4580, 85
  %v5311 = vpop.permute.xlu0 %5310
  %5312 = vrot.lane.b32.xlu0 %v4581, 85
  %v5313 = vpop.permute.xlu0 %5312
  %v5314 = vsel %vm1086, %v5311, %v5313
  %v5315 = vsel %vm1086, %v5309, %v5311
  %v5316 = vsel %vm1086, %v5307, %v5309
  %v5317 = vsel %vm1086, %v5313, %v5307
  %v5318 = vmul.f32 %v5316, %v3971
  %v5319 = vmul.f32 %v5315, %v3971
  %v5320 = vmul.f32 %v5314, %v3971
  %v5321 = vmul.f32 %v5317, %v3971
  %v5322 = vadd.f32 %v5302, %v5318
  %v5323 = vadd.f32 %v5303, %v5319
  %v5324 = vadd.f32 %v5304, %v5320
  %v5325 = vadd.f32 %v5305, %v5321
  %5326 = vrot.lane.b32.xlu0 %v4578, 84
  %v5327 = vpop.permute.xlu0 %5326
  %5328 = vrot.lane.b32.xlu0 %v4579, 84
  %v5329 = vpop.permute.xlu0 %5328
  %5330 = vrot.lane.b32.xlu0 %v4580, 84
  %v5331 = vpop.permute.xlu0 %5330
  %5332 = vrot.lane.b32.xlu0 %v4581, 84
  %v5333 = vpop.permute.xlu0 %5332
  %v5334 = vsel %vm1114, %v5331, %v5333
  %v5335 = vsel %vm1114, %v5329, %v5331
  %v5336 = vsel %vm1114, %v5327, %v5329
  %v5337 = vsel %vm1114, %v5333, %v5327
  %v5338 = vmul.f32 %v5336, %v3998
  %v5339 = vmul.f32 %v5335, %v3998
  %v5340 = vmul.f32 %v5334, %v3998
  %v5341 = vmul.f32 %v5337, %v3998
  %v5342 = vadd.f32 %v5322, %v5338
  %v5343 = vadd.f32 %v5323, %v5339
  %v5344 = vadd.f32 %v5324, %v5340
  %v5345 = vadd.f32 %v5325, %v5341
  %5346 = vrot.lane.b32.xlu0 %v4578, 83
  %v5347 = vpop.permute.xlu0 %5346
  %5348 = vrot.lane.b32.xlu0 %v4579, 83
  %v5349 = vpop.permute.xlu0 %5348
  %5350 = vrot.lane.b32.xlu0 %v4580, 83
  %v5351 = vpop.permute.xlu0 %5350
  %5352 = vrot.lane.b32.xlu0 %v4581, 83
  %v5353 = vpop.permute.xlu0 %5352
  %v5354 = vsel %vm1142, %v5351, %v5353
  %v5355 = vsel %vm1142, %v5349, %v5351
  %v5356 = vsel %vm1142, %v5347, %v5349
  %v5357 = vsel %vm1142, %v5353, %v5347
  %v5358 = vmul.f32 %v5356, %v4025
  %v5359 = vmul.f32 %v5355, %v4025
  %v5360 = vmul.f32 %v5354, %v4025
  %v5361 = vmul.f32 %v5357, %v4025
  %v5362 = vadd.f32 %v5342, %v5358
  %v5363 = vadd.f32 %v5343, %v5359
  %v5364 = vadd.f32 %v5344, %v5360
  %v5365 = vadd.f32 %v5345, %v5361
  %5366 = vrot.lane.b32.xlu0 %v4578, 82
  %v5367 = vpop.permute.xlu0 %5366
  %5368 = vrot.lane.b32.xlu0 %v4579, 82
  %v5369 = vpop.permute.xlu0 %5368
  %5370 = vrot.lane.b32.xlu0 %v4580, 82
  %v5371 = vpop.permute.xlu0 %5370
  %5372 = vrot.lane.b32.xlu0 %v4581, 82
  %v5373 = vpop.permute.xlu0 %5372
  %v5374 = vsel %vm1170, %v5371, %v5373
  %v5375 = vsel %vm1170, %v5369, %v5371
  %v5376 = vsel %vm1170, %v5367, %v5369
  %v5377 = vsel %vm1170, %v5373, %v5367
  %v5378 = vmul.f32 %v5376, %v4052
  %v5379 = vmul.f32 %v5375, %v4052
  %v5380 = vmul.f32 %v5374, %v4052
  %v5381 = vmul.f32 %v5377, %v4052
  %v5382 = vadd.f32 %v5362, %v5378
  %v5383 = vadd.f32 %v5363, %v5379
  %v5384 = vadd.f32 %v5364, %v5380
  %v5385 = vadd.f32 %v5365, %v5381
  %5386 = vrot.lane.b32.xlu0 %v4578, 81
  %v5387 = vpop.permute.xlu0 %5386
  %5388 = vrot.lane.b32.xlu0 %v4579, 81
  %v5389 = vpop.permute.xlu0 %5388
  %5390 = vrot.lane.b32.xlu0 %v4580, 81
  %v5391 = vpop.permute.xlu0 %5390
  %5392 = vrot.lane.b32.xlu0 %v4581, 81
  %v5393 = vpop.permute.xlu0 %5392
  %v5394 = vsel %vm1198, %v5391, %v5393
  %v5395 = vsel %vm1198, %v5389, %v5391
  %v5396 = vsel %vm1198, %v5387, %v5389
  %v5397 = vsel %vm1198, %v5393, %v5387
  %v5398 = vmul.f32 %v5396, %v4079
  %v5399 = vmul.f32 %v5395, %v4079
  %v5400 = vmul.f32 %v5394, %v4079
  %v5401 = vmul.f32 %v5397, %v4079
  %v5402 = vadd.f32 %v5382, %v5398
  %v5403 = vadd.f32 %v5383, %v5399
  %v5404 = vadd.f32 %v5384, %v5400
  %v5405 = vadd.f32 %v5385, %v5401
  %v5406 = vmul.f32 %v4668, %v4094
  %v5407 = vmul.f32 %v4667, %v4094
  %v5408 = vmul.f32 %v4666, %v4094
  %v5409 = vmul.f32 %v4669, %v4094
  %v5410 = vadd.f32 %v5402, %v5406
  %v5411 = vadd.f32 %v5403, %v5407
  %v5412 = vadd.f32 %v5404, %v5408
  %v5413 = vadd.f32 %v5405, %v5409
  %v5414 = vmul.f32 %v4688, %v4109
  %v5415 = vmul.f32 %v4687, %v4109
  %v5416 = vmul.f32 %v4686, %v4109
  %v5417 = vmul.f32 %v4689, %v4109
  %v5418 = vadd.f32 %v5410, %v5414
  %v5419 = vadd.f32 %v5411, %v5415
  %v5420 = vadd.f32 %v5412, %v5416
  %v5421 = vadd.f32 %v5413, %v5417
  %v5422 = vmul.f32 %v4708, %v4124
  %v5423 = vmul.f32 %v4707, %v4124
  %v5424 = vmul.f32 %v4706, %v4124
  %v5425 = vmul.f32 %v4709, %v4124
  %v5426 = vadd.f32 %v5418, %v5422
  %v5427 = vadd.f32 %v5419, %v5423
  %v5428 = vadd.f32 %v5420, %v5424
  %v5429 = vadd.f32 %v5421, %v5425
  %5430 = vrot.lane.b32.xlu0 %v4578, 62
  %v5431 = vpop.permute.xlu0 %5430
  %5432 = vrot.lane.b32.xlu0 %v4579, 62
  %v5433 = vpop.permute.xlu0 %5432
  %5434 = vrot.lane.b32.xlu0 %v4580, 62
  %v5435 = vpop.permute.xlu0 %5434
  %5436 = vrot.lane.b32.xlu0 %v4581, 62
  %v5437 = vpop.permute.xlu0 %5436
  %v5438 = vsel %vm1271, %v5435, %v5437
  %v5439 = vsel %vm1271, %v5433, %v5435
  %v5440 = vsel %vm1271, %v5431, %v5433
  %v5441 = vsel %vm1271, %v5437, %v5431
  %v5442 = vmul.f32 %v5440, %v4151
  %v5443 = vmul.f32 %v5439, %v4151
  %v5444 = vmul.f32 %v5438, %v4151
  %v5445 = vmul.f32 %v5441, %v4151
  %v5446 = vadd.f32 %v5426, %v5442
  %v5447 = vadd.f32 %v5427, %v5443
  %v5448 = vadd.f32 %v5428, %v5444
  %v5449 = vadd.f32 %v5429, %v5445
  %5450 = vrot.lane.b32.xlu0 %v4578, 61
  %v5451 = vpop.permute.xlu0 %5450
  %5452 = vrot.lane.b32.xlu0 %v4579, 61
  %v5453 = vpop.permute.xlu0 %5452
  %5454 = vrot.lane.b32.xlu0 %v4580, 61
  %v5455 = vpop.permute.xlu0 %5454
  %5456 = vrot.lane.b32.xlu0 %v4581, 61
  %v5457 = vpop.permute.xlu0 %5456
  %v5458 = vsel %vm1299, %v5455, %v5457
  %v5459 = vsel %vm1299, %v5453, %v5455
  %v5460 = vsel %vm1299, %v5451, %v5453
  %v5461 = vsel %vm1299, %v5457, %v5451
  %v5462 = vmul.f32 %v5460, %v4178
  %v5463 = vmul.f32 %v5459, %v4178
  %v5464 = vmul.f32 %v5458, %v4178
  %v5465 = vmul.f32 %v5461, %v4178
  %v5466 = vadd.f32 %v5446, %v5462
  %v5467 = vadd.f32 %v5447, %v5463
  %v5468 = vadd.f32 %v5448, %v5464
  %v5469 = vadd.f32 %v5449, %v5465
  %5470 = vrot.lane.b32.xlu0 %v4578, 60
  %v5471 = vpop.permute.xlu0 %5470
  %5472 = vrot.lane.b32.xlu0 %v4579, 60
  %v5473 = vpop.permute.xlu0 %5472
  %5474 = vrot.lane.b32.xlu0 %v4580, 60
  %v5475 = vpop.permute.xlu0 %5474
  %5476 = vrot.lane.b32.xlu0 %v4581, 60
  %v5477 = vpop.permute.xlu0 %5476
  %v5478 = vsel %vm1327, %v5475, %v5477
  %v5479 = vsel %vm1327, %v5473, %v5475
  %v5480 = vsel %vm1327, %v5471, %v5473
  %v5481 = vsel %vm1327, %v5477, %v5471
  %v5482 = vmul.f32 %v5480, %v4205
  %v5483 = vmul.f32 %v5479, %v4205
  %v5484 = vmul.f32 %v5478, %v4205
  %v5485 = vmul.f32 %v5481, %v4205
  %v5486 = vadd.f32 %v5466, %v5482
  %v5487 = vadd.f32 %v5467, %v5483
  %v5488 = vadd.f32 %v5468, %v5484
  %v5489 = vadd.f32 %v5469, %v5485
  %5490 = vrot.lane.b32.xlu0 %v4578, 59
  %v5491 = vpop.permute.xlu0 %5490
  %5492 = vrot.lane.b32.xlu0 %v4579, 59
  %v5493 = vpop.permute.xlu0 %5492
  %5494 = vrot.lane.b32.xlu0 %v4580, 59
  %v5495 = vpop.permute.xlu0 %5494
  %5496 = vrot.lane.b32.xlu0 %v4581, 59
  %v5497 = vpop.permute.xlu0 %5496
  %v5498 = vsel %vm1355, %v5495, %v5497
  %v5499 = vsel %vm1355, %v5493, %v5495
  %v5500 = vsel %vm1355, %v5491, %v5493
  %v5501 = vsel %vm1355, %v5497, %v5491
  %v5502 = vmul.f32 %v5500, %v4232
  %v5503 = vmul.f32 %v5499, %v4232
  %v5504 = vmul.f32 %v5498, %v4232
  %v5505 = vmul.f32 %v5501, %v4232
  %v5506 = vadd.f32 %v5486, %v5502
  %v5507 = vadd.f32 %v5487, %v5503
  %v5508 = vadd.f32 %v5488, %v5504
  %v5509 = vadd.f32 %v5489, %v5505
  %v5510 = vmul.f32 %v4238, %v4238
  %v5511 = vmul.f32 %v4239, %v4239
  %v5512 = vmul.f32 %v4240, %v4240
  %v5513 = vmul.f32 %v4241, %v4241
  %v5514 = vmul.f32 %v5506, %v2316
  %v5515 = vmul.f32 %v5507, %v2320
  %v5516 = vmul.f32 %v5508, %v2324
  %v5517 = vmul.f32 %v5509, %v2328
  %vm5518 = vcmask 1043456
  %v5519 = vsel %vm5518, %v5514, 0.0
  %v5520 = vsel %vm5518, %v5515, 0.0
  %v5521 = vadd.f32 %v5519, %v5520
  %v5522 = vsel %vm5518, %v5516, 0.0
  %v5523 = vadd.f32 %v5521, %v5522
  %v5524 = vsel %vm5518, %v5517, 0.0
  %v5525 = vadd.f32 %v5523, %v5524
  %5526 = vadd.xlane.f32.xlu0 %v5525
  %v5527 = vpop.xlane.xlu0 %5526
  %v5528 = vmul.f32 %v5506, %v5506
  %v5529 = vmul.f32 %v5507, %v5507
  %v5530 = vmul.f32 %v5508, %v5508
  %v5531 = vmul.f32 %v5509, %v5509
  %v5532 = vmul.f32 %v5528, %v2316
  %v5533 = vmul.f32 %v5529, %v2320
  %v5534 = vmul.f32 %v5530, %v2324
  %v5535 = vmul.f32 %v5531, %v2328
  %v5536 = vsel %vm5518, %v5532, 0.0
  %v5537 = vsel %vm5518, %v5533, 0.0
  %v5538 = vadd.f32 %v5536, %v5537
  %v5539 = vsel %vm5518, %v5534, 0.0
  %v5540 = vadd.f32 %v5538, %v5539
  %v5541 = vsel %vm5518, %v5535, 0.0
  %v5542 = vadd.f32 %v5540, %v5541
  %5543 = vadd.xlane.f32.xlu0 %v5542
  %v5544 = vpop.xlane.xlu0 %5543
  %v5545 = vmul.f32 %v4238, %v2316
  %v5546 = vmul.f32 %v4239, %v2320
  %v5547 = vmul.f32 %v4240, %v2324
  %v5548 = vmul.f32 %v4241, %v2328
  %v5549 = vsel %vm5518, %v5545, 0.0
  %v5550 = vsel %vm5518, %v5546, 0.0
  %v5551 = vadd.f32 %v5549, %v5550
  %v5552 = vsel %vm5518, %v5547, 0.0
  %v5553 = vadd.f32 %v5551, %v5552
  %v5554 = vsel %vm5518, %v5548, 0.0
  %v5555 = vadd.f32 %v5553, %v5554
  %5556 = vadd.xlane.f32.xlu0 %v5555
  %v5557 = vpop.xlane.xlu0 %5556
  %v5558 = vadd.f32 %v5557, %v5527
  %v5559 = vmul.f32 %v5510, %v2316
  %v5560 = vmul.f32 %v5511, %v2320
  %v5561 = vmul.f32 %v5512, %v2324
  %v5562 = vmul.f32 %v5513, %v2328
  %v5563 = vsel %vm5518, %v5559, 0.0
  %v5564 = vsel %vm5518, %v5560, 0.0
  %v5565 = vadd.f32 %v5563, %v5564
  %v5566 = vsel %vm5518, %v5561, 0.0
  %v5567 = vadd.f32 %v5565, %v5566
  %v5568 = vsel %vm5518, %v5562, 0.0
  %v5569 = vadd.f32 %v5567, %v5568
  %5570 = vadd.xlane.f32.xlu0 %v5569
  %v5571 = vpop.xlane.xlu0 %5570
  %v5572 = vadd.f32 %v5571, %v5544
  %v5573 = vmul.f32 %v5558, 0.001953125
  %v5574 = vmul.f32 %v5572, 0.001953125
  %v5575 = vmul.f32 %v5573, %v5573
  %v5576 = vsub.f32 %v5574, %v5575
  %v5577 = vmax.f32 %v5576, 0.0
  %v5578 = vld [vmem:[%s12] sm:$0xff]
  %v5579 = vld [vmem:[%s12 + $0x8] sm:$0xff]
  %v5580 = vld [vmem:[%s13] sm:$0xff]
  %v5581 = vld [vmem:[%s13 + $0x8] sm:$0xff]
  %v5582 = vld [vmem:[%s10] sm:$0xf]
  %v5583 = vld [vmem:[%s11] sm:$0xf]
  %v5584 = vadd.f32 %v5577, 1e-05
  %v5585 = vrsqrt.pop %v5584
  %v5586 = vmul.f32 %v5582, %v5585
  %v5587 = vmul.f32 %v5573, %v5586
  %v5588 = vsub.f32 %v5583, %v5587
  %5590 = vset.pattern.permute.xlu0 0
  %5591 = vperm.xlu0 %5590, %v5586
  %v5592 = vpop.permute.xlu0 %5591
  %v5594 = vmul.f32 %v2399, %v5592
  %vm5595 = vcmask 31744
  %v5597 = vsel %vm5595, %v5578, 0
  %v5600 = vsel %vm5595, %v5579, 0
  %v5603 = vsel %vm5518, %v5594, 0
  %5605 = vmatprep.subr.mxu0 0.0
  %5606 = vmatpush1.msra.mxu0 0.0
  %5607 = vmatprep.subr.mxu0 0.0
  %5608 = vmatpush1.msra.mxu0 0.0
  %5609 = vmatprep.subr.mxu0 0.0
  %5610 = vmatpush1.msra.mxu0 0.0
  %5611 = vmatprep.subr.mxu0 0.0
  %5612 = vmatpush1.msra.mxu0 0.0
  %5613 = vmatprep.subr.mxu0 0.0
  %5614 = vmatpush1.msra.mxu0 0.0
  %5615 = vmatprep.subr.mxu0 0.0
  %5616 = vmatpush1.msra.mxu0 0.0
  %5617 = vmatprep.subr.mxu0 0.0
  %5618 = vmatpush1.msra.mxu0 0.0
  %5619 = vmatprep.subr.mxu0 0.0
  %5620 = vmatpush1.msra.mxu0 0.0
  %5621 = vmatprep.subr.mxu0 0.0
  %5622 = vmatpush1.msra.mxu0 0.0
  %5623 = vmatprep.subr.mxu0 0.0
  %5624 = vmatpush1.msra.mxu0 0.0
  %5625 = vmatprep.subr.mxu0 0.0
  %5626 = vmatpush1.msra.mxu0 0.0
  %5627 = vmatprep.subr.mxu0 0.0
  %5628 = vmatpush1.msra.mxu0 0.0
  %5629 = vmatprep.subr.mxu0 0.0
  %5630 = vmatpush1.msra.mxu0 0.0
  %5631 = vmatprep.subr.mxu0 0.0
  %5632 = vmatpush1.msra.mxu0 0.0
  %5633 = vmatprep.subr.mxu0 0.0
  %5634 = vmatpush1.msra.mxu0 0.0
  %5635 = vmatprep.subr.mxu0 0.0
  %5636 = vmatpush1.msra.mxu0 %v5603
  %5637 = vmatprep.subr.mxu0 0.0
  %5638 = vmatpush2.msra.mxu0 0.0
  %5639 = vmatprep.subr.mxu0 0.0
  %5640 = vmatpush2.msra.mxu0 0.0
  %5641 = vmatprep.subr.mxu0 0.0
  %5642 = vmatpush2.msra.mxu0 0.0
  %5643 = vmatprep.subr.mxu0 0.0
  %5644 = vmatpush2.msra.mxu0 0.0
  %5645 = vmatprep.subr.mxu0 0.0
  %5646 = vmatpush2.msra.mxu0 0.0
  %5647 = vmatprep.subr.mxu0 0.0
  %5648 = vmatpush2.msra.mxu0 0.0
  %5649 = vmatprep.subr.mxu0 0.0
  %5650 = vmatpush2.msra.mxu0 0.0
  %5651 = vmatprep.subr.mxu0 0.0
  %5652 = vmatpush2.msra.mxu0 0.0
  %5653 = vmatprep.subr.mxu0 0.0
  %5654 = vmatpush2.msra.mxu0 0.0
  %5655 = vmatprep.subr.mxu0 0.0
  %5656 = vmatpush2.msra.mxu0 0.0
  %5657 = vmatprep.subr.mxu0 0.0
  %5658 = vmatpush2.msra.mxu0 0.0
  %5659 = vmatprep.subr.mxu0 0.0
  %5660 = vmatpush2.msra.mxu0 0.0
  %5661 = vmatprep.subr.mxu0 0.0
  %5662 = vmatpush2.msra.mxu0 0.0
  %5663 = vmatprep.subr.mxu0 0.0
  %5664 = vmatpush2.msra.mxu0 0.0
  %5665 = vmatprep.subr.mxu0 0.0
  %5666 = vmatpush2.msra.mxu0 0.0
  %5667 = vmatprep.subr.mxu0 0.0
  %5668 = vmatpush2.msra.mxu0 0.0
  %5669 = vmatprep.mubr.f32.mxu0 0.0
  %5670 = vmatmul.mubr.f32.gmra.mxu0 %v5597
  %v5671 = vpop.f32.mrf.mxu0
  %v5672 = vadd.f32 0.0, %v5671
  %v5673 = vpop.f32.mrf.mxu0
  %5674 = vmatprep.mubr.f32.mxu0 0.0
  %5675 = vmatmul.mubr.f32.gmra.mxu0 %v5600
  %v5676 = vpop.f32.mrf.mxu0
  %v5677 = vadd.f32 0.0, %v5676
  %v5678 = vpop.f32.mrf.mxu0
  %5679 = vdwg.mxu0
  %v5681 = vsel %vm5518, %v5588, 0
  %5683 = vmatprep.subr.mxu0 0.0
  %5684 = vmatpush1.msra.mxu0 0.0
  %5685 = vmatprep.subr.mxu0 0.0
  %5686 = vmatpush1.msra.mxu0 0.0
  %5687 = vmatprep.subr.mxu0 0.0
  %5688 = vmatpush1.msra.mxu0 0.0
  %5689 = vmatprep.subr.mxu0 0.0
  %5690 = vmatpush1.msra.mxu0 0.0
  %5691 = vmatprep.subr.mxu0 0.0
  %5692 = vmatpush1.msra.mxu0 0.0
  %5693 = vmatprep.subr.mxu0 0.0
  %5694 = vmatpush1.msra.mxu0 0.0
  %5695 = vmatprep.subr.mxu0 0.0
  %5696 = vmatpush1.msra.mxu0 0.0
  %5697 = vmatprep.subr.mxu0 0.0
  %5698 = vmatpush1.msra.mxu0 0.0
  %5699 = vmatprep.subr.mxu0 0.0
  %5700 = vmatpush1.msra.mxu0 0.0
  %5701 = vmatprep.subr.mxu0 0.0
  %5702 = vmatpush1.msra.mxu0 0.0
  %5703 = vmatprep.subr.mxu0 0.0
  %5704 = vmatpush1.msra.mxu0 0.0
  %5705 = vmatprep.subr.mxu0 0.0
  %5706 = vmatpush1.msra.mxu0 0.0
  %5707 = vmatprep.subr.mxu0 0.0
  %5708 = vmatpush1.msra.mxu0 0.0
  %5709 = vmatprep.subr.mxu0 0.0
  %5710 = vmatpush1.msra.mxu0 0.0
  %5711 = vmatprep.subr.mxu0 0.0
  %5712 = vmatpush1.msra.mxu0 0.0
  %5713 = vmatprep.subr.mxu0 0.0
  %5714 = vmatpush1.msra.mxu0 %v5681
  %5715 = vmatprep.subr.mxu0 0.0
  %5716 = vmatpush2.msra.mxu0 0.0
  %5717 = vmatprep.subr.mxu0 0.0
  %5718 = vmatpush2.msra.mxu0 0.0
  %5719 = vmatprep.subr.mxu0 0.0
  %5720 = vmatpush2.msra.mxu0 0.0
  %5721 = vmatprep.subr.mxu0 0.0
  %5722 = vmatpush2.msra.mxu0 0.0
  %5723 = vmatprep.subr.mxu0 0.0
  %5724 = vmatpush2.msra.mxu0 0.0
  %5725 = vmatprep.subr.mxu0 0.0
  %5726 = vmatpush2.msra.mxu0 0.0
  %5727 = vmatprep.subr.mxu0 0.0
  %5728 = vmatpush2.msra.mxu0 0.0
  %5729 = vmatprep.subr.mxu0 0.0
  %5730 = vmatpush2.msra.mxu0 0.0
  %5731 = vmatprep.subr.mxu0 0.0
  %5732 = vmatpush2.msra.mxu0 0.0
  %5733 = vmatprep.subr.mxu0 0.0
  %5734 = vmatpush2.msra.mxu0 0.0
  %5735 = vmatprep.subr.mxu0 0.0
  %5736 = vmatpush2.msra.mxu0 0.0
  %5737 = vmatprep.subr.mxu0 0.0
  %5738 = vmatpush2.msra.mxu0 0.0
  %5739 = vmatprep.subr.mxu0 0.0
  %5740 = vmatpush2.msra.mxu0 0.0
  %5741 = vmatprep.subr.mxu0 0.0
  %5742 = vmatpush2.msra.mxu0 0.0
  %5743 = vmatprep.subr.mxu0 0.0
  %5744 = vmatpush2.msra.mxu0 0.0
  %5745 = vmatprep.subr.mxu0 0.0
  %5746 = vmatpush2.msra.mxu0 0.0
  %5747 = vmatprep.mubr.f32.mxu0 0.0
  %5748 = vmatmul.mubr.f32.gmra.mxu0 %v5597
  %v5749 = vpop.f32.mrf.mxu0
  %v5750 = vadd.f32 %v5580, %v5749
  %v5751 = vpop.f32.mrf.mxu0
  %5752 = vmatprep.mubr.f32.mxu0 0.0
  %5753 = vmatmul.mubr.f32.gmra.mxu0 %v5600
  %v5754 = vpop.f32.mrf.mxu0
  %v5755 = vadd.f32 %v5581, %v5754
  %v5756 = vpop.f32.mrf.mxu0
  %5757 = vdwg.mxu0
  %v5758 = vld [vmem:[%s14] sm:$0xf]
  %v5759 = vld [vmem:[%s15] sm:$0xf]
  %5761 = vset.pattern.permute.xlu0 0
  %5762 = vperm.xlu0 %5761, %v5750
  %v5763 = vpop.permute.xlu0 %5762
  %5766 = vset.pattern.permute.xlu0 0
  %5767 = vperm.xlu0 %5766, %v5755
  %v5768 = vpop.permute.xlu0 %5767
  %v5771 = vsel %vm5595, %v5672, 0
  %v5774 = vsel %vm5595, %v5677, 0
  %v5777 = vsel %vm5518, %v4238, 0
  %v5780 = vsel %vm5518, %v4239, 0
  %v5783 = vsel %vm5518, %v4240, 0
  %v5786 = vsel %vm5518, %v4241, 0
  %5788 = vmatprep.subr.mxu0 0.0
  %5789 = vmatpush1.msra.mxu0 0.0
  %5790 = vmatprep.subr.mxu0 0.0
  %5791 = vmatpush1.msra.mxu0 0.0
  %5792 = vmatprep.subr.mxu0 0.0
  %5793 = vmatpush1.msra.mxu0 0.0
  %5794 = vmatprep.subr.mxu0 0.0
  %5795 = vmatpush1.msra.mxu0 0.0
  %5796 = vmatprep.subr.mxu0 0.0
  %5797 = vmatpush1.msra.mxu0 0.0
  %5798 = vmatprep.subr.mxu0 0.0
  %5799 = vmatpush1.msra.mxu0 0.0
  %5800 = vmatprep.subr.mxu0 0.0
  %5801 = vmatpush1.msra.mxu0 0.0
  %5802 = vmatprep.subr.mxu0 0.0
  %5803 = vmatpush1.msra.mxu0 0.0
  %5804 = vmatprep.subr.mxu0 0.0
  %5805 = vmatpush1.msra.mxu0 0.0
  %5806 = vmatprep.subr.mxu0 0.0
  %5807 = vmatpush1.msra.mxu0 0.0
  %5808 = vmatprep.subr.mxu0 0.0
  %5809 = vmatpush1.msra.mxu0 0.0
  %5810 = vmatprep.subr.mxu0 0.0
  %5811 = vmatpush1.msra.mxu0 0.0
  %5812 = vmatprep.subr.mxu0 0.0
  %5813 = vmatpush1.msra.mxu0 0.0
  %5814 = vmatprep.subr.mxu0 0.0
  %5815 = vmatpush1.msra.mxu0 0.0
  %5816 = vmatprep.subr.mxu0 0.0
  %5817 = vmatpush1.msra.mxu0 0.0
  %5818 = vmatprep.subr.mxu0 %v5780
  %5819 = vmatpush1.msra.mxu0 %v5777
  %5820 = vmatprep.subr.mxu0 0.0
  %5821 = vmatpush2.msra.mxu0 0.0
  %5822 = vmatprep.subr.mxu0 0.0
  %5823 = vmatpush2.msra.mxu0 0.0
  %5824 = vmatprep.subr.mxu0 0.0
  %5825 = vmatpush2.msra.mxu0 0.0
  %5826 = vmatprep.subr.mxu0 0.0
  %5827 = vmatpush2.msra.mxu0 0.0
  %5828 = vmatprep.subr.mxu0 0.0
  %5829 = vmatpush2.msra.mxu0 0.0
  %5830 = vmatprep.subr.mxu0 0.0
  %5831 = vmatpush2.msra.mxu0 0.0
  %5832 = vmatprep.subr.mxu0 0.0
  %5833 = vmatpush2.msra.mxu0 0.0
  %5834 = vmatprep.subr.mxu0 0.0
  %5835 = vmatpush2.msra.mxu0 0.0
  %5836 = vmatprep.subr.mxu0 0.0
  %5837 = vmatpush2.msra.mxu0 0.0
  %5838 = vmatprep.subr.mxu0 0.0
  %5839 = vmatpush2.msra.mxu0 0.0
  %5840 = vmatprep.subr.mxu0 0.0
  %5841 = vmatpush2.msra.mxu0 0.0
  %5842 = vmatprep.subr.mxu0 0.0
  %5843 = vmatpush2.msra.mxu0 0.0
  %5844 = vmatprep.subr.mxu0 0.0
  %5845 = vmatpush2.msra.mxu0 0.0
  %5846 = vmatprep.subr.mxu0 0.0
  %5847 = vmatpush2.msra.mxu0 0.0
  %5848 = vmatprep.subr.mxu0 0.0
  %5849 = vmatpush2.msra.mxu0 0.0
  %5850 = vmatprep.subr.mxu0 0.0
  %5851 = vmatpush2.msra.mxu0 0.0
  %5852 = vmatprep.mubr.f32.mxu0 0.0
  %5853 = vmatmul.mubr.f32.gmra.mxu0 %v5771
  %v5854 = vpop.f32.mrf.mxu0
  %v5855 = vadd.f32 %v5763, %v5854
  %v5856 = vpop.f32.mrf.mxu0
  %v5857 = vadd.f32 %v5763, %v5856
  %5858 = vmatprep.mubr.f32.mxu0 0.0
  %5859 = vmatmul.mubr.f32.gmra.mxu0 %v5774
  %v5860 = vpop.f32.mrf.mxu0
  %v5861 = vadd.f32 %v5768, %v5860
  %v5862 = vpop.f32.mrf.mxu0
  %v5863 = vadd.f32 %v5768, %v5862
  %5864 = vdwg.mxu0
  %5865 = vmatprep.subr.mxu0 0.0
  %5866 = vmatpush1.msra.mxu0 0.0
  %5867 = vmatprep.subr.mxu0 0.0
  %5868 = vmatpush1.msra.mxu0 0.0
  %5869 = vmatprep.subr.mxu0 0.0
  %5870 = vmatpush1.msra.mxu0 0.0
  %5871 = vmatprep.subr.mxu0 0.0
  %5872 = vmatpush1.msra.mxu0 0.0
  %5873 = vmatprep.subr.mxu0 0.0
  %5874 = vmatpush1.msra.mxu0 0.0
  %5875 = vmatprep.subr.mxu0 0.0
  %5876 = vmatpush1.msra.mxu0 0.0
  %5877 = vmatprep.subr.mxu0 0.0
  %5878 = vmatpush1.msra.mxu0 0.0
  %5879 = vmatprep.subr.mxu0 0.0
  %5880 = vmatpush1.msra.mxu0 0.0
  %5881 = vmatprep.subr.mxu0 0.0
  %5882 = vmatpush1.msra.mxu0 0.0
  %5883 = vmatprep.subr.mxu0 0.0
  %5884 = vmatpush1.msra.mxu0 0.0
  %5885 = vmatprep.subr.mxu0 0.0
  %5886 = vmatpush1.msra.mxu0 0.0
  %5887 = vmatprep.subr.mxu0 0.0
  %5888 = vmatpush1.msra.mxu0 0.0
  %5889 = vmatprep.subr.mxu0 0.0
  %5890 = vmatpush1.msra.mxu0 0.0
  %5891 = vmatprep.subr.mxu0 0.0
  %5892 = vmatpush1.msra.mxu0 0.0
  %5893 = vmatprep.subr.mxu0 0.0
  %5894 = vmatpush1.msra.mxu0 0.0
  %5895 = vmatprep.subr.mxu0 %v5786
  %5896 = vmatpush1.msra.mxu0 %v5783
  %5897 = vmatprep.subr.mxu0 0.0
  %5898 = vmatpush2.msra.mxu0 0.0
  %5899 = vmatprep.subr.mxu0 0.0
  %5900 = vmatpush2.msra.mxu0 0.0
  %5901 = vmatprep.subr.mxu0 0.0
  %5902 = vmatpush2.msra.mxu0 0.0
  %5903 = vmatprep.subr.mxu0 0.0
  %5904 = vmatpush2.msra.mxu0 0.0
  %5905 = vmatprep.subr.mxu0 0.0
  %5906 = vmatpush2.msra.mxu0 0.0
  %5907 = vmatprep.subr.mxu0 0.0
  %5908 = vmatpush2.msra.mxu0 0.0
  %5909 = vmatprep.subr.mxu0 0.0
  %5910 = vmatpush2.msra.mxu0 0.0
  %5911 = vmatprep.subr.mxu0 0.0
  %5912 = vmatpush2.msra.mxu0 0.0
  %5913 = vmatprep.subr.mxu0 0.0
  %5914 = vmatpush2.msra.mxu0 0.0
  %5915 = vmatprep.subr.mxu0 0.0
  %5916 = vmatpush2.msra.mxu0 0.0
  %5917 = vmatprep.subr.mxu0 0.0
  %5918 = vmatpush2.msra.mxu0 0.0
  %5919 = vmatprep.subr.mxu0 0.0
  %5920 = vmatpush2.msra.mxu0 0.0
  %5921 = vmatprep.subr.mxu0 0.0
  %5922 = vmatpush2.msra.mxu0 0.0
  %5923 = vmatprep.subr.mxu0 0.0
  %5924 = vmatpush2.msra.mxu0 0.0
  %5925 = vmatprep.subr.mxu0 0.0
  %5926 = vmatpush2.msra.mxu0 0.0
  %5927 = vmatprep.subr.mxu0 0.0
  %5928 = vmatpush2.msra.mxu0 0.0
  %5929 = vmatprep.mubr.f32.mxu0 0.0
  %5930 = vmatmul.mubr.f32.gmra.mxu0 %v5771
  %v5931 = vpop.f32.mrf.mxu0
  %v5932 = vadd.f32 %v5763, %v5931
  %v5933 = vpop.f32.mrf.mxu0
  %v5934 = vadd.f32 %v5763, %v5933
  %5935 = vmatprep.mubr.f32.mxu0 0.0
  %5936 = vmatmul.mubr.f32.gmra.mxu0 %v5774
  %v5937 = vpop.f32.mrf.mxu0
  %v5938 = vadd.f32 %v5768, %v5937
  %v5939 = vpop.f32.mrf.mxu0
  %v5940 = vadd.f32 %v5768, %v5939
  %5941 = vdwg.mxu0
  %v5942 = vmax.f32 %v5855, 0.0
  %v5943 = vmax.f32 %v5857, 0.0
  %v5944 = vmax.f32 %v5932, 0.0
  %v5945 = vmax.f32 %v5934, 0.0
  %v5946 = vmax.f32 %v5861, 0.0
  %v5947 = vmax.f32 %v5863, 0.0
  %v5948 = vmax.f32 %v5938, 0.0
  %v5949 = vmax.f32 %v5940, 0.0
  %5951 = vset.pattern.permute.xlu0 0
  %5952 = vperm.xlu0 %5951, %v5759
  %v5953 = vpop.permute.xlu0 %5952
  %vm5955 = vcmask 130048
  %v5957 = vsel %vm5955, %v5758, 0
  %5959 = vmatprep.subr.mxu0 0.0
  %5960 = vmatpush1.msra.mxu0 0.0
  %5961 = vmatprep.subr.mxu0 0.0
  %5962 = vmatpush1.msra.mxu0 0.0
  %5963 = vmatprep.subr.mxu0 0.0
  %5964 = vmatpush1.msra.mxu0 0.0
  %5965 = vmatprep.subr.mxu0 0.0
  %5966 = vmatpush1.msra.mxu0 0.0
  %5967 = vmatprep.subr.mxu0 0.0
  %5968 = vmatpush1.msra.mxu0 0.0
  %5969 = vmatprep.subr.mxu0 0.0
  %5970 = vmatpush1.msra.mxu0 0.0
  %5971 = vmatprep.subr.mxu0 0.0
  %5972 = vmatpush1.msra.mxu0 0.0
  %5973 = vmatprep.subr.mxu0 0.0
  %5974 = vmatpush1.msra.mxu0 0.0
  %5975 = vmatprep.subr.mxu0 0.0
  %5976 = vmatpush1.msra.mxu0 0.0
  %5977 = vmatprep.subr.mxu0 0.0
  %5978 = vmatpush1.msra.mxu0 0.0
  %5979 = vmatprep.subr.mxu0 0.0
  %5980 = vmatpush1.msra.mxu0 0.0
  %5981 = vmatprep.subr.mxu0 0.0
  %5982 = vmatpush1.msra.mxu0 0.0
  %5983 = vmatprep.subr.mxu0 0.0
  %5984 = vmatpush1.msra.mxu0 0.0
  %5985 = vmatprep.subr.mxu0 0.0
  %5986 = vmatpush1.msra.mxu0 0.0
  %5987 = vmatprep.subr.mxu0 %v5947
  %5988 = vmatpush1.msra.mxu0 %v5946
  %5989 = vmatprep.subr.mxu0 %v5943
  %5990 = vmatpush1.msra.mxu0 %v5942
  %5991 = vmatprep.subr.mxu0 0.0
  %5992 = vmatpush2.msra.mxu0 0.0
  %5993 = vmatprep.subr.mxu0 0.0
  %5994 = vmatpush2.msra.mxu0 0.0
  %5995 = vmatprep.subr.mxu0 0.0
  %5996 = vmatpush2.msra.mxu0 0.0
  %5997 = vmatprep.subr.mxu0 0.0
  %5998 = vmatpush2.msra.mxu0 0.0
  %5999 = vmatprep.subr.mxu0 0.0
  %6000 = vmatpush2.msra.mxu0 0.0
  %6001 = vmatprep.subr.mxu0 0.0
  %6002 = vmatpush2.msra.mxu0 0.0
  %6003 = vmatprep.subr.mxu0 0.0
  %6004 = vmatpush2.msra.mxu0 0.0
  %6005 = vmatprep.subr.mxu0 0.0
  %6006 = vmatpush2.msra.mxu0 0.0
  %6007 = vmatprep.subr.mxu0 0.0
  %6008 = vmatpush2.msra.mxu0 0.0
  %6009 = vmatprep.subr.mxu0 0.0
  %6010 = vmatpush2.msra.mxu0 0.0
  %6011 = vmatprep.subr.mxu0 0.0
  %6012 = vmatpush2.msra.mxu0 0.0
  %6013 = vmatprep.subr.mxu0 0.0
  %6014 = vmatpush2.msra.mxu0 0.0
  %6015 = vmatprep.subr.mxu0 0.0
  %6016 = vmatpush2.msra.mxu0 0.0
  %6017 = vmatprep.subr.mxu0 0.0
  %6018 = vmatpush2.msra.mxu0 0.0
  %6019 = vmatprep.subr.mxu0 0.0
  %6020 = vmatpush2.msra.mxu0 0.0
  %6021 = vmatprep.subr.mxu0 0.0
  %6022 = vmatpush2.msra.mxu0 0.0
  %6023 = vmatprep.mubr.f32.mxu0 0.0
  %6024 = vmatmul.mubr.f32.gmra.mxu0 %v5957
  %v6025 = vpop.f32.mrf.mxu0
  %v6026 = vadd.f32 %v5953, %v6025
  %v6027 = vpop.f32.mrf.mxu0
  %v6028 = vadd.f32 %v5953, %v6027
  %6029 = vdwg.mxu0
  %6030 = vmatprep.subr.mxu0 0.0
  %6031 = vmatpush1.msra.mxu0 0.0
  %6032 = vmatprep.subr.mxu0 0.0
  %6033 = vmatpush1.msra.mxu0 0.0
  %6034 = vmatprep.subr.mxu0 0.0
  %6035 = vmatpush1.msra.mxu0 0.0
  %6036 = vmatprep.subr.mxu0 0.0
  %6037 = vmatpush1.msra.mxu0 0.0
  %6038 = vmatprep.subr.mxu0 0.0
  %6039 = vmatpush1.msra.mxu0 0.0
  %6040 = vmatprep.subr.mxu0 0.0
  %6041 = vmatpush1.msra.mxu0 0.0
  %6042 = vmatprep.subr.mxu0 0.0
  %6043 = vmatpush1.msra.mxu0 0.0
  %6044 = vmatprep.subr.mxu0 0.0
  %6045 = vmatpush1.msra.mxu0 0.0
  %6046 = vmatprep.subr.mxu0 0.0
  %6047 = vmatpush1.msra.mxu0 0.0
  %6048 = vmatprep.subr.mxu0 0.0
  %6049 = vmatpush1.msra.mxu0 0.0
  %6050 = vmatprep.subr.mxu0 0.0
  %6051 = vmatpush1.msra.mxu0 0.0
  %6052 = vmatprep.subr.mxu0 0.0
  %6053 = vmatpush1.msra.mxu0 0.0
  %6054 = vmatprep.subr.mxu0 0.0
  %6055 = vmatpush1.msra.mxu0 0.0
  %6056 = vmatprep.subr.mxu0 0.0
  %6057 = vmatpush1.msra.mxu0 0.0
  %6058 = vmatprep.subr.mxu0 %v5949
  %6059 = vmatpush1.msra.mxu0 %v5948
  %6060 = vmatprep.subr.mxu0 %v5945
  %6061 = vmatpush1.msra.mxu0 %v5944
  %6062 = vmatprep.subr.mxu0 0.0
  %6063 = vmatpush2.msra.mxu0 0.0
  %6064 = vmatprep.subr.mxu0 0.0
  %6065 = vmatpush2.msra.mxu0 0.0
  %6066 = vmatprep.subr.mxu0 0.0
  %6067 = vmatpush2.msra.mxu0 0.0
  %6068 = vmatprep.subr.mxu0 0.0
  %6069 = vmatpush2.msra.mxu0 0.0
  %6070 = vmatprep.subr.mxu0 0.0
  %6071 = vmatpush2.msra.mxu0 0.0
  %6072 = vmatprep.subr.mxu0 0.0
  %6073 = vmatpush2.msra.mxu0 0.0
  %6074 = vmatprep.subr.mxu0 0.0
  %6075 = vmatpush2.msra.mxu0 0.0
  %6076 = vmatprep.subr.mxu0 0.0
  %6077 = vmatpush2.msra.mxu0 0.0
  %6078 = vmatprep.subr.mxu0 0.0
  %6079 = vmatpush2.msra.mxu0 0.0
  %6080 = vmatprep.subr.mxu0 0.0
  %6081 = vmatpush2.msra.mxu0 0.0
  %6082 = vmatprep.subr.mxu0 0.0
  %6083 = vmatpush2.msra.mxu0 0.0
  %6084 = vmatprep.subr.mxu0 0.0
  %6085 = vmatpush2.msra.mxu0 0.0
  %6086 = vmatprep.subr.mxu0 0.0
  %6087 = vmatpush2.msra.mxu0 0.0
  %6088 = vmatprep.subr.mxu0 0.0
  %6089 = vmatpush2.msra.mxu0 0.0
  %6090 = vmatprep.subr.mxu0 0.0
  %6091 = vmatpush2.msra.mxu0 0.0
  %6092 = vmatprep.subr.mxu0 0.0
  %6093 = vmatpush2.msra.mxu0 0.0
  %6094 = vmatprep.mubr.f32.mxu0 0.0
  %6095 = vmatmul.mubr.f32.gmra.mxu0 %v5957
  %v6096 = vpop.f32.mrf.mxu0
  %v6097 = vadd.f32 %v5953, %v6096
  %v6098 = vpop.f32.mrf.mxu0
  %v6099 = vadd.f32 %v5953, %v6098
  %6100 = vdwg.mxu0
  %v6105 = vcombine.low %v6026, %v6028
  %v6106 = vcombine.low %v6097, %v6099
  %6109 = vst [vmem:[%s16] sm:$0xff] %v6105
  %6110 = vst [vmem:[%s16 + $0x8] sm:$0xff] %v6106
  %v6112 = vsel %vm5518, %v5506, 0
  %v6115 = vsel %vm5518, %v5507, 0
  %v6118 = vsel %vm5518, %v5508, 0
  %v6121 = vsel %vm5518, %v5509, 0
  %6123 = vmatprep.subr.mxu0 0.0
  %6124 = vmatpush1.msra.mxu0 0.0
  %6125 = vmatprep.subr.mxu0 0.0
  %6126 = vmatpush1.msra.mxu0 0.0
  %6127 = vmatprep.subr.mxu0 0.0
  %6128 = vmatpush1.msra.mxu0 0.0
  %6129 = vmatprep.subr.mxu0 0.0
  %6130 = vmatpush1.msra.mxu0 0.0
  %6131 = vmatprep.subr.mxu0 0.0
  %6132 = vmatpush1.msra.mxu0 0.0
  %6133 = vmatprep.subr.mxu0 0.0
  %6134 = vmatpush1.msra.mxu0 0.0
  %6135 = vmatprep.subr.mxu0 0.0
  %6136 = vmatpush1.msra.mxu0 0.0
  %6137 = vmatprep.subr.mxu0 0.0
  %6138 = vmatpush1.msra.mxu0 0.0
  %6139 = vmatprep.subr.mxu0 0.0
  %6140 = vmatpush1.msra.mxu0 0.0
  %6141 = vmatprep.subr.mxu0 0.0
  %6142 = vmatpush1.msra.mxu0 0.0
  %6143 = vmatprep.subr.mxu0 0.0
  %6144 = vmatpush1.msra.mxu0 0.0
  %6145 = vmatprep.subr.mxu0 0.0
  %6146 = vmatpush1.msra.mxu0 0.0
  %6147 = vmatprep.subr.mxu0 0.0
  %6148 = vmatpush1.msra.mxu0 0.0
  %6149 = vmatprep.subr.mxu0 0.0
  %6150 = vmatpush1.msra.mxu0 0.0
  %6151 = vmatprep.subr.mxu0 0.0
  %6152 = vmatpush1.msra.mxu0 0.0
  %6153 = vmatprep.subr.mxu0 %v6115
  %6154 = vmatpush1.msra.mxu0 %v6112
  %6155 = vmatprep.subr.mxu0 0.0
  %6156 = vmatpush2.msra.mxu0 0.0
  %6157 = vmatprep.subr.mxu0 0.0
  %6158 = vmatpush2.msra.mxu0 0.0
  %6159 = vmatprep.subr.mxu0 0.0
  %6160 = vmatpush2.msra.mxu0 0.0
  %6161 = vmatprep.subr.mxu0 0.0
  %6162 = vmatpush2.msra.mxu0 0.0
  %6163 = vmatprep.subr.mxu0 0.0
  %6164 = vmatpush2.msra.mxu0 0.0
  %6165 = vmatprep.subr.mxu0 0.0
  %6166 = vmatpush2.msra.mxu0 0.0
  %6167 = vmatprep.subr.mxu0 0.0
  %6168 = vmatpush2.msra.mxu0 0.0
  %6169 = vmatprep.subr.mxu0 0.0
  %6170 = vmatpush2.msra.mxu0 0.0
  %6171 = vmatprep.subr.mxu0 0.0
  %6172 = vmatpush2.msra.mxu0 0.0
  %6173 = vmatprep.subr.mxu0 0.0
  %6174 = vmatpush2.msra.mxu0 0.0
  %6175 = vmatprep.subr.mxu0 0.0
  %6176 = vmatpush2.msra.mxu0 0.0
  %6177 = vmatprep.subr.mxu0 0.0
  %6178 = vmatpush2.msra.mxu0 0.0
  %6179 = vmatprep.subr.mxu0 0.0
  %6180 = vmatpush2.msra.mxu0 0.0
  %6181 = vmatprep.subr.mxu0 0.0
  %6182 = vmatpush2.msra.mxu0 0.0
  %6183 = vmatprep.subr.mxu0 0.0
  %6184 = vmatpush2.msra.mxu0 0.0
  %6185 = vmatprep.subr.mxu0 0.0
  %6186 = vmatpush2.msra.mxu0 0.0
  %6187 = vmatprep.mubr.f32.mxu0 0.0
  %6188 = vmatmul.mubr.f32.gmra.mxu0 %v5771
  %v6189 = vpop.f32.mrf.mxu0
  %v6190 = vadd.f32 %v5763, %v6189
  %v6191 = vpop.f32.mrf.mxu0
  %v6192 = vadd.f32 %v5763, %v6191
  %6193 = vmatprep.mubr.f32.mxu0 0.0
  %6194 = vmatmul.mubr.f32.gmra.mxu0 %v5774
  %v6195 = vpop.f32.mrf.mxu0
  %v6196 = vadd.f32 %v5768, %v6195
  %v6197 = vpop.f32.mrf.mxu0
  %v6198 = vadd.f32 %v5768, %v6197
  %6199 = vdwg.mxu0
  %6200 = vmatprep.subr.mxu0 0.0
  %6201 = vmatpush1.msra.mxu0 0.0
  %6202 = vmatprep.subr.mxu0 0.0
  %6203 = vmatpush1.msra.mxu0 0.0
  %6204 = vmatprep.subr.mxu0 0.0
  %6205 = vmatpush1.msra.mxu0 0.0
  %6206 = vmatprep.subr.mxu0 0.0
  %6207 = vmatpush1.msra.mxu0 0.0
  %6208 = vmatprep.subr.mxu0 0.0
  %6209 = vmatpush1.msra.mxu0 0.0
  %6210 = vmatprep.subr.mxu0 0.0
  %6211 = vmatpush1.msra.mxu0 0.0
  %6212 = vmatprep.subr.mxu0 0.0
  %6213 = vmatpush1.msra.mxu0 0.0
  %6214 = vmatprep.subr.mxu0 0.0
  %6215 = vmatpush1.msra.mxu0 0.0
  %6216 = vmatprep.subr.mxu0 0.0
  %6217 = vmatpush1.msra.mxu0 0.0
  %6218 = vmatprep.subr.mxu0 0.0
  %6219 = vmatpush1.msra.mxu0 0.0
  %6220 = vmatprep.subr.mxu0 0.0
  %6221 = vmatpush1.msra.mxu0 0.0
  %6222 = vmatprep.subr.mxu0 0.0
  %6223 = vmatpush1.msra.mxu0 0.0
  %6224 = vmatprep.subr.mxu0 0.0
  %6225 = vmatpush1.msra.mxu0 0.0
  %6226 = vmatprep.subr.mxu0 0.0
  %6227 = vmatpush1.msra.mxu0 0.0
  %6228 = vmatprep.subr.mxu0 0.0
  %6229 = vmatpush1.msra.mxu0 0.0
  %6230 = vmatprep.subr.mxu0 %v6121
  %6231 = vmatpush1.msra.mxu0 %v6118
  %6232 = vmatprep.subr.mxu0 0.0
  %6233 = vmatpush2.msra.mxu0 0.0
  %6234 = vmatprep.subr.mxu0 0.0
  %6235 = vmatpush2.msra.mxu0 0.0
  %6236 = vmatprep.subr.mxu0 0.0
  %6237 = vmatpush2.msra.mxu0 0.0
  %6238 = vmatprep.subr.mxu0 0.0
  %6239 = vmatpush2.msra.mxu0 0.0
  %6240 = vmatprep.subr.mxu0 0.0
  %6241 = vmatpush2.msra.mxu0 0.0
  %6242 = vmatprep.subr.mxu0 0.0
  %6243 = vmatpush2.msra.mxu0 0.0
  %6244 = vmatprep.subr.mxu0 0.0
  %6245 = vmatpush2.msra.mxu0 0.0
  %6246 = vmatprep.subr.mxu0 0.0
  %6247 = vmatpush2.msra.mxu0 0.0
  %6248 = vmatprep.subr.mxu0 0.0
  %6249 = vmatpush2.msra.mxu0 0.0
  %6250 = vmatprep.subr.mxu0 0.0
  %6251 = vmatpush2.msra.mxu0 0.0
  %6252 = vmatprep.subr.mxu0 0.0
  %6253 = vmatpush2.msra.mxu0 0.0
  %6254 = vmatprep.subr.mxu0 0.0
  %6255 = vmatpush2.msra.mxu0 0.0
  %6256 = vmatprep.subr.mxu0 0.0
  %6257 = vmatpush2.msra.mxu0 0.0
  %6258 = vmatprep.subr.mxu0 0.0
  %6259 = vmatpush2.msra.mxu0 0.0
  %6260 = vmatprep.subr.mxu0 0.0
  %6261 = vmatpush2.msra.mxu0 0.0
  %6262 = vmatprep.subr.mxu0 0.0
  %6263 = vmatpush2.msra.mxu0 0.0
  %6264 = vmatprep.mubr.f32.mxu0 0.0
  %6265 = vmatmul.mubr.f32.gmra.mxu0 %v5771
  %v6266 = vpop.f32.mrf.mxu0
  %v6267 = vadd.f32 %v5763, %v6266
  %v6268 = vpop.f32.mrf.mxu0
  %v6269 = vadd.f32 %v5763, %v6268
  %6270 = vmatprep.mubr.f32.mxu0 0.0
  %6271 = vmatmul.mubr.f32.gmra.mxu0 %v5774
  %v6272 = vpop.f32.mrf.mxu0
  %v6273 = vadd.f32 %v5768, %v6272
  %v6274 = vpop.f32.mrf.mxu0
  %v6275 = vadd.f32 %v5768, %v6274
  %6276 = vdwg.mxu0
  %v6277 = vmax.f32 %v6190, 0.0
  %v6278 = vmax.f32 %v6192, 0.0
  %v6279 = vmax.f32 %v6267, 0.0
  %v6280 = vmax.f32 %v6269, 0.0
  %v6281 = vmax.f32 %v6196, 0.0
  %v6282 = vmax.f32 %v6198, 0.0
  %v6283 = vmax.f32 %v6273, 0.0
  %v6284 = vmax.f32 %v6275, 0.0
  %6285 = vmatprep.subr.mxu0 0.0
  %6286 = vmatpush1.msra.mxu0 0.0
  %6287 = vmatprep.subr.mxu0 0.0
  %6288 = vmatpush1.msra.mxu0 0.0
  %6289 = vmatprep.subr.mxu0 0.0
  %6290 = vmatpush1.msra.mxu0 0.0
  %6291 = vmatprep.subr.mxu0 0.0
  %6292 = vmatpush1.msra.mxu0 0.0
  %6293 = vmatprep.subr.mxu0 0.0
  %6294 = vmatpush1.msra.mxu0 0.0
  %6295 = vmatprep.subr.mxu0 0.0
  %6296 = vmatpush1.msra.mxu0 0.0
  %6297 = vmatprep.subr.mxu0 0.0
  %6298 = vmatpush1.msra.mxu0 0.0
  %6299 = vmatprep.subr.mxu0 0.0
  %6300 = vmatpush1.msra.mxu0 0.0
  %6301 = vmatprep.subr.mxu0 0.0
  %6302 = vmatpush1.msra.mxu0 0.0
  %6303 = vmatprep.subr.mxu0 0.0
  %6304 = vmatpush1.msra.mxu0 0.0
  %6305 = vmatprep.subr.mxu0 0.0
  %6306 = vmatpush1.msra.mxu0 0.0
  %6307 = vmatprep.subr.mxu0 0.0
  %6308 = vmatpush1.msra.mxu0 0.0
  %6309 = vmatprep.subr.mxu0 0.0
  %6310 = vmatpush1.msra.mxu0 0.0
  %6311 = vmatprep.subr.mxu0 0.0
  %6312 = vmatpush1.msra.mxu0 0.0
  %6313 = vmatprep.subr.mxu0 %v6282
  %6314 = vmatpush1.msra.mxu0 %v6281
  %6315 = vmatprep.subr.mxu0 %v6278
  %6316 = vmatpush1.msra.mxu0 %v6277
  %6317 = vmatprep.subr.mxu0 0.0
  %6318 = vmatpush2.msra.mxu0 0.0
  %6319 = vmatprep.subr.mxu0 0.0
  %6320 = vmatpush2.msra.mxu0 0.0
  %6321 = vmatprep.subr.mxu0 0.0
  %6322 = vmatpush2.msra.mxu0 0.0
  %6323 = vmatprep.subr.mxu0 0.0
  %6324 = vmatpush2.msra.mxu0 0.0
  %6325 = vmatprep.subr.mxu0 0.0
  %6326 = vmatpush2.msra.mxu0 0.0
  %6327 = vmatprep.subr.mxu0 0.0
  %6328 = vmatpush2.msra.mxu0 0.0
  %6329 = vmatprep.subr.mxu0 0.0
  %6330 = vmatpush2.msra.mxu0 0.0
  %6331 = vmatprep.subr.mxu0 0.0
  %6332 = vmatpush2.msra.mxu0 0.0
  %6333 = vmatprep.subr.mxu0 0.0
  %6334 = vmatpush2.msra.mxu0 0.0
  %6335 = vmatprep.subr.mxu0 0.0
  %6336 = vmatpush2.msra.mxu0 0.0
  %6337 = vmatprep.subr.mxu0 0.0
  %6338 = vmatpush2.msra.mxu0 0.0
  %6339 = vmatprep.subr.mxu0 0.0
  %6340 = vmatpush2.msra.mxu0 0.0
  %6341 = vmatprep.subr.mxu0 0.0
  %6342 = vmatpush2.msra.mxu0 0.0
  %6343 = vmatprep.subr.mxu0 0.0
  %6344 = vmatpush2.msra.mxu0 0.0
  %6345 = vmatprep.subr.mxu0 0.0
  %6346 = vmatpush2.msra.mxu0 0.0
  %6347 = vmatprep.subr.mxu0 0.0
  %6348 = vmatpush2.msra.mxu0 0.0
  %6349 = vmatprep.mubr.f32.mxu0 0.0
  %6350 = vmatmul.mubr.f32.gmra.mxu0 %v5957
  %v6351 = vpop.f32.mrf.mxu0
  %v6352 = vadd.f32 %v5953, %v6351
  %v6353 = vpop.f32.mrf.mxu0
  %v6354 = vadd.f32 %v5953, %v6353
  %6355 = vdwg.mxu0
  %6356 = vmatprep.subr.mxu0 0.0
  %6357 = vmatpush1.msra.mxu0 0.0
  %6358 = vmatprep.subr.mxu0 0.0
  %6359 = vmatpush1.msra.mxu0 0.0
  %6360 = vmatprep.subr.mxu0 0.0
  %6361 = vmatpush1.msra.mxu0 0.0
  %6362 = vmatprep.subr.mxu0 0.0
  %6363 = vmatpush1.msra.mxu0 0.0
  %6364 = vmatprep.subr.mxu0 0.0
  %6365 = vmatpush1.msra.mxu0 0.0
  %6366 = vmatprep.subr.mxu0 0.0
  %6367 = vmatpush1.msra.mxu0 0.0
  %6368 = vmatprep.subr.mxu0 0.0
  %6369 = vmatpush1.msra.mxu0 0.0
  %6370 = vmatprep.subr.mxu0 0.0
  %6371 = vmatpush1.msra.mxu0 0.0
  %6372 = vmatprep.subr.mxu0 0.0
  %6373 = vmatpush1.msra.mxu0 0.0
  %6374 = vmatprep.subr.mxu0 0.0
  %6375 = vmatpush1.msra.mxu0 0.0
  %6376 = vmatprep.subr.mxu0 0.0
  %6377 = vmatpush1.msra.mxu0 0.0
  %6378 = vmatprep.subr.mxu0 0.0
  %6379 = vmatpush1.msra.mxu0 0.0
  %6380 = vmatprep.subr.mxu0 0.0
  %6381 = vmatpush1.msra.mxu0 0.0
  %6382 = vmatprep.subr.mxu0 0.0
  %6383 = vmatpush1.msra.mxu0 0.0
  %6384 = vmatprep.subr.mxu0 %v6284
  %6385 = vmatpush1.msra.mxu0 %v6283
  %6386 = vmatprep.subr.mxu0 %v6280
  %6387 = vmatpush1.msra.mxu0 %v6279
  %6388 = vmatprep.subr.mxu0 0.0
  %6389 = vmatpush2.msra.mxu0 0.0
  %6390 = vmatprep.subr.mxu0 0.0
  %6391 = vmatpush2.msra.mxu0 0.0
  %6392 = vmatprep.subr.mxu0 0.0
  %6393 = vmatpush2.msra.mxu0 0.0
  %6394 = vmatprep.subr.mxu0 0.0
  %6395 = vmatpush2.msra.mxu0 0.0
  %6396 = vmatprep.subr.mxu0 0.0
  %6397 = vmatpush2.msra.mxu0 0.0
  %6398 = vmatprep.subr.mxu0 0.0
  %6399 = vmatpush2.msra.mxu0 0.0
  %6400 = vmatprep.subr.mxu0 0.0
  %6401 = vmatpush2.msra.mxu0 0.0
  %6402 = vmatprep.subr.mxu0 0.0
  %6403 = vmatpush2.msra.mxu0 0.0
  %6404 = vmatprep.subr.mxu0 0.0
  %6405 = vmatpush2.msra.mxu0 0.0
  %6406 = vmatprep.subr.mxu0 0.0
  %6407 = vmatpush2.msra.mxu0 0.0
  %6408 = vmatprep.subr.mxu0 0.0
  %6409 = vmatpush2.msra.mxu0 0.0
  %6410 = vmatprep.subr.mxu0 0.0
  %6411 = vmatpush2.msra.mxu0 0.0
  %6412 = vmatprep.subr.mxu0 0.0
  %6413 = vmatpush2.msra.mxu0 0.0
  %6414 = vmatprep.subr.mxu0 0.0
  %6415 = vmatpush2.msra.mxu0 0.0
  %6416 = vmatprep.subr.mxu0 0.0
  %6417 = vmatpush2.msra.mxu0 0.0
  %6418 = vmatprep.subr.mxu0 0.0
  %6419 = vmatpush2.msra.mxu0 0.0
  %6420 = vmatprep.mubr.f32.mxu0 0.0
  %6421 = vmatmul.mubr.f32.gmra.mxu0 %v5957
  %v6422 = vpop.f32.mrf.mxu0
  %v6423 = vadd.f32 %v5953, %v6422
  %v6424 = vpop.f32.mrf.mxu0
  %v6425 = vadd.f32 %v5953, %v6424
  %6426 = vdwg.mxu0
  %v6431 = vcombine.low %v6352, %v6354
  %v6432 = vcombine.low %v6423, %v6425
  %s6435 = scalar_lea.vmem %s16, 16
  %6436 = vst [vmem:[%s6435] sm:$0xff] %v6431
  %6437 = vst [vmem:[%s6435 + $0x8] sm:$0xff] %v6432
  // Predicated region
  $region66: #{decoder_block_forward.1} parent=0 // pred_check
    _
  $region67: #{decoder_block_forward.1} parent=0 // pred_check_branch
    %6439 = sbr.rel (0) target = $region69
  $region68: #{decoder_block_forward.1} parent=0 // pred_region
    _
  $region69: #{decoder_block_forward.1} parent=0 // pred_fallthru
    _
  // Predicated region
  $region70: #{decoder_block_forward.1} parent=0 // pred_check
    _
  $region71: #{decoder_block_forward.1} parent=0 // pred_check_branch
    %6441 = sbr.rel (0) target = $region73
  $region72: #{decoder_block_forward.1} parent=0 // pred_region
    _
  $region73: #{decoder_block_forward.1} parent=0 // pred_fallthru
    _

</llo_original>
